<compile_context>
chip_gen: v7x
topology: tpu7x:2x2x1
jax: 0.10.0
libtpu: 0.0.40
codegen_flags: <defaults>
</compile_context>

<pallas_src>
import functools

import jax
import jax.numpy as jnp
import numpy as np
from jax.experimental import pallas as pl
from jax.experimental.pallas import tpu as pltpu


# --------------------------------------------------------------------------- #
# Kernel
# --------------------------------------------------------------------------- #
def _ggnn_kernel(
    a_in_ref,     # (M, M)      matmul_dtype  block-diagonal in-adjacency
    a_out_ref,    # (M, M)      matmul_dtype  block-diagonal out-adjacency
    h_ref,        # (M, Hp)     float32       flattened (padded) hidden block
    w_ein_ref,    # (Hp, Hp)    matmul_dtype  linear_edge_in.weight.T  (padded)
    w_eout_ref,   # (Hp, Hp)    matmul_dtype  linear_edge_out.weight.T (padded)
    w_ih_in_ref,  # (Hp, 3Hp)   matmul_dtype  w_ih.T rows acting on nb_in
    w_ih_out_ref, # (Hp, 3Hp)   matmul_dtype  w_ih.T rows acting on nb_out
    w_hh_ref,     # (Hp, 3Hp)   matmul_dtype  w_hh.T
    b_ein_ref,    # (1, Hp)     float32
    b_eout_ref,   # (1, Hp)     float32
    b_iah_ref,    # (1, Hp)     float32
    b_oah_ref,    # (1, Hp)     float32
    b_ih_ref,     # (1, 3Hp)    float32
    b_hh_ref,     # (1, 3Hp)    float32
    out_ref,      # (M, Hp)     float32
    *,
    step: int,
    hidden_pad: int,
    matmul_dtype,
):
    f32 = jnp.float32
    md = matmul_dtype
    Hp = hidden_pad

    # Loaded once per grid block; resident in VMEM for every GGNN step (the
    # recurrence never touches HBM until the final store).
    a_in = a_in_ref[...]
    a_out = a_out_ref[...]
    w_ein = w_ein_ref[...]
    w_eout = w_eout_ref[...]
    w_ih_in = w_ih_in_ref[...]
    w_ih_out = w_ih_out_ref[...]
    w_hh = w_hh_ref[...]
    b_ein = b_ein_ref[...]
    b_eout = b_eout_ref[...]
    b_iah = b_iah_ref[...]
    b_oah = b_oah_ref[...]
    b_ih = b_ih_ref[...]
    b_hh = b_hh_ref[...]

    def cell(h):
        h_md = h.astype(md)

        # Edge linears on the whole flattened (M, Hp) block (large MXU M dim).
        edge_in = jnp.dot(h_md, w_ein, preferred_element_type=f32) + b_ein
        edge_out = jnp.dot(h_md, w_eout, preferred_element_type=f32) + b_eout

        # Neighbor aggregation: one (M,M) x (M,Hp) dot per direction thanks to
        # the block-diagonal adjacency (exactly equals the per-graph matmuls).
        nb_in = jnp.dot(a_in, edge_in.astype(md), preferred_element_type=f32) + b_iah
        nb_out = jnp.dot(a_out, edge_out.astype(md), preferred_element_type=f32) + b_oah

        # GRU gates: 3 wide, lane-aligned dots (gate weights fused into 3Hp
        # columns; no concat of [nb_in, nb_out], no non-128-aligned slicing).
        g_i = (jnp.dot(nb_in.astype(md), w_ih_in, preferred_element_type=f32)
               + jnp.dot(nb_out.astype(md), w_ih_out, preferred_element_type=f32)
               + b_ih)
        g_h = jnp.dot(h_md, w_hh, preferred_element_type=f32) + b_hh

        i_r, i_u, i_c = g_i[:, :Hp], g_i[:, Hp:2 * Hp], g_i[:, 2 * Hp:]
        h_r, h_u, h_c = g_h[:, :Hp], g_h[:, Hp:2 * Hp], g_h[:, 2 * Hp:]

        reset_gate = jax.nn.sigmoid(i_r + h_r)
        update_gate = jax.nn.sigmoid(i_u + h_u)
        candidate = jnp.tanh(i_c + reset_gate * h_c)
        # PyTorch module: new_hidden = (1 - update) * pre_hidden + update * cand
        return (1.0 - update_gate) * h + update_gate * candidate

    h0 = h_ref[...]
    # fori_loop bounds the live carry to just `h`; fully unrolled for small
    # static step counts so the LLO scheduler still sees the whole recurrence.
    h_final = jax.lax.fori_loop(0, step, lambda _, h: cell(h), h0,
                                unroll=(step <= 4))
    out_ref[...] = h_final


# --------------------------------------------------------------------------- #
# Wrapper-side parameter / input preparation
# --------------------------------------------------------------------------- #
def prepare_ggnn_params(params, hidden_size, hidden_pad, matmul_dtype):
    """PyTorch-layout GGNN parameters -> padded, pre-transposed kernel layout."""
    H, Hp = hidden_size, hidden_pad
    f32 = jnp.float32
    md = matmul_dtype

    def pad_sq(w_t):                       # (H, H) -> (Hp, Hp)
        return jnp.pad(w_t, ((0, Hp - H), (0, Hp - H)))

    def pad_gate_w(w_t):                   # (H, 3H) -> (Hp, 3Hp), per-gate pad
        w3 = w_t.reshape(H, 3, H)
        w3 = jnp.pad(w3, ((0, Hp - H), (0, 0), (0, Hp - H)))
        return w3.reshape(Hp, 3 * Hp)

    def pad_vec(b):                        # (H,) -> (1, Hp)
        return jnp.pad(jnp.asarray(b, f32), (0, Hp - H)).reshape(1, Hp)

    def pad_gate_b(b):                     # (3H,) -> (1, 3Hp)
        b3 = jnp.asarray(b, f32).reshape(3, H)
        b3 = jnp.pad(b3, ((0, 0), (0, Hp - H)))
        return b3.reshape(1, 3 * Hp)

    w_ih_T = jnp.asarray(params["w_ih"], f32).T    # (2H, 3H)
    w_hh_T = jnp.asarray(params["w_hh"], f32).T    # (H, 3H)

    return {
        "w_edge_in": pad_sq(jnp.asarray(params["w_edge_in"], f32).T).astype(md),
        "w_edge_out": pad_sq(jnp.asarray(params["w_edge_out"], f32).T).astype(md),
        "w_ih_in": pad_gate_w(w_ih_T[:H]).astype(md),    # acts on nb_in
        "w_ih_out": pad_gate_w(w_ih_T[H:]).astype(md),   # acts on nb_out
        "w_hh": pad_gate_w(w_hh_T).astype(md),           # acts on hidden
        "b_edge_in": pad_vec(params["b_edge_in"]),
        "b_edge_out": pad_vec(params["b_edge_out"]),
        "b_iah": pad_vec(params["b_iah"]),
        "b_oah": pad_vec(params["b_oah"]),
        "b_ih": pad_gate_b(params["b_ih"]),
        "b_hh": pad_gate_b(params["b_hh"]),
    }
    # NOTE: linear_edge_f exists in the PyTorch module but is unused in forward.


def _block_diag_adjacency(a_side, batch_block, dtype):
    """(B, N, N) per-graph adjacency -> (B*N, Bb*N) block-diagonal-per-block."""
    B, N, _ = a_side.shape
    g = B // batch_block
    blocks = a_side.reshape(g, batch_block, N, N)
    eye = jnp.eye(batch_block, dtype=a_side.dtype)
    bd = jnp.einsum("gbij,bc->gbicj", blocks, eye)
    return bd.reshape(g * batch_block * N, batch_block * N).astype(dtype)


def _vmem_limit_bytes():
    """Generation-aware scoped-VMEM budget (~100 MiB v5e/v6e, <=48 MiB v7x)."""
    phys = None
    try:
        info = pltpu.get_tpu_info()
        phys = int(getattr(info, "vmem_capacity_bytes", 0)) or None
    except Exception:
        phys = None
    if phys is None:
        try:
            kind = jax.devices()[0].device_kind.lower()
        except Exception:
            kind = ""
        phys = 128 * 1024 * 1024 if ("v5" in kind or "v6" in kind) else 64 * 1024 * 1024
    return min(phys - 16 * 1024 * 1024, 100 * 1024 * 1024)


def _choose_batch_block(B, N, Hp, mxu_bytes, vmem_limit):
    """Pick Bb (graphs per grid block) from the VMEM budget + MXU targets."""
    budget = int(vmem_limit * 0.7)   # headroom for compiler-internal scratch

    def vmem_needed(bb):
        M = bb * N
        a_bytes = 2 * M * M * mxu_bytes                      # A_in + A_out blocks
        io_bytes = 2 * M * Hp * 4                            # hidden in + out
        w_bytes = (2 * Hp * Hp + 3 * Hp * 3 * Hp) * mxu_bytes
        b_bytes = (4 * Hp + 6 * Hp) * 4
        tmp_bytes = 15 * M * Hp * 4                          # live f32 temporaries
        return 2 * (a_bytes + io_bytes + w_bytes + b_bytes) + tmp_bytes

    divisors = [d for d in range(1, B + 1) if B % d == 0]
    feasible = [d for d in divisors
                if ((d * N) % 8 == 0 or d == B)      # tile-aligned block rows
                and d * N <= 4096                    # bound block-diag blowup
                and vmem_needed(d) <= budget]
    if not feasible:
        aligned = [d for d in divisors if (d * N) % 8 == 0 or d == B] or [B]
        return min(aligned)

    def score(d):
        blocks = B // d
        return (1 if d * N >= 256 else 0,            # fill MXU rows
                1 if blocks % 2 == 0 else 0,         # even block count (v7x 2 TCs)
                d)                                   # then biggest block
    return max(feasible, key=score)


# --------------------------------------------------------------------------- #
# Public forward
# --------------------------------------------------------------------------- #
def ggnn_forward_pallas(A, hidden, params, step=1, matmul_dtype=jnp.bfloat16,
                        batch_block=None):
    """GGNN.forward: A [B,N,2N], hidden [B,N,H] -> new hidden [B,N,H]."""
    B, N, twoN = A.shape
    H = hidden.shape[-1]
    assert twoN == 2 * N
    md = jnp.dtype(matmul_dtype)
    Hp = max(128, ((H + 127) // 128) * 128)          # lane-dense hidden width

    vmem_limit = _vmem_limit_bytes()
    Bb = batch_block or _choose_batch_block(B, N, Hp, md.itemsize, vmem_limit)
    Bb = max(1, min(Bb, B))
    while B % Bb:
        Bb -= 1
    if (B // Bb) > 1 and (Bb * N) % 8 != 0:
        Bb = B                                       # keep block rows tile-aligned
    num_blocks = B // Bb
    M = Bb * N

    kp = prepare_ggnn_params(params, H, Hp, md)

    # Block-diagonal adjacency (per direction) and padded, flattened hidden.
    A_f32 = jnp.asarray(A, jnp.float32)
    a_in_bd = _block_diag_adjacency(A_f32[:, :, :N], Bb, md)
    a_out_bd = _block_diag_adjacency(A_f32[:, :, N:2 * N], Bb, md)
    h_flat = jnp.asarray(hidden, jnp.float32).reshape(B * N, H)
    if Hp != H:
        h_flat = jnp.pad(h_flat, ((0, 0), (0, Hp - H)))

    kernel = functools.partial(_ggnn_kernel, step=step, hidden_pad=Hp,
                               matmul_dtype=md)

    def rep(shape):  # full-array block, replicated across the batch grid
        return pl.BlockSpec(shape, lambda b, _n=len(shape): (0,) * _n)

    grid_spec = pltpu.PrefetchScalarGridSpec(
        num_scalar_prefetch=0,
        grid=(num_blocks,),
        in_specs=[
            pl.BlockSpec((M, M), lambda b: (b, 0)),    # block-diag A_in
            pl.BlockSpec((M, M), lambda b: (b, 0)),    # block-diag A_out
            pl.BlockSpec((M, Hp), lambda b: (b, 0)),   # hidden (flattened, padded)
            rep((Hp, Hp)), rep((Hp, Hp)),              # edge weights
            rep((Hp, 3 * Hp)), rep((Hp, 3 * Hp)), rep((Hp, 3 * Hp)),  # gate weights
            rep((1, Hp)), rep((1, Hp)), rep((1, Hp)), rep((1, Hp)),   # edge/agg biases
            rep((1, 3 * Hp)), rep((1, 3 * Hp)),        # gate biases
        ],
        out_specs=pl.BlockSpec((M, Hp), lambda b: (b, 0)),
    )

    out_flat = pl.pallas_call(
        kernel,
        out_shape=jax.ShapeDtypeStruct((B * N, Hp), jnp.float32),
        grid_spec=grid_spec,
        input_output_aliases={2: 0},                   # hidden buffer -> output buffer
        compiler_params=pltpu.CompilerParams(
            dimension_semantics=("parallel",),
            vmem_limit_bytes=int(vmem_limit),
        ),
    )(
        a_in_bd, a_out_bd, h_flat,
        kp["w_edge_in"], kp["w_edge_out"],
        kp["w_ih_in"], kp["w_ih_out"], kp["w_hh"],
        kp["b_edge_in"], kp["b_edge_out"], kp["b_iah"], kp["b_oah"],
        kp["b_ih"], kp["b_hh"],
    )
    return out_flat[:, :H].reshape(B, N, H).astype(hidden.dtype)


# ---------------- pure-JAX reference (mirrors the PyTorch module) ---------------- #
def ggnn_forward_ref(A, hidden, params, step=1):
    N = A.shape[1]
    for _ in range(step):
        ei = hidden @ params["w_edge_in"].T + params["b_edge_in"]
        eo = hidden @ params["w_edge_out"].T + params["b_edge_out"]
        nb_in = jnp.matmul(A[:, :, :N], ei) + params["b_iah"]
        nb_out = jnp.matmul(A[:, :, N:2 * N], eo) + params["b_oah"]
        nb = jnp.concatenate([nb_in, nb_out], axis=2)
        g_i = nb @ params["w_ih"].T + params["b_ih"]
        g_h = hidden @ params["w_hh"].T + params["b_hh"]
        i_r, i_u, i_c = jnp.split(g_i, 3, axis=2)
        h_r, h_u, h_c = jnp.split(g_h, 3, axis=2)
        r = jax.nn.sigmoid(i_r + h_r)
        u = jax.nn.sigmoid(i_u + h_u)
        c = jnp.tanh(i_c + r * h_c)
        hidden = (1.0 - u) * hidden + u * c
    return hidden


def make_params(key, hidden_size):
    """Parameters in PyTorch layout (nn.Linear weight is [out, in])."""
    H = hidden_size
    ks = jax.random.split(key, 10)
    s = 0.1
    return {
        "w_ih": s * jax.random.normal(ks[0], (3 * H, 2 * H), jnp.float32),
        "w_hh": s * jax.random.normal(ks[1], (3 * H, H), jnp.float32),
        "b_ih": s * jax.random.normal(ks[2], (3 * H,), jnp.float32),
        "b_hh": s * jax.random.normal(ks[3], (3 * H,), jnp.float32),
        "b_iah": s * jax.random.normal(ks[4], (H,), jnp.float32),
        "b_oah": s * jax.random.normal(ks[5], (H,), jnp.float32),
        "w_edge_in": s * jax.random.normal(ks[6], (H, H), jnp.float32),
        "b_edge_in": s * jax.random.normal(ks[7], (H,), jnp.float32),
        "w_edge_out": s * jax.random.normal(ks[8], (H, H), jnp.float32),
        "b_edge_out": s * jax.random.normal(ks[9], (H,), jnp.float32),
    }


if __name__ == "__main__":
    B, N, H, STEP = 16, 16, 32, 2

    key = jax.random.PRNGKey(0)
    k_a, k_h, k_p = jax.random.split(key, 3)

    # Adjacency-like matrices (non-negative, row-normalized-ish) and node embeddings.
    A_raw = jax.random.uniform(k_a, (B, N, 2 * N), jnp.float32)
    A = A_raw / (jnp.sum(A_raw, axis=-1, keepdims=True) + 1e-6)
    hidden = jax.random.normal(k_h, (B, N, H), jnp.float32)
    params = make_params(k_p, H)

    ref = ggnn_forward_ref(A, hidden, params, step=STEP)

    # Exact-semantics f32 matmul path (tight tolerance).
    out_f32 = jax.block_until_ready(
        ggnn_forward_pallas(A, hidden, params, step=STEP,
                            matmul_dtype=jnp.float32))
    np.testing.assert_allclose(np.asarray(out_f32), np.asarray(ref),
                               rtol=2e-4, atol=1e-4)

    # Default path: bf16 matmul operands, f32 accumulate / GRU math / carry.
    out_bf16 = jax.block_until_ready(
        ggnn_forward_pallas(A, hidden, params, step=STEP))
    np.testing.assert_allclose(np.asarray(out_bf16), np.asarray(ref),
                               rtol=5e-2, atol=5e-2)

    print("KERNEL_OK")
</pallas_src>

<mosaic_0001>
module attributes {stable_mosaic.version = 11 : i64} {
  func.func @_ggnn_kernel(%arg0: i32, %arg1: memref<256x256xf32, #tpu.memory_space<vmem>>, %arg2: memref<256x256xf32, #tpu.memory_space<vmem>>, %arg3: memref<256x128xf32, #tpu.memory_space<vmem>>, %arg4: memref<128x128xf32, #tpu.memory_space<vmem>>, %arg5: memref<128x128xf32, #tpu.memory_space<vmem>>, %arg6: memref<128x384xf32, #tpu.memory_space<vmem>>, %arg7: memref<128x384xf32, #tpu.memory_space<vmem>>, %arg8: memref<128x384xf32, #tpu.memory_space<vmem>>, %arg9: memref<1x128xf32, #tpu.memory_space<vmem>>, %arg10: memref<1x128xf32, #tpu.memory_space<vmem>>, %arg11: memref<1x128xf32, #tpu.memory_space<vmem>>, %arg12: memref<1x128xf32, #tpu.memory_space<vmem>>, %arg13: memref<1x384xf32, #tpu.memory_space<vmem>>, %arg14: memref<1x384xf32, #tpu.memory_space<vmem>>, %arg15: memref<256x128xf32, #tpu.memory_space<vmem>>) attributes {dimension_semantics = [#tpu.dimension_semantics<parallel>], iteration_bounds = array<i64: 1>, scalar_prefetch = 0 : i64, scratch_operands = 0 : i64, tpu.core_type = #tpu.core_type<tc>, window_params = [{transform_indices = @transform_0, window_bounds = array<i64: 256, 256>}, {transform_indices = @transform_1, window_bounds = array<i64: 256, 256>}, {transform_indices = @transform_2, window_bounds = array<i64: 256, 128>}, {pipeline_mode = #tpu.pipeline_mode<synchronous>, transform_indices = @transform_3, window_bounds = array<i64: 128, 128>}, {pipeline_mode = #tpu.pipeline_mode<synchronous>, transform_indices = @transform_4, window_bounds = array<i64: 128, 128>}, {pipeline_mode = #tpu.pipeline_mode<synchronous>, transform_indices = @transform_5, window_bounds = array<i64: 128, 384>}, {pipeline_mode = #tpu.pipeline_mode<synchronous>, transform_indices = @transform_6, window_bounds = array<i64: 128, 384>}, {pipeline_mode = #tpu.pipeline_mode<synchronous>, transform_indices = @transform_7, window_bounds = array<i64: 128, 384>}, {pipeline_mode = #tpu.pipeline_mode<synchronous>, transform_indices = @transform_8, window_bounds = array<i64: 1, 128>}, {pipeline_mode = #tpu.pipeline_mode<synchronous>, transform_indices = @transform_9, window_bounds = array<i64: 1, 128>}, {pipeline_mode = #tpu.pipeline_mode<synchronous>, transform_indices = @transform_10, window_bounds = array<i64: 1, 128>}, {pipeline_mode = #tpu.pipeline_mode<synchronous>, transform_indices = @transform_11, window_bounds = array<i64: 1, 128>}, {pipeline_mode = #tpu.pipeline_mode<synchronous>, transform_indices = @transform_12, window_bounds = array<i64: 1, 384>}, {pipeline_mode = #tpu.pipeline_mode<synchronous>, transform_indices = @transform_13, window_bounds = array<i64: 1, 384>}, {transform_indices = @transform_14, window_bounds = array<i64: 256, 128>}]} {
    %c0 = arith.constant 0 : index
    %c0_0 = arith.constant 0 : index
    %0 = vector.load %arg1[%c0, %c0_0] : memref<256x256xf32, #tpu.memory_space<vmem>>, vector<256x256xf32>
    %c0_1 = arith.constant 0 : index
    %c0_2 = arith.constant 0 : index
    %1 = vector.load %arg2[%c0_1, %c0_2] : memref<256x256xf32, #tpu.memory_space<vmem>>, vector<256x256xf32>
    %c0_3 = arith.constant 0 : index
    %c0_4 = arith.constant 0 : index
    %2 = vector.load %arg4[%c0_3, %c0_4] : memref<128x128xf32, #tpu.memory_space<vmem>>, vector<128x128xf32>
    %c0_5 = arith.constant 0 : index
    %c0_6 = arith.constant 0 : index
    %3 = vector.load %arg5[%c0_5, %c0_6] : memref<128x128xf32, #tpu.memory_space<vmem>>, vector<128x128xf32>
    %c0_7 = arith.constant 0 : index
    %c0_8 = arith.constant 0 : index
    %4 = vector.load %arg6[%c0_7, %c0_8] : memref<128x384xf32, #tpu.memory_space<vmem>>, vector<128x384xf32>
    %c0_9 = arith.constant 0 : index
    %c0_10 = arith.constant 0 : index
    %5 = vector.load %arg7[%c0_9, %c0_10] : memref<128x384xf32, #tpu.memory_space<vmem>>, vector<128x384xf32>
    %c0_11 = arith.constant 0 : index
    %c0_12 = arith.constant 0 : index
    %6 = vector.load %arg8[%c0_11, %c0_12] : memref<128x384xf32, #tpu.memory_space<vmem>>, vector<128x384xf32>
    %c0_13 = arith.constant 0 : index
    %c0_14 = arith.constant 0 : index
    %7 = vector.load %arg9[%c0_13, %c0_14] : memref<1x128xf32, #tpu.memory_space<vmem>>, vector<1x128xf32>
    %c0_15 = arith.constant 0 : index
    %c0_16 = arith.constant 0 : index
    %8 = vector.load %arg10[%c0_15, %c0_16] : memref<1x128xf32, #tpu.memory_space<vmem>>, vector<1x128xf32>
    %c0_17 = arith.constant 0 : index
    %c0_18 = arith.constant 0 : index
    %9 = vector.load %arg11[%c0_17, %c0_18] : memref<1x128xf32, #tpu.memory_space<vmem>>, vector<1x128xf32>
    %c0_19 = arith.constant 0 : index
    %c0_20 = arith.constant 0 : index
    %10 = vector.load %arg12[%c0_19, %c0_20] : memref<1x128xf32, #tpu.memory_space<vmem>>, vector<1x128xf32>
    %c0_21 = arith.constant 0 : index
    %c0_22 = arith.constant 0 : index
    %11 = vector.load %arg13[%c0_21, %c0_22] : memref<1x384xf32, #tpu.memory_space<vmem>>, vector<1x384xf32>
    %c0_23 = arith.constant 0 : index
    %c0_24 = arith.constant 0 : index
    %12 = vector.load %arg14[%c0_23, %c0_24] : memref<1x384xf32, #tpu.memory_space<vmem>>, vector<1x384xf32>
    %c0_25 = arith.constant 0 : index
    %c0_26 = arith.constant 0 : index
    %13 = vector.load %arg3[%c0_25, %c0_26] : memref<256x128xf32, #tpu.memory_space<vmem>>, vector<256x128xf32>
    %c0_i32 = arith.constant 0 : i32
    %cst = arith.constant dense<0.000000e+00> : vector<256x128xf32>
    %14 = tpu.matmul %13, %2, %cst {dimension_numbers = #tpu.dot_dimension_numbers<[1], [0], [0], [1], [0, 0, 1, 1], [], []>} : vector<256x128xf32>, vector<128x128xf32>, vector<256x128xf32> -> vector<256x128xf32>
    %15 = vector.broadcast %7 : vector<1x128xf32> to vector<256x128xf32>
    %16 = arith.addf %14, %15 : vector<256x128xf32>
    %cst_27 = arith.constant dense<0.000000e+00> : vector<256x128xf32>
    %17 = tpu.matmul %13, %3, %cst_27 {dimension_numbers = #tpu.dot_dimension_numbers<[1], [0], [0], [1], [0, 0, 1, 1], [], []>} : vector<256x128xf32>, vector<128x128xf32>, vector<256x128xf32> -> vector<256x128xf32>
    %18 = vector.broadcast %8 : vector<1x128xf32> to vector<256x128xf32>
    %19 = arith.addf %17, %18 : vector<256x128xf32>
    %cst_28 = arith.constant dense<0.000000e+00> : vector<256x128xf32>
    %20 = tpu.matmul %0, %16, %cst_28 {dimension_numbers = #tpu.dot_dimension_numbers<[1], [0], [0], [1], [0, 0, 1, 1], [], []>} : vector<256x256xf32>, vector<256x128xf32>, vector<256x128xf32> -> vector<256x128xf32>
    %21 = vector.broadcast %9 : vector<1x128xf32> to vector<256x128xf32>
    %22 = arith.addf %20, %21 : vector<256x128xf32>
    %cst_29 = arith.constant dense<0.000000e+00> : vector<256x128xf32>
    %23 = tpu.matmul %1, %19, %cst_29 {dimension_numbers = #tpu.dot_dimension_numbers<[1], [0], [0], [1], [0, 0, 1, 1], [], []>} : vector<256x256xf32>, vector<256x128xf32>, vector<256x128xf32> -> vector<256x128xf32>
    %24 = vector.broadcast %10 : vector<1x128xf32> to vector<256x128xf32>
    %25 = arith.addf %23, %24 : vector<256x128xf32>
    %cst_30 = arith.constant dense<0.000000e+00> : vector<256x384xf32>
    %26 = tpu.matmul %22, %4, %cst_30 {dimension_numbers = #tpu.dot_dimension_numbers<[1], [0], [0], [1], [0, 0, 1, 1], [], []>} : vector<256x128xf32>, vector<128x384xf32>, vector<256x384xf32> -> vector<256x384xf32>
    %cst_31 = arith.constant dense<0.000000e+00> : vector<256x384xf32>
    %27 = tpu.matmul %25, %5, %cst_31 {dimension_numbers = #tpu.dot_dimension_numbers<[1], [0], [0], [1], [0, 0, 1, 1], [], []>} : vector<256x128xf32>, vector<128x384xf32>, vector<256x384xf32> -> vector<256x384xf32>
    %28 = arith.addf %26, %27 : vector<256x384xf32>
    %29 = vector.broadcast %11 : vector<1x384xf32> to vector<256x384xf32>
    %30 = arith.addf %28, %29 : vector<256x384xf32>
    %cst_32 = arith.constant dense<0.000000e+00> : vector<256x384xf32>
    %31 = tpu.matmul %13, %6, %cst_32 {dimension_numbers = #tpu.dot_dimension_numbers<[1], [0], [0], [1], [0, 0, 1, 1], [], []>} : vector<256x128xf32>, vector<128x384xf32>, vector<256x384xf32> -> vector<256x384xf32>
    %32 = vector.broadcast %12 : vector<1x384xf32> to vector<256x384xf32>
    %33 = arith.addf %31, %32 : vector<256x384xf32>
    %34 = vector.extract_strided_slice %30 {offsets = [0, 0], sizes = [256, 128], strides = [1, 1]} : vector<256x384xf32> to vector<256x128xf32>
    %35 = vector.extract_strided_slice %30 {offsets = [0, 128], sizes = [256, 128], strides = [1, 1]} : vector<256x384xf32> to vector<256x128xf32>
    %36 = vector.extract_strided_slice %30 {offsets = [0, 256], sizes = [256, 128], strides = [1, 1]} : vector<256x384xf32> to vector<256x128xf32>
    %37 = vector.extract_strided_slice %33 {offsets = [0, 0], sizes = [256, 128], strides = [1, 1]} : vector<256x384xf32> to vector<256x128xf32>
    %38 = vector.extract_strided_slice %33 {offsets = [0, 128], sizes = [256, 128], strides = [1, 1]} : vector<256x384xf32> to vector<256x128xf32>
    %39 = vector.extract_strided_slice %33 {offsets = [0, 256], sizes = [256, 128], strides = [1, 1]} : vector<256x384xf32> to vector<256x128xf32>
    %40 = arith.addf %34, %37 : vector<256x128xf32>
    %41 = arith.negf %40 : vector<256x128xf32>
    %42 = math.exp %41 : vector<256x128xf32>
    %cst_33 = arith.constant 1.000000e+00 : f32
    %43 = vector.broadcast %cst_33 : f32 to vector<256x128xf32>
    %44 = arith.addf %43, %42 : vector<256x128xf32>
    %45 = arith.divf %43, %44 : vector<256x128xf32>
    %46 = arith.addf %35, %38 : vector<256x128xf32>
    %47 = arith.negf %46 : vector<256x128xf32>
    %48 = math.exp %47 : vector<256x128xf32>
    %cst_34 = arith.constant 1.000000e+00 : f32
    %49 = vector.broadcast %cst_34 : f32 to vector<256x128xf32>
    %50 = arith.addf %49, %48 : vector<256x128xf32>
    %51 = arith.divf %49, %50 : vector<256x128xf32>
    %52 = arith.mulf %45, %39 : vector<256x128xf32>
    %53 = arith.addf %36, %52 : vector<256x128xf32>
    %54 = math.tanh %53 : vector<256x128xf32>
    %cst_35 = arith.constant 1.000000e+00 : f32
    %55 = vector.broadcast %cst_35 : f32 to vector<256x128xf32>
    %56 = arith.subf %55, %51 : vector<256x128xf32>
    %57 = arith.mulf %56, %13 : vector<256x128xf32>
    %58 = arith.mulf %51, %54 : vector<256x128xf32>
    %59 = arith.addf %57, %58 : vector<256x128xf32>
    %c1_i32 = arith.constant 1 : i32
    %cst_36 = arith.constant dense<0.000000e+00> : vector<256x128xf32>
    %60 = tpu.matmul %59, %2, %cst_36 {dimension_numbers = #tpu.dot_dimension_numbers<[1], [0], [0], [1], [0, 0, 1, 1], [], []>} : vector<256x128xf32>, vector<128x128xf32>, vector<256x128xf32> -> vector<256x128xf32>
    %61 = vector.broadcast %7 : vector<1x128xf32> to vector<256x128xf32>
    %62 = arith.addf %60, %61 : vector<256x128xf32>
    %cst_37 = arith.constant dense<0.000000e+00> : vector<256x128xf32>
    %63 = tpu.matmul %59, %3, %cst_37 {dimension_numbers = #tpu.dot_dimension_numbers<[1], [0], [0], [1], [0, 0, 1, 1], [], []>} : vector<256x128xf32>, vector<128x128xf32>, vector<256x128xf32> -> vector<256x128xf32>
    %64 = vector.broadcast %8 : vector<1x128xf32> to vector<256x128xf32>
    %65 = arith.addf %63, %64 : vector<256x128xf32>
    %cst_38 = arith.constant dense<0.000000e+00> : vector<256x128xf32>
    %66 = tpu.matmul %0, %62, %cst_38 {dimension_numbers = #tpu.dot_dimension_numbers<[1], [0], [0], [1], [0, 0, 1, 1], [], []>} : vector<256x256xf32>, vector<256x128xf32>, vector<256x128xf32> -> vector<256x128xf32>
    %67 = vector.broadcast %9 : vector<1x128xf32> to vector<256x128xf32>
    %68 = arith.addf %66, %67 : vector<256x128xf32>
    %cst_39 = arith.constant dense<0.000000e+00> : vector<256x128xf32>
    %69 = tpu.matmul %1, %65, %cst_39 {dimension_numbers = #tpu.dot_dimension_numbers<[1], [0], [0], [1], [0, 0, 1, 1], [], []>} : vector<256x256xf32>, vector<256x128xf32>, vector<256x128xf32> -> vector<256x128xf32>
    %70 = vector.broadcast %10 : vector<1x128xf32> to vector<256x128xf32>
    %71 = arith.addf %69, %70 : vector<256x128xf32>
    %cst_40 = arith.constant dense<0.000000e+00> : vector<256x384xf32>
    %72 = tpu.matmul %68, %4, %cst_40 {dimension_numbers = #tpu.dot_dimension_numbers<[1], [0], [0], [1], [0, 0, 1, 1], [], []>} : vector<256x128xf32>, vector<128x384xf32>, vector<256x384xf32> -> vector<256x384xf32>
    %cst_41 = arith.constant dense<0.000000e+00> : vector<256x384xf32>
    %73 = tpu.matmul %71, %5, %cst_41 {dimension_numbers = #tpu.dot_dimension_numbers<[1], [0], [0], [1], [0, 0, 1, 1], [], []>} : vector<256x128xf32>, vector<128x384xf32>, vector<256x384xf32> -> vector<256x384xf32>
    %74 = arith.addf %72, %73 : vector<256x384xf32>
    %75 = vector.broadcast %11 : vector<1x384xf32> to vector<256x384xf32>
    %76 = arith.addf %74, %75 : vector<256x384xf32>
    %cst_42 = arith.constant dense<0.000000e+00> : vector<256x384xf32>
    %77 = tpu.matmul %59, %6, %cst_42 {dimension_numbers = #tpu.dot_dimension_numbers<[1], [0], [0], [1], [0, 0, 1, 1], [], []>} : vector<256x128xf32>, vector<128x384xf32>, vector<256x384xf32> -> vector<256x384xf32>
    %78 = vector.broadcast %12 : vector<1x384xf32> to vector<256x384xf32>
    %79 = arith.addf %77, %78 : vector<256x384xf32>
    %80 = vector.extract_strided_slice %76 {offsets = [0, 0], sizes = [256, 128], strides = [1, 1]} : vector<256x384xf32> to vector<256x128xf32>
    %81 = vector.extract_strided_slice %76 {offsets = [0, 128], sizes = [256, 128], strides = [1, 1]} : vector<256x384xf32> to vector<256x128xf32>
    %82 = vector.extract_strided_slice %76 {offsets = [0, 256], sizes = [256, 128], strides = [1, 1]} : vector<256x384xf32> to vector<256x128xf32>
    %83 = vector.extract_strided_slice %79 {offsets = [0, 0], sizes = [256, 128], strides = [1, 1]} : vector<256x384xf32> to vector<256x128xf32>
    %84 = vector.extract_strided_slice %79 {offsets = [0, 128], sizes = [256, 128], strides = [1, 1]} : vector<256x384xf32> to vector<256x128xf32>
    %85 = vector.extract_strided_slice %79 {offsets = [0, 256], sizes = [256, 128], strides = [1, 1]} : vector<256x384xf32> to vector<256x128xf32>
    %86 = arith.addf %80, %83 : vector<256x128xf32>
    %87 = arith.negf %86 : vector<256x128xf32>
    %88 = math.exp %87 : vector<256x128xf32>
    %cst_43 = arith.constant 1.000000e+00 : f32
    %89 = vector.broadcast %cst_43 : f32 to vector<256x128xf32>
    %90 = arith.addf %89, %88 : vector<256x128xf32>
    %91 = arith.divf %89, %90 : vector<256x128xf32>
    %92 = arith.addf %81, %84 : vector<256x128xf32>
    %93 = arith.negf %92 : vector<256x128xf32>
    %94 = math.exp %93 : vector<256x128xf32>
    %cst_44 = arith.constant 1.000000e+00 : f32
    %95 = vector.broadcast %cst_44 : f32 to vector<256x128xf32>
    %96 = arith.addf %95, %94 : vector<256x128xf32>
    %97 = arith.divf %95, %96 : vector<256x128xf32>
    %98 = arith.mulf %91, %85 : vector<256x128xf32>
    %99 = arith.addf %82, %98 : vector<256x128xf32>
    %100 = math.tanh %99 : vector<256x128xf32>
    %cst_45 = arith.constant 1.000000e+00 : f32
    %101 = vector.broadcast %cst_45 : f32 to vector<256x128xf32>
    %102 = arith.subf %101, %97 : vector<256x128xf32>
    %103 = arith.mulf %102, %59 : vector<256x128xf32>
    %104 = arith.mulf %97, %100 : vector<256x128xf32>
    %105 = arith.addf %103, %104 : vector<256x128xf32>
    %c0_46 = arith.constant 0 : index
    %c0_47 = arith.constant 0 : index
    %106 = vector.load %arg15[%c0_46, %c0_47] : memref<256x128xf32, #tpu.memory_space<vmem>>, vector<256x128xf32>
    tpu.vector_store %arg15[%c0_46, %c0_47], %105 {strides = array<i32>} : memref<256x128xf32, #tpu.memory_space<vmem>>, vector<256x128xf32>,
    return
  }
  func.func @transform_0(%arg0: i32) -> (i32, i32) {
    %c0_i32 = arith.constant 0 : i32
    %c0_i32_0 = arith.constant 0 : i32
    return %arg0, %c0_i32 : i32, i32
  }
  func.func @transform_1(%arg0: i32) -> (i32, i32) {
    %c0_i32 = arith.constant 0 : i32
    %c0_i32_0 = arith.constant 0 : i32
    return %arg0, %c0_i32 : i32, i32
  }
  func.func @transform_2(%arg0: i32) -> (i32, i32) {
    %c0_i32 = arith.constant 0 : i32
    %c0_i32_0 = arith.constant 0 : i32
    return %arg0, %c0_i32 : i32, i32
  }
  func.func @transform_3(%arg0: i32) -> (i32, i32) {
    %c0_i32 = arith.constant 0 : i32
    %c0_i32_0 = arith.constant 0 : i32
    %c0_i32_1 = arith.constant 0 : i32
    return %c0_i32, %c0_i32_0 : i32, i32
  }
  func.func @transform_4(%arg0: i32) -> (i32, i32) {
    %c0_i32 = arith.constant 0 : i32
    %c0_i32_0 = arith.constant 0 : i32
    %c0_i32_1 = arith.constant 0 : i32
    return %c0_i32, %c0_i32_0 : i32, i32
  }
  func.func @transform_5(%arg0: i32) -> (i32, i32) {
    %c0_i32 = arith.constant 0 : i32
    %c0_i32_0 = arith.constant 0 : i32
    %c0_i32_1 = arith.constant 0 : i32
    return %c0_i32, %c0_i32_0 : i32, i32
  }
  func.func @transform_6(%arg0: i32) -> (i32, i32) {
    %c0_i32 = arith.constant 0 : i32
    %c0_i32_0 = arith.constant 0 : i32
    %c0_i32_1 = arith.constant 0 : i32
    return %c0_i32, %c0_i32_0 : i32, i32
  }
  func.func @transform_7(%arg0: i32) -> (i32, i32) {
    %c0_i32 = arith.constant 0 : i32
    %c0_i32_0 = arith.constant 0 : i32
    %c0_i32_1 = arith.constant 0 : i32
    return %c0_i32, %c0_i32_0 : i32, i32
  }
  func.func @transform_8(%arg0: i32) -> (i32, i32) {
    %c0_i32 = arith.constant 0 : i32
    %c0_i32_0 = arith.constant 0 : i32
    %c0_i32_1 = arith.constant 0 : i32
    return %c0_i32, %c0_i32_0 : i32, i32
  }
  func.func @transform_9(%arg0: i32) -> (i32, i32) {
    %c0_i32 = arith.constant 0 : i32
    %c0_i32_0 = arith.constant 0 : i32
    %c0_i32_1 = arith.constant 0 : i32
    return %c0_i32, %c0_i32_0 : i32, i32
  }
  func.func @transform_10(%arg0: i32) -> (i32, i32) {
    %c0_i32 = arith.constant 0 : i32
    %c0_i32_0 = arith.constant 0 : i32
    %c0_i32_1 = arith.constant 0 : i32
    return %c0_i32, %c0_i32_0 : i32, i32
  }
  func.func @transform_11(%arg0: i32) -> (i32, i32) {
    %c0_i32 = arith.constant 0 : i32
    %c0_i32_0 = arith.constant 0 : i32
    %c0_i32_1 = arith.constant 0 : i32
    return %c0_i32, %c0_i32_0 : i32, i32
  }
  func.func @transform_12(%arg0: i32) -> (i32, i32) {
    %c0_i32 = arith.constant 0 : i32
    %c0_i32_0 = arith.constant 0 : i32
    %c0_i32_1 = arith.constant 0 : i32
    return %c0_i32, %c0_i32_0 : i32, i32
  }
  func.func @transform_13(%arg0: i32) -> (i32, i32) {
    %c0_i32 = arith.constant 0 : i32
    %c0_i32_0 = arith.constant 0 : i32
    %c0_i32_1 = arith.constant 0 : i32
    return %c0_i32, %c0_i32_0 : i32, i32
  }
  func.func @transform_14(%arg0: i32) -> (i32, i32) {
    %c0_i32 = arith.constant 0 : i32
    %c0_i32_0 = arith.constant 0 : i32
    return %arg0, %c0_i32 : i32, i32
  }
}

</mosaic_0001>

<llo_original>
// kernel: tpu_custom_call.1
$region0: #{tpu_custom_call.1}
  #allocation0 [shape = 'u32[]', space=smem, size = 0x4, offset = 0x4, fixed_abs, tag = 'smem constant byte address 0x4 - core index']
  #allocation1 [shape = 'u32[144,128]{1,0:T(1,128)}', space=vmem, size = 0x12000, scoped, tag = 'internal scratch']
  %s0 = inlined_call_operand.vmem [shape: f32[256,256], index: 0, kind: input, shape index: {}]
  %s1 = inlined_call_operand.hbm [shape: f32[256,256], index: 1, kind: input, shape index: {}]
  %s2 = inlined_call_operand.hbm [shape: f32[256,128], index: 2, kind: input, shape index: {}, may-alias: {2,14}]
  %s3 = inlined_call_operand.hbm [shape: f32[128,128], index: 3, kind: input, shape index: {}]
  %s4 = inlined_call_operand.hbm [shape: f32[128,128], index: 4, kind: input, shape index: {}]
  %s5 = inlined_call_operand.hbm [shape: f32[128,384], index: 5, kind: input, shape index: {}]
  %s6 = inlined_call_operand.hbm [shape: f32[128,384], index: 6, kind: input, shape index: {}]
  %s7 = inlined_call_operand.hbm [shape: f32[128,384], index: 7, kind: input, shape index: {}]
  %s8 = inlined_call_operand.vmem [shape: f32[1,128], index: 8, kind: input, shape index: {}]
  %s9 = inlined_call_operand.vmem [shape: f32[1,128], index: 9, kind: input, shape index: {}]
  %s10 = inlined_call_operand.vmem [shape: f32[1,128], index: 10, kind: input, shape index: {}]
  %s11 = inlined_call_operand.vmem [shape: f32[1,128], index: 11, kind: input, shape index: {}]
  %s12 = inlined_call_operand.vmem [shape: f32[1,384], index: 12, kind: input, shape index: {}]
  %s13 = inlined_call_operand.vmem [shape: f32[1,384], index: 13, kind: input, shape index: {}]
  %s14 = inlined_call_operand.hbm [shape: f32[256,128], index: 14, kind: output, shape index: {}, may-alias: {2,14}]
  %s15 = sld [smem:[#allocation0]]
  $region94: #{tpu_custom_call.1} parent=0
    _
  %s17 = ssub.s32 1, %s15
  %s18 = scalar_select 0, %s17, %s15
  $region1: #{tpu_custom_call.1} parent=0
    #allocation2 [shape = 'u8[262144]{0}', space=vmem, size = 0x40000, scoped, tag = 'input window, operand 1, single buffered']
    #allocation3 [shape = 's32[1]{0}', space=sflag, size = 0x4, scoped, tag = 'scoped memory for tpu_custom_call.1']
    #allocation4 [shape = 's32[1]{0}', space=sflag, size = 0x4, scoped, tag = 'scoped memory for tpu_custom_call.1']
    #allocation5 [shape = 'u8[131072]{0}', space=vmem, size = 0x20000, scoped, tag = 'input window, operand 2, single buffered']
    #allocation6 [shape = 's32[1]{0}', space=sflag, size = 0x4, scoped, tag = 'scoped memory for tpu_custom_call.1']
    #allocation7 [shape = 'u8[65536]{0}', space=vmem, size = 0x10000, scoped, tag = 'input window, operand 3, single buffered']
    #allocation8 [shape = 'u8[65536]{0}', space=vmem, size = 0x10000, scoped, tag = 'input window, operand 4, single buffered']
    #allocation9 [shape = 's32[1]{0}', space=sflag, size = 0x4, scoped, tag = 'scoped memory for tpu_custom_call.1']
    #allocation10 [shape = 'u8[196608]{0}', space=vmem, size = 0x30000, scoped, tag = 'input window, operand 5, single buffered']
    #allocation11 [shape = 'u8[196608]{0}', space=vmem, size = 0x30000, scoped, tag = 'input window, operand 6, single buffered']
    #allocation12 [shape = 's32[1]{0}', space=sflag, size = 0x4, scoped, tag = 'scoped memory for tpu_custom_call.1']
    #allocation13 [shape = 'u8[196608]{0}', space=vmem, size = 0x30000, scoped, tag = 'input window, operand 7, single buffered']
    #allocation14 [shape = 'u8[131072]{0}', space=vmem, size = 0x20000, scoped, tag = 'output window, operand 0, single buffered']
    %19 = vsyncpa [#allocation3], 0
    %20 = vsyncpa [#allocation6], 0
    %21 = vsyncpa [#allocation9], 0
    %22 = vsyncpa [#allocation12], 0
    %23 = vsyncpa [#allocation4], 0
    // Predicated region
    $region2: #{tpu_custom_call.1} parent=1 // pred_check
      _
    $region3: #{tpu_custom_call.1} parent=1 // pred_check_branch
      %25 = sbr.rel (0) target = $region5
    $region4: #{tpu_custom_call.1} parent=1 // pred_region
      _
    $region5: #{tpu_custom_call.1} parent=1 // pred_fallthru
      _
    // Predicated region
    $region6: #{tpu_custom_call.1} parent=1 // pred_check
      _
    $region7: #{tpu_custom_call.1} parent=1 // pred_check_branch
      %27 = sbr.rel (0) target = $region9
    $region8: #{tpu_custom_call.1} parent=1 // pred_region
      %s29 = ssub.s32 8192, 8192
      %30 = vsyncadd [#allocation3], %s29
      %s31 = sshll.u32 [#allocation2], 4
      %s32 = int_to_ptr.vmem [resolvable:$true] %s31
      %37 = dma.hbm_to_vmem [thread:$0]  %s1, 8192, %s32, [#allocation3], 256, 256, 16
    $region9: #{tpu_custom_call.1} parent=1 // pred_fallthru
      _
    // Predicated region
    $region10: #{tpu_custom_call.1} parent=1 // pred_check
      _
    $region11: #{tpu_custom_call.1} parent=1 // pred_check_branch
      %39 = sbr.rel (0) target = $region13
    $region12: #{tpu_custom_call.1} parent=1 // pred_region
      %s41 = ssub.s32 4096, 4096
      %42 = vsyncadd [#allocation6], %s41
      %s43 = sshll.u32 [#allocation5], 4
      %s44 = int_to_ptr.vmem [resolvable:$true] %s43
      %49 = dma.hbm_to_vmem [thread:$0]  %s2, 4096, %s44, [#allocation6], 128, 128, 8
    $region13: #{tpu_custom_call.1} parent=1 // pred_fallthru
      _
    // Predicated region
    $region14: #{tpu_custom_call.1} parent=1 // pred_check
      _
    $region15: #{tpu_custom_call.1} parent=1 // pred_check_branch
      %51 = sbr.rel (0) target = $region17
    $region16: #{tpu_custom_call.1} parent=1 // pred_region
      %s53 = ssub.s32 2048, 2048
      %54 = vsyncadd [#allocation6], %s53
      %s55 = sshll.u32 [#allocation7], 4
      %s56 = int_to_ptr.vmem [resolvable:$true] %s55
      %61 = dma.hbm_to_vmem [thread:$0]  %s3, 2048, %s56, [#allocation6], 128, 128, 8
    $region17: #{tpu_custom_call.1} parent=1 // pred_fallthru
      _
    // Predicated region
    $region18: #{tpu_custom_call.1} parent=1 // pred_check
      _
    $region19: #{tpu_custom_call.1} parent=1 // pred_check_branch
      %63 = sbr.rel (0) target = $region21
    $region20: #{tpu_custom_call.1} parent=1 // pred_region
      %s65 = ssub.s32 2048, 2048
      %66 = vsyncadd [#allocation9], %s65
      %s67 = sshll.u32 [#allocation8], 4
      %s68 = int_to_ptr.vmem [resolvable:$true] %s67
      %73 = dma.hbm_to_vmem [thread:$0]  %s4, 2048, %s68, [#allocation9], 128, 128, 8
    $region21: #{tpu_custom_call.1} parent=1 // pred_fallthru
      _
    // Predicated region
    $region22: #{tpu_custom_call.1} parent=1 // pred_check
      _
    $region23: #{tpu_custom_call.1} parent=1 // pred_check_branch
      %75 = sbr.rel (0) target = $region25
    $region24: #{tpu_custom_call.1} parent=1 // pred_region
      %s77 = ssub.s32 6144, 6144
      %78 = vsyncadd [#allocation9], %s77
      %s79 = sshll.u32 [#allocation10], 4
      %s80 = int_to_ptr.vmem [resolvable:$true] %s79
      %85 = dma.hbm_to_vmem [thread:$0]  %s5, 6144, %s80, [#allocation9], 384, 384, 24
    $region25: #{tpu_custom_call.1} parent=1 // pred_fallthru
      _
    // Predicated region
    $region26: #{tpu_custom_call.1} parent=1 // pred_check
      _
    $region27: #{tpu_custom_call.1} parent=1 // pred_check_branch
      %87 = sbr.rel (0) target = $region29
    $region28: #{tpu_custom_call.1} parent=1 // pred_region
      %s89 = ssub.s32 6144, 6144
      %90 = vsyncadd [#allocation12], %s89
      %s91 = sshll.u32 [#allocation11], 4
      %s92 = int_to_ptr.vmem [resolvable:$true] %s91
      %97 = dma.hbm_to_vmem [thread:$0]  %s6, 6144, %s92, [#allocation12], 384, 384, 24
    $region29: #{tpu_custom_call.1} parent=1 // pred_fallthru
      _
    // Predicated region
    $region30: #{tpu_custom_call.1} parent=1 // pred_check
      _
    $region31: #{tpu_custom_call.1} parent=1 // pred_check_branch
      %99 = sbr.rel (0) target = $region33
    $region32: #{tpu_custom_call.1} parent=1 // pred_region
      %s101 = ssub.s32 6144, 6144
      %102 = vsyncadd [#allocation12], %s101
      %s103 = sshll.u32 [#allocation13], 4
      %s104 = int_to_ptr.vmem [resolvable:$true] %s103
      %109 = dma.hbm_to_vmem [thread:$0]  %s7, 6144, %s104, [#allocation12], 384, 384, 24
    $region33: #{tpu_custom_call.1} parent=1 // pred_fallthru
      _
    // Predicated region
    $region34: #{tpu_custom_call.1} parent=1 // pred_check
      _
    $region35: #{tpu_custom_call.1} parent=1 // pred_check_branch
      %111 = sbr.rel (0) target = $region37
    $region36: #{tpu_custom_call.1} parent=1 // pred_region
      _
    $region37: #{tpu_custom_call.1} parent=1 // pred_fallthru
      _
    // Predicated region
    $region38: #{tpu_custom_call.1} parent=1 // pred_check
      _
    $region39: #{tpu_custom_call.1} parent=1 // pred_check_branch
      %113 = sbr.rel (0) target = $region41
    $region40: #{tpu_custom_call.1} parent=1 // pred_region
      _
    $region41: #{tpu_custom_call.1} parent=1 // pred_fallthru
      _
    // Predicated region
    $region42: #{tpu_custom_call.1} parent=1 // pred_check
      _
    $region43: #{tpu_custom_call.1} parent=1 // pred_check_branch
      %115 = sbr.rel (0) target = $region45
    $region44: #{tpu_custom_call.1} parent=1 // pred_region
      _
    $region45: #{tpu_custom_call.1} parent=1 // pred_fallthru
      _
    // Predicated region
    $region46: #{tpu_custom_call.1} parent=1 // pred_check
      _
    $region47: #{tpu_custom_call.1} parent=1 // pred_check_branch
      %117 = sbr.rel (0) target = $region49
    $region48: #{tpu_custom_call.1} parent=1 // pred_region
      _
    $region49: #{tpu_custom_call.1} parent=1 // pred_fallthru
      _
    // Predicated region
    $region50: #{tpu_custom_call.1} parent=1 // pred_check
      _
    $region51: #{tpu_custom_call.1} parent=1 // pred_check_branch
      %119 = sbr.rel (0) target = $region53
    $region52: #{tpu_custom_call.1} parent=1 // pred_region
      _
    $region53: #{tpu_custom_call.1} parent=1 // pred_fallthru
      _
    // Predicated region
    $region54: #{tpu_custom_call.1} parent=1 // pred_check
      _
    $region55: #{tpu_custom_call.1} parent=1 // pred_check_branch
      %121 = sbr.rel (0) target = $region57
    $region56: #{tpu_custom_call.1} parent=1 // pred_region
      _
    $region57: #{tpu_custom_call.1} parent=1 // pred_fallthru
      _
    // Predicated region
    $region58: #{tpu_custom_call.1} parent=1 // pred_check
      _
    $region59: #{tpu_custom_call.1} parent=1 // pred_check_branch
      %123 = sbr.rel (0) target = $region61
    $region60: #{tpu_custom_call.1} parent=1 // pred_region
      %124 = dma.done [#allocation3], 8192
    $region61: #{tpu_custom_call.1} parent=1 // pred_fallthru
      _
    // Predicated region
    $region62: #{tpu_custom_call.1} parent=1 // pred_check
      _
    $region63: #{tpu_custom_call.1} parent=1 // pred_check_branch
      %126 = sbr.rel (0) target = $region65
    $region64: #{tpu_custom_call.1} parent=1 // pred_region
      %127 = dma.done [#allocation6], 4096
    $region65: #{tpu_custom_call.1} parent=1 // pred_fallthru
      _
    // Predicated region
    $region66: #{tpu_custom_call.1} parent=1 // pred_check
      _
    $region67: #{tpu_custom_call.1} parent=1 // pred_check_branch
      %129 = sbr.rel (0) target = $region69
    $region68: #{tpu_custom_call.1} parent=1 // pred_region
      %130 = dma.done [#allocation6], 2048
    $region69: #{tpu_custom_call.1} parent=1 // pred_fallthru
      _
    // Predicated region
    $region70: #{tpu_custom_call.1} parent=1 // pred_check
      _
    $region71: #{tpu_custom_call.1} parent=1 // pred_check_branch
      %132 = sbr.rel (0) target = $region73
    $region72: #{tpu_custom_call.1} parent=1 // pred_region
      %133 = dma.done [#allocation9], 2048
    $region73: #{tpu_custom_call.1} parent=1 // pred_fallthru
      _
    // Predicated region
    $region74: #{tpu_custom_call.1} parent=1 // pred_check
      _
    $region75: #{tpu_custom_call.1} parent=1 // pred_check_branch
      %135 = sbr.rel (0) target = $region77
    $region76: #{tpu_custom_call.1} parent=1 // pred_region
      %136 = dma.done [#allocation9], 6144
    $region77: #{tpu_custom_call.1} parent=1 // pred_fallthru
      _
    // Predicated region
    $region78: #{tpu_custom_call.1} parent=1 // pred_check
      _
    $region79: #{tpu_custom_call.1} parent=1 // pred_check_branch
      %138 = sbr.rel (0) target = $region81
    $region80: #{tpu_custom_call.1} parent=1 // pred_region
      %139 = dma.done [#allocation12], 6144
    $region81: #{tpu_custom_call.1} parent=1 // pred_fallthru
      _
    // Predicated region
    $region82: #{tpu_custom_call.1} parent=1 // pred_check
      _
    $region83: #{tpu_custom_call.1} parent=1 // pred_check_branch
      %141 = sbr.rel (0) target = $region85
    $region84: #{tpu_custom_call.1} parent=1 // pred_region
      %142 = dma.done [#allocation12], 6144
    $region85: #{tpu_custom_call.1} parent=1 // pred_fallthru
      _
    %v143 = vld [vmem:[%s0] sm:$0xff]
    %v144 = vld [vmem:[%s0 + $0x8] sm:$0xff]
    %v145 = vld [vmem:[%s0 + $0x10] sm:$0xff]
    %v146 = vld [vmem:[%s0 + $0x18] sm:$0xff]
    %v147 = vld [vmem:[%s0 + $0x20] sm:$0xff]
    %v148 = vld [vmem:[%s0 + $0x28] sm:$0xff]
    %v149 = vld [vmem:[%s0 + $0x30] sm:$0xff]
    %v150 = vld [vmem:[%s0 + $0x38] sm:$0xff]
    %v151 = vld [vmem:[%s0 + $0x40] sm:$0xff]
    %v152 = vld [vmem:[%s0 + $0x48] sm:$0xff]
    %v153 = vld [vmem:[%s0 + $0x50] sm:$0xff]
    %v154 = vld [vmem:[%s0 + $0x58] sm:$0xff]
    %v155 = vld [vmem:[%s0 + $0x60] sm:$0xff]
    %v156 = vld [vmem:[%s0 + $0x68] sm:$0xff]
    %v157 = vld [vmem:[%s0 + $0x70] sm:$0xff]
    %v158 = vld [vmem:[%s0 + $0x78] sm:$0xff]
    %v159 = vld [vmem:[%s0 + $0x80] sm:$0xff]
    %v160 = vld [vmem:[%s0 + $0x88] sm:$0xff]
    %v161 = vld [vmem:[%s0 + $0x90] sm:$0xff]
    %v162 = vld [vmem:[%s0 + $0x98] sm:$0xff]
    %v163 = vld [vmem:[%s0 + $0xa0] sm:$0xff]
    %v164 = vld [vmem:[%s0 + $0xa8] sm:$0xff]
    %v165 = vld [vmem:[%s0 + $0xb0] sm:$0xff]
    %v166 = vld [vmem:[%s0 + $0xb8] sm:$0xff]
    %v167 = vld [vmem:[%s0 + $0xc0] sm:$0xff]
    %v168 = vld [vmem:[%s0 + $0xc8] sm:$0xff]
    %v169 = vld [vmem:[%s0 + $0xd0] sm:$0xff]
    %v170 = vld [vmem:[%s0 + $0xd8] sm:$0xff]
    %v171 = vld [vmem:[%s0 + $0xe0] sm:$0xff]
    %v172 = vld [vmem:[%s0 + $0xe8] sm:$0xff]
    %v173 = vld [vmem:[%s0 + $0xf0] sm:$0xff]
    %v174 = vld [vmem:[%s0 + $0xf8] sm:$0xff]
    %v175 = vld [vmem:[%s0 + $0x100] sm:$0xff]
    %v176 = vld [vmem:[%s0 + $0x108] sm:$0xff]
    %v177 = vld [vmem:[%s0 + $0x110] sm:$0xff]
    %v178 = vld [vmem:[%s0 + $0x118] sm:$0xff]
    %v179 = vld [vmem:[%s0 + $0x120] sm:$0xff]
    %v180 = vld [vmem:[%s0 + $0x128] sm:$0xff]
    %v181 = vld [vmem:[%s0 + $0x130] sm:$0xff]
    %v182 = vld [vmem:[%s0 + $0x138] sm:$0xff]
    %v183 = vld [vmem:[%s0 + $0x140] sm:$0xff]
    %v184 = vld [vmem:[%s0 + $0x148] sm:$0xff]
    %v185 = vld [vmem:[%s0 + $0x150] sm:$0xff]
    %v186 = vld [vmem:[%s0 + $0x158] sm:$0xff]
    %v187 = vld [vmem:[%s0 + $0x160] sm:$0xff]
    %v188 = vld [vmem:[%s0 + $0x168] sm:$0xff]
    %v189 = vld [vmem:[%s0 + $0x170] sm:$0xff]
    %v190 = vld [vmem:[%s0 + $0x178] sm:$0xff]
    %v191 = vld [vmem:[%s0 + $0x180] sm:$0xff]
    %v192 = vld [vmem:[%s0 + $0x188] sm:$0xff]
    %v193 = vld [vmem:[%s0 + $0x190] sm:$0xff]
    %v194 = vld [vmem:[%s0 + $0x198] sm:$0xff]
    %v195 = vld [vmem:[%s0 + $0x1a0] sm:$0xff]
    %v196 = vld [vmem:[%s0 + $0x1a8] sm:$0xff]
    %v197 = vld [vmem:[%s0 + $0x1b0] sm:$0xff]
    %v198 = vld [vmem:[%s0 + $0x1b8] sm:$0xff]
    %v199 = vld [vmem:[%s0 + $0x1c0] sm:$0xff]
    %v200 = vld [vmem:[%s0 + $0x1c8] sm:$0xff]
    %v201 = vld [vmem:[%s0 + $0x1d0] sm:$0xff]
    %v202 = vld [vmem:[%s0 + $0x1d8] sm:$0xff]
    %v203 = vld [vmem:[%s0 + $0x1e0] sm:$0xff]
    %v204 = vld [vmem:[%s0 + $0x1e8] sm:$0xff]
    %v205 = vld [vmem:[%s0 + $0x1f0] sm:$0xff]
    %v206 = vld [vmem:[%s0 + $0x1f8] sm:$0xff]
    %v207 = vld [vmem:[#allocation2] sm:$0xff]
    %v208 = vld [vmem:[#allocation2 + $0x8] sm:$0xff]
    %v209 = vld [vmem:[#allocation2 + $0x10] sm:$0xff]
    %v210 = vld [vmem:[#allocation2 + $0x18] sm:$0xff]
    %v211 = vld [vmem:[#allocation2 + $0x20] sm:$0xff]
    %v212 = vld [vmem:[#allocation2 + $0x28] sm:$0xff]
    %v213 = vld [vmem:[#allocation2 + $0x30] sm:$0xff]
    %v214 = vld [vmem:[#allocation2 + $0x38] sm:$0xff]
    %v215 = vld [vmem:[#allocation2 + $0x40] sm:$0xff]
    %v216 = vld [vmem:[#allocation2 + $0x48] sm:$0xff]
    %v217 = vld [vmem:[#allocation2 + $0x50] sm:$0xff]
    %v218 = vld [vmem:[#allocation2 + $0x58] sm:$0xff]
    %v219 = vld [vmem:[#allocation2 + $0x60] sm:$0xff]
    %v220 = vld [vmem:[#allocation2 + $0x68] sm:$0xff]
    %v221 = vld [vmem:[#allocation2 + $0x70] sm:$0xff]
    %v222 = vld [vmem:[#allocation2 + $0x78] sm:$0xff]
    %v223 = vld [vmem:[#allocation2 + $0x80] sm:$0xff]
    %v224 = vld [vmem:[#allocation2 + $0x88] sm:$0xff]
    %v225 = vld [vmem:[#allocation2 + $0x90] sm:$0xff]
    %v226 = vld [vmem:[#allocation2 + $0x98] sm:$0xff]
    %v227 = vld [vmem:[#allocation2 + $0xa0] sm:$0xff]
    %v228 = vld [vmem:[#allocation2 + $0xa8] sm:$0xff]
    %v229 = vld [vmem:[#allocation2 + $0xb0] sm:$0xff]
    %v230 = vld [vmem:[#allocation2 + $0xb8] sm:$0xff]
    %v231 = vld [vmem:[#allocation2 + $0xc0] sm:$0xff]
    %v232 = vld [vmem:[#allocation2 + $0xc8] sm:$0xff]
    %v233 = vld [vmem:[#allocation2 + $0xd0] sm:$0xff]
    %v234 = vld [vmem:[#allocation2 + $0xd8] sm:$0xff]
    %v235 = vld [vmem:[#allocation2 + $0xe0] sm:$0xff]
    %v236 = vld [vmem:[#allocation2 + $0xe8] sm:$0xff]
    %v237 = vld [vmem:[#allocation2 + $0xf0] sm:$0xff]
    %v238 = vld [vmem:[#allocation2 + $0xf8] sm:$0xff]
    %v239 = vld [vmem:[#allocation2 + $0x100] sm:$0xff]
    %v240 = vld [vmem:[#allocation2 + $0x108] sm:$0xff]
    %v241 = vld [vmem:[#allocation2 + $0x110] sm:$0xff]
    %v242 = vld [vmem:[#allocation2 + $0x118] sm:$0xff]
    %v243 = vld [vmem:[#allocation2 + $0x120] sm:$0xff]
    %v244 = vld [vmem:[#allocation2 + $0x128] sm:$0xff]
    %v245 = vld [vmem:[#allocation2 + $0x130] sm:$0xff]
    %v246 = vld [vmem:[#allocation2 + $0x138] sm:$0xff]
    %v247 = vld [vmem:[#allocation2 + $0x140] sm:$0xff]
    %v248 = vld [vmem:[#allocation2 + $0x148] sm:$0xff]
    %v249 = vld [vmem:[#allocation2 + $0x150] sm:$0xff]
    %v250 = vld [vmem:[#allocation2 + $0x158] sm:$0xff]
    %v251 = vld [vmem:[#allocation2 + $0x160] sm:$0xff]
    %v252 = vld [vmem:[#allocation2 + $0x168] sm:$0xff]
    %v253 = vld [vmem:[#allocation2 + $0x170] sm:$0xff]
    %v254 = vld [vmem:[#allocation2 + $0x178] sm:$0xff]
    %v255 = vld [vmem:[#allocation2 + $0x180] sm:$0xff]
    %v256 = vld [vmem:[#allocation2 + $0x188] sm:$0xff]
    %v257 = vld [vmem:[#allocation2 + $0x190] sm:$0xff]
    %v258 = vld [vmem:[#allocation2 + $0x198] sm:$0xff]
    %v259 = vld [vmem:[#allocation2 + $0x1a0] sm:$0xff]
    %v260 = vld [vmem:[#allocation2 + $0x1a8] sm:$0xff]
    %v261 = vld [vmem:[#allocation2 + $0x1b0] sm:$0xff]
    %v262 = vld [vmem:[#allocation2 + $0x1b8] sm:$0xff]
    %v263 = vld [vmem:[#allocation2 + $0x1c0] sm:$0xff]
    %v264 = vld [vmem:[#allocation2 + $0x1c8] sm:$0xff]
    %v265 = vld [vmem:[#allocation2 + $0x1d0] sm:$0xff]
    %v266 = vld [vmem:[#allocation2 + $0x1d8] sm:$0xff]
    %v267 = vld [vmem:[#allocation2 + $0x1e0] sm:$0xff]
    %v268 = vld [vmem:[#allocation2 + $0x1e8] sm:$0xff]
    %v269 = vld [vmem:[#allocation2 + $0x1f0] sm:$0xff]
    %v270 = vld [vmem:[#allocation2 + $0x1f8] sm:$0xff]
    %v271 = vld [vmem:[#allocation7] sm:$0xff]
    %v272 = vld [vmem:[#allocation7 + $0x8] sm:$0xff]
    %v273 = vld [vmem:[#allocation7 + $0x10] sm:$0xff]
    %v274 = vld [vmem:[#allocation7 + $0x18] sm:$0xff]
    %v275 = vld [vmem:[#allocation7 + $0x20] sm:$0xff]
    %v276 = vld [vmem:[#allocation7 + $0x28] sm:$0xff]
    %v277 = vld [vmem:[#allocation7 + $0x30] sm:$0xff]
    %v278 = vld [vmem:[#allocation7 + $0x38] sm:$0xff]
    %v279 = vld [vmem:[#allocation7 + $0x40] sm:$0xff]
    %v280 = vld [vmem:[#allocation7 + $0x48] sm:$0xff]
    %v281 = vld [vmem:[#allocation7 + $0x50] sm:$0xff]
    %v282 = vld [vmem:[#allocation7 + $0x58] sm:$0xff]
    %v283 = vld [vmem:[#allocation7 + $0x60] sm:$0xff]
    %v284 = vld [vmem:[#allocation7 + $0x68] sm:$0xff]
    %v285 = vld [vmem:[#allocation7 + $0x70] sm:$0xff]
    %v286 = vld [vmem:[#allocation7 + $0x78] sm:$0xff]
    %v287 = vld [vmem:[#allocation8] sm:$0xff]
    %v288 = vld [vmem:[#allocation8 + $0x8] sm:$0xff]
    %v289 = vld [vmem:[#allocation8 + $0x10] sm:$0xff]
    %v290 = vld [vmem:[#allocation8 + $0x18] sm:$0xff]
    %v291 = vld [vmem:[#allocation8 + $0x20] sm:$0xff]
    %v292 = vld [vmem:[#allocation8 + $0x28] sm:$0xff]
    %v293 = vld [vmem:[#allocation8 + $0x30] sm:$0xff]
    %v294 = vld [vmem:[#allocation8 + $0x38] sm:$0xff]
    %v295 = vld [vmem:[#allocation8 + $0x40] sm:$0xff]
    %v296 = vld [vmem:[#allocation8 + $0x48] sm:$0xff]
    %v297 = vld [vmem:[#allocation8 + $0x50] sm:$0xff]
    %v298 = vld [vmem:[#allocation8 + $0x58] sm:$0xff]
    %v299 = vld [vmem:[#allocation8 + $0x60] sm:$0xff]
    %v300 = vld [vmem:[#allocation8 + $0x68] sm:$0xff]
    %v301 = vld [vmem:[#allocation8 + $0x70] sm:$0xff]
    %v302 = vld [vmem:[#allocation8 + $0x78] sm:$0xff]
    %v303 = vld [vmem:[#allocation10] sm:$0xff]
    %v304 = vld [vmem:[#allocation10 + $0x8] sm:$0xff]
    %v305 = vld [vmem:[#allocation10 + $0x10] sm:$0xff]
    %v306 = vld [vmem:[#allocation10 + $0x18] sm:$0xff]
    %v307 = vld [vmem:[#allocation10 + $0x20] sm:$0xff]
    %v308 = vld [vmem:[#allocation10 + $0x28] sm:$0xff]
    %v309 = vld [vmem:[#allocation10 + $0x30] sm:$0xff]
    %v310 = vld [vmem:[#allocation10 + $0x38] sm:$0xff]
    %v311 = vld [vmem:[#allocation10 + $0x40] sm:$0xff]
    %v312 = vld [vmem:[#allocation10 + $0x48] sm:$0xff]
    %v313 = vld [vmem:[#allocation10 + $0x50] sm:$0xff]
    %v314 = vld [vmem:[#allocation10 + $0x58] sm:$0xff]
    %v315 = vld [vmem:[#allocation10 + $0x60] sm:$0xff]
    %v316 = vld [vmem:[#allocation10 + $0x68] sm:$0xff]
    %v317 = vld [vmem:[#allocation10 + $0x70] sm:$0xff]
    %v318 = vld [vmem:[#allocation10 + $0x78] sm:$0xff]
    %v319 = vld [vmem:[#allocation10 + $0x80] sm:$0xff]
    %v320 = vld [vmem:[#allocation10 + $0x88] sm:$0xff]
    %v321 = vld [vmem:[#allocation10 + $0x90] sm:$0xff]
    %v322 = vld [vmem:[#allocation10 + $0x98] sm:$0xff]
    %v323 = vld [vmem:[#allocation10 + $0xa0] sm:$0xff]
    %v324 = vld [vmem:[#allocation10 + $0xa8] sm:$0xff]
    %v325 = vld [vmem:[#allocation10 + $0xb0] sm:$0xff]
    %v326 = vld [vmem:[#allocation10 + $0xb8] sm:$0xff]
    %v327 = vld [vmem:[#allocation10 + $0xc0] sm:$0xff]
    %v328 = vld [vmem:[#allocation10 + $0xc8] sm:$0xff]
    %v329 = vld [vmem:[#allocation10 + $0xd0] sm:$0xff]
    %v330 = vld [vmem:[#allocation10 + $0xd8] sm:$0xff]
    %v331 = vld [vmem:[#allocation10 + $0xe0] sm:$0xff]
    %v332 = vld [vmem:[#allocation10 + $0xe8] sm:$0xff]
    %v333 = vld [vmem:[#allocation10 + $0xf0] sm:$0xff]
    %v334 = vld [vmem:[#allocation10 + $0xf8] sm:$0xff]
    %v335 = vld [vmem:[#allocation10 + $0x100] sm:$0xff]
    %v336 = vld [vmem:[#allocation10 + $0x108] sm:$0xff]
    %v337 = vld [vmem:[#allocation10 + $0x110] sm:$0xff]
    %v338 = vld [vmem:[#allocation10 + $0x118] sm:$0xff]
    %v339 = vld [vmem:[#allocation10 + $0x120] sm:$0xff]
    %v340 = vld [vmem:[#allocation10 + $0x128] sm:$0xff]
    %v341 = vld [vmem:[#allocation10 + $0x130] sm:$0xff]
    %v342 = vld [vmem:[#allocation10 + $0x138] sm:$0xff]
    %v343 = vld [vmem:[#allocation10 + $0x140] sm:$0xff]
    %v344 = vld [vmem:[#allocation10 + $0x148] sm:$0xff]
    %v345 = vld [vmem:[#allocation10 + $0x150] sm:$0xff]
    %v346 = vld [vmem:[#allocation10 + $0x158] sm:$0xff]
    %v347 = vld [vmem:[#allocation10 + $0x160] sm:$0xff]
    %v348 = vld [vmem:[#allocation10 + $0x168] sm:$0xff]
    %v349 = vld [vmem:[#allocation10 + $0x170] sm:$0xff]
    %v350 = vld [vmem:[#allocation10 + $0x178] sm:$0xff]
    %v351 = vld [vmem:[#allocation11] sm:$0xff]
    %v352 = vld [vmem:[#allocation11 + $0x8] sm:$0xff]
    %v353 = vld [vmem:[#allocation11 + $0x10] sm:$0xff]
    %v354 = vld [vmem:[#allocation11 + $0x18] sm:$0xff]
    %v355 = vld [vmem:[#allocation11 + $0x20] sm:$0xff]
    %v356 = vld [vmem:[#allocation11 + $0x28] sm:$0xff]
    %v357 = vld [vmem:[#allocation11 + $0x30] sm:$0xff]
    %v358 = vld [vmem:[#allocation11 + $0x38] sm:$0xff]
    %v359 = vld [vmem:[#allocation11 + $0x40] sm:$0xff]
    %v360 = vld [vmem:[#allocation11 + $0x48] sm:$0xff]
    %v361 = vld [vmem:[#allocation11 + $0x50] sm:$0xff]
    %v362 = vld [vmem:[#allocation11 + $0x58] sm:$0xff]
    %v363 = vld [vmem:[#allocation11 + $0x60] sm:$0xff]
    %v364 = vld [vmem:[#allocation11 + $0x68] sm:$0xff]
    %v365 = vld [vmem:[#allocation11 + $0x70] sm:$0xff]
    %v366 = vld [vmem:[#allocation11 + $0x78] sm:$0xff]
    %v367 = vld [vmem:[#allocation11 + $0x80] sm:$0xff]
    %v368 = vld [vmem:[#allocation11 + $0x88] sm:$0xff]
    %v369 = vld [vmem:[#allocation11 + $0x90] sm:$0xff]
    %v370 = vld [vmem:[#allocation11 + $0x98] sm:$0xff]
    %v371 = vld [vmem:[#allocation11 + $0xa0] sm:$0xff]
    %v372 = vld [vmem:[#allocation11 + $0xa8] sm:$0xff]
    %v373 = vld [vmem:[#allocation11 + $0xb0] sm:$0xff]
    %v374 = vld [vmem:[#allocation11 + $0xb8] sm:$0xff]
    %v375 = vld [vmem:[#allocation11 + $0xc0] sm:$0xff]
    %v376 = vld [vmem:[#allocation11 + $0xc8] sm:$0xff]
    %v377 = vld [vmem:[#allocation11 + $0xd0] sm:$0xff]
    %v378 = vld [vmem:[#allocation11 + $0xd8] sm:$0xff]
    %v379 = vld [vmem:[#allocation11 + $0xe0] sm:$0xff]
    %v380 = vld [vmem:[#allocation11 + $0xe8] sm:$0xff]
    %v381 = vld [vmem:[#allocation11 + $0xf0] sm:$0xff]
    %v382 = vld [vmem:[#allocation11 + $0xf8] sm:$0xff]
    %v383 = vld [vmem:[#allocation11 + $0x100] sm:$0xff]
    %v384 = vld [vmem:[#allocation11 + $0x108] sm:$0xff]
    %v385 = vld [vmem:[#allocation11 + $0x110] sm:$0xff]
    %v386 = vld [vmem:[#allocation11 + $0x118] sm:$0xff]
    %v387 = vld [vmem:[#allocation11 + $0x120] sm:$0xff]
    %v388 = vld [vmem:[#allocation11 + $0x128] sm:$0xff]
    %v389 = vld [vmem:[#allocation11 + $0x130] sm:$0xff]
    %v390 = vld [vmem:[#allocation11 + $0x138] sm:$0xff]
    %v391 = vld [vmem:[#allocation11 + $0x140] sm:$0xff]
    %v392 = vld [vmem:[#allocation11 + $0x148] sm:$0xff]
    %v393 = vld [vmem:[#allocation11 + $0x150] sm:$0xff]
    %v394 = vld [vmem:[#allocation11 + $0x158] sm:$0xff]
    %v395 = vld [vmem:[#allocation11 + $0x160] sm:$0xff]
    %v396 = vld [vmem:[#allocation11 + $0x168] sm:$0xff]
    %v397 = vld [vmem:[#allocation11 + $0x170] sm:$0xff]
    %v398 = vld [vmem:[#allocation11 + $0x178] sm:$0xff]
    %v399 = vld [vmem:[#allocation13] sm:$0xff]
    %v400 = vld [vmem:[#allocation13 + $0x8] sm:$0xff]
    %v401 = vld [vmem:[#allocation13 + $0x10] sm:$0xff]
    %v402 = vld [vmem:[#allocation13 + $0x18] sm:$0xff]
    %v403 = vld [vmem:[#allocation13 + $0x20] sm:$0xff]
    %v404 = vld [vmem:[#allocation13 + $0x28] sm:$0xff]
    %v405 = vld [vmem:[#allocation13 + $0x30] sm:$0xff]
    %v406 = vld [vmem:[#allocation13 + $0x38] sm:$0xff]
    %v407 = vld [vmem:[#allocation13 + $0x40] sm:$0xff]
    %v408 = vld [vmem:[#allocation13 + $0x48] sm:$0xff]
    %v409 = vld [vmem:[#allocation13 + $0x50] sm:$0xff]
    %v410 = vld [vmem:[#allocation13 + $0x58] sm:$0xff]
    %v411 = vld [vmem:[#allocation13 + $0x60] sm:$0xff]
    %v412 = vld [vmem:[#allocation13 + $0x68] sm:$0xff]
    %v413 = vld [vmem:[#allocation13 + $0x70] sm:$0xff]
    %v414 = vld [vmem:[#allocation13 + $0x78] sm:$0xff]
    %v415 = vld [vmem:[#allocation13 + $0x80] sm:$0xff]
    %v416 = vld [vmem:[#allocation13 + $0x88] sm:$0xff]
    %v417 = vld [vmem:[#allocation13 + $0x90] sm:$0xff]
    %v418 = vld [vmem:[#allocation13 + $0x98] sm:$0xff]
    %v419 = vld [vmem:[#allocation13 + $0xa0] sm:$0xff]
    %v420 = vld [vmem:[#allocation13 + $0xa8] sm:$0xff]
    %v421 = vld [vmem:[#allocation13 + $0xb0] sm:$0xff]
    %v422 = vld [vmem:[#allocation13 + $0xb8] sm:$0xff]
    %v423 = vld [vmem:[#allocation13 + $0xc0] sm:$0xff]
    %v424 = vld [vmem:[#allocation13 + $0xc8] sm:$0xff]
    %v425 = vld [vmem:[#allocation13 + $0xd0] sm:$0xff]
    %v426 = vld [vmem:[#allocation13 + $0xd8] sm:$0xff]
    %v427 = vld [vmem:[#allocation13 + $0xe0] sm:$0xff]
    %v428 = vld [vmem:[#allocation13 + $0xe8] sm:$0xff]
    %v429 = vld [vmem:[#allocation13 + $0xf0] sm:$0xff]
    %v430 = vld [vmem:[#allocation13 + $0xf8] sm:$0xff]
    %v431 = vld [vmem:[#allocation13 + $0x100] sm:$0xff]
    %v432 = vld [vmem:[#allocation13 + $0x108] sm:$0xff]
    %v433 = vld [vmem:[#allocation13 + $0x110] sm:$0xff]
    %v434 = vld [vmem:[#allocation13 + $0x118] sm:$0xff]
    %v435 = vld [vmem:[#allocation13 + $0x120] sm:$0xff]
    %v436 = vld [vmem:[#allocation13 + $0x128] sm:$0xff]
    %v437 = vld [vmem:[#allocation13 + $0x130] sm:$0xff]
    %v438 = vld [vmem:[#allocation13 + $0x138] sm:$0xff]
    %v439 = vld [vmem:[#allocation13 + $0x140] sm:$0xff]
    %v440 = vld [vmem:[#allocation13 + $0x148] sm:$0xff]
    %v441 = vld [vmem:[#allocation13 + $0x150] sm:$0xff]
    %v442 = vld [vmem:[#allocation13 + $0x158] sm:$0xff]
    %v443 = vld [vmem:[#allocation13 + $0x160] sm:$0xff]
    %v444 = vld [vmem:[#allocation13 + $0x168] sm:$0xff]
    %v445 = vld [vmem:[#allocation13 + $0x170] sm:$0xff]
    %v446 = vld [vmem:[#allocation13 + $0x178] sm:$0xff]
    %v447 = vld [vmem:[%s8] sm:$0x1]
    %v448 = vld [vmem:[%s9] sm:$0x1]
    %v449 = vld [vmem:[%s10] sm:$0x1]
    %v450 = vld [vmem:[%s11] sm:$0x1]
    %v451 = vld [vmem:[%s12] sm:$0x7]
    %v452 = vld [vmem:[%s13] sm:$0x7]
    %v453 = vld [vmem:[#allocation5] sm:$0xff]
    %v454 = vld [vmem:[#allocation5 + $0x8] sm:$0xff]
    %v455 = vld [vmem:[#allocation5 + $0x10] sm:$0xff]
    %v456 = vld [vmem:[#allocation5 + $0x18] sm:$0xff]
    %v457 = vld [vmem:[#allocation5 + $0x20] sm:$0xff]
    %v458 = vld [vmem:[#allocation5 + $0x28] sm:$0xff]
    %v459 = vld [vmem:[#allocation5 + $0x30] sm:$0xff]
    %v460 = vld [vmem:[#allocation5 + $0x38] sm:$0xff]
    %v461 = vld [vmem:[#allocation5 + $0x40] sm:$0xff]
    %v462 = vld [vmem:[#allocation5 + $0x48] sm:$0xff]
    %v463 = vld [vmem:[#allocation5 + $0x50] sm:$0xff]
    %v464 = vld [vmem:[#allocation5 + $0x58] sm:$0xff]
    %v465 = vld [vmem:[#allocation5 + $0x60] sm:$0xff]
    %v466 = vld [vmem:[#allocation5 + $0x68] sm:$0xff]
    %v467 = vld [vmem:[#allocation5 + $0x70] sm:$0xff]
    %v468 = vld [vmem:[#allocation5 + $0x78] sm:$0xff]
    %v469 = vld [vmem:[#allocation5 + $0x80] sm:$0xff]
    %v470 = vld [vmem:[#allocation5 + $0x88] sm:$0xff]
    %v471 = vld [vmem:[#allocation5 + $0x90] sm:$0xff]
    %v472 = vld [vmem:[#allocation5 + $0x98] sm:$0xff]
    %v473 = vld [vmem:[#allocation5 + $0xa0] sm:$0xff]
    %v474 = vld [vmem:[#allocation5 + $0xa8] sm:$0xff]
    %v475 = vld [vmem:[#allocation5 + $0xb0] sm:$0xff]
    %v476 = vld [vmem:[#allocation5 + $0xb8] sm:$0xff]
    %v477 = vld [vmem:[#allocation5 + $0xc0] sm:$0xff]
    %v478 = vld [vmem:[#allocation5 + $0xc8] sm:$0xff]
    %v479 = vld [vmem:[#allocation5 + $0xd0] sm:$0xff]
    %v480 = vld [vmem:[#allocation5 + $0xd8] sm:$0xff]
    %v481 = vld [vmem:[#allocation5 + $0xe0] sm:$0xff]
    %v482 = vld [vmem:[#allocation5 + $0xe8] sm:$0xff]
    %v483 = vld [vmem:[#allocation5 + $0xf0] sm:$0xff]
    %v484 = vld [vmem:[#allocation5 + $0xf8] sm:$0xff]
    %v486 = vlaneseq
    %v487 = vshrl.u32 %v486, 7
    %v488 = vsub.s32 0, %v487
    %v489 = vrot.slane %v447, %v488
    %491 = vmatprep.subr.mxu0 0.0
    %492 = vmatpush1.msra.mxu0 %v271
    %493 = vmatprep.subr.mxu0 0.0
    %494 = vmatpush1.msra.mxu0 %v272
    %495 = vmatprep.subr.mxu0 0.0
    %496 = vmatpush1.msra.mxu0 %v273
    %497 = vmatprep.subr.mxu0 0.0
    %498 = vmatpush1.msra.mxu0 %v274
    %499 = vmatprep.subr.mxu0 0.0
    %500 = vmatpush1.msra.mxu0 %v275
    %501 = vmatprep.subr.mxu0 0.0
    %502 = vmatpush1.msra.mxu0 %v276
    %503 = vmatprep.subr.mxu0 0.0
    %504 = vmatpush1.msra.mxu0 %v277
    %505 = vmatprep.subr.mxu0 0.0
    %506 = vmatpush1.msra.mxu0 %v278
    %507 = vmatprep.subr.mxu0 0.0
    %508 = vmatpush1.msra.mxu0 %v279
    %509 = vmatprep.subr.mxu0 0.0
    %510 = vmatpush1.msra.mxu0 %v280
    %511 = vmatprep.subr.mxu0 0.0
    %512 = vmatpush1.msra.mxu0 %v281
    %513 = vmatprep.subr.mxu0 0.0
    %514 = vmatpush1.msra.mxu0 %v282
    %515 = vmatprep.subr.mxu0 0.0
    %516 = vmatpush1.msra.mxu0 %v283
    %517 = vmatprep.subr.mxu0 0.0
    %518 = vmatpush1.msra.mxu0 %v284
    %519 = vmatprep.subr.mxu0 0.0
    %520 = vmatpush1.msra.mxu0 %v285
    %521 = vmatprep.subr.mxu0 0.0
    %522 = vmatpush1.msra.mxu0 %v286
    %523 = vmatprep.subr.mxu0 0.0
    %524 = vmatpush1.msra.mxu0 0.0
    %525 = vmatprep.subr.mxu0 0.0
    %526 = vmatpush1.msra.mxu0 0.0
    %527 = vmatprep.subr.mxu0 0.0
    %528 = vmatpush1.msra.mxu0 0.0
    %529 = vmatprep.subr.mxu0 0.0
    %530 = vmatpush1.msra.mxu0 0.0
    %531 = vmatprep.subr.mxu0 0.0
    %532 = vmatpush1.msra.mxu0 0.0
    %533 = vmatprep.subr.mxu0 0.0
    %534 = vmatpush1.msra.mxu0 0.0
    %535 = vmatprep.subr.mxu0 0.0
    %536 = vmatpush1.msra.mxu0 0.0
    %537 = vmatprep.subr.mxu0 0.0
    %538 = vmatpush1.msra.mxu0 0.0
    %539 = vmatprep.subr.mxu0 0.0
    %540 = vmatpush1.msra.mxu0 0.0
    %541 = vmatprep.subr.mxu0 0.0
    %542 = vmatpush1.msra.mxu0 0.0
    %543 = vmatprep.subr.mxu0 0.0
    %544 = vmatpush1.msra.mxu0 0.0
    %545 = vmatprep.subr.mxu0 0.0
    %546 = vmatpush1.msra.mxu0 0.0
    %547 = vmatprep.subr.mxu0 0.0
    %548 = vmatpush1.msra.mxu0 0.0
    %549 = vmatprep.subr.mxu0 0.0
    %550 = vmatpush1.msra.mxu0 0.0
    %551 = vmatprep.subr.mxu0 0.0
    %552 = vmatpush1.msra.mxu0 0.0
    %553 = vmatprep.subr.mxu0 0.0
    %554 = vmatpush1.msra.mxu0 0.0
    %555 = vmatprep.mubr.f32.mxu0 0.0
    %556 = vmatmul.mubr.f32.gmra.mrb[0].mxu0 %v453
    %v557 = vpop.f32.mrb[0].mxu0
    %v558 = vadd.f32 %v489, %v557
    %v559 = vpop.f32.mrb[0].mxu0
    %560 = vmatprep.mubr.f32.mxu0 0.0
    %561 = vmatmul.mubr.f32.gmra.mrb[0].mxu0 %v454
    %v562 = vpop.f32.mrb[0].mxu0
    %v563 = vadd.f32 %v489, %v562
    %v564 = vpop.f32.mrb[0].mxu0
    %565 = vmatprep.mubr.f32.mxu0 0.0
    %566 = vmatmul.mubr.f32.gmra.mrb[0].mxu0 %v455
    %v567 = vpop.f32.mrb[0].mxu0
    %v568 = vadd.f32 %v489, %v567
    %v569 = vpop.f32.mrb[0].mxu0
    %570 = vmatprep.mubr.f32.mxu0 0.0
    %571 = vmatmul.mubr.f32.gmra.mrb[0].mxu0 %v456
    %v572 = vpop.f32.mrb[0].mxu0
    %v573 = vadd.f32 %v489, %v572
    %v574 = vpop.f32.mrb[0].mxu0
    %575 = vmatprep.mubr.f32.mxu0 0.0
    %576 = vmatmul.mubr.f32.gmra.mrb[0].mxu0 %v457
    %v577 = vpop.f32.mrb[0].mxu0
    %v578 = vadd.f32 %v489, %v577
    %v579 = vpop.f32.mrb[0].mxu0
    %580 = vmatprep.mubr.f32.mxu0 0.0
    %581 = vmatmul.mubr.f32.gmra.mrb[0].mxu0 %v458
    %v582 = vpop.f32.mrb[0].mxu0
    %v583 = vadd.f32 %v489, %v582
    %v584 = vpop.f32.mrb[0].mxu0
    %585 = vmatprep.mubr.f32.mxu0 0.0
    %586 = vmatmul.mubr.f32.gmra.mrb[0].mxu0 %v459
    %v587 = vpop.f32.mrb[0].mxu0
    %v588 = vadd.f32 %v489, %v587
    %v589 = vpop.f32.mrb[0].mxu0
    %590 = vmatprep.mubr.f32.mxu0 0.0
    %591 = vmatmul.mubr.f32.gmra.mrb[0].mxu0 %v460
    %v592 = vpop.f32.mrb[0].mxu0
    %v593 = vadd.f32 %v489, %v592
    %v594 = vpop.f32.mrb[0].mxu0
    %595 = vmatprep.mubr.f32.mxu0 0.0
    %596 = vmatmul.mubr.f32.gmra.mrb[0].mxu0 %v461
    %v597 = vpop.f32.mrb[0].mxu0
    %v598 = vadd.f32 %v489, %v597
    %v599 = vpop.f32.mrb[0].mxu0
    %600 = vmatprep.mubr.f32.mxu0 0.0
    %601 = vmatmul.mubr.f32.gmra.mrb[0].mxu0 %v462
    %v602 = vpop.f32.mrb[0].mxu0
    %v603 = vadd.f32 %v489, %v602
    %v604 = vpop.f32.mrb[0].mxu0
    %605 = vmatprep.mubr.f32.mxu0 0.0
    %606 = vmatmul.mubr.f32.gmra.mrb[0].mxu0 %v463
    %v607 = vpop.f32.mrb[0].mxu0
    %v608 = vadd.f32 %v489, %v607
    %v609 = vpop.f32.mrb[0].mxu0
    %610 = vmatprep.mubr.f32.mxu0 0.0
    %611 = vmatmul.mubr.f32.gmra.mrb[0].mxu0 %v464
    %v612 = vpop.f32.mrb[0].mxu0
    %v613 = vadd.f32 %v489, %v612
    %v614 = vpop.f32.mrb[0].mxu0
    %615 = vmatprep.mubr.f32.mxu0 0.0
    %616 = vmatmul.mubr.f32.gmra.mrb[0].mxu0 %v465
    %v617 = vpop.f32.mrb[0].mxu0
    %v618 = vadd.f32 %v489, %v617
    %v619 = vpop.f32.mrb[0].mxu0
    %620 = vmatprep.mubr.f32.mxu0 0.0
    %621 = vmatmul.mubr.f32.gmra.mrb[0].mxu0 %v466
    %v622 = vpop.f32.mrb[0].mxu0
    %v623 = vadd.f32 %v489, %v622
    %v624 = vpop.f32.mrb[0].mxu0
    %625 = vmatprep.mubr.f32.mxu0 0.0
    %626 = vmatmul.mubr.f32.gmra.mrb[0].mxu0 %v467
    %v627 = vpop.f32.mrb[0].mxu0
    %v628 = vadd.f32 %v489, %v627
    %v629 = vpop.f32.mrb[0].mxu0
    %630 = vmatprep.mubr.f32.mxu0 0.0
    %631 = vmatmul.mubr.f32.gmra.mrb[0].mxu0 %v468
    %v632 = vpop.f32.mrb[0].mxu0
    %v633 = vadd.f32 %v489, %v632
    %v634 = vpop.f32.mrb[0].mxu0
    %635 = vmatprep.mubr.f32.mxu0 0.0
    %636 = vmatmul.mubr.f32.gmra.mrb[0].mxu0 %v469
    %v637 = vpop.f32.mrb[0].mxu0
    %v638 = vadd.f32 %v489, %v637
    %v639 = vpop.f32.mrb[0].mxu0
    %640 = vmatprep.mubr.f32.mxu0 0.0
    %641 = vmatmul.mubr.f32.gmra.mrb[0].mxu0 %v470
    %v642 = vpop.f32.mrb[0].mxu0
    %v643 = vadd.f32 %v489, %v642
    %v644 = vpop.f32.mrb[0].mxu0
    %645 = vmatprep.mubr.f32.mxu0 0.0
    %646 = vmatmul.mubr.f32.gmra.mrb[0].mxu0 %v471
    %v647 = vpop.f32.mrb[0].mxu0
    %v648 = vadd.f32 %v489, %v647
    %v649 = vpop.f32.mrb[0].mxu0
    %650 = vmatprep.mubr.f32.mxu0 0.0
    %651 = vmatmul.mubr.f32.gmra.mrb[0].mxu0 %v472
    %v652 = vpop.f32.mrb[0].mxu0
    %v653 = vadd.f32 %v489, %v652
    %v654 = vpop.f32.mrb[0].mxu0
    %655 = vmatprep.mubr.f32.mxu0 0.0
    %656 = vmatmul.mubr.f32.gmra.mrb[0].mxu0 %v473
    %v657 = vpop.f32.mrb[0].mxu0
    %v658 = vadd.f32 %v489, %v657
    %v659 = vpop.f32.mrb[0].mxu0
    %660 = vmatprep.mubr.f32.mxu0 0.0
    %661 = vmatmul.mubr.f32.gmra.mrb[0].mxu0 %v474
    %v662 = vpop.f32.mrb[0].mxu0
    %v663 = vadd.f32 %v489, %v662
    %v664 = vpop.f32.mrb[0].mxu0
    %665 = vmatprep.mubr.f32.mxu0 0.0
    %666 = vmatmul.mubr.f32.gmra.mrb[0].mxu0 %v475
    %v667 = vpop.f32.mrb[0].mxu0
    %v668 = vadd.f32 %v489, %v667
    %v669 = vpop.f32.mrb[0].mxu0
    %670 = vmatprep.mubr.f32.mxu0 0.0
    %671 = vmatmul.mubr.f32.gmra.mrb[0].mxu0 %v476
    %v672 = vpop.f32.mrb[0].mxu0
    %v673 = vadd.f32 %v489, %v672
    %v674 = vpop.f32.mrb[0].mxu0
    %675 = vmatprep.mubr.f32.mxu0 0.0
    %676 = vmatmul.mubr.f32.gmra.mrb[0].mxu0 %v477
    %v677 = vpop.f32.mrb[0].mxu0
    %v678 = vadd.f32 %v489, %v677
    %v679 = vpop.f32.mrb[0].mxu0
    %680 = vmatprep.mubr.f32.mxu0 0.0
    %681 = vmatmul.mubr.f32.gmra.mrb[0].mxu0 %v478
    %v682 = vpop.f32.mrb[0].mxu0
    %v683 = vadd.f32 %v489, %v682
    %v684 = vpop.f32.mrb[0].mxu0
    %685 = vmatprep.mubr.f32.mxu0 0.0
    %686 = vmatmul.mubr.f32.gmra.mrb[0].mxu0 %v479
    %v687 = vpop.f32.mrb[0].mxu0
    %v688 = vadd.f32 %v489, %v687
    %v689 = vpop.f32.mrb[0].mxu0
    %690 = vmatprep.mubr.f32.mxu0 0.0
    %691 = vmatmul.mubr.f32.gmra.mrb[0].mxu0 %v480
    %v692 = vpop.f32.mrb[0].mxu0
    %v693 = vadd.f32 %v489, %v692
    %v694 = vpop.f32.mrb[0].mxu0
    %695 = vmatprep.mubr.f32.mxu0 0.0
    %696 = vmatmul.mubr.f32.gmra.mrb[0].mxu0 %v481
    %v697 = vpop.f32.mrb[0].mxu0
    %v698 = vadd.f32 %v489, %v697
    %v699 = vpop.f32.mrb[0].mxu0
    %700 = vmatprep.mubr.f32.mxu0 0.0
    %701 = vmatmul.mubr.f32.gmra.mrb[0].mxu0 %v482
    %v702 = vpop.f32.mrb[0].mxu0
    %v703 = vadd.f32 %v489, %v702
    %v704 = vpop.f32.mrb[0].mxu0
    %705 = vmatprep.mubr.f32.mxu0 0.0
    %706 = vmatmul.mubr.f32.gmra.mrb[0].mxu0 %v483
    %v707 = vpop.f32.mrb[0].mxu0
    %v708 = vadd.f32 %v489, %v707
    %v709 = vpop.f32.mrb[0].mxu0
    %710 = vmatprep.mubr.f32.mxu0 0.0
    %711 = vmatmul.mubr.f32.gmra.mrb[0].mxu0 %v484
    %v712 = vpop.f32.mrb[0].mxu0
    %v713 = vadd.f32 %v489, %v712
    %v714 = vpop.f32.mrb[0].mxu0
    %715 = vdwg.mxu0
    %v717 = vlaneseq
    %v718 = vshrl.u32 %v717, 7
    %v719 = vsub.s32 0, %v718
    %v720 = vrot.slane %v448, %v719
    %722 = vmatprep.subr.mxu0 0.0
    %723 = vmatpush1.msra.mxu0 %v287
    %724 = vmatprep.subr.mxu0 0.0
    %725 = vmatpush1.msra.mxu0 %v288
    %726 = vmatprep.subr.mxu0 0.0
    %727 = vmatpush1.msra.mxu0 %v289
    %728 = vmatprep.subr.mxu0 0.0
    %729 = vmatpush1.msra.mxu0 %v290
    %730 = vmatprep.subr.mxu0 0.0
    %731 = vmatpush1.msra.mxu0 %v291
    %732 = vmatprep.subr.mxu0 0.0
    %733 = vmatpush1.msra.mxu0 %v292
    %734 = vmatprep.subr.mxu0 0.0
    %735 = vmatpush1.msra.mxu0 %v293
    %736 = vmatprep.subr.mxu0 0.0
    %737 = vmatpush1.msra.mxu0 %v294
    %738 = vmatprep.subr.mxu0 0.0
    %739 = vmatpush1.msra.mxu0 %v295
    %740 = vmatprep.subr.mxu0 0.0
    %741 = vmatpush1.msra.mxu0 %v296
    %742 = vmatprep.subr.mxu0 0.0
    %743 = vmatpush1.msra.mxu0 %v297
    %744 = vmatprep.subr.mxu0 0.0
    %745 = vmatpush1.msra.mxu0 %v298
    %746 = vmatprep.subr.mxu0 0.0
    %747 = vmatpush1.msra.mxu0 %v299
    %748 = vmatprep.subr.mxu0 0.0
    %749 = vmatpush1.msra.mxu0 %v300
    %750 = vmatprep.subr.mxu0 0.0
    %751 = vmatpush1.msra.mxu0 %v301
    %752 = vmatprep.subr.mxu0 0.0
    %753 = vmatpush1.msra.mxu0 %v302
    %754 = vmatprep.subr.mxu0 0.0
    %755 = vmatpush1.msra.mxu0 0.0
    %756 = vmatprep.subr.mxu0 0.0
    %757 = vmatpush1.msra.mxu0 0.0
    %758 = vmatprep.subr.mxu0 0.0
    %759 = vmatpush1.msra.mxu0 0.0
    %760 = vmatprep.subr.mxu0 0.0
    %761 = vmatpush1.msra.mxu0 0.0
    %762 = vmatprep.subr.mxu0 0.0
    %763 = vmatpush1.msra.mxu0 0.0
    %764 = vmatprep.subr.mxu0 0.0
    %765 = vmatpush1.msra.mxu0 0.0
    %766 = vmatprep.subr.mxu0 0.0
    %767 = vmatpush1.msra.mxu0 0.0
    %768 = vmatprep.subr.mxu0 0.0
    %769 = vmatpush1.msra.mxu0 0.0
    %770 = vmatprep.subr.mxu0 0.0
    %771 = vmatpush1.msra.mxu0 0.0
    %772 = vmatprep.subr.mxu0 0.0
    %773 = vmatpush1.msra.mxu0 0.0
    %774 = vmatprep.subr.mxu0 0.0
    %775 = vmatpush1.msra.mxu0 0.0
    %776 = vmatprep.subr.mxu0 0.0
    %777 = vmatpush1.msra.mxu0 0.0
    %778 = vmatprep.subr.mxu0 0.0
    %779 = vmatpush1.msra.mxu0 0.0
    %780 = vmatprep.subr.mxu0 0.0
    %781 = vmatpush1.msra.mxu0 0.0
    %782 = vmatprep.subr.mxu0 0.0
    %783 = vmatpush1.msra.mxu0 0.0
    %784 = vmatprep.subr.mxu0 0.0
    %785 = vmatpush1.msra.mxu0 0.0
    %786 = vmatprep.mubr.f32.mxu0 0.0
    %787 = vmatmul.mubr.f32.gmra.mrb[0].mxu0 %v453
    %v788 = vpop.f32.mrb[0].mxu0
    %v789 = vadd.f32 %v720, %v788
    %v790 = vpop.f32.mrb[0].mxu0
    %791 = vmatprep.mubr.f32.mxu0 0.0
    %792 = vmatmul.mubr.f32.gmra.mrb[0].mxu0 %v454
    %v793 = vpop.f32.mrb[0].mxu0
    %v794 = vadd.f32 %v720, %v793
    %v795 = vpop.f32.mrb[0].mxu0
    %796 = vmatprep.mubr.f32.mxu0 0.0
    %797 = vmatmul.mubr.f32.gmra.mrb[0].mxu0 %v455
    %v798 = vpop.f32.mrb[0].mxu0
    %v799 = vadd.f32 %v720, %v798
    %v800 = vpop.f32.mrb[0].mxu0
    %801 = vmatprep.mubr.f32.mxu0 0.0
    %802 = vmatmul.mubr.f32.gmra.mrb[0].mxu0 %v456
    %v803 = vpop.f32.mrb[0].mxu0
    %v804 = vadd.f32 %v720, %v803
    %v805 = vpop.f32.mrb[0].mxu0
    %806 = vmatprep.mubr.f32.mxu0 0.0
    %807 = vmatmul.mubr.f32.gmra.mrb[0].mxu0 %v457
    %v808 = vpop.f32.mrb[0].mxu0
    %v809 = vadd.f32 %v720, %v808
    %v810 = vpop.f32.mrb[0].mxu0
    %811 = vmatprep.mubr.f32.mxu0 0.0
    %812 = vmatmul.mubr.f32.gmra.mrb[0].mxu0 %v458
    %v813 = vpop.f32.mrb[0].mxu0
    %v814 = vadd.f32 %v720, %v813
    %v815 = vpop.f32.mrb[0].mxu0
    %816 = vmatprep.mubr.f32.mxu0 0.0
    %817 = vmatmul.mubr.f32.gmra.mrb[0].mxu0 %v459
    %v818 = vpop.f32.mrb[0].mxu0
    %v819 = vadd.f32 %v720, %v818
    %v820 = vpop.f32.mrb[0].mxu0
    %821 = vmatprep.mubr.f32.mxu0 0.0
    %822 = vmatmul.mubr.f32.gmra.mrb[0].mxu0 %v460
    %v823 = vpop.f32.mrb[0].mxu0
    %v824 = vadd.f32 %v720, %v823
    %v825 = vpop.f32.mrb[0].mxu0
    %826 = vmatprep.mubr.f32.mxu0 0.0
    %827 = vmatmul.mubr.f32.gmra.mrb[0].mxu0 %v461
    %v828 = vpop.f32.mrb[0].mxu0
    %v829 = vadd.f32 %v720, %v828
    %v830 = vpop.f32.mrb[0].mxu0
    %831 = vmatprep.mubr.f32.mxu0 0.0
    %832 = vmatmul.mubr.f32.gmra.mrb[0].mxu0 %v462
    %v833 = vpop.f32.mrb[0].mxu0
    %v834 = vadd.f32 %v720, %v833
    %v835 = vpop.f32.mrb[0].mxu0
    %836 = vmatprep.mubr.f32.mxu0 0.0
    %837 = vmatmul.mubr.f32.gmra.mrb[0].mxu0 %v463
    %v838 = vpop.f32.mrb[0].mxu0
    %v839 = vadd.f32 %v720, %v838
    %v840 = vpop.f32.mrb[0].mxu0
    %841 = vmatprep.mubr.f32.mxu0 0.0
    %842 = vmatmul.mubr.f32.gmra.mrb[0].mxu0 %v464
    %v843 = vpop.f32.mrb[0].mxu0
    %v844 = vadd.f32 %v720, %v843
    %v845 = vpop.f32.mrb[0].mxu0
    %846 = vmatprep.mubr.f32.mxu0 0.0
    %847 = vmatmul.mubr.f32.gmra.mrb[0].mxu0 %v465
    %v848 = vpop.f32.mrb[0].mxu0
    %v849 = vadd.f32 %v720, %v848
    %v850 = vpop.f32.mrb[0].mxu0
    %851 = vmatprep.mubr.f32.mxu0 0.0
    %852 = vmatmul.mubr.f32.gmra.mrb[0].mxu0 %v466
    %v853 = vpop.f32.mrb[0].mxu0
    %v854 = vadd.f32 %v720, %v853
    %v855 = vpop.f32.mrb[0].mxu0
    %856 = vmatprep.mubr.f32.mxu0 0.0
    %857 = vmatmul.mubr.f32.gmra.mrb[0].mxu0 %v467
    %v858 = vpop.f32.mrb[0].mxu0
    %v859 = vadd.f32 %v720, %v858
    %v860 = vpop.f32.mrb[0].mxu0
    %861 = vmatprep.mubr.f32.mxu0 0.0
    %862 = vmatmul.mubr.f32.gmra.mrb[0].mxu0 %v468
    %v863 = vpop.f32.mrb[0].mxu0
    %v864 = vadd.f32 %v720, %v863
    %v865 = vpop.f32.mrb[0].mxu0
    %866 = vmatprep.mubr.f32.mxu0 0.0
    %867 = vmatmul.mubr.f32.gmra.mrb[0].mxu0 %v469
    %v868 = vpop.f32.mrb[0].mxu0
    %v869 = vadd.f32 %v720, %v868
    %v870 = vpop.f32.mrb[0].mxu0
    %871 = vmatprep.mubr.f32.mxu0 0.0
    %872 = vmatmul.mubr.f32.gmra.mrb[0].mxu0 %v470
    %v873 = vpop.f32.mrb[0].mxu0
    %v874 = vadd.f32 %v720, %v873
    %v875 = vpop.f32.mrb[0].mxu0
    %876 = vmatprep.mubr.f32.mxu0 0.0
    %877 = vmatmul.mubr.f32.gmra.mrb[0].mxu0 %v471
    %v878 = vpop.f32.mrb[0].mxu0
    %v879 = vadd.f32 %v720, %v878
    %v880 = vpop.f32.mrb[0].mxu0
    %881 = vmatprep.mubr.f32.mxu0 0.0
    %882 = vmatmul.mubr.f32.gmra.mrb[0].mxu0 %v472
    %v883 = vpop.f32.mrb[0].mxu0
    %v884 = vadd.f32 %v720, %v883
    %v885 = vpop.f32.mrb[0].mxu0
    %886 = vmatprep.mubr.f32.mxu0 0.0
    %887 = vmatmul.mubr.f32.gmra.mrb[0].mxu0 %v473
    %v888 = vpop.f32.mrb[0].mxu0
    %v889 = vadd.f32 %v720, %v888
    %v890 = vpop.f32.mrb[0].mxu0
    %891 = vmatprep.mubr.f32.mxu0 0.0
    %892 = vmatmul.mubr.f32.gmra.mrb[0].mxu0 %v474
    %v893 = vpop.f32.mrb[0].mxu0
    %v894 = vadd.f32 %v720, %v893
    %v895 = vpop.f32.mrb[0].mxu0
    %896 = vmatprep.mubr.f32.mxu0 0.0
    %897 = vmatmul.mubr.f32.gmra.mrb[0].mxu0 %v475
    %v898 = vpop.f32.mrb[0].mxu0
    %v899 = vadd.f32 %v720, %v898
    %v900 = vpop.f32.mrb[0].mxu0
    %901 = vmatprep.mubr.f32.mxu0 0.0
    %902 = vmatmul.mubr.f32.gmra.mrb[0].mxu0 %v476
    %v903 = vpop.f32.mrb[0].mxu0
    %v904 = vadd.f32 %v720, %v903
    %v905 = vpop.f32.mrb[0].mxu0
    %906 = vmatprep.mubr.f32.mxu0 0.0
    %907 = vmatmul.mubr.f32.gmra.mrb[0].mxu0 %v477
    %v908 = vpop.f32.mrb[0].mxu0
    %v909 = vadd.f32 %v720, %v908
    %v910 = vpop.f32.mrb[0].mxu0
    %911 = vmatprep.mubr.f32.mxu0 0.0
    %912 = vmatmul.mubr.f32.gmra.mrb[0].mxu0 %v478
    %v913 = vpop.f32.mrb[0].mxu0
    %v914 = vadd.f32 %v720, %v913
    %v915 = vpop.f32.mrb[0].mxu0
    %916 = vmatprep.mubr.f32.mxu0 0.0
    %917 = vmatmul.mubr.f32.gmra.mrb[0].mxu0 %v479
    %v918 = vpop.f32.mrb[0].mxu0
    %v919 = vadd.f32 %v720, %v918
    %v920 = vpop.f32.mrb[0].mxu0
    %921 = vmatprep.mubr.f32.mxu0 0.0
    %922 = vmatmul.mubr.f32.gmra.mrb[0].mxu0 %v480
    %v923 = vpop.f32.mrb[0].mxu0
    %v924 = vadd.f32 %v720, %v923
    %v925 = vpop.f32.mrb[0].mxu0
    %926 = vmatprep.mubr.f32.mxu0 0.0
    %927 = vmatmul.mubr.f32.gmra.mrb[0].mxu0 %v481
    %v928 = vpop.f32.mrb[0].mxu0
    %v929 = vadd.f32 %v720, %v928
    %v930 = vpop.f32.mrb[0].mxu0
    %931 = vmatprep.mubr.f32.mxu0 0.0
    %932 = vmatmul.mubr.f32.gmra.mrb[0].mxu0 %v482
    %v933 = vpop.f32.mrb[0].mxu0
    %v934 = vadd.f32 %v720, %v933
    %v935 = vpop.f32.mrb[0].mxu0
    %936 = vmatprep.mubr.f32.mxu0 0.0
    %937 = vmatmul.mubr.f32.gmra.mrb[0].mxu0 %v483
    %v938 = vpop.f32.mrb[0].mxu0
    %v939 = vadd.f32 %v720, %v938
    %v940 = vpop.f32.mrb[0].mxu0
    %941 = vmatprep.mubr.f32.mxu0 0.0
    %942 = vmatmul.mubr.f32.gmra.mrb[0].mxu0 %v484
    %v943 = vpop.f32.mrb[0].mxu0
    %v944 = vadd.f32 %v720, %v943
    %v945 = vpop.f32.mrb[0].mxu0
    %946 = vdwg.mxu0
    %v948 = vlaneseq
    %v949 = vshrl.u32 %v948, 7
    %v950 = vsub.s32 0, %v949
    %v951 = vrot.slane %v449, %v950
    %953 = vmatprep.subr.mxu0 0.0
    %954 = vmatpush1.msra.mxu0 %v558
    %955 = vmatprep.subr.mxu0 0.0
    %956 = vmatpush1.msra.mxu0 %v563
    %957 = vmatprep.subr.mxu0 0.0
    %958 = vmatpush1.msra.mxu0 %v568
    %959 = vmatprep.subr.mxu0 0.0
    %960 = vmatpush1.msra.mxu0 %v573
    %961 = vmatprep.subr.mxu0 0.0
    %962 = vmatpush1.msra.mxu0 %v578
    %963 = vmatprep.subr.mxu0 0.0
    %964 = vmatpush1.msra.mxu0 %v583
    %965 = vmatprep.subr.mxu0 0.0
    %966 = vmatpush1.msra.mxu0 %v588
    %967 = vmatprep.subr.mxu0 0.0
    %968 = vmatpush1.msra.mxu0 %v593
    %969 = vmatprep.subr.mxu0 0.0
    %970 = vmatpush1.msra.mxu0 %v598
    %971 = vmatprep.subr.mxu0 0.0
    %972 = vmatpush1.msra.mxu0 %v603
    %973 = vmatprep.subr.mxu0 0.0
    %974 = vmatpush1.msra.mxu0 %v608
    %975 = vmatprep.subr.mxu0 0.0
    %976 = vmatpush1.msra.mxu0 %v613
    %977 = vmatprep.subr.mxu0 0.0
    %978 = vmatpush1.msra.mxu0 %v618
    %979 = vmatprep.subr.mxu0 0.0
    %980 = vmatpush1.msra.mxu0 %v623
    %981 = vmatprep.subr.mxu0 0.0
    %982 = vmatpush1.msra.mxu0 %v628
    %983 = vmatprep.subr.mxu0 0.0
    %984 = vmatpush1.msra.mxu0 %v633
    %985 = vmatprep.subr.mxu0 0.0
    %986 = vmatpush1.msra.mxu0 %v638
    %987 = vmatprep.subr.mxu0 0.0
    %988 = vmatpush1.msra.mxu0 %v643
    %989 = vmatprep.subr.mxu0 0.0
    %990 = vmatpush1.msra.mxu0 %v648
    %991 = vmatprep.subr.mxu0 0.0
    %992 = vmatpush1.msra.mxu0 %v653
    %993 = vmatprep.subr.mxu0 0.0
    %994 = vmatpush1.msra.mxu0 %v658
    %995 = vmatprep.subr.mxu0 0.0
    %996 = vmatpush1.msra.mxu0 %v663
    %997 = vmatprep.subr.mxu0 0.0
    %998 = vmatpush1.msra.mxu0 %v668
    %999 = vmatprep.subr.mxu0 0.0
    %1000 = vmatpush1.msra.mxu0 %v673
    %1001 = vmatprep.subr.mxu0 0.0
    %1002 = vmatpush1.msra.mxu0 %v678
    %1003 = vmatprep.subr.mxu0 0.0
    %1004 = vmatpush1.msra.mxu0 %v683
    %1005 = vmatprep.subr.mxu0 0.0
    %1006 = vmatpush1.msra.mxu0 %v688
    %1007 = vmatprep.subr.mxu0 0.0
    %1008 = vmatpush1.msra.mxu0 %v693
    %1009 = vmatprep.subr.mxu0 0.0
    %1010 = vmatpush1.msra.mxu0 %v698
    %1011 = vmatprep.subr.mxu0 0.0
    %1012 = vmatpush1.msra.mxu0 %v703
    %1013 = vmatprep.subr.mxu0 0.0
    %1014 = vmatpush1.msra.mxu0 %v708
    %1015 = vmatprep.subr.mxu0 0.0
    %1016 = vmatpush1.msra.mxu0 %v713
    %1017 = vmatprep.mubr.f32.mxu0 %v144
    %1018 = vmatmul.mubr.f32.gmra.mrb[0].mxu0 %v143
    %v1019 = vpop.f32.mrb[0].mxu0
    %v1020 = vadd.f32 %v951, %v1019
    %v1021 = vpop.f32.mrb[0].mxu0
    %1022 = vmatprep.mubr.f32.mxu0 %v146
    %1023 = vmatmul.mubr.f32.gmra.mrb[0].mxu0 %v145
    %v1024 = vpop.f32.mrb[0].mxu0
    %v1025 = vadd.f32 %v951, %v1024
    %v1026 = vpop.f32.mrb[0].mxu0
    %1027 = vmatprep.mubr.f32.mxu0 %v148
    %1028 = vmatmul.mubr.f32.gmra.mrb[0].mxu0 %v147
    %v1029 = vpop.f32.mrb[0].mxu0
    %v1030 = vadd.f32 %v951, %v1029
    %v1031 = vpop.f32.mrb[0].mxu0
    %1032 = vmatprep.mubr.f32.mxu0 %v150
    %1033 = vmatmul.mubr.f32.gmra.mrb[0].mxu0 %v149
    %v1034 = vpop.f32.mrb[0].mxu0
    %v1035 = vadd.f32 %v951, %v1034
    %v1036 = vpop.f32.mrb[0].mxu0
    %1037 = vmatprep.mubr.f32.mxu0 %v152
    %1038 = vmatmul.mubr.f32.gmra.mrb[0].mxu0 %v151
    %v1039 = vpop.f32.mrb[0].mxu0
    %v1040 = vadd.f32 %v951, %v1039
    %v1041 = vpop.f32.mrb[0].mxu0
    %1042 = vmatprep.mubr.f32.mxu0 %v154
    %1043 = vmatmul.mubr.f32.gmra.mrb[0].mxu0 %v153
    %v1044 = vpop.f32.mrb[0].mxu0
    %v1045 = vadd.f32 %v951, %v1044
    %v1046 = vpop.f32.mrb[0].mxu0
    %1047 = vmatprep.mubr.f32.mxu0 %v156
    %1048 = vmatmul.mubr.f32.gmra.mrb[0].mxu0 %v155
    %v1049 = vpop.f32.mrb[0].mxu0
    %v1050 = vadd.f32 %v951, %v1049
    %v1051 = vpop.f32.mrb[0].mxu0
    %1052 = vmatprep.mubr.f32.mxu0 %v158
    %1053 = vmatmul.mubr.f32.gmra.mrb[0].mxu0 %v157
    %v1054 = vpop.f32.mrb[0].mxu0
    %v1055 = vadd.f32 %v951, %v1054
    %v1056 = vpop.f32.mrb[0].mxu0
    %1057 = vmatprep.mubr.f32.mxu0 %v160
    %1058 = vmatmul.mubr.f32.gmra.mrb[0].mxu0 %v159
    %v1059 = vpop.f32.mrb[0].mxu0
    %v1060 = vadd.f32 %v951, %v1059
    %v1061 = vpop.f32.mrb[0].mxu0
    %1062 = vmatprep.mubr.f32.mxu0 %v162
    %1063 = vmatmul.mubr.f32.gmra.mrb[0].mxu0 %v161
    %v1064 = vpop.f32.mrb[0].mxu0
    %v1065 = vadd.f32 %v951, %v1064
    %v1066 = vpop.f32.mrb[0].mxu0
    %1067 = vmatprep.mubr.f32.mxu0 %v164
    %1068 = vmatmul.mubr.f32.gmra.mrb[0].mxu0 %v163
    %v1069 = vpop.f32.mrb[0].mxu0
    %v1070 = vadd.f32 %v951, %v1069
    %v1071 = vpop.f32.mrb[0].mxu0
    %1072 = vmatprep.mubr.f32.mxu0 %v166
    %1073 = vmatmul.mubr.f32.gmra.mrb[0].mxu0 %v165
    %v1074 = vpop.f32.mrb[0].mxu0
    %v1075 = vadd.f32 %v951, %v1074
    %v1076 = vpop.f32.mrb[0].mxu0
    %1077 = vmatprep.mubr.f32.mxu0 %v168
    %1078 = vmatmul.mubr.f32.gmra.mrb[0].mxu0 %v167
    %v1079 = vpop.f32.mrb[0].mxu0
    %v1080 = vadd.f32 %v951, %v1079
    %v1081 = vpop.f32.mrb[0].mxu0
    %1082 = vmatprep.mubr.f32.mxu0 %v170
    %1083 = vmatmul.mubr.f32.gmra.mrb[0].mxu0 %v169
    %v1084 = vpop.f32.mrb[0].mxu0
    %v1085 = vadd.f32 %v951, %v1084
    %v1086 = vpop.f32.mrb[0].mxu0
    %1087 = vmatprep.mubr.f32.mxu0 %v172
    %1088 = vmatmul.mubr.f32.gmra.mrb[0].mxu0 %v171
    %v1089 = vpop.f32.mrb[0].mxu0
    %v1090 = vadd.f32 %v951, %v1089
    %v1091 = vpop.f32.mrb[0].mxu0
    %1092 = vmatprep.mubr.f32.mxu0 %v174
    %1093 = vmatmul.mubr.f32.gmra.mrb[0].mxu0 %v173
    %v1094 = vpop.f32.mrb[0].mxu0
    %v1095 = vadd.f32 %v951, %v1094
    %v1096 = vpop.f32.mrb[0].mxu0
    %1097 = vmatprep.mubr.f32.mxu0 %v176
    %1098 = vmatmul.mubr.f32.gmra.mrb[0].mxu0 %v175
    %v1099 = vpop.f32.mrb[0].mxu0
    %v1100 = vadd.f32 %v951, %v1099
    %v1101 = vpop.f32.mrb[0].mxu0
    %1102 = vmatprep.mubr.f32.mxu0 %v178
    %1103 = vmatmul.mubr.f32.gmra.mrb[0].mxu0 %v177
    %v1104 = vpop.f32.mrb[0].mxu0
    %v1105 = vadd.f32 %v951, %v1104
    %v1106 = vpop.f32.mrb[0].mxu0
    %1107 = vmatprep.mubr.f32.mxu0 %v180
    %1108 = vmatmul.mubr.f32.gmra.mrb[0].mxu0 %v179
    %v1109 = vpop.f32.mrb[0].mxu0
    %v1110 = vadd.f32 %v951, %v1109
    %v1111 = vpop.f32.mrb[0].mxu0
    %1112 = vmatprep.mubr.f32.mxu0 %v182
    %1113 = vmatmul.mubr.f32.gmra.mrb[0].mxu0 %v181
    %v1114 = vpop.f32.mrb[0].mxu0
    %v1115 = vadd.f32 %v951, %v1114
    %v1116 = vpop.f32.mrb[0].mxu0
    %1117 = vmatprep.mubr.f32.mxu0 %v184
    %1118 = vmatmul.mubr.f32.gmra.mrb[0].mxu0 %v183
    %v1119 = vpop.f32.mrb[0].mxu0
    %v1120 = vadd.f32 %v951, %v1119
    %v1121 = vpop.f32.mrb[0].mxu0
    %1122 = vmatprep.mubr.f32.mxu0 %v186
    %1123 = vmatmul.mubr.f32.gmra.mrb[0].mxu0 %v185
    %v1124 = vpop.f32.mrb[0].mxu0
    %v1125 = vadd.f32 %v951, %v1124
    %v1126 = vpop.f32.mrb[0].mxu0
    %1127 = vmatprep.mubr.f32.mxu0 %v188
    %1128 = vmatmul.mubr.f32.gmra.mrb[0].mxu0 %v187
    %v1129 = vpop.f32.mrb[0].mxu0
    %v1130 = vadd.f32 %v951, %v1129
    %v1131 = vpop.f32.mrb[0].mxu0
    %1132 = vmatprep.mubr.f32.mxu0 %v190
    %1133 = vmatmul.mubr.f32.gmra.mrb[0].mxu0 %v189
    %v1134 = vpop.f32.mrb[0].mxu0
    %v1135 = vadd.f32 %v951, %v1134
    %v1136 = vpop.f32.mrb[0].mxu0
    %1137 = vmatprep.mubr.f32.mxu0 %v192
    %1138 = vmatmul.mubr.f32.gmra.mrb[0].mxu0 %v191
    %v1139 = vpop.f32.mrb[0].mxu0
    %v1140 = vadd.f32 %v951, %v1139
    %v1141 = vpop.f32.mrb[0].mxu0
    %1142 = vmatprep.mubr.f32.mxu0 %v194
    %1143 = vmatmul.mubr.f32.gmra.mrb[0].mxu0 %v193
    %v1144 = vpop.f32.mrb[0].mxu0
    %v1145 = vadd.f32 %v951, %v1144
    %v1146 = vpop.f32.mrb[0].mxu0
    %1147 = vmatprep.mubr.f32.mxu0 %v196
    %1148 = vmatmul.mubr.f32.gmra.mrb[0].mxu0 %v195
    %v1149 = vpop.f32.mrb[0].mxu0
    %v1150 = vadd.f32 %v951, %v1149
    %v1151 = vpop.f32.mrb[0].mxu0
    %1152 = vmatprep.mubr.f32.mxu0 %v198
    %1153 = vmatmul.mubr.f32.gmra.mrb[0].mxu0 %v197
    %v1154 = vpop.f32.mrb[0].mxu0
    %v1155 = vadd.f32 %v951, %v1154
    %v1156 = vpop.f32.mrb[0].mxu0
    %1157 = vmatprep.mubr.f32.mxu0 %v200
    %1158 = vmatmul.mubr.f32.gmra.mrb[0].mxu0 %v199
    %v1159 = vpop.f32.mrb[0].mxu0
    %v1160 = vadd.f32 %v951, %v1159
    %v1161 = vpop.f32.mrb[0].mxu0
    %1162 = vmatprep.mubr.f32.mxu0 %v202
    %1163 = vmatmul.mubr.f32.gmra.mrb[0].mxu0 %v201
    %v1164 = vpop.f32.mrb[0].mxu0
    %v1165 = vadd.f32 %v951, %v1164
    %v1166 = vpop.f32.mrb[0].mxu0
    %1167 = vmatprep.mubr.f32.mxu0 %v204
    %1168 = vmatmul.mubr.f32.gmra.mrb[0].mxu0 %v203
    %v1169 = vpop.f32.mrb[0].mxu0
    %v1170 = vadd.f32 %v951, %v1169
    %v1171 = vpop.f32.mrb[0].mxu0
    %1172 = vmatprep.mubr.f32.mxu0 %v206
    %1173 = vmatmul.mubr.f32.gmra.mrb[0].mxu0 %v205
    %v1174 = vpop.f32.mrb[0].mxu0
    %v1175 = vadd.f32 %v951, %v1174
    %v1176 = vpop.f32.mrb[0].mxu0
    %1177 = vdwg.mxu0
    %v1179 = vlaneseq
    %v1180 = vshrl.u32 %v1179, 7
    %v1181 = vsub.s32 0, %v1180
    %v1182 = vrot.slane %v450, %v1181
    %1184 = vmatprep.subr.mxu0 0.0
    %1185 = vmatpush1.msra.mxu0 %v789
    %1186 = vmatprep.subr.mxu0 0.0
    %1187 = vmatpush1.msra.mxu0 %v794
    %1188 = vmatprep.subr.mxu0 0.0
    %1189 = vmatpush1.msra.mxu0 %v799
    %1190 = vmatprep.subr.mxu0 0.0
    %1191 = vmatpush1.msra.mxu0 %v804
    %1192 = vmatprep.subr.mxu0 0.0
    %1193 = vmatpush1.msra.mxu0 %v809
    %1194 = vmatprep.subr.mxu0 0.0
    %1195 = vmatpush1.msra.mxu0 %v814
    %1196 = vmatprep.subr.mxu0 0.0
    %1197 = vmatpush1.msra.mxu0 %v819
    %1198 = vmatprep.subr.mxu0 0.0
    %1199 = vmatpush1.msra.mxu0 %v824
    %1200 = vmatprep.subr.mxu0 0.0
    %1201 = vmatpush1.msra.mxu0 %v829
    %1202 = vmatprep.subr.mxu0 0.0
    %1203 = vmatpush1.msra.mxu0 %v834
    %1204 = vmatprep.subr.mxu0 0.0
    %1205 = vmatpush1.msra.mxu0 %v839
    %1206 = vmatprep.subr.mxu0 0.0
    %1207 = vmatpush1.msra.mxu0 %v844
    %1208 = vmatprep.subr.mxu0 0.0
    %1209 = vmatpush1.msra.mxu0 %v849
    %1210 = vmatprep.subr.mxu0 0.0
    %1211 = vmatpush1.msra.mxu0 %v854
    %1212 = vmatprep.subr.mxu0 0.0
    %1213 = vmatpush1.msra.mxu0 %v859
    %1214 = vmatprep.subr.mxu0 0.0
    %1215 = vmatpush1.msra.mxu0 %v864
    %1216 = vmatprep.subr.mxu0 0.0
    %1217 = vmatpush1.msra.mxu0 %v869
    %1218 = vmatprep.subr.mxu0 0.0
    %1219 = vmatpush1.msra.mxu0 %v874
    %1220 = vmatprep.subr.mxu0 0.0
    %1221 = vmatpush1.msra.mxu0 %v879
    %1222 = vmatprep.subr.mxu0 0.0
    %1223 = vmatpush1.msra.mxu0 %v884
    %1224 = vmatprep.subr.mxu0 0.0
    %1225 = vmatpush1.msra.mxu0 %v889
    %1226 = vmatprep.subr.mxu0 0.0
    %1227 = vmatpush1.msra.mxu0 %v894
    %1228 = vmatprep.subr.mxu0 0.0
    %1229 = vmatpush1.msra.mxu0 %v899
    %1230 = vmatprep.subr.mxu0 0.0
    %1231 = vmatpush1.msra.mxu0 %v904
    %1232 = vmatprep.subr.mxu0 0.0
    %1233 = vmatpush1.msra.mxu0 %v909
    %1234 = vmatprep.subr.mxu0 0.0
    %1235 = vmatpush1.msra.mxu0 %v914
    %1236 = vmatprep.subr.mxu0 0.0
    %1237 = vmatpush1.msra.mxu0 %v919
    %1238 = vmatprep.subr.mxu0 0.0
    %1239 = vmatpush1.msra.mxu0 %v924
    %1240 = vmatprep.subr.mxu0 0.0
    %1241 = vmatpush1.msra.mxu0 %v929
    %1242 = vmatprep.subr.mxu0 0.0
    %1243 = vmatpush1.msra.mxu0 %v934
    %1244 = vmatprep.subr.mxu0 0.0
    %1245 = vmatpush1.msra.mxu0 %v939
    %1246 = vmatprep.subr.mxu0 0.0
    %1247 = vmatpush1.msra.mxu0 %v944
    %1248 = vmatprep.mubr.f32.mxu0 %v208
    %1249 = vmatmul.mubr.f32.gmra.mrb[0].mxu0 %v207
    %v1250 = vpop.f32.mrb[0].mxu0
    %v1251 = vadd.f32 %v1182, %v1250
    %v1252 = vpop.f32.mrb[0].mxu0
    %1253 = vmatprep.mubr.f32.mxu0 %v210
    %1254 = vmatmul.mubr.f32.gmra.mrb[0].mxu0 %v209
    %v1255 = vpop.f32.mrb[0].mxu0
    %v1256 = vadd.f32 %v1182, %v1255
    %v1257 = vpop.f32.mrb[0].mxu0
    %1258 = vmatprep.mubr.f32.mxu0 %v212
    %1259 = vmatmul.mubr.f32.gmra.mrb[0].mxu0 %v211
    %v1260 = vpop.f32.mrb[0].mxu0
    %v1261 = vadd.f32 %v1182, %v1260
    %v1262 = vpop.f32.mrb[0].mxu0
    %1263 = vmatprep.mubr.f32.mxu0 %v214
    %1264 = vmatmul.mubr.f32.gmra.mrb[0].mxu0 %v213
    %v1265 = vpop.f32.mrb[0].mxu0
    %v1266 = vadd.f32 %v1182, %v1265
    %v1267 = vpop.f32.mrb[0].mxu0
    %1268 = vmatprep.mubr.f32.mxu0 %v216
    %1269 = vmatmul.mubr.f32.gmra.mrb[0].mxu0 %v215
    %v1270 = vpop.f32.mrb[0].mxu0
    %v1271 = vadd.f32 %v1182, %v1270
    %v1272 = vpop.f32.mrb[0].mxu0
    %1273 = vmatprep.mubr.f32.mxu0 %v218
    %1274 = vmatmul.mubr.f32.gmra.mrb[0].mxu0 %v217
    %v1275 = vpop.f32.mrb[0].mxu0
    %v1276 = vadd.f32 %v1182, %v1275
    %v1277 = vpop.f32.mrb[0].mxu0
    %1278 = vmatprep.mubr.f32.mxu0 %v220
    %1279 = vmatmul.mubr.f32.gmra.mrb[0].mxu0 %v219
    %v1280 = vpop.f32.mrb[0].mxu0
    %v1281 = vadd.f32 %v1182, %v1280
    %v1282 = vpop.f32.mrb[0].mxu0
    %1283 = vmatprep.mubr.f32.mxu0 %v222
    %1284 = vmatmul.mubr.f32.gmra.mrb[0].mxu0 %v221
    %v1285 = vpop.f32.mrb[0].mxu0
    %v1286 = vadd.f32 %v1182, %v1285
    %v1287 = vpop.f32.mrb[0].mxu0
    %1288 = vmatprep.mubr.f32.mxu0 %v224
    %1289 = vmatmul.mubr.f32.gmra.mrb[0].mxu0 %v223
    %v1290 = vpop.f32.mrb[0].mxu0
    %v1291 = vadd.f32 %v1182, %v1290
    %v1292 = vpop.f32.mrb[0].mxu0
    %1293 = vmatprep.mubr.f32.mxu0 %v226
    %1294 = vmatmul.mubr.f32.gmra.mrb[0].mxu0 %v225
    %v1295 = vpop.f32.mrb[0].mxu0
    %v1296 = vadd.f32 %v1182, %v1295
    %v1297 = vpop.f32.mrb[0].mxu0
    %1298 = vmatprep.mubr.f32.mxu0 %v228
    %1299 = vmatmul.mubr.f32.gmra.mrb[0].mxu0 %v227
    %v1300 = vpop.f32.mrb[0].mxu0
    %v1301 = vadd.f32 %v1182, %v1300
    %v1302 = vpop.f32.mrb[0].mxu0
    %1303 = vmatprep.mubr.f32.mxu0 %v230
    %1304 = vmatmul.mubr.f32.gmra.mrb[0].mxu0 %v229
    %v1305 = vpop.f32.mrb[0].mxu0
    %v1306 = vadd.f32 %v1182, %v1305
    %v1307 = vpop.f32.mrb[0].mxu0
    %1308 = vmatprep.mubr.f32.mxu0 %v232
    %1309 = vmatmul.mubr.f32.gmra.mrb[0].mxu0 %v231
    %v1310 = vpop.f32.mrb[0].mxu0
    %v1311 = vadd.f32 %v1182, %v1310
    %v1312 = vpop.f32.mrb[0].mxu0
    %1313 = vmatprep.mubr.f32.mxu0 %v234
    %1314 = vmatmul.mubr.f32.gmra.mrb[0].mxu0 %v233
    %v1315 = vpop.f32.mrb[0].mxu0
    %v1316 = vadd.f32 %v1182, %v1315
    %v1317 = vpop.f32.mrb[0].mxu0
    %1318 = vmatprep.mubr.f32.mxu0 %v236
    %1319 = vmatmul.mubr.f32.gmra.mrb[0].mxu0 %v235
    %v1320 = vpop.f32.mrb[0].mxu0
    %v1321 = vadd.f32 %v1182, %v1320
    %v1322 = vpop.f32.mrb[0].mxu0
    %1323 = vmatprep.mubr.f32.mxu0 %v238
    %1324 = vmatmul.mubr.f32.gmra.mrb[0].mxu0 %v237
    %v1325 = vpop.f32.mrb[0].mxu0
    %v1326 = vadd.f32 %v1182, %v1325
    %v1327 = vpop.f32.mrb[0].mxu0
    %1328 = vmatprep.mubr.f32.mxu0 %v240
    %1329 = vmatmul.mubr.f32.gmra.mrb[0].mxu0 %v239
    %v1330 = vpop.f32.mrb[0].mxu0
    %v1331 = vadd.f32 %v1182, %v1330
    %v1332 = vpop.f32.mrb[0].mxu0
    %1333 = vmatprep.mubr.f32.mxu0 %v242
    %1334 = vmatmul.mubr.f32.gmra.mrb[0].mxu0 %v241
    %v1335 = vpop.f32.mrb[0].mxu0
    %v1336 = vadd.f32 %v1182, %v1335
    %v1337 = vpop.f32.mrb[0].mxu0
    %1338 = vmatprep.mubr.f32.mxu0 %v244
    %1339 = vmatmul.mubr.f32.gmra.mrb[0].mxu0 %v243
    %v1340 = vpop.f32.mrb[0].mxu0
    %v1341 = vadd.f32 %v1182, %v1340
    %v1342 = vpop.f32.mrb[0].mxu0
    %1343 = vmatprep.mubr.f32.mxu0 %v246
    %1344 = vmatmul.mubr.f32.gmra.mrb[0].mxu0 %v245
    %v1345 = vpop.f32.mrb[0].mxu0
    %v1346 = vadd.f32 %v1182, %v1345
    %v1347 = vpop.f32.mrb[0].mxu0
    %1348 = vmatprep.mubr.f32.mxu0 %v248
    %1349 = vmatmul.mubr.f32.gmra.mrb[0].mxu0 %v247
    %v1350 = vpop.f32.mrb[0].mxu0
    %v1351 = vadd.f32 %v1182, %v1350
    %v1352 = vpop.f32.mrb[0].mxu0
    %1353 = vmatprep.mubr.f32.mxu0 %v250
    %1354 = vmatmul.mubr.f32.gmra.mrb[0].mxu0 %v249
    %v1355 = vpop.f32.mrb[0].mxu0
    %v1356 = vadd.f32 %v1182, %v1355
    %v1357 = vpop.f32.mrb[0].mxu0
    %1358 = vmatprep.mubr.f32.mxu0 %v252
    %1359 = vmatmul.mubr.f32.gmra.mrb[0].mxu0 %v251
    %v1360 = vpop.f32.mrb[0].mxu0
    %v1361 = vadd.f32 %v1182, %v1360
    %v1362 = vpop.f32.mrb[0].mxu0
    %1363 = vmatprep.mubr.f32.mxu0 %v254
    %1364 = vmatmul.mubr.f32.gmra.mrb[0].mxu0 %v253
    %v1365 = vpop.f32.mrb[0].mxu0
    %v1366 = vadd.f32 %v1182, %v1365
    %v1367 = vpop.f32.mrb[0].mxu0
    %1368 = vmatprep.mubr.f32.mxu0 %v256
    %1369 = vmatmul.mubr.f32.gmra.mrb[0].mxu0 %v255
    %v1370 = vpop.f32.mrb[0].mxu0
    %v1371 = vadd.f32 %v1182, %v1370
    %v1372 = vpop.f32.mrb[0].mxu0
    %1373 = vmatprep.mubr.f32.mxu0 %v258
    %1374 = vmatmul.mubr.f32.gmra.mrb[0].mxu0 %v257
    %v1375 = vpop.f32.mrb[0].mxu0
    %v1376 = vadd.f32 %v1182, %v1375
    %v1377 = vpop.f32.mrb[0].mxu0
    %1378 = vmatprep.mubr.f32.mxu0 %v260
    %1379 = vmatmul.mubr.f32.gmra.mrb[0].mxu0 %v259
    %v1380 = vpop.f32.mrb[0].mxu0
    %v1381 = vadd.f32 %v1182, %v1380
    %v1382 = vpop.f32.mrb[0].mxu0
    %1383 = vmatprep.mubr.f32.mxu0 %v262
    %1384 = vmatmul.mubr.f32.gmra.mrb[0].mxu0 %v261
    %v1385 = vpop.f32.mrb[0].mxu0
    %v1386 = vadd.f32 %v1182, %v1385
    %v1387 = vpop.f32.mrb[0].mxu0
    %1388 = vmatprep.mubr.f32.mxu0 %v264
    %1389 = vmatmul.mubr.f32.gmra.mrb[0].mxu0 %v263
    %v1390 = vpop.f32.mrb[0].mxu0
    %v1391 = vadd.f32 %v1182, %v1390
    %v1392 = vpop.f32.mrb[0].mxu0
    %1393 = vmatprep.mubr.f32.mxu0 %v266
    %1394 = vmatmul.mubr.f32.gmra.mrb[0].mxu0 %v265
    %v1395 = vpop.f32.mrb[0].mxu0
    %v1396 = vadd.f32 %v1182, %v1395
    %v1397 = vpop.f32.mrb[0].mxu0
    %1398 = vmatprep.mubr.f32.mxu0 %v268
    %1399 = vmatmul.mubr.f32.gmra.mrb[0].mxu0 %v267
    %v1400 = vpop.f32.mrb[0].mxu0
    %v1401 = vadd.f32 %v1182, %v1400
    %v1402 = vpop.f32.mrb[0].mxu0
    %1403 = vmatprep.mubr.f32.mxu0 %v270
    %1404 = vmatmul.mubr.f32.gmra.mrb[0].mxu0 %v269
    %v1405 = vpop.f32.mrb[0].mxu0
    %v1406 = vadd.f32 %v1182, %v1405
    %v1407 = vpop.f32.mrb[0].mxu0
    %1408 = vdwg.mxu0
    %1409 = vmatprep.subr.mxu0 %v352
    %1410 = vmatpush1.msra.mxu0 %v351
    %1411 = vmatprep.subr.mxu0 %v355
    %1412 = vmatpush1.msra.mxu0 %v354
    %1413 = vmatprep.subr.mxu0 %v358
    %1414 = vmatpush1.msra.mxu0 %v357
    %1415 = vmatprep.subr.mxu0 %v361
    %1416 = vmatpush1.msra.mxu0 %v360
    %1417 = vmatprep.subr.mxu0 %v364
    %1418 = vmatpush1.msra.mxu0 %v363
    %1419 = vmatprep.subr.mxu0 %v367
    %1420 = vmatpush1.msra.mxu0 %v366
    %1421 = vmatprep.subr.mxu0 %v370
    %1422 = vmatpush1.msra.mxu0 %v369
    %1423 = vmatprep.subr.mxu0 %v373
    %1424 = vmatpush1.msra.mxu0 %v372
    %1425 = vmatprep.subr.mxu0 %v376
    %1426 = vmatpush1.msra.mxu0 %v375
    %1427 = vmatprep.subr.mxu0 %v379
    %1428 = vmatpush1.msra.mxu0 %v378
    %1429 = vmatprep.subr.mxu0 %v382
    %1430 = vmatpush1.msra.mxu0 %v381
    %1431 = vmatprep.subr.mxu0 %v385
    %1432 = vmatpush1.msra.mxu0 %v384
    %1433 = vmatprep.subr.mxu0 %v388
    %1434 = vmatpush1.msra.mxu0 %v387
    %1435 = vmatprep.subr.mxu0 %v391
    %1436 = vmatpush1.msra.mxu0 %v390
    %1437 = vmatprep.subr.mxu0 %v394
    %1438 = vmatpush1.msra.mxu0 %v393
    %1439 = vmatprep.subr.mxu0 %v397
    %1440 = vmatpush1.msra.mxu0 %v396
    %1441 = vmatprep.subr.mxu0 0.0
    %1442 = vmatpush1.msra.mxu0 0.0
    %1443 = vmatprep.subr.mxu0 0.0
    %1444 = vmatpush1.msra.mxu0 0.0
    %1445 = vmatprep.subr.mxu0 0.0
    %1446 = vmatpush1.msra.mxu0 0.0
    %1447 = vmatprep.subr.mxu0 0.0
    %1448 = vmatpush1.msra.mxu0 0.0
    %1449 = vmatprep.subr.mxu0 0.0
    %1450 = vmatpush1.msra.mxu0 0.0
    %1451 = vmatprep.subr.mxu0 0.0
    %1452 = vmatpush1.msra.mxu0 0.0
    %1453 = vmatprep.subr.mxu0 0.0
    %1454 = vmatpush1.msra.mxu0 0.0
    %1455 = vmatprep.subr.mxu0 0.0
    %1456 = vmatpush1.msra.mxu0 0.0
    %1457 = vmatprep.subr.mxu0 0.0
    %1458 = vmatpush1.msra.mxu0 0.0
    %1459 = vmatprep.subr.mxu0 0.0
    %1460 = vmatpush1.msra.mxu0 0.0
    %1461 = vmatprep.subr.mxu0 0.0
    %1462 = vmatpush1.msra.mxu0 0.0
    %1463 = vmatprep.subr.mxu0 0.0
    %1464 = vmatpush1.msra.mxu0 0.0
    %1465 = vmatprep.subr.mxu0 0.0
    %1466 = vmatpush1.msra.mxu0 0.0
    %1467 = vmatprep.subr.mxu0 0.0
    %1468 = vmatpush1.msra.mxu0 0.0
    %1469 = vmatprep.subr.mxu0 0.0
    %1470 = vmatpush1.msra.mxu0 0.0
    %1471 = vmatprep.subr.mxu0 0.0
    %1472 = vmatpush1.msra.mxu0 0.0
    %1473 = vmatprep.mubr.f32.mxu0 0.0
    %1474 = vmatmul.mubr.f32.gmra.mrb[0].mxu0 %v1251
    %v1475 = vpop.f32.mrb[0].mxu0
    %v1476 = vadd.f32 0.0, %v1475
    %v1477 = vpop.f32.mrb[0].mxu0
    %v1478 = vadd.f32 0.0, %v1477
    %1479 = vmatprep.mubr.f32.mxu0 0.0
    %1480 = vmatmul.mubr.f32.gmra.mrb[0].mxu0 %v1256
    %v1481 = vpop.f32.mrb[0].mxu0
    %v1482 = vadd.f32 0.0, %v1481
    %v1483 = vpop.f32.mrb[0].mxu0
    %v1484 = vadd.f32 0.0, %v1483
    %1485 = vmatprep.mubr.f32.mxu0 0.0
    %1486 = vmatmul.mubr.f32.gmra.mrb[0].mxu0 %v1261
    %v1487 = vpop.f32.mrb[0].mxu0
    %v1488 = vadd.f32 0.0, %v1487
    %v1489 = vpop.f32.mrb[0].mxu0
    %v1490 = vadd.f32 0.0, %v1489
    %1491 = vmatprep.mubr.f32.mxu0 0.0
    %1492 = vmatmul.mubr.f32.gmra.mrb[0].mxu0 %v1266
    %v1493 = vpop.f32.mrb[0].mxu0
    %v1494 = vadd.f32 0.0, %v1493
    %v1495 = vpop.f32.mrb[0].mxu0
    %v1496 = vadd.f32 0.0, %v1495
    %1497 = vmatprep.mubr.f32.mxu0 0.0
    %1498 = vmatmul.mubr.f32.gmra.mrb[0].mxu0 %v1271
    %v1499 = vpop.f32.mrb[0].mxu0
    %v1500 = vadd.f32 0.0, %v1499
    %v1501 = vpop.f32.mrb[0].mxu0
    %v1502 = vadd.f32 0.0, %v1501
    %1503 = vmatprep.mubr.f32.mxu0 0.0
    %1504 = vmatmul.mubr.f32.gmra.mrb[0].mxu0 %v1276
    %v1505 = vpop.f32.mrb[0].mxu0
    %v1506 = vadd.f32 0.0, %v1505
    %v1507 = vpop.f32.mrb[0].mxu0
    %v1508 = vadd.f32 0.0, %v1507
    %1509 = vmatprep.mubr.f32.mxu0 0.0
    %1510 = vmatmul.mubr.f32.gmra.mrb[0].mxu0 %v1281
    %v1511 = vpop.f32.mrb[0].mxu0
    %v1512 = vadd.f32 0.0, %v1511
    %v1513 = vpop.f32.mrb[0].mxu0
    %v1514 = vadd.f32 0.0, %v1513
    %1515 = vmatprep.mubr.f32.mxu0 0.0
    %1516 = vmatmul.mubr.f32.gmra.mrb[0].mxu0 %v1286
    %v1517 = vpop.f32.mrb[0].mxu0
    %v1518 = vadd.f32 0.0, %v1517
    %v1519 = vpop.f32.mrb[0].mxu0
    %v1520 = vadd.f32 0.0, %v1519
    %1521 = vmatprep.mubr.f32.mxu0 0.0
    %1522 = vmatmul.mubr.f32.gmra.mrb[0].mxu0 %v1291
    %v1523 = vpop.f32.mrb[0].mxu0
    %v1524 = vadd.f32 0.0, %v1523
    %v1525 = vpop.f32.mrb[0].mxu0
    %v1526 = vadd.f32 0.0, %v1525
    %1527 = vmatprep.mubr.f32.mxu0 0.0
    %1528 = vmatmul.mubr.f32.gmra.mrb[0].mxu0 %v1296
    %v1529 = vpop.f32.mrb[0].mxu0
    %v1530 = vadd.f32 0.0, %v1529
    %v1531 = vpop.f32.mrb[0].mxu0
    %v1532 = vadd.f32 0.0, %v1531
    %1533 = vmatprep.mubr.f32.mxu0 0.0
    %1534 = vmatmul.mubr.f32.gmra.mrb[0].mxu0 %v1301
    %v1535 = vpop.f32.mrb[0].mxu0
    %v1536 = vadd.f32 0.0, %v1535
    %v1537 = vpop.f32.mrb[0].mxu0
    %v1538 = vadd.f32 0.0, %v1537
    %1539 = vmatprep.mubr.f32.mxu0 0.0
    %1540 = vmatmul.mubr.f32.gmra.mrb[0].mxu0 %v1306
    %v1541 = vpop.f32.mrb[0].mxu0
    %v1542 = vadd.f32 0.0, %v1541
    %v1543 = vpop.f32.mrb[0].mxu0
    %v1544 = vadd.f32 0.0, %v1543
    %1545 = vmatprep.mubr.f32.mxu0 0.0
    %1546 = vmatmul.mubr.f32.gmra.mrb[0].mxu0 %v1311
    %v1547 = vpop.f32.mrb[0].mxu0
    %v1548 = vadd.f32 0.0, %v1547
    %v1549 = vpop.f32.mrb[0].mxu0
    %v1550 = vadd.f32 0.0, %v1549
    %1551 = vmatprep.mubr.f32.mxu0 0.0
    %1552 = vmatmul.mubr.f32.gmra.mrb[0].mxu0 %v1316
    %v1553 = vpop.f32.mrb[0].mxu0
    %v1554 = vadd.f32 0.0, %v1553
    %v1555 = vpop.f32.mrb[0].mxu0
    %v1556 = vadd.f32 0.0, %v1555
    %1557 = vmatprep.mubr.f32.mxu0 0.0
    %1558 = vmatmul.mubr.f32.gmra.mrb[0].mxu0 %v1321
    %v1559 = vpop.f32.mrb[0].mxu0
    %v1560 = vadd.f32 0.0, %v1559
    %v1561 = vpop.f32.mrb[0].mxu0
    %v1562 = vadd.f32 0.0, %v1561
    %1563 = vmatprep.mubr.f32.mxu0 0.0
    %1564 = vmatmul.mubr.f32.gmra.mrb[0].mxu0 %v1326
    %v1565 = vpop.f32.mrb[0].mxu0
    %v1566 = vadd.f32 0.0, %v1565
    %v1567 = vpop.f32.mrb[0].mxu0
    %v1568 = vadd.f32 0.0, %v1567
    %1569 = vmatprep.mubr.f32.mxu0 0.0
    %1570 = vmatmul.mubr.f32.gmra.mrb[0].mxu0 %v1331
    %v1571 = vpop.f32.mrb[0].mxu0
    %v1572 = vadd.f32 0.0, %v1571
    %v1573 = vpop.f32.mrb[0].mxu0
    %v1574 = vadd.f32 0.0, %v1573
    %1575 = vmatprep.mubr.f32.mxu0 0.0
    %1576 = vmatmul.mubr.f32.gmra.mrb[0].mxu0 %v1336
    %v1577 = vpop.f32.mrb[0].mxu0
    %v1578 = vadd.f32 0.0, %v1577
    %v1579 = vpop.f32.mrb[0].mxu0
    %v1580 = vadd.f32 0.0, %v1579
    %1581 = vmatprep.mubr.f32.mxu0 0.0
    %1582 = vmatmul.mubr.f32.gmra.mrb[0].mxu0 %v1341
    %v1583 = vpop.f32.mrb[0].mxu0
    %v1584 = vadd.f32 0.0, %v1583
    %v1585 = vpop.f32.mrb[0].mxu0
    %v1586 = vadd.f32 0.0, %v1585
    %1587 = vmatprep.mubr.f32.mxu0 0.0
    %1588 = vmatmul.mubr.f32.gmra.mrb[0].mxu0 %v1346
    %v1589 = vpop.f32.mrb[0].mxu0
    %v1590 = vadd.f32 0.0, %v1589
    %v1591 = vpop.f32.mrb[0].mxu0
    %v1592 = vadd.f32 0.0, %v1591
    %1593 = vmatprep.mubr.f32.mxu0 0.0
    %1594 = vmatmul.mubr.f32.gmra.mrb[0].mxu0 %v1351
    %v1595 = vpop.f32.mrb[0].mxu0
    %v1596 = vadd.f32 0.0, %v1595
    %v1597 = vpop.f32.mrb[0].mxu0
    %v1598 = vadd.f32 0.0, %v1597
    %1599 = vmatprep.mubr.f32.mxu0 0.0
    %1600 = vmatmul.mubr.f32.gmra.mrb[0].mxu0 %v1356
    %v1601 = vpop.f32.mrb[0].mxu0
    %v1602 = vadd.f32 0.0, %v1601
    %v1603 = vpop.f32.mrb[0].mxu0
    %v1604 = vadd.f32 0.0, %v1603
    %1605 = vmatprep.mubr.f32.mxu0 0.0
    %1606 = vmatmul.mubr.f32.gmra.mrb[0].mxu0 %v1361
    %v1607 = vpop.f32.mrb[0].mxu0
    %v1608 = vadd.f32 0.0, %v1607
    %v1609 = vpop.f32.mrb[0].mxu0
    %v1610 = vadd.f32 0.0, %v1609
    %1611 = vmatprep.mubr.f32.mxu0 0.0
    %1612 = vmatmul.mubr.f32.gmra.mrb[0].mxu0 %v1366
    %v1613 = vpop.f32.mrb[0].mxu0
    %v1614 = vadd.f32 0.0, %v1613
    %v1615 = vpop.f32.mrb[0].mxu0
    %v1616 = vadd.f32 0.0, %v1615
    %1617 = vmatprep.mubr.f32.mxu0 0.0
    %1618 = vmatmul.mubr.f32.gmra.mrb[0].mxu0 %v1371
    %v1619 = vpop.f32.mrb[0].mxu0
    %v1620 = vadd.f32 0.0, %v1619
    %v1621 = vpop.f32.mrb[0].mxu0
    %v1622 = vadd.f32 0.0, %v1621
    %1623 = vmatprep.mubr.f32.mxu0 0.0
    %1624 = vmatmul.mubr.f32.gmra.mrb[0].mxu0 %v1376
    %v1625 = vpop.f32.mrb[0].mxu0
    %v1626 = vadd.f32 0.0, %v1625
    %v1627 = vpop.f32.mrb[0].mxu0
    %v1628 = vadd.f32 0.0, %v1627
    %1629 = vmatprep.mubr.f32.mxu0 0.0
    %1630 = vmatmul.mubr.f32.gmra.mrb[0].mxu0 %v1381
    %v1631 = vpop.f32.mrb[0].mxu0
    %v1632 = vadd.f32 0.0, %v1631
    %v1633 = vpop.f32.mrb[0].mxu0
    %v1634 = vadd.f32 0.0, %v1633
    %1635 = vmatprep.mubr.f32.mxu0 0.0
    %1636 = vmatmul.mubr.f32.gmra.mrb[0].mxu0 %v1386
    %v1637 = vpop.f32.mrb[0].mxu0
    %v1638 = vadd.f32 0.0, %v1637
    %v1639 = vpop.f32.mrb[0].mxu0
    %v1640 = vadd.f32 0.0, %v1639
    %1641 = vmatprep.mubr.f32.mxu0 0.0
    %1642 = vmatmul.mubr.f32.gmra.mrb[0].mxu0 %v1391
    %v1643 = vpop.f32.mrb[0].mxu0
    %v1644 = vadd.f32 0.0, %v1643
    %v1645 = vpop.f32.mrb[0].mxu0
    %v1646 = vadd.f32 0.0, %v1645
    %1647 = vmatprep.mubr.f32.mxu0 0.0
    %1648 = vmatmul.mubr.f32.gmra.mrb[0].mxu0 %v1396
    %v1649 = vpop.f32.mrb[0].mxu0
    %v1650 = vadd.f32 0.0, %v1649
    %v1651 = vpop.f32.mrb[0].mxu0
    %v1652 = vadd.f32 0.0, %v1651
    %1653 = vmatprep.mubr.f32.mxu0 0.0
    %1654 = vmatmul.mubr.f32.gmra.mrb[0].mxu0 %v1401
    %v1655 = vpop.f32.mrb[0].mxu0
    %v1656 = vadd.f32 0.0, %v1655
    %v1657 = vpop.f32.mrb[0].mxu0
    %v1658 = vadd.f32 0.0, %v1657
    %1659 = vmatprep.mubr.f32.mxu0 0.0
    %1660 = vmatmul.mubr.f32.gmra.mrb[0].mxu0 %v1406
    %v1661 = vpop.f32.mrb[0].mxu0
    %v1662 = vadd.f32 0.0, %v1661
    %v1663 = vpop.f32.mrb[0].mxu0
    %v1664 = vadd.f32 0.0, %v1663
    %1665 = vdwg.mxu0
    %1666 = vmatprep.subr.mxu0 0.0
    %1667 = vmatpush1.msra.mxu0 %v353
    %1668 = vmatprep.subr.mxu0 0.0
    %1669 = vmatpush1.msra.mxu0 %v356
    %1670 = vmatprep.subr.mxu0 0.0
    %1671 = vmatpush1.msra.mxu0 %v359
    %1672 = vmatprep.subr.mxu0 0.0
    %1673 = vmatpush1.msra.mxu0 %v362
    %1674 = vmatprep.subr.mxu0 0.0
    %1675 = vmatpush1.msra.mxu0 %v365
    %1676 = vmatprep.subr.mxu0 0.0
    %1677 = vmatpush1.msra.mxu0 %v368
    %1678 = vmatprep.subr.mxu0 0.0
    %1679 = vmatpush1.msra.mxu0 %v371
    %1680 = vmatprep.subr.mxu0 0.0
    %1681 = vmatpush1.msra.mxu0 %v374
    %1682 = vmatprep.subr.mxu0 0.0
    %1683 = vmatpush1.msra.mxu0 %v377
    %1684 = vmatprep.subr.mxu0 0.0
    %1685 = vmatpush1.msra.mxu0 %v380
    %1686 = vmatprep.subr.mxu0 0.0
    %1687 = vmatpush1.msra.mxu0 %v383
    %1688 = vmatprep.subr.mxu0 0.0
    %1689 = vmatpush1.msra.mxu0 %v386
    %1690 = vmatprep.subr.mxu0 0.0
    %1691 = vmatpush1.msra.mxu0 %v389
    %1692 = vmatprep.subr.mxu0 0.0
    %1693 = vmatpush1.msra.mxu0 %v392
    %1694 = vmatprep.subr.mxu0 0.0
    %1695 = vmatpush1.msra.mxu0 %v395
    %1696 = vmatprep.subr.mxu0 0.0
    %1697 = vmatpush1.msra.mxu0 %v398
    %1698 = vmatprep.subr.mxu0 0.0
    %1699 = vmatpush1.msra.mxu0 0.0
    %1700 = vmatprep.subr.mxu0 0.0
    %1701 = vmatpush1.msra.mxu0 0.0
    %1702 = vmatprep.subr.mxu0 0.0
    %1703 = vmatpush1.msra.mxu0 0.0
    %1704 = vmatprep.subr.mxu0 0.0
    %1705 = vmatpush1.msra.mxu0 0.0
    %1706 = vmatprep.subr.mxu0 0.0
    %1707 = vmatpush1.msra.mxu0 0.0
    %1708 = vmatprep.subr.mxu0 0.0
    %1709 = vmatpush1.msra.mxu0 0.0
    %1710 = vmatprep.subr.mxu0 0.0
    %1711 = vmatpush1.msra.mxu0 0.0
    %1712 = vmatprep.subr.mxu0 0.0
    %1713 = vmatpush1.msra.mxu0 0.0
    %1714 = vmatprep.subr.mxu0 0.0
    %1715 = vmatpush1.msra.mxu0 0.0
    %1716 = vmatprep.subr.mxu0 0.0
    %1717 = vmatpush1.msra.mxu0 0.0
    %1718 = vmatprep.subr.mxu0 0.0
    %1719 = vmatpush1.msra.mxu0 0.0
    %1720 = vmatprep.subr.mxu0 0.0
    %1721 = vmatpush1.msra.mxu0 0.0
    %1722 = vmatprep.subr.mxu0 0.0
    %1723 = vmatpush1.msra.mxu0 0.0
    %1724 = vmatprep.subr.mxu0 0.0
    %1725 = vmatpush1.msra.mxu0 0.0
    %1726 = vmatprep.subr.mxu0 0.0
    %1727 = vmatpush1.msra.mxu0 0.0
    %1728 = vmatprep.subr.mxu0 0.0
    %1729 = vmatpush1.msra.mxu0 0.0
    %1730 = vmatprep.mubr.f32.mxu0 0.0
    %1731 = vmatmul.mubr.f32.gmra.mrb[0].mxu0 %v1251
    %v1732 = vpop.f32.mrb[0].mxu0
    %v1733 = vadd.f32 0.0, %v1732
    %v1734 = vpop.f32.mrb[0].mxu0
    %1735 = vmatprep.mubr.f32.mxu0 0.0
    %1736 = vmatmul.mubr.f32.gmra.mrb[0].mxu0 %v1256
    %v1737 = vpop.f32.mrb[0].mxu0
    %v1738 = vadd.f32 0.0, %v1737
    %v1739 = vpop.f32.mrb[0].mxu0
    %1740 = vmatprep.mubr.f32.mxu0 0.0
    %1741 = vmatmul.mubr.f32.gmra.mrb[0].mxu0 %v1261
    %v1742 = vpop.f32.mrb[0].mxu0
    %v1743 = vadd.f32 0.0, %v1742
    %v1744 = vpop.f32.mrb[0].mxu0
    %1745 = vmatprep.mubr.f32.mxu0 0.0
    %1746 = vmatmul.mubr.f32.gmra.mrb[0].mxu0 %v1266
    %v1747 = vpop.f32.mrb[0].mxu0
    %v1748 = vadd.f32 0.0, %v1747
    %v1749 = vpop.f32.mrb[0].mxu0
    %1750 = vmatprep.mubr.f32.mxu0 0.0
    %1751 = vmatmul.mubr.f32.gmra.mrb[0].mxu0 %v1271
    %v1752 = vpop.f32.mrb[0].mxu0
    %v1753 = vadd.f32 0.0, %v1752
    %v1754 = vpop.f32.mrb[0].mxu0
    %1755 = vmatprep.mubr.f32.mxu0 0.0
    %1756 = vmatmul.mubr.f32.gmra.mrb[0].mxu0 %v1276
    %v1757 = vpop.f32.mrb[0].mxu0
    %v1758 = vadd.f32 0.0, %v1757
    %v1759 = vpop.f32.mrb[0].mxu0
    %1760 = vmatprep.mubr.f32.mxu0 0.0
    %1761 = vmatmul.mubr.f32.gmra.mrb[0].mxu0 %v1281
    %v1762 = vpop.f32.mrb[0].mxu0
    %v1763 = vadd.f32 0.0, %v1762
    %v1764 = vpop.f32.mrb[0].mxu0
    %1765 = vmatprep.mubr.f32.mxu0 0.0
    %1766 = vmatmul.mubr.f32.gmra.mrb[0].mxu0 %v1286
    %v1767 = vpop.f32.mrb[0].mxu0
    %v1768 = vadd.f32 0.0, %v1767
    %v1769 = vpop.f32.mrb[0].mxu0
    %1770 = vmatprep.mubr.f32.mxu0 0.0
    %1771 = vmatmul.mubr.f32.gmra.mrb[0].mxu0 %v1291
    %v1772 = vpop.f32.mrb[0].mxu0
    %v1773 = vadd.f32 0.0, %v1772
    %v1774 = vpop.f32.mrb[0].mxu0
    %1775 = vmatprep.mubr.f32.mxu0 0.0
    %1776 = vmatmul.mubr.f32.gmra.mrb[0].mxu0 %v1296
    %v1777 = vpop.f32.mrb[0].mxu0
    %v1778 = vadd.f32 0.0, %v1777
    %v1779 = vpop.f32.mrb[0].mxu0
    %1780 = vmatprep.mubr.f32.mxu0 0.0
    %1781 = vmatmul.mubr.f32.gmra.mrb[0].mxu0 %v1301
    %v1782 = vpop.f32.mrb[0].mxu0
    %v1783 = vadd.f32 0.0, %v1782
    %v1784 = vpop.f32.mrb[0].mxu0
    %1785 = vmatprep.mubr.f32.mxu0 0.0
    %1786 = vmatmul.mubr.f32.gmra.mrb[0].mxu0 %v1306
    %v1787 = vpop.f32.mrb[0].mxu0
    %v1788 = vadd.f32 0.0, %v1787
    %v1789 = vpop.f32.mrb[0].mxu0
    %1790 = vmatprep.mubr.f32.mxu0 0.0
    %1791 = vmatmul.mubr.f32.gmra.mrb[0].mxu0 %v1311
    %v1792 = vpop.f32.mrb[0].mxu0
    %v1793 = vadd.f32 0.0, %v1792
    %v1794 = vpop.f32.mrb[0].mxu0
    %1795 = vmatprep.mubr.f32.mxu0 0.0
    %1796 = vmatmul.mubr.f32.gmra.mrb[0].mxu0 %v1316
    %v1797 = vpop.f32.mrb[0].mxu0
    %v1798 = vadd.f32 0.0, %v1797
    %v1799 = vpop.f32.mrb[0].mxu0
    %1800 = vmatprep.mubr.f32.mxu0 0.0
    %1801 = vmatmul.mubr.f32.gmra.mrb[0].mxu0 %v1321
    %v1802 = vpop.f32.mrb[0].mxu0
    %v1803 = vadd.f32 0.0, %v1802
    %v1804 = vpop.f32.mrb[0].mxu0
    %1805 = vmatprep.mubr.f32.mxu0 0.0
    %1806 = vmatmul.mubr.f32.gmra.mrb[0].mxu0 %v1326
    %v1807 = vpop.f32.mrb[0].mxu0
    %v1808 = vadd.f32 0.0, %v1807
    %v1809 = vpop.f32.mrb[0].mxu0
    %1810 = vmatprep.mubr.f32.mxu0 0.0
    %1811 = vmatmul.mubr.f32.gmra.mrb[0].mxu0 %v1331
    %v1812 = vpop.f32.mrb[0].mxu0
    %v1813 = vadd.f32 0.0, %v1812
    %v1814 = vpop.f32.mrb[0].mxu0
    %1815 = vmatprep.mubr.f32.mxu0 0.0
    %1816 = vmatmul.mubr.f32.gmra.mrb[0].mxu0 %v1336
    %v1817 = vpop.f32.mrb[0].mxu0
    %v1818 = vadd.f32 0.0, %v1817
    %v1819 = vpop.f32.mrb[0].mxu0
    %1820 = vmatprep.mubr.f32.mxu0 0.0
    %1821 = vmatmul.mubr.f32.gmra.mrb[0].mxu0 %v1341
    %v1822 = vpop.f32.mrb[0].mxu0
    %v1823 = vadd.f32 0.0, %v1822
    %v1824 = vpop.f32.mrb[0].mxu0
    %1825 = vmatprep.mubr.f32.mxu0 0.0
    %1826 = vmatmul.mubr.f32.gmra.mrb[0].mxu0 %v1346
    %v1827 = vpop.f32.mrb[0].mxu0
    %v1828 = vadd.f32 0.0, %v1827
    %v1829 = vpop.f32.mrb[0].mxu0
    %1830 = vmatprep.mubr.f32.mxu0 0.0
    %1831 = vmatmul.mubr.f32.gmra.mrb[0].mxu0 %v1351
    %v1832 = vpop.f32.mrb[0].mxu0
    %v1833 = vadd.f32 0.0, %v1832
    %v1834 = vpop.f32.mrb[0].mxu0
    %1835 = vmatprep.mubr.f32.mxu0 0.0
    %1836 = vmatmul.mubr.f32.gmra.mrb[0].mxu0 %v1356
    %v1837 = vpop.f32.mrb[0].mxu0
    %v1838 = vadd.f32 0.0, %v1837
    %v1839 = vpop.f32.mrb[0].mxu0
    %1840 = vmatprep.mubr.f32.mxu0 0.0
    %1841 = vmatmul.mubr.f32.gmra.mrb[0].mxu0 %v1361
    %v1842 = vpop.f32.mrb[0].mxu0
    %v1843 = vadd.f32 0.0, %v1842
    %v1844 = vpop.f32.mrb[0].mxu0
    %1845 = vmatprep.mubr.f32.mxu0 0.0
    %1846 = vmatmul.mubr.f32.gmra.mrb[0].mxu0 %v1366
    %v1847 = vpop.f32.mrb[0].mxu0
    %v1848 = vadd.f32 0.0, %v1847
    %v1849 = vpop.f32.mrb[0].mxu0
    %1850 = vmatprep.mubr.f32.mxu0 0.0
    %1851 = vmatmul.mubr.f32.gmra.mrb[0].mxu0 %v1371
    %v1852 = vpop.f32.mrb[0].mxu0
    %v1853 = vadd.f32 0.0, %v1852
    %v1854 = vpop.f32.mrb[0].mxu0
    %1855 = vmatprep.mubr.f32.mxu0 0.0
    %1856 = vmatmul.mubr.f32.gmra.mrb[0].mxu0 %v1376
    %v1857 = vpop.f32.mrb[0].mxu0
    %v1858 = vadd.f32 0.0, %v1857
    %v1859 = vpop.f32.mrb[0].mxu0
    %1860 = vmatprep.mubr.f32.mxu0 0.0
    %1861 = vmatmul.mubr.f32.gmra.mrb[0].mxu0 %v1381
    %v1862 = vpop.f32.mrb[0].mxu0
    %v1863 = vadd.f32 0.0, %v1862
    %v1864 = vpop.f32.mrb[0].mxu0
    %1865 = vmatprep.mubr.f32.mxu0 0.0
    %1866 = vmatmul.mubr.f32.gmra.mrb[0].mxu0 %v1386
    %v1867 = vpop.f32.mrb[0].mxu0
    %v1868 = vadd.f32 0.0, %v1867
    %v1869 = vpop.f32.mrb[0].mxu0
    %1870 = vmatprep.mubr.f32.mxu0 0.0
    %1871 = vmatmul.mubr.f32.gmra.mrb[0].mxu0 %v1391
    %v1872 = vpop.f32.mrb[0].mxu0
    %v1873 = vadd.f32 0.0, %v1872
    %v1874 = vpop.f32.mrb[0].mxu0
    %1875 = vmatprep.mubr.f32.mxu0 0.0
    %1876 = vmatmul.mubr.f32.gmra.mrb[0].mxu0 %v1396
    %v1877 = vpop.f32.mrb[0].mxu0
    %v1878 = vadd.f32 0.0, %v1877
    %v1879 = vpop.f32.mrb[0].mxu0
    %1880 = vmatprep.mubr.f32.mxu0 0.0
    %1881 = vmatmul.mubr.f32.gmra.mrb[0].mxu0 %v1401
    %v1882 = vpop.f32.mrb[0].mxu0
    %v1883 = vadd.f32 0.0, %v1882
    %v1884 = vpop.f32.mrb[0].mxu0
    %1885 = vmatprep.mubr.f32.mxu0 0.0
    %1886 = vmatmul.mubr.f32.gmra.mrb[0].mxu0 %v1406
    %v1887 = vpop.f32.mrb[0].mxu0
    %v1888 = vadd.f32 0.0, %v1887
    %v1889 = vpop.f32.mrb[0].mxu0
    %1890 = vdwg.mxu0
    %1891 = vmatprep.subr.mxu0 %v304
    %1892 = vmatpush1.msra.mxu0 %v303
    %1893 = vmatprep.subr.mxu0 %v307
    %1894 = vmatpush1.msra.mxu0 %v306
    %1895 = vmatprep.subr.mxu0 %v310
    %1896 = vmatpush1.msra.mxu0 %v309
    %1897 = vmatprep.subr.mxu0 %v313
    %1898 = vmatpush1.msra.mxu0 %v312
    %1899 = vmatprep.subr.mxu0 %v316
    %1900 = vmatpush1.msra.mxu0 %v315
    %1901 = vmatprep.subr.mxu0 %v319
    %1902 = vmatpush1.msra.mxu0 %v318
    %1903 = vmatprep.subr.mxu0 %v322
    %1904 = vmatpush1.msra.mxu0 %v321
    %1905 = vmatprep.subr.mxu0 %v325
    %1906 = vmatpush1.msra.mxu0 %v324
    %1907 = vmatprep.subr.mxu0 %v328
    %1908 = vmatpush1.msra.mxu0 %v327
    %1909 = vmatprep.subr.mxu0 %v331
    %1910 = vmatpush1.msra.mxu0 %v330
    %1911 = vmatprep.subr.mxu0 %v334
    %1912 = vmatpush1.msra.mxu0 %v333
    %1913 = vmatprep.subr.mxu0 %v337
    %1914 = vmatpush1.msra.mxu0 %v336
    %1915 = vmatprep.subr.mxu0 %v340
    %1916 = vmatpush1.msra.mxu0 %v339
    %1917 = vmatprep.subr.mxu0 %v343
    %1918 = vmatpush1.msra.mxu0 %v342
    %1919 = vmatprep.subr.mxu0 %v346
    %1920 = vmatpush1.msra.mxu0 %v345
    %1921 = vmatprep.subr.mxu0 %v349
    %1922 = vmatpush1.msra.mxu0 %v348
    %1923 = vmatprep.subr.mxu0 0.0
    %1924 = vmatpush1.msra.mxu0 0.0
    %1925 = vmatprep.subr.mxu0 0.0
    %1926 = vmatpush1.msra.mxu0 0.0
    %1927 = vmatprep.subr.mxu0 0.0
    %1928 = vmatpush1.msra.mxu0 0.0
    %1929 = vmatprep.subr.mxu0 0.0
    %1930 = vmatpush1.msra.mxu0 0.0
    %1931 = vmatprep.subr.mxu0 0.0
    %1932 = vmatpush1.msra.mxu0 0.0
    %1933 = vmatprep.subr.mxu0 0.0
    %1934 = vmatpush1.msra.mxu0 0.0
    %1935 = vmatprep.subr.mxu0 0.0
    %1936 = vmatpush1.msra.mxu0 0.0
    %1937 = vmatprep.subr.mxu0 0.0
    %1938 = vmatpush1.msra.mxu0 0.0
    %1939 = vmatprep.subr.mxu0 0.0
    %1940 = vmatpush1.msra.mxu0 0.0
    %1941 = vmatprep.subr.mxu0 0.0
    %1942 = vmatpush1.msra.mxu0 0.0
    %1943 = vmatprep.subr.mxu0 0.0
    %1944 = vmatpush1.msra.mxu0 0.0
    %1945 = vmatprep.subr.mxu0 0.0
    %1946 = vmatpush1.msra.mxu0 0.0
    %1947 = vmatprep.subr.mxu0 0.0
    %1948 = vmatpush1.msra.mxu0 0.0
    %1949 = vmatprep.subr.mxu0 0.0
    %1950 = vmatpush1.msra.mxu0 0.0
    %1951 = vmatprep.subr.mxu0 0.0
    %1952 = vmatpush1.msra.mxu0 0.0
    %1953 = vmatprep.subr.mxu0 0.0
    %1954 = vmatpush1.msra.mxu0 0.0
    %1955 = vmatprep.mubr.f32.mxu0 0.0
    %1956 = vmatmul.mubr.f32.gmra.mrb[0].mxu0 %v1020
    %v1957 = vpop.f32.mrb[0].mxu0
    %v1958 = vadd.f32 %v1476, %v1957
    %v1959 = vpop.f32.mrb[0].mxu0
    %v1960 = vadd.f32 %v1478, %v1959
    %1961 = vmatprep.mubr.f32.mxu0 0.0
    %1962 = vmatmul.mubr.f32.gmra.mrb[0].mxu0 %v1025
    %v1963 = vpop.f32.mrb[0].mxu0
    %v1964 = vadd.f32 %v1482, %v1963
    %v1965 = vpop.f32.mrb[0].mxu0
    %v1966 = vadd.f32 %v1484, %v1965
    %1967 = vmatprep.mubr.f32.mxu0 0.0
    %1968 = vmatmul.mubr.f32.gmra.mrb[0].mxu0 %v1030
    %v1969 = vpop.f32.mrb[0].mxu0
    %v1970 = vadd.f32 %v1488, %v1969
    %v1971 = vpop.f32.mrb[0].mxu0
    %v1972 = vadd.f32 %v1490, %v1971
    %1973 = vmatprep.mubr.f32.mxu0 0.0
    %1974 = vmatmul.mubr.f32.gmra.mrb[0].mxu0 %v1035
    %v1975 = vpop.f32.mrb[0].mxu0
    %v1976 = vadd.f32 %v1494, %v1975
    %v1977 = vpop.f32.mrb[0].mxu0
    %v1978 = vadd.f32 %v1496, %v1977
    %1979 = vmatprep.mubr.f32.mxu0 0.0
    %1980 = vmatmul.mubr.f32.gmra.mrb[0].mxu0 %v1040
    %v1981 = vpop.f32.mrb[0].mxu0
    %v1982 = vadd.f32 %v1500, %v1981
    %v1983 = vpop.f32.mrb[0].mxu0
    %v1984 = vadd.f32 %v1502, %v1983
    %1985 = vmatprep.mubr.f32.mxu0 0.0
    %1986 = vmatmul.mubr.f32.gmra.mrb[0].mxu0 %v1045
    %v1987 = vpop.f32.mrb[0].mxu0
    %v1988 = vadd.f32 %v1506, %v1987
    %v1989 = vpop.f32.mrb[0].mxu0
    %v1990 = vadd.f32 %v1508, %v1989
    %1991 = vmatprep.mubr.f32.mxu0 0.0
    %1992 = vmatmul.mubr.f32.gmra.mrb[0].mxu0 %v1050
    %v1993 = vpop.f32.mrb[0].mxu0
    %v1994 = vadd.f32 %v1512, %v1993
    %v1995 = vpop.f32.mrb[0].mxu0
    %v1996 = vadd.f32 %v1514, %v1995
    %1997 = vmatprep.mubr.f32.mxu0 0.0
    %1998 = vmatmul.mubr.f32.gmra.mrb[0].mxu0 %v1055
    %v1999 = vpop.f32.mrb[0].mxu0
    %v2000 = vadd.f32 %v1518, %v1999
    %v2001 = vpop.f32.mrb[0].mxu0
    %v2002 = vadd.f32 %v1520, %v2001
    %2003 = vmatprep.mubr.f32.mxu0 0.0
    %2004 = vmatmul.mubr.f32.gmra.mrb[0].mxu0 %v1060
    %v2005 = vpop.f32.mrb[0].mxu0
    %v2006 = vadd.f32 %v1524, %v2005
    %v2007 = vpop.f32.mrb[0].mxu0
    %v2008 = vadd.f32 %v1526, %v2007
    %2009 = vmatprep.mubr.f32.mxu0 0.0
    %2010 = vmatmul.mubr.f32.gmra.mrb[0].mxu0 %v1065
    %v2011 = vpop.f32.mrb[0].mxu0
    %v2012 = vadd.f32 %v1530, %v2011
    %v2013 = vpop.f32.mrb[0].mxu0
    %v2014 = vadd.f32 %v1532, %v2013
    %2015 = vmatprep.mubr.f32.mxu0 0.0
    %2016 = vmatmul.mubr.f32.gmra.mrb[0].mxu0 %v1070
    %v2017 = vpop.f32.mrb[0].mxu0
    %v2018 = vadd.f32 %v1536, %v2017
    %v2019 = vpop.f32.mrb[0].mxu0
    %v2020 = vadd.f32 %v1538, %v2019
    %2021 = vmatprep.mubr.f32.mxu0 0.0
    %2022 = vmatmul.mubr.f32.gmra.mrb[0].mxu0 %v1075
    %v2023 = vpop.f32.mrb[0].mxu0
    %v2024 = vadd.f32 %v1542, %v2023
    %v2025 = vpop.f32.mrb[0].mxu0
    %v2026 = vadd.f32 %v1544, %v2025
    %2027 = vmatprep.mubr.f32.mxu0 0.0
    %2028 = vmatmul.mubr.f32.gmra.mrb[0].mxu0 %v1080
    %v2029 = vpop.f32.mrb[0].mxu0
    %v2030 = vadd.f32 %v1548, %v2029
    %v2031 = vpop.f32.mrb[0].mxu0
    %v2032 = vadd.f32 %v1550, %v2031
    %2033 = vmatprep.mubr.f32.mxu0 0.0
    %2034 = vmatmul.mubr.f32.gmra.mrb[0].mxu0 %v1085
    %v2035 = vpop.f32.mrb[0].mxu0
    %v2036 = vadd.f32 %v1554, %v2035
    %v2037 = vpop.f32.mrb[0].mxu0
    %v2038 = vadd.f32 %v1556, %v2037
    %2039 = vmatprep.mubr.f32.mxu0 0.0
    %2040 = vmatmul.mubr.f32.gmra.mrb[0].mxu0 %v1090
    %v2041 = vpop.f32.mrb[0].mxu0
    %v2042 = vadd.f32 %v1560, %v2041
    %v2043 = vpop.f32.mrb[0].mxu0
    %v2044 = vadd.f32 %v1562, %v2043
    %2045 = vmatprep.mubr.f32.mxu0 0.0
    %2046 = vmatmul.mubr.f32.gmra.mrb[0].mxu0 %v1095
    %v2047 = vpop.f32.mrb[0].mxu0
    %v2048 = vadd.f32 %v1566, %v2047
    %v2049 = vpop.f32.mrb[0].mxu0
    %v2050 = vadd.f32 %v1568, %v2049
    %2051 = vmatprep.mubr.f32.mxu0 0.0
    %2052 = vmatmul.mubr.f32.gmra.mrb[0].mxu0 %v1100
    %v2053 = vpop.f32.mrb[0].mxu0
    %v2054 = vadd.f32 %v1572, %v2053
    %v2055 = vpop.f32.mrb[0].mxu0
    %v2056 = vadd.f32 %v1574, %v2055
    %2057 = vmatprep.mubr.f32.mxu0 0.0
    %2058 = vmatmul.mubr.f32.gmra.mrb[0].mxu0 %v1105
    %v2059 = vpop.f32.mrb[0].mxu0
    %v2060 = vadd.f32 %v1578, %v2059
    %v2061 = vpop.f32.mrb[0].mxu0
    %v2062 = vadd.f32 %v1580, %v2061
    %2063 = vmatprep.mubr.f32.mxu0 0.0
    %2064 = vmatmul.mubr.f32.gmra.mrb[0].mxu0 %v1110
    %v2065 = vpop.f32.mrb[0].mxu0
    %v2066 = vadd.f32 %v1584, %v2065
    %v2067 = vpop.f32.mrb[0].mxu0
    %v2068 = vadd.f32 %v1586, %v2067
    %2069 = vmatprep.mubr.f32.mxu0 0.0
    %2070 = vmatmul.mubr.f32.gmra.mrb[0].mxu0 %v1115
    %v2071 = vpop.f32.mrb[0].mxu0
    %v2072 = vadd.f32 %v1590, %v2071
    %v2073 = vpop.f32.mrb[0].mxu0
    %v2074 = vadd.f32 %v1592, %v2073
    %2075 = vmatprep.mubr.f32.mxu0 0.0
    %2076 = vmatmul.mubr.f32.gmra.mrb[0].mxu0 %v1120
    %v2077 = vpop.f32.mrb[0].mxu0
    %v2078 = vadd.f32 %v1596, %v2077
    %v2079 = vpop.f32.mrb[0].mxu0
    %v2080 = vadd.f32 %v1598, %v2079
    %2081 = vmatprep.mubr.f32.mxu0 0.0
    %2082 = vmatmul.mubr.f32.gmra.mrb[0].mxu0 %v1125
    %v2083 = vpop.f32.mrb[0].mxu0
    %v2084 = vadd.f32 %v1602, %v2083
    %v2085 = vpop.f32.mrb[0].mxu0
    %v2086 = vadd.f32 %v1604, %v2085
    %2087 = vmatprep.mubr.f32.mxu0 0.0
    %2088 = vmatmul.mubr.f32.gmra.mrb[0].mxu0 %v1130
    %v2089 = vpop.f32.mrb[0].mxu0
    %v2090 = vadd.f32 %v1608, %v2089
    %v2091 = vpop.f32.mrb[0].mxu0
    %v2092 = vadd.f32 %v1610, %v2091
    %2093 = vmatprep.mubr.f32.mxu0 0.0
    %2094 = vmatmul.mubr.f32.gmra.mrb[0].mxu0 %v1135
    %v2095 = vpop.f32.mrb[0].mxu0
    %v2096 = vadd.f32 %v1614, %v2095
    %v2097 = vpop.f32.mrb[0].mxu0
    %v2098 = vadd.f32 %v1616, %v2097
    %2099 = vmatprep.mubr.f32.mxu0 0.0
    %2100 = vmatmul.mubr.f32.gmra.mrb[0].mxu0 %v1140
    %v2101 = vpop.f32.mrb[0].mxu0
    %v2102 = vadd.f32 %v1620, %v2101
    %v2103 = vpop.f32.mrb[0].mxu0
    %v2104 = vadd.f32 %v1622, %v2103
    %2105 = vmatprep.mubr.f32.mxu0 0.0
    %2106 = vmatmul.mubr.f32.gmra.mrb[0].mxu0 %v1145
    %v2107 = vpop.f32.mrb[0].mxu0
    %v2108 = vadd.f32 %v1626, %v2107
    %v2109 = vpop.f32.mrb[0].mxu0
    %v2110 = vadd.f32 %v1628, %v2109
    %2111 = vmatprep.mubr.f32.mxu0 0.0
    %2112 = vmatmul.mubr.f32.gmra.mrb[0].mxu0 %v1150
    %v2113 = vpop.f32.mrb[0].mxu0
    %v2114 = vadd.f32 %v1632, %v2113
    %v2115 = vpop.f32.mrb[0].mxu0
    %v2116 = vadd.f32 %v1634, %v2115
    %2117 = vmatprep.mubr.f32.mxu0 0.0
    %2118 = vmatmul.mubr.f32.gmra.mrb[0].mxu0 %v1155
    %v2119 = vpop.f32.mrb[0].mxu0
    %v2120 = vadd.f32 %v1638, %v2119
    %v2121 = vpop.f32.mrb[0].mxu0
    %v2122 = vadd.f32 %v1640, %v2121
    %2123 = vmatprep.mubr.f32.mxu0 0.0
    %2124 = vmatmul.mubr.f32.gmra.mrb[0].mxu0 %v1160
    %v2125 = vpop.f32.mrb[0].mxu0
    %v2126 = vadd.f32 %v1644, %v2125
    %v2127 = vpop.f32.mrb[0].mxu0
    %v2128 = vadd.f32 %v1646, %v2127
    %2129 = vmatprep.mubr.f32.mxu0 0.0
    %2130 = vmatmul.mubr.f32.gmra.mrb[0].mxu0 %v1165
    %v2131 = vpop.f32.mrb[0].mxu0
    %v2132 = vadd.f32 %v1650, %v2131
    %v2133 = vpop.f32.mrb[0].mxu0
    %v2134 = vadd.f32 %v1652, %v2133
    %2135 = vmatprep.mubr.f32.mxu0 0.0
    %2136 = vmatmul.mubr.f32.gmra.mrb[0].mxu0 %v1170
    %v2137 = vpop.f32.mrb[0].mxu0
    %v2138 = vadd.f32 %v1656, %v2137
    %v2139 = vpop.f32.mrb[0].mxu0
    %v2140 = vadd.f32 %v1658, %v2139
    %2141 = vmatprep.mubr.f32.mxu0 0.0
    %2142 = vmatmul.mubr.f32.gmra.mrb[0].mxu0 %v1175
    %v2143 = vpop.f32.mrb[0].mxu0
    %v2144 = vadd.f32 %v1662, %v2143
    %v2145 = vpop.f32.mrb[0].mxu0
    %v2146 = vadd.f32 %v1664, %v2145
    %2147 = vdwg.mxu0
    %2148 = vmatprep.subr.mxu0 0.0
    %2149 = vmatpush1.msra.mxu0 %v305
    %2150 = vmatprep.subr.mxu0 0.0
    %2151 = vmatpush1.msra.mxu0 %v308
    %2152 = vmatprep.subr.mxu0 0.0
    %2153 = vmatpush1.msra.mxu0 %v311
    %2154 = vmatprep.subr.mxu0 0.0
    %2155 = vmatpush1.msra.mxu0 %v314
    %2156 = vmatprep.subr.mxu0 0.0
    %2157 = vmatpush1.msra.mxu0 %v317
    %2158 = vmatprep.subr.mxu0 0.0
    %2159 = vmatpush1.msra.mxu0 %v320
    %2160 = vmatprep.subr.mxu0 0.0
    %2161 = vmatpush1.msra.mxu0 %v323
    %2162 = vmatprep.subr.mxu0 0.0
    %2163 = vmatpush1.msra.mxu0 %v326
    %2164 = vmatprep.subr.mxu0 0.0
    %2165 = vmatpush1.msra.mxu0 %v329
    %2166 = vmatprep.subr.mxu0 0.0
    %2167 = vmatpush1.msra.mxu0 %v332
    %2168 = vmatprep.subr.mxu0 0.0
    %2169 = vmatpush1.msra.mxu0 %v335
    %2170 = vmatprep.subr.mxu0 0.0
    %2171 = vmatpush1.msra.mxu0 %v338
    %2172 = vmatprep.subr.mxu0 0.0
    %2173 = vmatpush1.msra.mxu0 %v341
    %2174 = vmatprep.subr.mxu0 0.0
    %2175 = vmatpush1.msra.mxu0 %v344
    %2176 = vmatprep.subr.mxu0 0.0
    %2177 = vmatpush1.msra.mxu0 %v347
    %2178 = vmatprep.subr.mxu0 0.0
    %2179 = vmatpush1.msra.mxu0 %v350
    %2180 = vmatprep.subr.mxu0 0.0
    %2181 = vmatpush1.msra.mxu0 0.0
    %2182 = vmatprep.subr.mxu0 0.0
    %2183 = vmatpush1.msra.mxu0 0.0
    %2184 = vmatprep.subr.mxu0 0.0
    %2185 = vmatpush1.msra.mxu0 0.0
    %2186 = vmatprep.subr.mxu0 0.0
    %2187 = vmatpush1.msra.mxu0 0.0
    %2188 = vmatprep.subr.mxu0 0.0
    %2189 = vmatpush1.msra.mxu0 0.0
    %2190 = vmatprep.subr.mxu0 0.0
    %2191 = vmatpush1.msra.mxu0 0.0
    %2192 = vmatprep.subr.mxu0 0.0
    %2193 = vmatpush1.msra.mxu0 0.0
    %2194 = vmatprep.subr.mxu0 0.0
    %2195 = vmatpush1.msra.mxu0 0.0
    %2196 = vmatprep.subr.mxu0 0.0
    %2197 = vmatpush1.msra.mxu0 0.0
    %2198 = vmatprep.subr.mxu0 0.0
    %2199 = vmatpush1.msra.mxu0 0.0
    %2200 = vmatprep.subr.mxu0 0.0
    %2201 = vmatpush1.msra.mxu0 0.0
    %2202 = vmatprep.subr.mxu0 0.0
    %2203 = vmatpush1.msra.mxu0 0.0
    %2204 = vmatprep.subr.mxu0 0.0
    %2205 = vmatpush1.msra.mxu0 0.0
    %2206 = vmatprep.subr.mxu0 0.0
    %2207 = vmatpush1.msra.mxu0 0.0
    %2208 = vmatprep.subr.mxu0 0.0
    %2209 = vmatpush1.msra.mxu0 0.0
    %2210 = vmatprep.subr.mxu0 0.0
    %2211 = vmatpush1.msra.mxu0 0.0
    %2212 = vmatprep.mubr.f32.mxu0 0.0
    %2213 = vmatmul.mubr.f32.gmra.mrb[0].mxu0 %v1020
    %v2214 = vpop.f32.mrb[0].mxu0
    %v2215 = vadd.f32 %v1733, %v2214
    %v2216 = vpop.f32.mrb[0].mxu0
    %2217 = vmatprep.mubr.f32.mxu0 0.0
    %2218 = vmatmul.mubr.f32.gmra.mrb[0].mxu0 %v1025
    %v2219 = vpop.f32.mrb[0].mxu0
    %v2220 = vadd.f32 %v1738, %v2219
    %v2221 = vpop.f32.mrb[0].mxu0
    %2222 = vmatprep.mubr.f32.mxu0 0.0
    %2223 = vmatmul.mubr.f32.gmra.mrb[0].mxu0 %v1030
    %v2224 = vpop.f32.mrb[0].mxu0
    %v2225 = vadd.f32 %v1743, %v2224
    %v2226 = vpop.f32.mrb[0].mxu0
    %2227 = vmatprep.mubr.f32.mxu0 0.0
    %2228 = vmatmul.mubr.f32.gmra.mrb[0].mxu0 %v1035
    %v2229 = vpop.f32.mrb[0].mxu0
    %v2230 = vadd.f32 %v1748, %v2229
    %v2231 = vpop.f32.mrb[0].mxu0
    %2232 = vmatprep.mubr.f32.mxu0 0.0
    %2233 = vmatmul.mubr.f32.gmra.mrb[0].mxu0 %v1040
    %v2234 = vpop.f32.mrb[0].mxu0
    %v2235 = vadd.f32 %v1753, %v2234
    %v2236 = vpop.f32.mrb[0].mxu0
    %2237 = vmatprep.mubr.f32.mxu0 0.0
    %2238 = vmatmul.mubr.f32.gmra.mrb[0].mxu0 %v1045
    %v2239 = vpop.f32.mrb[0].mxu0
    %v2240 = vadd.f32 %v1758, %v2239
    %v2241 = vpop.f32.mrb[0].mxu0
    %2242 = vmatprep.mubr.f32.mxu0 0.0
    %2243 = vmatmul.mubr.f32.gmra.mrb[0].mxu0 %v1050
    %v2244 = vpop.f32.mrb[0].mxu0
    %v2245 = vadd.f32 %v1763, %v2244
    %v2246 = vpop.f32.mrb[0].mxu0
    %2247 = vmatprep.mubr.f32.mxu0 0.0
    %2248 = vmatmul.mubr.f32.gmra.mrb[0].mxu0 %v1055
    %v2249 = vpop.f32.mrb[0].mxu0
    %v2250 = vadd.f32 %v1768, %v2249
    %v2251 = vpop.f32.mrb[0].mxu0
    %2252 = vmatprep.mubr.f32.mxu0 0.0
    %2253 = vmatmul.mubr.f32.gmra.mrb[0].mxu0 %v1060
    %v2254 = vpop.f32.mrb[0].mxu0
    %v2255 = vadd.f32 %v1773, %v2254
    %v2256 = vpop.f32.mrb[0].mxu0
    %2257 = vmatprep.mubr.f32.mxu0 0.0
    %2258 = vmatmul.mubr.f32.gmra.mrb[0].mxu0 %v1065
    %v2259 = vpop.f32.mrb[0].mxu0
    %v2260 = vadd.f32 %v1778, %v2259
    %v2261 = vpop.f32.mrb[0].mxu0
    %2262 = vmatprep.mubr.f32.mxu0 0.0
    %2263 = vmatmul.mubr.f32.gmra.mrb[0].mxu0 %v1070
    %v2264 = vpop.f32.mrb[0].mxu0
    %v2265 = vadd.f32 %v1783, %v2264
    %v2266 = vpop.f32.mrb[0].mxu0
    %2267 = vmatprep.mubr.f32.mxu0 0.0
    %2268 = vmatmul.mubr.f32.gmra.mrb[0].mxu0 %v1075
    %v2269 = vpop.f32.mrb[0].mxu0
    %v2270 = vadd.f32 %v1788, %v2269
    %v2271 = vpop.f32.mrb[0].mxu0
    %2272 = vmatprep.mubr.f32.mxu0 0.0
    %2273 = vmatmul.mubr.f32.gmra.mrb[0].mxu0 %v1080
    %v2274 = vpop.f32.mrb[0].mxu0
    %v2275 = vadd.f32 %v1793, %v2274
    %v2276 = vpop.f32.mrb[0].mxu0
    %2277 = vmatprep.mubr.f32.mxu0 0.0
    %2278 = vmatmul.mubr.f32.gmra.mrb[0].mxu0 %v1085
    %v2279 = vpop.f32.mrb[0].mxu0
    %v2280 = vadd.f32 %v1798, %v2279
    %v2281 = vpop.f32.mrb[0].mxu0
    %2282 = vmatprep.mubr.f32.mxu0 0.0
    %2283 = vmatmul.mubr.f32.gmra.mrb[0].mxu0 %v1090
    %v2284 = vpop.f32.mrb[0].mxu0
    %v2285 = vadd.f32 %v1803, %v2284
    %v2286 = vpop.f32.mrb[0].mxu0
    %2287 = vmatprep.mubr.f32.mxu0 0.0
    %2288 = vmatmul.mubr.f32.gmra.mrb[0].mxu0 %v1095
    %v2289 = vpop.f32.mrb[0].mxu0
    %v2290 = vadd.f32 %v1808, %v2289
    %v2291 = vpop.f32.mrb[0].mxu0
    %2292 = vmatprep.mubr.f32.mxu0 0.0
    %2293 = vmatmul.mubr.f32.gmra.mrb[0].mxu0 %v1100
    %v2294 = vpop.f32.mrb[0].mxu0
    %v2295 = vadd.f32 %v1813, %v2294
    %v2296 = vpop.f32.mrb[0].mxu0
    %2297 = vmatprep.mubr.f32.mxu0 0.0
    %2298 = vmatmul.mubr.f32.gmra.mrb[0].mxu0 %v1105
    %v2299 = vpop.f32.mrb[0].mxu0
    %v2300 = vadd.f32 %v1818, %v2299
    %v2301 = vpop.f32.mrb[0].mxu0
    %2302 = vmatprep.mubr.f32.mxu0 0.0
    %2303 = vmatmul.mubr.f32.gmra.mrb[0].mxu0 %v1110
    %v2304 = vpop.f32.mrb[0].mxu0
    %v2305 = vadd.f32 %v1823, %v2304
    %v2306 = vpop.f32.mrb[0].mxu0
    %2307 = vmatprep.mubr.f32.mxu0 0.0
    %2308 = vmatmul.mubr.f32.gmra.mrb[0].mxu0 %v1115
    %v2309 = vpop.f32.mrb[0].mxu0
    %v2310 = vadd.f32 %v1828, %v2309
    %v2311 = vpop.f32.mrb[0].mxu0
    %2312 = vmatprep.mubr.f32.mxu0 0.0
    %2313 = vmatmul.mubr.f32.gmra.mrb[0].mxu0 %v1120
    %v2314 = vpop.f32.mrb[0].mxu0
    %v2315 = vadd.f32 %v1833, %v2314
    %v2316 = vpop.f32.mrb[0].mxu0
    %2317 = vmatprep.mubr.f32.mxu0 0.0
    %2318 = vmatmul.mubr.f32.gmra.mrb[0].mxu0 %v1125
    %v2319 = vpop.f32.mrb[0].mxu0
    %v2320 = vadd.f32 %v1838, %v2319
    %v2321 = vpop.f32.mrb[0].mxu0
    %2322 = vmatprep.mubr.f32.mxu0 0.0
    %2323 = vmatmul.mubr.f32.gmra.mrb[0].mxu0 %v1130
    %v2324 = vpop.f32.mrb[0].mxu0
    %v2325 = vadd.f32 %v1843, %v2324
    %v2326 = vpop.f32.mrb[0].mxu0
    %2327 = vmatprep.mubr.f32.mxu0 0.0
    %2328 = vmatmul.mubr.f32.gmra.mrb[0].mxu0 %v1135
    %v2329 = vpop.f32.mrb[0].mxu0
    %v2330 = vadd.f32 %v1848, %v2329
    %v2331 = vpop.f32.mrb[0].mxu0
    %2332 = vmatprep.mubr.f32.mxu0 0.0
    %2333 = vmatmul.mubr.f32.gmra.mrb[0].mxu0 %v1140
    %v2334 = vpop.f32.mrb[0].mxu0
    %v2335 = vadd.f32 %v1853, %v2334
    %v2336 = vpop.f32.mrb[0].mxu0
    %2337 = vmatprep.mubr.f32.mxu0 0.0
    %2338 = vmatmul.mubr.f32.gmra.mrb[0].mxu0 %v1145
    %v2339 = vpop.f32.mrb[0].mxu0
    %v2340 = vadd.f32 %v1858, %v2339
    %v2341 = vpop.f32.mrb[0].mxu0
    %2342 = vmatprep.mubr.f32.mxu0 0.0
    %2343 = vmatmul.mubr.f32.gmra.mrb[0].mxu0 %v1150
    %v2344 = vpop.f32.mrb[0].mxu0
    %v2345 = vadd.f32 %v1863, %v2344
    %v2346 = vpop.f32.mrb[0].mxu0
    %2347 = vmatprep.mubr.f32.mxu0 0.0
    %2348 = vmatmul.mubr.f32.gmra.mrb[0].mxu0 %v1155
    %v2349 = vpop.f32.mrb[0].mxu0
    %v2350 = vadd.f32 %v1868, %v2349
    %v2351 = vpop.f32.mrb[0].mxu0
    %2352 = vmatprep.mubr.f32.mxu0 0.0
    %2353 = vmatmul.mubr.f32.gmra.mrb[0].mxu0 %v1160
    %v2354 = vpop.f32.mrb[0].mxu0
    %v2355 = vadd.f32 %v1873, %v2354
    %v2356 = vpop.f32.mrb[0].mxu0
    %2357 = vmatprep.mubr.f32.mxu0 0.0
    %2358 = vmatmul.mubr.f32.gmra.mrb[0].mxu0 %v1165
    %v2359 = vpop.f32.mrb[0].mxu0
    %v2360 = vadd.f32 %v1878, %v2359
    %v2361 = vpop.f32.mrb[0].mxu0
    %2362 = vmatprep.mubr.f32.mxu0 0.0
    %2363 = vmatmul.mubr.f32.gmra.mrb[0].mxu0 %v1170
    %v2364 = vpop.f32.mrb[0].mxu0
    %v2365 = vadd.f32 %v1883, %v2364
    %v2366 = vpop.f32.mrb[0].mxu0
    %2367 = vmatprep.mubr.f32.mxu0 0.0
    %2368 = vmatmul.mubr.f32.gmra.mrb[0].mxu0 %v1175
    %v2369 = vpop.f32.mrb[0].mxu0
    %v2370 = vadd.f32 %v1888, %v2369
    %v2371 = vpop.f32.mrb[0].mxu0
    %2372 = vdwg.mxu0
    %v2374 = vlaneseq
    %v2375 = vshrl.u32 %v2374, 7
    %v2376 = vsub.s32 0, %v2375
    %v2377 = vrot.slane %v451, %v2376
    %v2378 = vlaneseq
    %v2379 = vshrl.u32 %v2378, 7
    %v2380 = vsub.s32 1, %v2379
    %v2381 = vrot.slane %v451, %v2380
    %v2382 = vlaneseq
    %v2383 = vshrl.u32 %v2382, 7
    %v2384 = vsub.s32 2, %v2383
    %v2385 = vrot.slane %v451, %v2384
    %v2389 = vadd.f32 %v1958, %v2377
    %v2390 = vadd.f32 %v1960, %v2381
    %v2391 = vadd.f32 %v2215, %v2385
    %v2392 = vadd.f32 %v1964, %v2377
    %v2393 = vadd.f32 %v1966, %v2381
    %v2394 = vadd.f32 %v2220, %v2385
    %v2395 = vadd.f32 %v1970, %v2377
    %v2396 = vadd.f32 %v1972, %v2381
    %v2397 = vadd.f32 %v2225, %v2385
    %v2398 = vadd.f32 %v1976, %v2377
    %v2399 = vadd.f32 %v1978, %v2381
    %v2400 = vadd.f32 %v2230, %v2385
    %v2401 = vadd.f32 %v1982, %v2377
    %v2402 = vadd.f32 %v1984, %v2381
    %v2403 = vadd.f32 %v2235, %v2385
    %v2404 = vadd.f32 %v1988, %v2377
    %v2405 = vadd.f32 %v1990, %v2381
    %v2406 = vadd.f32 %v2240, %v2385
    %v2407 = vadd.f32 %v1994, %v2377
    %v2408 = vadd.f32 %v1996, %v2381
    %v2409 = vadd.f32 %v2245, %v2385
    %v2410 = vadd.f32 %v2000, %v2377
    %v2411 = vadd.f32 %v2002, %v2381
    %v2412 = vadd.f32 %v2250, %v2385
    %v2413 = vadd.f32 %v2006, %v2377
    %v2414 = vadd.f32 %v2008, %v2381
    %v2415 = vadd.f32 %v2255, %v2385
    %v2416 = vadd.f32 %v2012, %v2377
    %v2417 = vadd.f32 %v2014, %v2381
    %v2418 = vadd.f32 %v2260, %v2385
    %v2419 = vadd.f32 %v2018, %v2377
    %v2420 = vadd.f32 %v2020, %v2381
    %v2421 = vadd.f32 %v2265, %v2385
    %v2422 = vadd.f32 %v2024, %v2377
    %v2423 = vadd.f32 %v2026, %v2381
    %v2424 = vadd.f32 %v2270, %v2385
    %v2425 = vadd.f32 %v2030, %v2377
    %v2426 = vadd.f32 %v2032, %v2381
    %v2427 = vadd.f32 %v2275, %v2385
    %v2428 = vadd.f32 %v2036, %v2377
    %v2429 = vadd.f32 %v2038, %v2381
    %v2430 = vadd.f32 %v2280, %v2385
    %v2431 = vadd.f32 %v2042, %v2377
    %v2432 = vadd.f32 %v2044, %v2381
    %v2433 = vadd.f32 %v2285, %v2385
    %v2434 = vadd.f32 %v2048, %v2377
    %v2435 = vadd.f32 %v2050, %v2381
    %v2436 = vadd.f32 %v2290, %v2385
    %v2437 = vadd.f32 %v2054, %v2377
    %v2438 = vadd.f32 %v2056, %v2381
    %v2439 = vadd.f32 %v2295, %v2385
    %v2440 = vadd.f32 %v2060, %v2377
    %v2441 = vadd.f32 %v2062, %v2381
    %v2442 = vadd.f32 %v2300, %v2385
    %v2443 = vadd.f32 %v2066, %v2377
    %v2444 = vadd.f32 %v2068, %v2381
    %v2445 = vadd.f32 %v2305, %v2385
    %v2446 = vadd.f32 %v2072, %v2377
    %v2447 = vadd.f32 %v2074, %v2381
    %v2448 = vadd.f32 %v2310, %v2385
    %v2449 = vadd.f32 %v2078, %v2377
    %v2450 = vadd.f32 %v2080, %v2381
    %v2451 = vadd.f32 %v2315, %v2385
    %v2452 = vadd.f32 %v2084, %v2377
    %v2453 = vadd.f32 %v2086, %v2381
    %v2454 = vadd.f32 %v2320, %v2385
    %v2455 = vadd.f32 %v2090, %v2377
    %v2456 = vadd.f32 %v2092, %v2381
    %v2457 = vadd.f32 %v2325, %v2385
    %v2458 = vadd.f32 %v2096, %v2377
    %v2459 = vadd.f32 %v2098, %v2381
    %v2460 = vadd.f32 %v2330, %v2385
    %v2461 = vadd.f32 %v2102, %v2377
    %v2462 = vadd.f32 %v2104, %v2381
    %v2463 = vadd.f32 %v2335, %v2385
    %v2464 = vadd.f32 %v2108, %v2377
    %v2465 = vadd.f32 %v2110, %v2381
    %v2466 = vadd.f32 %v2340, %v2385
    %v2467 = vadd.f32 %v2114, %v2377
    %v2468 = vadd.f32 %v2116, %v2381
    %v2469 = vadd.f32 %v2345, %v2385
    %v2470 = vadd.f32 %v2120, %v2377
    %v2471 = vadd.f32 %v2122, %v2381
    %v2472 = vadd.f32 %v2350, %v2385
    %v2473 = vadd.f32 %v2126, %v2377
    %v2474 = vadd.f32 %v2128, %v2381
    %v2475 = vadd.f32 %v2355, %v2385
    %v2476 = vadd.f32 %v2132, %v2377
    %v2477 = vadd.f32 %v2134, %v2381
    %v2478 = vadd.f32 %v2360, %v2385
    %v2479 = vadd.f32 %v2138, %v2377
    %v2480 = vadd.f32 %v2140, %v2381
    %v2481 = vadd.f32 %v2365, %v2385
    %v2482 = vadd.f32 %v2144, %v2377
    %v2483 = vadd.f32 %v2146, %v2381
    %v2484 = vadd.f32 %v2370, %v2385
    %v2486 = vlaneseq
    %v2487 = vshrl.u32 %v2486, 7
    %v2488 = vsub.s32 0, %v2487
    %v2489 = vrot.slane %v452, %v2488
    %v2490 = vlaneseq
    %v2491 = vshrl.u32 %v2490, 7
    %v2492 = vsub.s32 1, %v2491
    %v2493 = vrot.slane %v452, %v2492
    %v2494 = vlaneseq
    %v2495 = vshrl.u32 %v2494, 7
    %v2496 = vsub.s32 2, %v2495
    %v2497 = vrot.slane %v452, %v2496
    %2501 = vmatprep.subr.mxu0 %v400
    %2502 = vmatpush1.msra.mxu0 %v399
    %2503 = vmatprep.subr.mxu0 %v403
    %2504 = vmatpush1.msra.mxu0 %v402
    %2505 = vmatprep.subr.mxu0 %v406
    %2506 = vmatpush1.msra.mxu0 %v405
    %2507 = vmatprep.subr.mxu0 %v409
    %2508 = vmatpush1.msra.mxu0 %v408
    %2509 = vmatprep.subr.mxu0 %v412
    %2510 = vmatpush1.msra.mxu0 %v411
    %2511 = vmatprep.subr.mxu0 %v415
    %2512 = vmatpush1.msra.mxu0 %v414
    %2513 = vmatprep.subr.mxu0 %v418
    %2514 = vmatpush1.msra.mxu0 %v417
    %2515 = vmatprep.subr.mxu0 %v421
    %2516 = vmatpush1.msra.mxu0 %v420
    %2517 = vmatprep.subr.mxu0 %v424
    %2518 = vmatpush1.msra.mxu0 %v423
    %2519 = vmatprep.subr.mxu0 %v427
    %2520 = vmatpush1.msra.mxu0 %v426
    %2521 = vmatprep.subr.mxu0 %v430
    %2522 = vmatpush1.msra.mxu0 %v429
    %2523 = vmatprep.subr.mxu0 %v433
    %2524 = vmatpush1.msra.mxu0 %v432
    %2525 = vmatprep.subr.mxu0 %v436
    %2526 = vmatpush1.msra.mxu0 %v435
    %2527 = vmatprep.subr.mxu0 %v439
    %2528 = vmatpush1.msra.mxu0 %v438
    %2529 = vmatprep.subr.mxu0 %v442
    %2530 = vmatpush1.msra.mxu0 %v441
    %2531 = vmatprep.subr.mxu0 %v445
    %2532 = vmatpush1.msra.mxu0 %v444
    %2533 = vmatprep.subr.mxu0 0.0
    %2534 = vmatpush1.msra.mxu0 0.0
    %2535 = vmatprep.subr.mxu0 0.0
    %2536 = vmatpush1.msra.mxu0 0.0
    %2537 = vmatprep.subr.mxu0 0.0
    %2538 = vmatpush1.msra.mxu0 0.0
    %2539 = vmatprep.subr.mxu0 0.0
    %2540 = vmatpush1.msra.mxu0 0.0
    %2541 = vmatprep.subr.mxu0 0.0
    %2542 = vmatpush1.msra.mxu0 0.0
    %2543 = vmatprep.subr.mxu0 0.0
    %2544 = vmatpush1.msra.mxu0 0.0
    %2545 = vmatprep.subr.mxu0 0.0
    %2546 = vmatpush1.msra.mxu0 0.0
    %2547 = vmatprep.subr.mxu0 0.0
    %2548 = vmatpush1.msra.mxu0 0.0
    %2549 = vmatprep.subr.mxu0 0.0
    %2550 = vmatpush1.msra.mxu0 0.0
    %2551 = vmatprep.subr.mxu0 0.0
    %2552 = vmatpush1.msra.mxu0 0.0
    %2553 = vmatprep.subr.mxu0 0.0
    %2554 = vmatpush1.msra.mxu0 0.0
    %2555 = vmatprep.subr.mxu0 0.0
    %2556 = vmatpush1.msra.mxu0 0.0
    %2557 = vmatprep.subr.mxu0 0.0
    %2558 = vmatpush1.msra.mxu0 0.0
    %2559 = vmatprep.subr.mxu0 0.0
    %2560 = vmatpush1.msra.mxu0 0.0
    %2561 = vmatprep.subr.mxu0 0.0
    %2562 = vmatpush1.msra.mxu0 0.0
    %2563 = vmatprep.subr.mxu0 0.0
    %2564 = vmatpush1.msra.mxu0 0.0
    %2565 = vmatprep.mubr.f32.mxu0 0.0
    %2566 = vmatmul.mubr.f32.gmra.mrb[0].mxu0 %v453
    %v2567 = vpop.f32.mrb[0].mxu0
    %v2568 = vadd.f32 %v2489, %v2567
    %v2569 = vpop.f32.mrb[0].mxu0
    %v2570 = vadd.f32 %v2493, %v2569
    %2571 = vmatprep.mubr.f32.mxu0 0.0
    %2572 = vmatmul.mubr.f32.gmra.mrb[0].mxu0 %v454
    %v2573 = vpop.f32.mrb[0].mxu0
    %v2574 = vadd.f32 %v2489, %v2573
    %v2575 = vpop.f32.mrb[0].mxu0
    %v2576 = vadd.f32 %v2493, %v2575
    %2577 = vmatprep.mubr.f32.mxu0 0.0
    %2578 = vmatmul.mubr.f32.gmra.mrb[0].mxu0 %v455
    %v2579 = vpop.f32.mrb[0].mxu0
    %v2580 = vadd.f32 %v2489, %v2579
    %v2581 = vpop.f32.mrb[0].mxu0
    %v2582 = vadd.f32 %v2493, %v2581
    %2583 = vmatprep.mubr.f32.mxu0 0.0
    %2584 = vmatmul.mubr.f32.gmra.mrb[0].mxu0 %v456
    %v2585 = vpop.f32.mrb[0].mxu0
    %v2586 = vadd.f32 %v2489, %v2585
    %v2587 = vpop.f32.mrb[0].mxu0
    %v2588 = vadd.f32 %v2493, %v2587
    %2589 = vmatprep.mubr.f32.mxu0 0.0
    %2590 = vmatmul.mubr.f32.gmra.mrb[0].mxu0 %v457
    %v2591 = vpop.f32.mrb[0].mxu0
    %v2592 = vadd.f32 %v2489, %v2591
    %v2593 = vpop.f32.mrb[0].mxu0
    %v2594 = vadd.f32 %v2493, %v2593
    %2595 = vmatprep.mubr.f32.mxu0 0.0
    %2596 = vmatmul.mubr.f32.gmra.mrb[0].mxu0 %v458
    %v2597 = vpop.f32.mrb[0].mxu0
    %v2598 = vadd.f32 %v2489, %v2597
    %v2599 = vpop.f32.mrb[0].mxu0
    %v2600 = vadd.f32 %v2493, %v2599
    %2601 = vmatprep.mubr.f32.mxu0 0.0
    %2602 = vmatmul.mubr.f32.gmra.mrb[0].mxu0 %v459
    %v2603 = vpop.f32.mrb[0].mxu0
    %v2604 = vadd.f32 %v2489, %v2603
    %v2605 = vpop.f32.mrb[0].mxu0
    %v2606 = vadd.f32 %v2493, %v2605
    %2607 = vmatprep.mubr.f32.mxu0 0.0
    %2608 = vmatmul.mubr.f32.gmra.mrb[0].mxu0 %v460
    %v2609 = vpop.f32.mrb[0].mxu0
    %v2610 = vadd.f32 %v2489, %v2609
    %v2611 = vpop.f32.mrb[0].mxu0
    %v2612 = vadd.f32 %v2493, %v2611
    %2613 = vmatprep.mubr.f32.mxu0 0.0
    %2614 = vmatmul.mubr.f32.gmra.mrb[0].mxu0 %v461
    %v2615 = vpop.f32.mrb[0].mxu0
    %v2616 = vadd.f32 %v2489, %v2615
    %v2617 = vpop.f32.mrb[0].mxu0
    %v2618 = vadd.f32 %v2493, %v2617
    %2619 = vmatprep.mubr.f32.mxu0 0.0
    %2620 = vmatmul.mubr.f32.gmra.mrb[0].mxu0 %v462
    %v2621 = vpop.f32.mrb[0].mxu0
    %v2622 = vadd.f32 %v2489, %v2621
    %v2623 = vpop.f32.mrb[0].mxu0
    %v2624 = vadd.f32 %v2493, %v2623
    %2625 = vmatprep.mubr.f32.mxu0 0.0
    %2626 = vmatmul.mubr.f32.gmra.mrb[0].mxu0 %v463
    %v2627 = vpop.f32.mrb[0].mxu0
    %v2628 = vadd.f32 %v2489, %v2627
    %v2629 = vpop.f32.mrb[0].mxu0
    %v2630 = vadd.f32 %v2493, %v2629
    %2631 = vmatprep.mubr.f32.mxu0 0.0
    %2632 = vmatmul.mubr.f32.gmra.mrb[0].mxu0 %v464
    %v2633 = vpop.f32.mrb[0].mxu0
    %v2634 = vadd.f32 %v2489, %v2633
    %v2635 = vpop.f32.mrb[0].mxu0
    %v2636 = vadd.f32 %v2493, %v2635
    %2637 = vmatprep.mubr.f32.mxu0 0.0
    %2638 = vmatmul.mubr.f32.gmra.mrb[0].mxu0 %v465
    %v2639 = vpop.f32.mrb[0].mxu0
    %v2640 = vadd.f32 %v2489, %v2639
    %v2641 = vpop.f32.mrb[0].mxu0
    %v2642 = vadd.f32 %v2493, %v2641
    %2643 = vmatprep.mubr.f32.mxu0 0.0
    %2644 = vmatmul.mubr.f32.gmra.mrb[0].mxu0 %v466
    %v2645 = vpop.f32.mrb[0].mxu0
    %v2646 = vadd.f32 %v2489, %v2645
    %v2647 = vpop.f32.mrb[0].mxu0
    %v2648 = vadd.f32 %v2493, %v2647
    %2649 = vmatprep.mubr.f32.mxu0 0.0
    %2650 = vmatmul.mubr.f32.gmra.mrb[0].mxu0 %v467
    %v2651 = vpop.f32.mrb[0].mxu0
    %v2652 = vadd.f32 %v2489, %v2651
    %v2653 = vpop.f32.mrb[0].mxu0
    %v2654 = vadd.f32 %v2493, %v2653
    %2655 = vmatprep.mubr.f32.mxu0 0.0
    %2656 = vmatmul.mubr.f32.gmra.mrb[0].mxu0 %v468
    %v2657 = vpop.f32.mrb[0].mxu0
    %v2658 = vadd.f32 %v2489, %v2657
    %v2659 = vpop.f32.mrb[0].mxu0
    %v2660 = vadd.f32 %v2493, %v2659
    %2661 = vmatprep.mubr.f32.mxu0 0.0
    %2662 = vmatmul.mubr.f32.gmra.mrb[0].mxu0 %v469
    %v2663 = vpop.f32.mrb[0].mxu0
    %v2664 = vadd.f32 %v2489, %v2663
    %v2665 = vpop.f32.mrb[0].mxu0
    %v2666 = vadd.f32 %v2493, %v2665
    %2667 = vmatprep.mubr.f32.mxu0 0.0
    %2668 = vmatmul.mubr.f32.gmra.mrb[0].mxu0 %v470
    %v2669 = vpop.f32.mrb[0].mxu0
    %v2670 = vadd.f32 %v2489, %v2669
    %v2671 = vpop.f32.mrb[0].mxu0
    %v2672 = vadd.f32 %v2493, %v2671
    %2673 = vmatprep.mubr.f32.mxu0 0.0
    %2674 = vmatmul.mubr.f32.gmra.mrb[0].mxu0 %v471
    %v2675 = vpop.f32.mrb[0].mxu0
    %v2676 = vadd.f32 %v2489, %v2675
    %v2677 = vpop.f32.mrb[0].mxu0
    %v2678 = vadd.f32 %v2493, %v2677
    %2679 = vmatprep.mubr.f32.mxu0 0.0
    %2680 = vmatmul.mubr.f32.gmra.mrb[0].mxu0 %v472
    %v2681 = vpop.f32.mrb[0].mxu0
    %v2682 = vadd.f32 %v2489, %v2681
    %v2683 = vpop.f32.mrb[0].mxu0
    %v2684 = vadd.f32 %v2493, %v2683
    %2685 = vmatprep.mubr.f32.mxu0 0.0
    %2686 = vmatmul.mubr.f32.gmra.mrb[0].mxu0 %v473
    %v2687 = vpop.f32.mrb[0].mxu0
    %v2688 = vadd.f32 %v2489, %v2687
    %v2689 = vpop.f32.mrb[0].mxu0
    %v2690 = vadd.f32 %v2493, %v2689
    %2691 = vmatprep.mubr.f32.mxu0 0.0
    %2692 = vmatmul.mubr.f32.gmra.mrb[0].mxu0 %v474
    %v2693 = vpop.f32.mrb[0].mxu0
    %v2694 = vadd.f32 %v2489, %v2693
    %v2695 = vpop.f32.mrb[0].mxu0
    %v2696 = vadd.f32 %v2493, %v2695
    %2697 = vmatprep.mubr.f32.mxu0 0.0
    %2698 = vmatmul.mubr.f32.gmra.mrb[0].mxu0 %v475
    %v2699 = vpop.f32.mrb[0].mxu0
    %v2700 = vadd.f32 %v2489, %v2699
    %v2701 = vpop.f32.mrb[0].mxu0
    %v2702 = vadd.f32 %v2493, %v2701
    %2703 = vmatprep.mubr.f32.mxu0 0.0
    %2704 = vmatmul.mubr.f32.gmra.mrb[0].mxu0 %v476
    %v2705 = vpop.f32.mrb[0].mxu0
    %v2706 = vadd.f32 %v2489, %v2705
    %v2707 = vpop.f32.mrb[0].mxu0
    %v2708 = vadd.f32 %v2493, %v2707
    %2709 = vmatprep.mubr.f32.mxu0 0.0
    %2710 = vmatmul.mubr.f32.gmra.mrb[0].mxu0 %v477
    %v2711 = vpop.f32.mrb[0].mxu0
    %v2712 = vadd.f32 %v2489, %v2711
    %v2713 = vpop.f32.mrb[0].mxu0
    %v2714 = vadd.f32 %v2493, %v2713
    %2715 = vmatprep.mubr.f32.mxu0 0.0
    %2716 = vmatmul.mubr.f32.gmra.mrb[0].mxu0 %v478
    %v2717 = vpop.f32.mrb[0].mxu0
    %v2718 = vadd.f32 %v2489, %v2717
    %v2719 = vpop.f32.mrb[0].mxu0
    %v2720 = vadd.f32 %v2493, %v2719
    %2721 = vmatprep.mubr.f32.mxu0 0.0
    %2722 = vmatmul.mubr.f32.gmra.mrb[0].mxu0 %v479
    %v2723 = vpop.f32.mrb[0].mxu0
    %v2724 = vadd.f32 %v2489, %v2723
    %v2725 = vpop.f32.mrb[0].mxu0
    %v2726 = vadd.f32 %v2493, %v2725
    %2727 = vmatprep.mubr.f32.mxu0 0.0
    %2728 = vmatmul.mubr.f32.gmra.mrb[0].mxu0 %v480
    %v2729 = vpop.f32.mrb[0].mxu0
    %v2730 = vadd.f32 %v2489, %v2729
    %v2731 = vpop.f32.mrb[0].mxu0
    %v2732 = vadd.f32 %v2493, %v2731
    %2733 = vmatprep.mubr.f32.mxu0 0.0
    %2734 = vmatmul.mubr.f32.gmra.mrb[0].mxu0 %v481
    %v2735 = vpop.f32.mrb[0].mxu0
    %v2736 = vadd.f32 %v2489, %v2735
    %v2737 = vpop.f32.mrb[0].mxu0
    %v2738 = vadd.f32 %v2493, %v2737
    %2739 = vmatprep.mubr.f32.mxu0 0.0
    %2740 = vmatmul.mubr.f32.gmra.mrb[0].mxu0 %v482
    %v2741 = vpop.f32.mrb[0].mxu0
    %v2742 = vadd.f32 %v2489, %v2741
    %v2743 = vpop.f32.mrb[0].mxu0
    %v2744 = vadd.f32 %v2493, %v2743
    %2745 = vmatprep.mubr.f32.mxu0 0.0
    %2746 = vmatmul.mubr.f32.gmra.mrb[0].mxu0 %v483
    %v2747 = vpop.f32.mrb[0].mxu0
    %v2748 = vadd.f32 %v2489, %v2747
    %v2749 = vpop.f32.mrb[0].mxu0
    %v2750 = vadd.f32 %v2493, %v2749
    %2751 = vmatprep.mubr.f32.mxu0 0.0
    %2752 = vmatmul.mubr.f32.gmra.mrb[0].mxu0 %v484
    %v2753 = vpop.f32.mrb[0].mxu0
    %v2754 = vadd.f32 %v2489, %v2753
    %v2755 = vpop.f32.mrb[0].mxu0
    %v2756 = vadd.f32 %v2493, %v2755
    %2757 = vdwg.mxu0
    %2758 = vmatprep.subr.mxu0 0.0
    %2759 = vmatpush1.msra.mxu0 %v401
    %2760 = vmatprep.subr.mxu0 0.0
    %2761 = vmatpush1.msra.mxu0 %v404
    %2762 = vmatprep.subr.mxu0 0.0
    %2763 = vmatpush1.msra.mxu0 %v407
    %2764 = vmatprep.subr.mxu0 0.0
    %2765 = vmatpush1.msra.mxu0 %v410
    %2766 = vmatprep.subr.mxu0 0.0
    %2767 = vmatpush1.msra.mxu0 %v413
    %2768 = vmatprep.subr.mxu0 0.0
    %2769 = vmatpush1.msra.mxu0 %v416
    %2770 = vmatprep.subr.mxu0 0.0
    %2771 = vmatpush1.msra.mxu0 %v419
    %2772 = vmatprep.subr.mxu0 0.0
    %2773 = vmatpush1.msra.mxu0 %v422
    %2774 = vmatprep.subr.mxu0 0.0
    %2775 = vmatpush1.msra.mxu0 %v425
    %2776 = vmatprep.subr.mxu0 0.0
    %2777 = vmatpush1.msra.mxu0 %v428
    %2778 = vmatprep.subr.mxu0 0.0
    %2779 = vmatpush1.msra.mxu0 %v431
    %2780 = vmatprep.subr.mxu0 0.0
    %2781 = vmatpush1.msra.mxu0 %v434
    %2782 = vmatprep.subr.mxu0 0.0
    %2783 = vmatpush1.msra.mxu0 %v437
    %2784 = vmatprep.subr.mxu0 0.0
    %2785 = vmatpush1.msra.mxu0 %v440
    %2786 = vmatprep.subr.mxu0 0.0
    %2787 = vmatpush1.msra.mxu0 %v443
    %2788 = vmatprep.subr.mxu0 0.0
    %2789 = vmatpush1.msra.mxu0 %v446
    %2790 = vmatprep.subr.mxu0 0.0
    %2791 = vmatpush1.msra.mxu0 0.0
    %2792 = vmatprep.subr.mxu0 0.0
    %2793 = vmatpush1.msra.mxu0 0.0
    %2794 = vmatprep.subr.mxu0 0.0
    %2795 = vmatpush1.msra.mxu0 0.0
    %2796 = vmatprep.subr.mxu0 0.0
    %2797 = vmatpush1.msra.mxu0 0.0
    %2798 = vmatprep.subr.mxu0 0.0
    %2799 = vmatpush1.msra.mxu0 0.0
    %2800 = vmatprep.subr.mxu0 0.0
    %2801 = vmatpush1.msra.mxu0 0.0
    %2802 = vmatprep.subr.mxu0 0.0
    %2803 = vmatpush1.msra.mxu0 0.0
    %2804 = vmatprep.subr.mxu0 0.0
    %2805 = vmatpush1.msra.mxu0 0.0
    %2806 = vmatprep.subr.mxu0 0.0
    %2807 = vmatpush1.msra.mxu0 0.0
    %2808 = vmatprep.subr.mxu0 0.0
    %2809 = vmatpush1.msra.mxu0 0.0
    %2810 = vmatprep.subr.mxu0 0.0
    %2811 = vmatpush1.msra.mxu0 0.0
    %2812 = vmatprep.subr.mxu0 0.0
    %2813 = vmatpush1.msra.mxu0 0.0
    %2814 = vmatprep.subr.mxu0 0.0
    %2815 = vmatpush1.msra.mxu0 0.0
    %2816 = vmatprep.subr.mxu0 0.0
    %2817 = vmatpush1.msra.mxu0 0.0
    %2818 = vmatprep.subr.mxu0 0.0
    %2819 = vmatpush1.msra.mxu0 0.0
    %2820 = vmatprep.subr.mxu0 0.0
    %2821 = vmatpush1.msra.mxu0 0.0
    %2822 = vmatprep.mubr.f32.mxu0 0.0
    %2823 = vmatmul.mubr.f32.gmra.mrb[0].mxu0 %v453
    %v2824 = vpop.f32.mrb[0].mxu0
    %v2825 = vadd.f32 %v2497, %v2824
    %v2826 = vpop.f32.mrb[0].mxu0
    %2827 = vmatprep.mubr.f32.mxu0 0.0
    %2828 = vmatmul.mubr.f32.gmra.mrb[0].mxu0 %v454
    %v2829 = vpop.f32.mrb[0].mxu0
    %v2830 = vadd.f32 %v2497, %v2829
    %v2831 = vpop.f32.mrb[0].mxu0
    %2832 = vmatprep.mubr.f32.mxu0 0.0
    %2833 = vmatmul.mubr.f32.gmra.mrb[0].mxu0 %v455
    %v2834 = vpop.f32.mrb[0].mxu0
    %v2835 = vadd.f32 %v2497, %v2834
    %v2836 = vpop.f32.mrb[0].mxu0
    %2837 = vmatprep.mubr.f32.mxu0 0.0
    %2838 = vmatmul.mubr.f32.gmra.mrb[0].mxu0 %v456
    %v2839 = vpop.f32.mrb[0].mxu0
    %v2840 = vadd.f32 %v2497, %v2839
    %v2841 = vpop.f32.mrb[0].mxu0
    %2842 = vmatprep.mubr.f32.mxu0 0.0
    %2843 = vmatmul.mubr.f32.gmra.mrb[0].mxu0 %v457
    %v2844 = vpop.f32.mrb[0].mxu0
    %v2845 = vadd.f32 %v2497, %v2844
    %v2846 = vpop.f32.mrb[0].mxu0
    %2847 = vmatprep.mubr.f32.mxu0 0.0
    %2848 = vmatmul.mubr.f32.gmra.mrb[0].mxu0 %v458
    %v2849 = vpop.f32.mrb[0].mxu0
    %v2850 = vadd.f32 %v2497, %v2849
    %v2851 = vpop.f32.mrb[0].mxu0
    %2852 = vmatprep.mubr.f32.mxu0 0.0
    %2853 = vmatmul.mubr.f32.gmra.mrb[0].mxu0 %v459
    %v2854 = vpop.f32.mrb[0].mxu0
    %v2855 = vadd.f32 %v2497, %v2854
    %v2856 = vpop.f32.mrb[0].mxu0
    %2857 = vmatprep.mubr.f32.mxu0 0.0
    %2858 = vmatmul.mubr.f32.gmra.mrb[0].mxu0 %v460
    %v2859 = vpop.f32.mrb[0].mxu0
    %v2860 = vadd.f32 %v2497, %v2859
    %v2861 = vpop.f32.mrb[0].mxu0
    %2862 = vmatprep.mubr.f32.mxu0 0.0
    %2863 = vmatmul.mubr.f32.gmra.mrb[0].mxu0 %v461
    %v2864 = vpop.f32.mrb[0].mxu0
    %v2865 = vadd.f32 %v2497, %v2864
    %v2866 = vpop.f32.mrb[0].mxu0
    %2867 = vmatprep.mubr.f32.mxu0 0.0
    %2868 = vmatmul.mubr.f32.gmra.mrb[0].mxu0 %v462
    %v2869 = vpop.f32.mrb[0].mxu0
    %v2870 = vadd.f32 %v2497, %v2869
    %v2871 = vpop.f32.mrb[0].mxu0
    %2872 = vmatprep.mubr.f32.mxu0 0.0
    %2873 = vmatmul.mubr.f32.gmra.mrb[0].mxu0 %v463
    %v2874 = vpop.f32.mrb[0].mxu0
    %v2875 = vadd.f32 %v2497, %v2874
    %v2876 = vpop.f32.mrb[0].mxu0
    %2877 = vmatprep.mubr.f32.mxu0 0.0
    %2878 = vmatmul.mubr.f32.gmra.mrb[0].mxu0 %v464
    %v2879 = vpop.f32.mrb[0].mxu0
    %v2880 = vadd.f32 %v2497, %v2879
    %v2881 = vpop.f32.mrb[0].mxu0
    %2882 = vmatprep.mubr.f32.mxu0 0.0
    %2883 = vmatmul.mubr.f32.gmra.mrb[0].mxu0 %v465
    %v2884 = vpop.f32.mrb[0].mxu0
    %v2885 = vadd.f32 %v2497, %v2884
    %v2886 = vpop.f32.mrb[0].mxu0
    %2887 = vmatprep.mubr.f32.mxu0 0.0
    %2888 = vmatmul.mubr.f32.gmra.mrb[0].mxu0 %v466
    %v2889 = vpop.f32.mrb[0].mxu0
    %v2890 = vadd.f32 %v2497, %v2889
    %v2891 = vpop.f32.mrb[0].mxu0
    %2892 = vmatprep.mubr.f32.mxu0 0.0
    %2893 = vmatmul.mubr.f32.gmra.mrb[0].mxu0 %v467
    %v2894 = vpop.f32.mrb[0].mxu0
    %v2895 = vadd.f32 %v2497, %v2894
    %v2896 = vpop.f32.mrb[0].mxu0
    %2897 = vmatprep.mubr.f32.mxu0 0.0
    %2898 = vmatmul.mubr.f32.gmra.mrb[0].mxu0 %v468
    %v2899 = vpop.f32.mrb[0].mxu0
    %v2900 = vadd.f32 %v2497, %v2899
    %v2901 = vpop.f32.mrb[0].mxu0
    %2902 = vmatprep.mubr.f32.mxu0 0.0
    %2903 = vmatmul.mubr.f32.gmra.mrb[0].mxu0 %v469
    %v2904 = vpop.f32.mrb[0].mxu0
    %v2905 = vadd.f32 %v2497, %v2904
    %v2906 = vpop.f32.mrb[0].mxu0
    %2907 = vmatprep.mubr.f32.mxu0 0.0
    %2908 = vmatmul.mubr.f32.gmra.mrb[0].mxu0 %v470
    %v2909 = vpop.f32.mrb[0].mxu0
    %v2910 = vadd.f32 %v2497, %v2909
    %v2911 = vpop.f32.mrb[0].mxu0
    %2912 = vmatprep.mubr.f32.mxu0 0.0
    %2913 = vmatmul.mubr.f32.gmra.mrb[0].mxu0 %v471
    %v2914 = vpop.f32.mrb[0].mxu0
    %v2915 = vadd.f32 %v2497, %v2914
    %v2916 = vpop.f32.mrb[0].mxu0
    %2917 = vmatprep.mubr.f32.mxu0 0.0
    %2918 = vmatmul.mubr.f32.gmra.mrb[0].mxu0 %v472
    %v2919 = vpop.f32.mrb[0].mxu0
    %v2920 = vadd.f32 %v2497, %v2919
    %v2921 = vpop.f32.mrb[0].mxu0
    %2922 = vmatprep.mubr.f32.mxu0 0.0
    %2923 = vmatmul.mubr.f32.gmra.mrb[0].mxu0 %v473
    %v2924 = vpop.f32.mrb[0].mxu0
    %v2925 = vadd.f32 %v2497, %v2924
    %v2926 = vpop.f32.mrb[0].mxu0
    %2927 = vmatprep.mubr.f32.mxu0 0.0
    %2928 = vmatmul.mubr.f32.gmra.mrb[0].mxu0 %v474
    %v2929 = vpop.f32.mrb[0].mxu0
    %v2930 = vadd.f32 %v2497, %v2929
    %v2931 = vpop.f32.mrb[0].mxu0
    %2932 = vmatprep.mubr.f32.mxu0 0.0
    %2933 = vmatmul.mubr.f32.gmra.mrb[0].mxu0 %v475
    %v2934 = vpop.f32.mrb[0].mxu0
    %v2935 = vadd.f32 %v2497, %v2934
    %v2936 = vpop.f32.mrb[0].mxu0
    %2937 = vmatprep.mubr.f32.mxu0 0.0
    %2938 = vmatmul.mubr.f32.gmra.mrb[0].mxu0 %v476
    %v2939 = vpop.f32.mrb[0].mxu0
    %v2940 = vadd.f32 %v2497, %v2939
    %v2941 = vpop.f32.mrb[0].mxu0
    %2942 = vmatprep.mubr.f32.mxu0 0.0
    %2943 = vmatmul.mubr.f32.gmra.mrb[0].mxu0 %v477
    %v2944 = vpop.f32.mrb[0].mxu0
    %v2945 = vadd.f32 %v2497, %v2944
    %v2946 = vpop.f32.mrb[0].mxu0
    %2947 = vmatprep.mubr.f32.mxu0 0.0
    %2948 = vmatmul.mubr.f32.gmra.mrb[0].mxu0 %v478
    %v2949 = vpop.f32.mrb[0].mxu0
    %v2950 = vadd.f32 %v2497, %v2949
    %v2951 = vpop.f32.mrb[0].mxu0
    %2952 = vmatprep.mubr.f32.mxu0 0.0
    %2953 = vmatmul.mubr.f32.gmra.mrb[0].mxu0 %v479
    %v2954 = vpop.f32.mrb[0].mxu0
    %v2955 = vadd.f32 %v2497, %v2954
    %v2956 = vpop.f32.mrb[0].mxu0
    %2957 = vmatprep.mubr.f32.mxu0 0.0
    %2958 = vmatmul.mubr.f32.gmra.mrb[0].mxu0 %v480
    %v2959 = vpop.f32.mrb[0].mxu0
    %v2960 = vadd.f32 %v2497, %v2959
    %v2961 = vpop.f32.mrb[0].mxu0
    %2962 = vmatprep.mubr.f32.mxu0 0.0
    %2963 = vmatmul.mubr.f32.gmra.mrb[0].mxu0 %v481
    %v2964 = vpop.f32.mrb[0].mxu0
    %v2965 = vadd.f32 %v2497, %v2964
    %v2966 = vpop.f32.mrb[0].mxu0
    %2967 = vmatprep.mubr.f32.mxu0 0.0
    %2968 = vmatmul.mubr.f32.gmra.mrb[0].mxu0 %v482
    %v2969 = vpop.f32.mrb[0].mxu0
    %v2970 = vadd.f32 %v2497, %v2969
    %v2971 = vpop.f32.mrb[0].mxu0
    %2972 = vmatprep.mubr.f32.mxu0 0.0
    %2973 = vmatmul.mubr.f32.gmra.mrb[0].mxu0 %v483
    %v2974 = vpop.f32.mrb[0].mxu0
    %v2975 = vadd.f32 %v2497, %v2974
    %v2976 = vpop.f32.mrb[0].mxu0
    %2977 = vmatprep.mubr.f32.mxu0 0.0
    %2978 = vmatmul.mubr.f32.gmra.mrb[0].mxu0 %v484
    %v2979 = vpop.f32.mrb[0].mxu0
    %v2980 = vadd.f32 %v2497, %v2979
    %v2981 = vpop.f32.mrb[0].mxu0
    %2982 = vdwg.mxu0
    %v2983 = vadd.f32 %v2389, %v2568
    %v2984 = vadd.f32 %v2392, %v2574
    %v2985 = vadd.f32 %v2395, %v2580
    %v2986 = vadd.f32 %v2398, %v2586
    %v2987 = vadd.f32 %v2401, %v2592
    %v2988 = vadd.f32 %v2404, %v2598
    %v2989 = vadd.f32 %v2407, %v2604
    %v2990 = vadd.f32 %v2410, %v2610
    %v2991 = vadd.f32 %v2413, %v2616
    %v2992 = vadd.f32 %v2416, %v2622
    %v2993 = vadd.f32 %v2419, %v2628
    %v2994 = vadd.f32 %v2422, %v2634
    %v2995 = vadd.f32 %v2425, %v2640
    %v2996 = vadd.f32 %v2428, %v2646
    %v2997 = vadd.f32 %v2431, %v2652
    %v2998 = vadd.f32 %v2434, %v2658
    %v2999 = vadd.f32 %v2437, %v2664
    %v3000 = vadd.f32 %v2440, %v2670
    %v3001 = vadd.f32 %v2443, %v2676
    %v3002 = vadd.f32 %v2446, %v2682
    %v3003 = vadd.f32 %v2449, %v2688
    %v3004 = vadd.f32 %v2452, %v2694
    %v3005 = vadd.f32 %v2455, %v2700
    %v3006 = vadd.f32 %v2458, %v2706
    %v3007 = vadd.f32 %v2461, %v2712
    %v3008 = vadd.f32 %v2464, %v2718
    %v3009 = vadd.f32 %v2467, %v2724
    %v3010 = vadd.f32 %v2470, %v2730
    %v3011 = vadd.f32 %v2473, %v2736
    %v3012 = vadd.f32 %v2476, %v2742
    %v3013 = vadd.f32 %v2479, %v2748
    %v3014 = vadd.f32 %v2482, %v2754
    %v3015 = vxor.u32 %v2983, 2147483648
    %v3016 = vxor.u32 %v2984, 2147483648
    %v3017 = vxor.u32 %v2985, 2147483648
    %v3018 = vxor.u32 %v2986, 2147483648
    %v3019 = vxor.u32 %v2987, 2147483648
    %v3020 = vxor.u32 %v2988, 2147483648
    %v3021 = vxor.u32 %v2989, 2147483648
    %v3022 = vxor.u32 %v2990, 2147483648
    %v3023 = vxor.u32 %v2991, 2147483648
    %v3024 = vxor.u32 %v2992, 2147483648
    %v3025 = vxor.u32 %v2993, 2147483648
    %v3026 = vxor.u32 %v2994, 2147483648
    %v3027 = vxor.u32 %v2995, 2147483648
    %v3028 = vxor.u32 %v2996, 2147483648
    %v3029 = vxor.u32 %v2997, 2147483648
    %v3030 = vxor.u32 %v2998, 2147483648
    %v3031 = vxor.u32 %v2999, 2147483648
    %v3032 = vxor.u32 %v3000, 2147483648
    %v3033 = vxor.u32 %v3001, 2147483648
    %v3034 = vxor.u32 %v3002, 2147483648
    %v3035 = vxor.u32 %v3003, 2147483648
    %v3036 = vxor.u32 %v3004, 2147483648
    %v3037 = vxor.u32 %v3005, 2147483648
    %v3038 = vxor.u32 %v3006, 2147483648
    %v3039 = vxor.u32 %v3007, 2147483648
    %v3040 = vxor.u32 %v3008, 2147483648
    %v3041 = vxor.u32 %v3009, 2147483648
    %v3042 = vxor.u32 %v3010, 2147483648
    %v3043 = vxor.u32 %v3011, 2147483648
    %v3044 = vxor.u32 %v3012, 2147483648
    %v3045 = vxor.u32 %v3013, 2147483648
    %v3046 = vxor.u32 %v3014, 2147483648
    %v3047 = vmul.f32 %v3015, 1.442695
    %v3048 = vpow.pop %v3047
    %v3049 = vmul.f32 %v3016, 1.442695
    %v3050 = vpow.pop %v3049
    %v3051 = vmul.f32 %v3017, 1.442695
    %v3052 = vpow.pop %v3051
    %v3053 = vmul.f32 %v3018, 1.442695
    %v3054 = vpow.pop %v3053
    %v3055 = vmul.f32 %v3019, 1.442695
    %v3056 = vpow.pop %v3055
    %v3057 = vmul.f32 %v3020, 1.442695
    %v3058 = vpow.pop %v3057
    %v3059 = vmul.f32 %v3021, 1.442695
    %v3060 = vpow.pop %v3059
    %v3061 = vmul.f32 %v3022, 1.442695
    %v3062 = vpow.pop %v3061
    %v3063 = vmul.f32 %v3023, 1.442695
    %v3064 = vpow.pop %v3063
    %v3065 = vmul.f32 %v3024, 1.442695
    %v3066 = vpow.pop %v3065
    %v3067 = vmul.f32 %v3025, 1.442695
    %v3068 = vpow.pop %v3067
    %v3069 = vmul.f32 %v3026, 1.442695
    %v3070 = vpow.pop %v3069
    %v3071 = vmul.f32 %v3027, 1.442695
    %v3072 = vpow.pop %v3071
    %v3073 = vmul.f32 %v3028, 1.442695
    %v3074 = vpow.pop %v3073
    %v3075 = vmul.f32 %v3029, 1.442695
    %v3076 = vpow.pop %v3075
    %v3077 = vmul.f32 %v3030, 1.442695
    %v3078 = vpow.pop %v3077
    %v3079 = vmul.f32 %v3031, 1.442695
    %v3080 = vpow.pop %v3079
    %v3081 = vmul.f32 %v3032, 1.442695
    %v3082 = vpow.pop %v3081
    %v3083 = vmul.f32 %v3033, 1.442695
    %v3084 = vpow.pop %v3083
    %v3085 = vmul.f32 %v3034, 1.442695
    %v3086 = vpow.pop %v3085
    %v3087 = vmul.f32 %v3035, 1.442695
    %v3088 = vpow.pop %v3087
    %v3089 = vmul.f32 %v3036, 1.442695
    %v3090 = vpow.pop %v3089
    %v3091 = vmul.f32 %v3037, 1.442695
    %v3092 = vpow.pop %v3091
    %v3093 = vmul.f32 %v3038, 1.442695
    %v3094 = vpow.pop %v3093
    %v3095 = vmul.f32 %v3039, 1.442695
    %v3096 = vpow.pop %v3095
    %v3097 = vmul.f32 %v3040, 1.442695
    %v3098 = vpow.pop %v3097
    %v3099 = vmul.f32 %v3041, 1.442695
    %v3100 = vpow.pop %v3099
    %v3101 = vmul.f32 %v3042, 1.442695
    %v3102 = vpow.pop %v3101
    %v3103 = vmul.f32 %v3043, 1.442695
    %v3104 = vpow.pop %v3103
    %v3105 = vmul.f32 %v3044, 1.442695
    %v3106 = vpow.pop %v3105
    %v3107 = vmul.f32 %v3045, 1.442695
    %v3108 = vpow.pop %v3107
    %v3109 = vmul.f32 %v3046, 1.442695
    %v3110 = vpow.pop %v3109
    %v3111 = vadd.f32 %v3048, 1.0
    %v3112 = vadd.f32 %v3050, 1.0
    %v3113 = vadd.f32 %v3052, 1.0
    %v3114 = vadd.f32 %v3054, 1.0
    %v3115 = vadd.f32 %v3056, 1.0
    %v3116 = vadd.f32 %v3058, 1.0
    %v3117 = vadd.f32 %v3060, 1.0
    %v3118 = vadd.f32 %v3062, 1.0
    %v3119 = vadd.f32 %v3064, 1.0
    %v3120 = vadd.f32 %v3066, 1.0
    %v3121 = vadd.f32 %v3068, 1.0
    %v3122 = vadd.f32 %v3070, 1.0
    %v3123 = vadd.f32 %v3072, 1.0
    %v3124 = vadd.f32 %v3074, 1.0
    %v3125 = vadd.f32 %v3076, 1.0
    %v3126 = vadd.f32 %v3078, 1.0
    %v3127 = vadd.f32 %v3080, 1.0
    %v3128 = vadd.f32 %v3082, 1.0
    %v3129 = vadd.f32 %v3084, 1.0
    %v3130 = vadd.f32 %v3086, 1.0
    %v3131 = vadd.f32 %v3088, 1.0
    %v3132 = vadd.f32 %v3090, 1.0
    %v3133 = vadd.f32 %v3092, 1.0
    %v3134 = vadd.f32 %v3094, 1.0
    %v3135 = vadd.f32 %v3096, 1.0
    %v3136 = vadd.f32 %v3098, 1.0
    %v3137 = vadd.f32 %v3100, 1.0
    %v3138 = vadd.f32 %v3102, 1.0
    %v3139 = vadd.f32 %v3104, 1.0
    %v3140 = vadd.f32 %v3106, 1.0
    %v3141 = vadd.f32 %v3108, 1.0
    %v3142 = vadd.f32 %v3110, 1.0
    %v3143 = vrcp.pop %v3111
    %v3144 = vmul.f32 1.0, %v3143
    %v3145 = vrcp.pop %v3112
    %v3146 = vmul.f32 1.0, %v3145
    %v3147 = vrcp.pop %v3113
    %v3148 = vmul.f32 1.0, %v3147
    %v3149 = vrcp.pop %v3114
    %v3150 = vmul.f32 1.0, %v3149
    %v3151 = vrcp.pop %v3115
    %v3152 = vmul.f32 1.0, %v3151
    %v3153 = vrcp.pop %v3116
    %v3154 = vmul.f32 1.0, %v3153
    %v3155 = vrcp.pop %v3117
    %v3156 = vmul.f32 1.0, %v3155
    %v3157 = vrcp.pop %v3118
    %v3158 = vmul.f32 1.0, %v3157
    %v3159 = vrcp.pop %v3119
    %v3160 = vmul.f32 1.0, %v3159
    %v3161 = vrcp.pop %v3120
    %v3162 = vmul.f32 1.0, %v3161
    %v3163 = vrcp.pop %v3121
    %v3164 = vmul.f32 1.0, %v3163
    %v3165 = vrcp.pop %v3122
    %v3166 = vmul.f32 1.0, %v3165
    %v3167 = vrcp.pop %v3123
    %v3168 = vmul.f32 1.0, %v3167
    %v3169 = vrcp.pop %v3124
    %v3170 = vmul.f32 1.0, %v3169
    %v3171 = vrcp.pop %v3125
    %v3172 = vmul.f32 1.0, %v3171
    %v3173 = vrcp.pop %v3126
    %v3174 = vmul.f32 1.0, %v3173
    %v3175 = vrcp.pop %v3127
    %v3176 = vmul.f32 1.0, %v3175
    %v3177 = vrcp.pop %v3128
    %v3178 = vmul.f32 1.0, %v3177
    %v3179 = vrcp.pop %v3129
    %v3180 = vmul.f32 1.0, %v3179
    %v3181 = vrcp.pop %v3130
    %v3182 = vmul.f32 1.0, %v3181
    %v3183 = vrcp.pop %v3131
    %v3184 = vmul.f32 1.0, %v3183
    %v3185 = vrcp.pop %v3132
    %v3186 = vmul.f32 1.0, %v3185
    %v3187 = vrcp.pop %v3133
    %v3188 = vmul.f32 1.0, %v3187
    %v3189 = vrcp.pop %v3134
    %v3190 = vmul.f32 1.0, %v3189
    %v3191 = vrcp.pop %v3135
    %v3192 = vmul.f32 1.0, %v3191
    %v3193 = vrcp.pop %v3136
    %v3194 = vmul.f32 1.0, %v3193
    %v3195 = vrcp.pop %v3137
    %v3196 = vmul.f32 1.0, %v3195
    %v3197 = vrcp.pop %v3138
    %v3198 = vmul.f32 1.0, %v3197
    %v3199 = vrcp.pop %v3139
    %v3200 = vmul.f32 1.0, %v3199
    %v3201 = vrcp.pop %v3140
    %v3202 = vmul.f32 1.0, %v3201
    %v3203 = vrcp.pop %v3141
    %v3204 = vmul.f32 1.0, %v3203
    %v3205 = vrcp.pop %v3142
    %v3206 = vmul.f32 1.0, %v3205
    %v3207 = vadd.f32 %v2390, %v2570
    %v3208 = vadd.f32 %v2393, %v2576
    %v3209 = vadd.f32 %v2396, %v2582
    %v3210 = vadd.f32 %v2399, %v2588
    %v3211 = vadd.f32 %v2402, %v2594
    %v3212 = vadd.f32 %v2405, %v2600
    %v3213 = vadd.f32 %v2408, %v2606
    %v3214 = vadd.f32 %v2411, %v2612
    %v3215 = vadd.f32 %v2414, %v2618
    %v3216 = vadd.f32 %v2417, %v2624
    %v3217 = vadd.f32 %v2420, %v2630
    %v3218 = vadd.f32 %v2423, %v2636
    %v3219 = vadd.f32 %v2426, %v2642
    %v3220 = vadd.f32 %v2429, %v2648
    %v3221 = vadd.f32 %v2432, %v2654
    %v3222 = vadd.f32 %v2435, %v2660
    %v3223 = vadd.f32 %v2438, %v2666
    %v3224 = vadd.f32 %v2441, %v2672
    %v3225 = vadd.f32 %v2444, %v2678
    %v3226 = vadd.f32 %v2447, %v2684
    %v3227 = vadd.f32 %v2450, %v2690
    %v3228 = vadd.f32 %v2453, %v2696
    %v3229 = vadd.f32 %v2456, %v2702
    %v3230 = vadd.f32 %v2459, %v2708
    %v3231 = vadd.f32 %v2462, %v2714
    %v3232 = vadd.f32 %v2465, %v2720
    %v3233 = vadd.f32 %v2468, %v2726
    %v3234 = vadd.f32 %v2471, %v2732
    %v3235 = vadd.f32 %v2474, %v2738
    %v3236 = vadd.f32 %v2477, %v2744
    %v3237 = vadd.f32 %v2480, %v2750
    %v3238 = vadd.f32 %v2483, %v2756
    %v3239 = vxor.u32 %v3207, 2147483648
    %v3240 = vxor.u32 %v3208, 2147483648
    %v3241 = vxor.u32 %v3209, 2147483648
    %v3242 = vxor.u32 %v3210, 2147483648
    %v3243 = vxor.u32 %v3211, 2147483648
    %v3244 = vxor.u32 %v3212, 2147483648
    %v3245 = vxor.u32 %v3213, 2147483648
    %v3246 = vxor.u32 %v3214, 2147483648
    %v3247 = vxor.u32 %v3215, 2147483648
    %v3248 = vxor.u32 %v3216, 2147483648
    %v3249 = vxor.u32 %v3217, 2147483648
    %v3250 = vxor.u32 %v3218, 2147483648
    %v3251 = vxor.u32 %v3219, 2147483648
    %v3252 = vxor.u32 %v3220, 2147483648
    %v3253 = vxor.u32 %v3221, 2147483648
    %v3254 = vxor.u32 %v3222, 2147483648
    %v3255 = vxor.u32 %v3223, 2147483648
    %v3256 = vxor.u32 %v3224, 2147483648
    %v3257 = vxor.u32 %v3225, 2147483648
    %v3258 = vxor.u32 %v3226, 2147483648
    %v3259 = vxor.u32 %v3227, 2147483648
    %v3260 = vxor.u32 %v3228, 2147483648
    %v3261 = vxor.u32 %v3229, 2147483648
    %v3262 = vxor.u32 %v3230, 2147483648
    %v3263 = vxor.u32 %v3231, 2147483648
    %v3264 = vxor.u32 %v3232, 2147483648
    %v3265 = vxor.u32 %v3233, 2147483648
    %v3266 = vxor.u32 %v3234, 2147483648
    %v3267 = vxor.u32 %v3235, 2147483648
    %v3268 = vxor.u32 %v3236, 2147483648
    %v3269 = vxor.u32 %v3237, 2147483648
    %v3270 = vxor.u32 %v3238, 2147483648
    %v3271 = vmul.f32 %v3239, 1.442695
    %v3272 = vpow.pop %v3271
    %v3273 = vmul.f32 %v3240, 1.442695
    %v3274 = vpow.pop %v3273
    %v3275 = vmul.f32 %v3241, 1.442695
    %v3276 = vpow.pop %v3275
    %v3277 = vmul.f32 %v3242, 1.442695
    %v3278 = vpow.pop %v3277
    %v3279 = vmul.f32 %v3243, 1.442695
    %v3280 = vpow.pop %v3279
    %v3281 = vmul.f32 %v3244, 1.442695
    %v3282 = vpow.pop %v3281
    %v3283 = vmul.f32 %v3245, 1.442695
    %v3284 = vpow.pop %v3283
    %v3285 = vmul.f32 %v3246, 1.442695
    %v3286 = vpow.pop %v3285
    %v3287 = vmul.f32 %v3247, 1.442695
    %v3288 = vpow.pop %v3287
    %v3289 = vmul.f32 %v3248, 1.442695
    %v3290 = vpow.pop %v3289
    %v3291 = vmul.f32 %v3249, 1.442695
    %v3292 = vpow.pop %v3291
    %v3293 = vmul.f32 %v3250, 1.442695
    %v3294 = vpow.pop %v3293
    %v3295 = vmul.f32 %v3251, 1.442695
    %v3296 = vpow.pop %v3295
    %v3297 = vmul.f32 %v3252, 1.442695
    %v3298 = vpow.pop %v3297
    %v3299 = vmul.f32 %v3253, 1.442695
    %v3300 = vpow.pop %v3299
    %v3301 = vmul.f32 %v3254, 1.442695
    %v3302 = vpow.pop %v3301
    %v3303 = vmul.f32 %v3255, 1.442695
    %v3304 = vpow.pop %v3303
    %v3305 = vmul.f32 %v3256, 1.442695
    %v3306 = vpow.pop %v3305
    %v3307 = vmul.f32 %v3257, 1.442695
    %v3308 = vpow.pop %v3307
    %v3309 = vmul.f32 %v3258, 1.442695
    %v3310 = vpow.pop %v3309
    %v3311 = vmul.f32 %v3259, 1.442695
    %v3312 = vpow.pop %v3311
    %v3313 = vmul.f32 %v3260, 1.442695
    %v3314 = vpow.pop %v3313
    %v3315 = vmul.f32 %v3261, 1.442695
    %v3316 = vpow.pop %v3315
    %v3317 = vmul.f32 %v3262, 1.442695
    %v3318 = vpow.pop %v3317
    %v3319 = vmul.f32 %v3263, 1.442695
    %v3320 = vpow.pop %v3319
    %v3321 = vmul.f32 %v3264, 1.442695
    %v3322 = vpow.pop %v3321
    %v3323 = vmul.f32 %v3265, 1.442695
    %v3324 = vpow.pop %v3323
    %v3325 = vmul.f32 %v3266, 1.442695
    %v3326 = vpow.pop %v3325
    %v3327 = vmul.f32 %v3267, 1.442695
    %v3328 = vpow.pop %v3327
    %v3329 = vmul.f32 %v3268, 1.442695
    %v3330 = vpow.pop %v3329
    %v3331 = vmul.f32 %v3269, 1.442695
    %v3332 = vpow.pop %v3331
    %v3333 = vmul.f32 %v3270, 1.442695
    %v3334 = vpow.pop %v3333
    %v3335 = vadd.f32 %v3272, 1.0
    %v3336 = vadd.f32 %v3274, 1.0
    %v3337 = vadd.f32 %v3276, 1.0
    %v3338 = vadd.f32 %v3278, 1.0
    %v3339 = vadd.f32 %v3280, 1.0
    %v3340 = vadd.f32 %v3282, 1.0
    %v3341 = vadd.f32 %v3284, 1.0
    %v3342 = vadd.f32 %v3286, 1.0
    %v3343 = vadd.f32 %v3288, 1.0
    %v3344 = vadd.f32 %v3290, 1.0
    %v3345 = vadd.f32 %v3292, 1.0
    %v3346 = vadd.f32 %v3294, 1.0
    %v3347 = vadd.f32 %v3296, 1.0
    %v3348 = vadd.f32 %v3298, 1.0
    %v3349 = vadd.f32 %v3300, 1.0
    %v3350 = vadd.f32 %v3302, 1.0
    %v3351 = vadd.f32 %v3304, 1.0
    %v3352 = vadd.f32 %v3306, 1.0
    %v3353 = vadd.f32 %v3308, 1.0
    %v3354 = vadd.f32 %v3310, 1.0
    %v3355 = vadd.f32 %v3312, 1.0
    %v3356 = vadd.f32 %v3314, 1.0
    %v3357 = vadd.f32 %v3316, 1.0
    %v3358 = vadd.f32 %v3318, 1.0
    %v3359 = vadd.f32 %v3320, 1.0
    %v3360 = vadd.f32 %v3322, 1.0
    %v3361 = vadd.f32 %v3324, 1.0
    %v3362 = vadd.f32 %v3326, 1.0
    %v3363 = vadd.f32 %v3328, 1.0
    %v3364 = vadd.f32 %v3330, 1.0
    %v3365 = vadd.f32 %v3332, 1.0
    %v3366 = vadd.f32 %v3334, 1.0
    %v3367 = vrcp.pop %v3335
    %v3368 = vmul.f32 1.0, %v3367
    %v3369 = vrcp.pop %v3336
    %v3370 = vmul.f32 1.0, %v3369
    %v3371 = vrcp.pop %v3337
    %v3372 = vmul.f32 1.0, %v3371
    %v3373 = vrcp.pop %v3338
    %v3374 = vmul.f32 1.0, %v3373
    %v3375 = vrcp.pop %v3339
    %v3376 = vmul.f32 1.0, %v3375
    %v3377 = vrcp.pop %v3340
    %v3378 = vmul.f32 1.0, %v3377
    %v3379 = vrcp.pop %v3341
    %v3380 = vmul.f32 1.0, %v3379
    %v3381 = vrcp.pop %v3342
    %v3382 = vmul.f32 1.0, %v3381
    %v3383 = vrcp.pop %v3343
    %v3384 = vmul.f32 1.0, %v3383
    %v3385 = vrcp.pop %v3344
    %v3386 = vmul.f32 1.0, %v3385
    %v3387 = vrcp.pop %v3345
    %v3388 = vmul.f32 1.0, %v3387
    %v3389 = vrcp.pop %v3346
    %v3390 = vmul.f32 1.0, %v3389
    %v3391 = vrcp.pop %v3347
    %v3392 = vmul.f32 1.0, %v3391
    %v3393 = vrcp.pop %v3348
    %v3394 = vmul.f32 1.0, %v3393
    %v3395 = vrcp.pop %v3349
    %v3396 = vmul.f32 1.0, %v3395
    %v3397 = vrcp.pop %v3350
    %v3398 = vmul.f32 1.0, %v3397
    %v3399 = vrcp.pop %v3351
    %v3400 = vmul.f32 1.0, %v3399
    %v3401 = vrcp.pop %v3352
    %v3402 = vmul.f32 1.0, %v3401
    %v3403 = vrcp.pop %v3353
    %v3404 = vmul.f32 1.0, %v3403
    %v3405 = vrcp.pop %v3354
    %v3406 = vmul.f32 1.0, %v3405
    %v3407 = vrcp.pop %v3355
    %v3408 = vmul.f32 1.0, %v3407
    %v3409 = vrcp.pop %v3356
    %v3410 = vmul.f32 1.0, %v3409
    %v3411 = vrcp.pop %v3357
    %v3412 = vmul.f32 1.0, %v3411
    %v3413 = vrcp.pop %v3358
    %v3414 = vmul.f32 1.0, %v3413
    %v3415 = vrcp.pop %v3359
    %v3416 = vmul.f32 1.0, %v3415
    %v3417 = vrcp.pop %v3360
    %v3418 = vmul.f32 1.0, %v3417
    %v3419 = vrcp.pop %v3361
    %v3420 = vmul.f32 1.0, %v3419
    %v3421 = vrcp.pop %v3362
    %v3422 = vmul.f32 1.0, %v3421
    %v3423 = vrcp.pop %v3363
    %v3424 = vmul.f32 1.0, %v3423
    %v3425 = vrcp.pop %v3364
    %v3426 = vmul.f32 1.0, %v3425
    %v3427 = vrcp.pop %v3365
    %v3428 = vmul.f32 1.0, %v3427
    %v3429 = vrcp.pop %v3366
    %v3430 = vmul.f32 1.0, %v3429
    %v3431 = vmul.f32 %v3144, %v2825
    %v3432 = vmul.f32 %v3146, %v2830
    %v3433 = vmul.f32 %v3148, %v2835
    %v3434 = vmul.f32 %v3150, %v2840
    %v3435 = vmul.f32 %v3152, %v2845
    %v3436 = vmul.f32 %v3154, %v2850
    %v3437 = vmul.f32 %v3156, %v2855
    %v3438 = vmul.f32 %v3158, %v2860
    %v3439 = vmul.f32 %v3160, %v2865
    %v3440 = vmul.f32 %v3162, %v2870
    %v3441 = vmul.f32 %v3164, %v2875
    %v3442 = vmul.f32 %v3166, %v2880
    %v3443 = vmul.f32 %v3168, %v2885
    %v3444 = vmul.f32 %v3170, %v2890
    %v3445 = vmul.f32 %v3172, %v2895
    %v3446 = vmul.f32 %v3174, %v2900
    %v3447 = vmul.f32 %v3176, %v2905
    %v3448 = vmul.f32 %v3178, %v2910
    %v3449 = vmul.f32 %v3180, %v2915
    %v3450 = vmul.f32 %v3182, %v2920
    %v3451 = vmul.f32 %v3184, %v2925
    %v3452 = vmul.f32 %v3186, %v2930
    %v3453 = vmul.f32 %v3188, %v2935
    %v3454 = vmul.f32 %v3190, %v2940
    %v3455 = vmul.f32 %v3192, %v2945
    %v3456 = vmul.f32 %v3194, %v2950
    %v3457 = vmul.f32 %v3196, %v2955
    %v3458 = vmul.f32 %v3198, %v2960
    %v3459 = vmul.f32 %v3200, %v2965
    %v3460 = vmul.f32 %v3202, %v2970
    %v3461 = vmul.f32 %v3204, %v2975
    %v3462 = vmul.f32 %v3206, %v2980
    %v3463 = vadd.f32 %v2391, %v3431
    %v3464 = vadd.f32 %v2394, %v3432
    %v3465 = vadd.f32 %v2397, %v3433
    %v3466 = vadd.f32 %v2400, %v3434
    %v3467 = vadd.f32 %v2403, %v3435
    %v3468 = vadd.f32 %v2406, %v3436
    %v3469 = vadd.f32 %v2409, %v3437
    %v3470 = vadd.f32 %v2412, %v3438
    %v3471 = vadd.f32 %v2415, %v3439
    %v3472 = vadd.f32 %v2418, %v3440
    %v3473 = vadd.f32 %v2421, %v3441
    %v3474 = vadd.f32 %v2424, %v3442
    %v3475 = vadd.f32 %v2427, %v3443
    %v3476 = vadd.f32 %v2430, %v3444
    %v3477 = vadd.f32 %v2433, %v3445
    %v3478 = vadd.f32 %v2436, %v3446
    %v3479 = vadd.f32 %v2439, %v3447
    %v3480 = vadd.f32 %v2442, %v3448
    %v3481 = vadd.f32 %v2445, %v3449
    %v3482 = vadd.f32 %v2448, %v3450
    %v3483 = vadd.f32 %v2451, %v3451
    %v3484 = vadd.f32 %v2454, %v3452
    %v3485 = vadd.f32 %v2457, %v3453
    %v3486 = vadd.f32 %v2460, %v3454
    %v3487 = vadd.f32 %v2463, %v3455
    %v3488 = vadd.f32 %v2466, %v3456
    %v3489 = vadd.f32 %v2469, %v3457
    %v3490 = vadd.f32 %v2472, %v3458
    %v3491 = vadd.f32 %v2475, %v3459
    %v3492 = vadd.f32 %v2478, %v3460
    %v3493 = vadd.f32 %v2481, %v3461
    %v3494 = vadd.f32 %v2484, %v3462
    %v3495 = vtanh.pop %v3463
    %v3496 = vtanh.pop %v3464
    %v3497 = vtanh.pop %v3465
    %v3498 = vtanh.pop %v3466
    %v3499 = vtanh.pop %v3467
    %v3500 = vtanh.pop %v3468
    %v3501 = vtanh.pop %v3469
    %v3502 = vtanh.pop %v3470
    %v3503 = vtanh.pop %v3471
    %v3504 = vtanh.pop %v3472
    %v3505 = vtanh.pop %v3473
    %v3506 = vtanh.pop %v3474
    %v3507 = vtanh.pop %v3475
    %v3508 = vtanh.pop %v3476
    %v3509 = vtanh.pop %v3477
    %v3510 = vtanh.pop %v3478
    %v3511 = vtanh.pop %v3479
    %v3512 = vtanh.pop %v3480
    %v3513 = vtanh.pop %v3481
    %v3514 = vtanh.pop %v3482
    %v3515 = vtanh.pop %v3483
    %v3516 = vtanh.pop %v3484
    %v3517 = vtanh.pop %v3485
    %v3518 = vtanh.pop %v3486
    %v3519 = vtanh.pop %v3487
    %v3520 = vtanh.pop %v3488
    %v3521 = vtanh.pop %v3489
    %v3522 = vtanh.pop %v3490
    %v3523 = vtanh.pop %v3491
    %v3524 = vtanh.pop %v3492
    %v3525 = vtanh.pop %v3493
    %v3526 = vtanh.pop %v3494
    %v3527 = vsub.f32 1.0, %v3368
    %v3528 = vsub.f32 1.0, %v3370
    %v3529 = vsub.f32 1.0, %v3372
    %v3530 = vsub.f32 1.0, %v3374
    %v3531 = vsub.f32 1.0, %v3376
    %v3532 = vsub.f32 1.0, %v3378
    %v3533 = vsub.f32 1.0, %v3380
    %v3534 = vsub.f32 1.0, %v3382
    %v3535 = vsub.f32 1.0, %v3384
    %v3536 = vsub.f32 1.0, %v3386
    %v3537 = vsub.f32 1.0, %v3388
    %v3538 = vsub.f32 1.0, %v3390
    %v3539 = vsub.f32 1.0, %v3392
    %v3540 = vsub.f32 1.0, %v3394
    %v3541 = vsub.f32 1.0, %v3396
    %v3542 = vsub.f32 1.0, %v3398
    %v3543 = vsub.f32 1.0, %v3400
    %v3544 = vsub.f32 1.0, %v3402
    %v3545 = vsub.f32 1.0, %v3404
    %v3546 = vsub.f32 1.0, %v3406
    %v3547 = vsub.f32 1.0, %v3408
    %v3548 = vsub.f32 1.0, %v3410
    %v3549 = vsub.f32 1.0, %v3412
    %v3550 = vsub.f32 1.0, %v3414
    %v3551 = vsub.f32 1.0, %v3416
    %v3552 = vsub.f32 1.0, %v3418
    %v3553 = vsub.f32 1.0, %v3420
    %v3554 = vsub.f32 1.0, %v3422
    %v3555 = vsub.f32 1.0, %v3424
    %v3556 = vsub.f32 1.0, %v3426
    %v3557 = vsub.f32 1.0, %v3428
    %v3558 = vsub.f32 1.0, %v3430
    %v3559 = vmul.f32 %v3527, %v453
    %v3560 = vmul.f32 %v3528, %v454
    %v3561 = vmul.f32 %v3529, %v455
    %v3562 = vmul.f32 %v3530, %v456
    %v3563 = vmul.f32 %v3531, %v457
    %v3564 = vmul.f32 %v3532, %v458
    %v3565 = vmul.f32 %v3533, %v459
    %v3566 = vmul.f32 %v3534, %v460
    %v3567 = vmul.f32 %v3535, %v461
    %v3568 = vmul.f32 %v3536, %v462
    %v3569 = vmul.f32 %v3537, %v463
    %v3570 = vmul.f32 %v3538, %v464
    %v3571 = vmul.f32 %v3539, %v465
    %v3572 = vmul.f32 %v3540, %v466
    %v3573 = vmul.f32 %v3541, %v467
    %v3574 = vmul.f32 %v3542, %v468
    %v3575 = vmul.f32 %v3543, %v469
    %v3576 = vmul.f32 %v3544, %v470
    %v3577 = vmul.f32 %v3545, %v471
    %v3578 = vmul.f32 %v3546, %v472
    %v3579 = vmul.f32 %v3547, %v473
    %v3580 = vmul.f32 %v3548, %v474
    %v3581 = vmul.f32 %v3549, %v475
    %v3582 = vmul.f32 %v3550, %v476
    %v3583 = vmul.f32 %v3551, %v477
    %v3584 = vmul.f32 %v3552, %v478
    %v3585 = vmul.f32 %v3553, %v479
    %v3586 = vmul.f32 %v3554, %v480
    %v3587 = vmul.f32 %v3555, %v481
    %v3588 = vmul.f32 %v3556, %v482
    %v3589 = vmul.f32 %v3557, %v483
    %v3590 = vmul.f32 %v3558, %v484
    %v3591 = vmul.f32 %v3368, %v3495
    %v3592 = vmul.f32 %v3370, %v3496
    %v3593 = vmul.f32 %v3372, %v3497
    %v3594 = vmul.f32 %v3374, %v3498
    %v3595 = vmul.f32 %v3376, %v3499
    %v3596 = vmul.f32 %v3378, %v3500
    %v3597 = vmul.f32 %v3380, %v3501
    %v3598 = vmul.f32 %v3382, %v3502
    %v3599 = vmul.f32 %v3384, %v3503
    %v3600 = vmul.f32 %v3386, %v3504
    %v3601 = vmul.f32 %v3388, %v3505
    %v3602 = vmul.f32 %v3390, %v3506
    %v3603 = vmul.f32 %v3392, %v3507
    %v3604 = vmul.f32 %v3394, %v3508
    %v3605 = vmul.f32 %v3396, %v3509
    %v3606 = vmul.f32 %v3398, %v3510
    %v3607 = vmul.f32 %v3400, %v3511
    %v3608 = vmul.f32 %v3402, %v3512
    %v3609 = vmul.f32 %v3404, %v3513
    %v3610 = vmul.f32 %v3406, %v3514
    %v3611 = vmul.f32 %v3408, %v3515
    %v3612 = vmul.f32 %v3410, %v3516
    %v3613 = vmul.f32 %v3412, %v3517
    %v3614 = vmul.f32 %v3414, %v3518
    %v3615 = vmul.f32 %v3416, %v3519
    %v3616 = vmul.f32 %v3418, %v3520
    %v3617 = vmul.f32 %v3420, %v3521
    %v3618 = vmul.f32 %v3422, %v3522
    %v3619 = vmul.f32 %v3424, %v3523
    %v3620 = vmul.f32 %v3426, %v3524
    %v3621 = vmul.f32 %v3428, %v3525
    %v3622 = vmul.f32 %v3430, %v3526
    %v3623 = vadd.f32 %v3559, %v3591
    %v3624 = vadd.f32 %v3560, %v3592
    %v3625 = vadd.f32 %v3561, %v3593
    %v3626 = vadd.f32 %v3562, %v3594
    %v3627 = vadd.f32 %v3563, %v3595
    %v3628 = vadd.f32 %v3564, %v3596
    %v3629 = vadd.f32 %v3565, %v3597
    %v3630 = vadd.f32 %v3566, %v3598
    %v3631 = vadd.f32 %v3567, %v3599
    %v3632 = vadd.f32 %v3568, %v3600
    %v3633 = vadd.f32 %v3569, %v3601
    %v3634 = vadd.f32 %v3570, %v3602
    %v3635 = vadd.f32 %v3571, %v3603
    %v3636 = vadd.f32 %v3572, %v3604
    %v3637 = vadd.f32 %v3573, %v3605
    %v3638 = vadd.f32 %v3574, %v3606
    %v3639 = vadd.f32 %v3575, %v3607
    %v3640 = vadd.f32 %v3576, %v3608
    %v3641 = vadd.f32 %v3577, %v3609
    %v3642 = vadd.f32 %v3578, %v3610
    %v3643 = vadd.f32 %v3579, %v3611
    %v3644 = vadd.f32 %v3580, %v3612
    %v3645 = vadd.f32 %v3581, %v3613
    %v3646 = vadd.f32 %v3582, %v3614
    %v3647 = vadd.f32 %v3583, %v3615
    %v3648 = vadd.f32 %v3584, %v3616
    %v3649 = vadd.f32 %v3585, %v3617
    %v3650 = vadd.f32 %v3586, %v3618
    %v3651 = vadd.f32 %v3587, %v3619
    %v3652 = vadd.f32 %v3588, %v3620
    %v3653 = vadd.f32 %v3589, %v3621
    %v3654 = vadd.f32 %v3590, %v3622
    %3655 = vmatprep.subr.mxu0 0.0
    %3656 = vmatpush1.msra.mxu0 %v271
    %3657 = vmatprep.subr.mxu0 0.0
    %3658 = vmatpush1.msra.mxu0 %v272
    %3659 = vmatprep.subr.mxu0 0.0
    %3660 = vmatpush1.msra.mxu0 %v273
    %3661 = vmatprep.subr.mxu0 0.0
    %3662 = vmatpush1.msra.mxu0 %v274
    %3663 = vmatprep.subr.mxu0 0.0
    %3664 = vmatpush1.msra.mxu0 %v275
    %3665 = vmatprep.subr.mxu0 0.0
    %3666 = vmatpush1.msra.mxu0 %v276
    %3667 = vmatprep.subr.mxu0 0.0
    %3668 = vmatpush1.msra.mxu0 %v277
    %3669 = vmatprep.subr.mxu0 0.0
    %3670 = vmatpush1.msra.mxu0 %v278
    %3671 = vmatprep.subr.mxu0 0.0
    %3672 = vmatpush1.msra.mxu0 %v279
    %3673 = vmatprep.subr.mxu0 0.0
    %3674 = vmatpush1.msra.mxu0 %v280
    %3675 = vmatprep.subr.mxu0 0.0
    %3676 = vmatpush1.msra.mxu0 %v281
    %3677 = vmatprep.subr.mxu0 0.0
    %3678 = vmatpush1.msra.mxu0 %v282
    %3679 = vmatprep.subr.mxu0 0.0
    %3680 = vmatpush1.msra.mxu0 %v283
    %3681 = vmatprep.subr.mxu0 0.0
    %3682 = vmatpush1.msra.mxu0 %v284
    %3683 = vmatprep.subr.mxu0 0.0
    %3684 = vmatpush1.msra.mxu0 %v285
    %3685 = vmatprep.subr.mxu0 0.0
    %3686 = vmatpush1.msra.mxu0 %v286
    %3687 = vmatprep.subr.mxu0 0.0
    %3688 = vmatpush1.msra.mxu0 0.0
    %3689 = vmatprep.subr.mxu0 0.0
    %3690 = vmatpush1.msra.mxu0 0.0
    %3691 = vmatprep.subr.mxu0 0.0
    %3692 = vmatpush1.msra.mxu0 0.0
    %3693 = vmatprep.subr.mxu0 0.0
    %3694 = vmatpush1.msra.mxu0 0.0
    %3695 = vmatprep.subr.mxu0 0.0
    %3696 = vmatpush1.msra.mxu0 0.0
    %3697 = vmatprep.subr.mxu0 0.0
    %3698 = vmatpush1.msra.mxu0 0.0
    %3699 = vmatprep.subr.mxu0 0.0
    %3700 = vmatpush1.msra.mxu0 0.0
    %3701 = vmatprep.subr.mxu0 0.0
    %3702 = vmatpush1.msra.mxu0 0.0
    %3703 = vmatprep.subr.mxu0 0.0
    %3704 = vmatpush1.msra.mxu0 0.0
    %3705 = vmatprep.subr.mxu0 0.0
    %3706 = vmatpush1.msra.mxu0 0.0
    %3707 = vmatprep.subr.mxu0 0.0
    %3708 = vmatpush1.msra.mxu0 0.0
    %3709 = vmatprep.subr.mxu0 0.0
    %3710 = vmatpush1.msra.mxu0 0.0
    %3711 = vmatprep.subr.mxu0 0.0
    %3712 = vmatpush1.msra.mxu0 0.0
    %3713 = vmatprep.subr.mxu0 0.0
    %3714 = vmatpush1.msra.mxu0 0.0
    %3715 = vmatprep.subr.mxu0 0.0
    %3716 = vmatpush1.msra.mxu0 0.0
    %3717 = vmatprep.subr.mxu0 0.0
    %3718 = vmatpush1.msra.mxu0 0.0
    %3719 = vmatprep.mubr.f32.mxu0 0.0
    %3720 = vmatmul.mubr.f32.gmra.mrb[0].mxu0 %v3623
    %v3721 = vpop.f32.mrb[0].mxu0
    %v3722 = vadd.f32 %v489, %v3721
    %v3723 = vpop.f32.mrb[0].mxu0
    %3724 = vmatprep.mubr.f32.mxu0 0.0
    %3725 = vmatmul.mubr.f32.gmra.mrb[0].mxu0 %v3624
    %v3726 = vpop.f32.mrb[0].mxu0
    %v3727 = vadd.f32 %v489, %v3726
    %v3728 = vpop.f32.mrb[0].mxu0
    %3729 = vmatprep.mubr.f32.mxu0 0.0
    %3730 = vmatmul.mubr.f32.gmra.mrb[0].mxu0 %v3625
    %v3731 = vpop.f32.mrb[0].mxu0
    %v3732 = vadd.f32 %v489, %v3731
    %v3733 = vpop.f32.mrb[0].mxu0
    %3734 = vmatprep.mubr.f32.mxu0 0.0
    %3735 = vmatmul.mubr.f32.gmra.mrb[0].mxu0 %v3626
    %v3736 = vpop.f32.mrb[0].mxu0
    %v3737 = vadd.f32 %v489, %v3736
    %v3738 = vpop.f32.mrb[0].mxu0
    %3739 = vmatprep.mubr.f32.mxu0 0.0
    %3740 = vmatmul.mubr.f32.gmra.mrb[0].mxu0 %v3627
    %v3741 = vpop.f32.mrb[0].mxu0
    %v3742 = vadd.f32 %v489, %v3741
    %v3743 = vpop.f32.mrb[0].mxu0
    %3744 = vmatprep.mubr.f32.mxu0 0.0
    %3745 = vmatmul.mubr.f32.gmra.mrb[0].mxu0 %v3628
    %v3746 = vpop.f32.mrb[0].mxu0
    %v3747 = vadd.f32 %v489, %v3746
    %v3748 = vpop.f32.mrb[0].mxu0
    %3749 = vmatprep.mubr.f32.mxu0 0.0
    %3750 = vmatmul.mubr.f32.gmra.mrb[0].mxu0 %v3629
    %v3751 = vpop.f32.mrb[0].mxu0
    %v3752 = vadd.f32 %v489, %v3751
    %v3753 = vpop.f32.mrb[0].mxu0
    %3754 = vmatprep.mubr.f32.mxu0 0.0
    %3755 = vmatmul.mubr.f32.gmra.mrb[0].mxu0 %v3630
    %v3756 = vpop.f32.mrb[0].mxu0
    %v3757 = vadd.f32 %v489, %v3756
    %v3758 = vpop.f32.mrb[0].mxu0
    %3759 = vmatprep.mubr.f32.mxu0 0.0
    %3760 = vmatmul.mubr.f32.gmra.mrb[0].mxu0 %v3631
    %v3761 = vpop.f32.mrb[0].mxu0
    %v3762 = vadd.f32 %v489, %v3761
    %v3763 = vpop.f32.mrb[0].mxu0
    %3764 = vmatprep.mubr.f32.mxu0 0.0
    %3765 = vmatmul.mubr.f32.gmra.mrb[0].mxu0 %v3632
    %v3766 = vpop.f32.mrb[0].mxu0
    %v3767 = vadd.f32 %v489, %v3766
    %v3768 = vpop.f32.mrb[0].mxu0
    %3769 = vmatprep.mubr.f32.mxu0 0.0
    %3770 = vmatmul.mubr.f32.gmra.mrb[0].mxu0 %v3633
    %v3771 = vpop.f32.mrb[0].mxu0
    %v3772 = vadd.f32 %v489, %v3771
    %v3773 = vpop.f32.mrb[0].mxu0
    %3774 = vmatprep.mubr.f32.mxu0 0.0
    %3775 = vmatmul.mubr.f32.gmra.mrb[0].mxu0 %v3634
    %v3776 = vpop.f32.mrb[0].mxu0
    %v3777 = vadd.f32 %v489, %v3776
    %v3778 = vpop.f32.mrb[0].mxu0
    %3779 = vmatprep.mubr.f32.mxu0 0.0
    %3780 = vmatmul.mubr.f32.gmra.mrb[0].mxu0 %v3635
    %v3781 = vpop.f32.mrb[0].mxu0
    %v3782 = vadd.f32 %v489, %v3781
    %v3783 = vpop.f32.mrb[0].mxu0
    %3784 = vmatprep.mubr.f32.mxu0 0.0
    %3785 = vmatmul.mubr.f32.gmra.mrb[0].mxu0 %v3636
    %v3786 = vpop.f32.mrb[0].mxu0
    %v3787 = vadd.f32 %v489, %v3786
    %v3788 = vpop.f32.mrb[0].mxu0
    %3789 = vmatprep.mubr.f32.mxu0 0.0
    %3790 = vmatmul.mubr.f32.gmra.mrb[0].mxu0 %v3637
    %v3791 = vpop.f32.mrb[0].mxu0
    %v3792 = vadd.f32 %v489, %v3791
    %v3793 = vpop.f32.mrb[0].mxu0
    %3794 = vmatprep.mubr.f32.mxu0 0.0
    %3795 = vmatmul.mubr.f32.gmra.mrb[0].mxu0 %v3638
    %v3796 = vpop.f32.mrb[0].mxu0
    %v3797 = vadd.f32 %v489, %v3796
    %v3798 = vpop.f32.mrb[0].mxu0
    %3799 = vmatprep.mubr.f32.mxu0 0.0
    %3800 = vmatmul.mubr.f32.gmra.mrb[0].mxu0 %v3639
    %v3801 = vpop.f32.mrb[0].mxu0
    %v3802 = vadd.f32 %v489, %v3801
    %v3803 = vpop.f32.mrb[0].mxu0
    %3804 = vmatprep.mubr.f32.mxu0 0.0
    %3805 = vmatmul.mubr.f32.gmra.mrb[0].mxu0 %v3640
    %v3806 = vpop.f32.mrb[0].mxu0
    %v3807 = vadd.f32 %v489, %v3806
    %v3808 = vpop.f32.mrb[0].mxu0
    %3809 = vmatprep.mubr.f32.mxu0 0.0
    %3810 = vmatmul.mubr.f32.gmra.mrb[0].mxu0 %v3641
    %v3811 = vpop.f32.mrb[0].mxu0
    %v3812 = vadd.f32 %v489, %v3811
    %v3813 = vpop.f32.mrb[0].mxu0
    %3814 = vmatprep.mubr.f32.mxu0 0.0
    %3815 = vmatmul.mubr.f32.gmra.mrb[0].mxu0 %v3642
    %v3816 = vpop.f32.mrb[0].mxu0
    %v3817 = vadd.f32 %v489, %v3816
    %v3818 = vpop.f32.mrb[0].mxu0
    %3819 = vmatprep.mubr.f32.mxu0 0.0
    %3820 = vmatmul.mubr.f32.gmra.mrb[0].mxu0 %v3643
    %v3821 = vpop.f32.mrb[0].mxu0
    %v3822 = vadd.f32 %v489, %v3821
    %v3823 = vpop.f32.mrb[0].mxu0
    %3824 = vmatprep.mubr.f32.mxu0 0.0
    %3825 = vmatmul.mubr.f32.gmra.mrb[0].mxu0 %v3644
    %v3826 = vpop.f32.mrb[0].mxu0
    %v3827 = vadd.f32 %v489, %v3826
    %v3828 = vpop.f32.mrb[0].mxu0
    %3829 = vmatprep.mubr.f32.mxu0 0.0
    %3830 = vmatmul.mubr.f32.gmra.mrb[0].mxu0 %v3645
    %v3831 = vpop.f32.mrb[0].mxu0
    %v3832 = vadd.f32 %v489, %v3831
    %v3833 = vpop.f32.mrb[0].mxu0
    %3834 = vmatprep.mubr.f32.mxu0 0.0
    %3835 = vmatmul.mubr.f32.gmra.mrb[0].mxu0 %v3646
    %v3836 = vpop.f32.mrb[0].mxu0
    %v3837 = vadd.f32 %v489, %v3836
    %v3838 = vpop.f32.mrb[0].mxu0
    %3839 = vmatprep.mubr.f32.mxu0 0.0
    %3840 = vmatmul.mubr.f32.gmra.mrb[0].mxu0 %v3647
    %v3841 = vpop.f32.mrb[0].mxu0
    %v3842 = vadd.f32 %v489, %v3841
    %v3843 = vpop.f32.mrb[0].mxu0
    %3844 = vmatprep.mubr.f32.mxu0 0.0
    %3845 = vmatmul.mubr.f32.gmra.mrb[0].mxu0 %v3648
    %v3846 = vpop.f32.mrb[0].mxu0
    %v3847 = vadd.f32 %v489, %v3846
    %v3848 = vpop.f32.mrb[0].mxu0
    %3849 = vmatprep.mubr.f32.mxu0 0.0
    %3850 = vmatmul.mubr.f32.gmra.mrb[0].mxu0 %v3649
    %v3851 = vpop.f32.mrb[0].mxu0
    %v3852 = vadd.f32 %v489, %v3851
    %v3853 = vpop.f32.mrb[0].mxu0
    %3854 = vmatprep.mubr.f32.mxu0 0.0
    %3855 = vmatmul.mubr.f32.gmra.mrb[0].mxu0 %v3650
    %v3856 = vpop.f32.mrb[0].mxu0
    %v3857 = vadd.f32 %v489, %v3856
    %v3858 = vpop.f32.mrb[0].mxu0
    %3859 = vmatprep.mubr.f32.mxu0 0.0
    %3860 = vmatmul.mubr.f32.gmra.mrb[0].mxu0 %v3651
    %v3861 = vpop.f32.mrb[0].mxu0
    %v3862 = vadd.f32 %v489, %v3861
    %v3863 = vpop.f32.mrb[0].mxu0
    %3864 = vmatprep.mubr.f32.mxu0 0.0
    %3865 = vmatmul.mubr.f32.gmra.mrb[0].mxu0 %v3652
    %v3866 = vpop.f32.mrb[0].mxu0
    %v3867 = vadd.f32 %v489, %v3866
    %v3868 = vpop.f32.mrb[0].mxu0
    %3869 = vmatprep.mubr.f32.mxu0 0.0
    %3870 = vmatmul.mubr.f32.gmra.mrb[0].mxu0 %v3653
    %v3871 = vpop.f32.mrb[0].mxu0
    %v3872 = vadd.f32 %v489, %v3871
    %v3873 = vpop.f32.mrb[0].mxu0
    %3874 = vmatprep.mubr.f32.mxu0 0.0
    %3875 = vmatmul.mubr.f32.gmra.mrb[0].mxu0 %v3654
    %v3876 = vpop.f32.mrb[0].mxu0
    %v3877 = vadd.f32 %v489, %v3876
    %v3878 = vpop.f32.mrb[0].mxu0
    %3879 = vdwg.mxu0
    %3880 = vmatprep.subr.mxu0 0.0
    %3881 = vmatpush1.msra.mxu0 %v287
    %3882 = vmatprep.subr.mxu0 0.0
    %3883 = vmatpush1.msra.mxu0 %v288
    %3884 = vmatprep.subr.mxu0 0.0
    %3885 = vmatpush1.msra.mxu0 %v289
    %3886 = vmatprep.subr.mxu0 0.0
    %3887 = vmatpush1.msra.mxu0 %v290
    %3888 = vmatprep.subr.mxu0 0.0
    %3889 = vmatpush1.msra.mxu0 %v291
    %3890 = vmatprep.subr.mxu0 0.0
    %3891 = vmatpush1.msra.mxu0 %v292
    %3892 = vmatprep.subr.mxu0 0.0
    %3893 = vmatpush1.msra.mxu0 %v293
    %3894 = vmatprep.subr.mxu0 0.0
    %3895 = vmatpush1.msra.mxu0 %v294
    %3896 = vmatprep.subr.mxu0 0.0
    %3897 = vmatpush1.msra.mxu0 %v295
    %3898 = vmatprep.subr.mxu0 0.0
    %3899 = vmatpush1.msra.mxu0 %v296
    %3900 = vmatprep.subr.mxu0 0.0
    %3901 = vmatpush1.msra.mxu0 %v297
    %3902 = vmatprep.subr.mxu0 0.0
    %3903 = vmatpush1.msra.mxu0 %v298
    %3904 = vmatprep.subr.mxu0 0.0
    %3905 = vmatpush1.msra.mxu0 %v299
    %3906 = vmatprep.subr.mxu0 0.0
    %3907 = vmatpush1.msra.mxu0 %v300
    %3908 = vmatprep.subr.mxu0 0.0
    %3909 = vmatpush1.msra.mxu0 %v301
    %3910 = vmatprep.subr.mxu0 0.0
    %3911 = vmatpush1.msra.mxu0 %v302
    %3912 = vmatprep.subr.mxu0 0.0
    %3913 = vmatpush1.msra.mxu0 0.0
    %3914 = vmatprep.subr.mxu0 0.0
    %3915 = vmatpush1.msra.mxu0 0.0
    %3916 = vmatprep.subr.mxu0 0.0
    %3917 = vmatpush1.msra.mxu0 0.0
    %3918 = vmatprep.subr.mxu0 0.0
    %3919 = vmatpush1.msra.mxu0 0.0
    %3920 = vmatprep.subr.mxu0 0.0
    %3921 = vmatpush1.msra.mxu0 0.0
    %3922 = vmatprep.subr.mxu0 0.0
    %3923 = vmatpush1.msra.mxu0 0.0
    %3924 = vmatprep.subr.mxu0 0.0
    %3925 = vmatpush1.msra.mxu0 0.0
    %3926 = vmatprep.subr.mxu0 0.0
    %3927 = vmatpush1.msra.mxu0 0.0
    %3928 = vmatprep.subr.mxu0 0.0
    %3929 = vmatpush1.msra.mxu0 0.0
    %3930 = vmatprep.subr.mxu0 0.0
    %3931 = vmatpush1.msra.mxu0 0.0
    %3932 = vmatprep.subr.mxu0 0.0
    %3933 = vmatpush1.msra.mxu0 0.0
    %3934 = vmatprep.subr.mxu0 0.0
    %3935 = vmatpush1.msra.mxu0 0.0
    %3936 = vmatprep.subr.mxu0 0.0
    %3937 = vmatpush1.msra.mxu0 0.0
    %3938 = vmatprep.subr.mxu0 0.0
    %3939 = vmatpush1.msra.mxu0 0.0
    %3940 = vmatprep.subr.mxu0 0.0
    %3941 = vmatpush1.msra.mxu0 0.0
    %3942 = vmatprep.subr.mxu0 0.0
    %3943 = vmatpush1.msra.mxu0 0.0
    %3944 = vmatprep.mubr.f32.mxu0 0.0
    %3945 = vmatmul.mubr.f32.gmra.mrb[0].mxu0 %v3623
    %v3946 = vpop.f32.mrb[0].mxu0
    %v3947 = vadd.f32 %v720, %v3946
    %v3948 = vpop.f32.mrb[0].mxu0
    %3949 = vmatprep.mubr.f32.mxu0 0.0
    %3950 = vmatmul.mubr.f32.gmra.mrb[0].mxu0 %v3624
    %v3951 = vpop.f32.mrb[0].mxu0
    %v3952 = vadd.f32 %v720, %v3951
    %v3953 = vpop.f32.mrb[0].mxu0
    %3954 = vmatprep.mubr.f32.mxu0 0.0
    %3955 = vmatmul.mubr.f32.gmra.mrb[0].mxu0 %v3625
    %v3956 = vpop.f32.mrb[0].mxu0
    %v3957 = vadd.f32 %v720, %v3956
    %v3958 = vpop.f32.mrb[0].mxu0
    %3959 = vmatprep.mubr.f32.mxu0 0.0
    %3960 = vmatmul.mubr.f32.gmra.mrb[0].mxu0 %v3626
    %v3961 = vpop.f32.mrb[0].mxu0
    %v3962 = vadd.f32 %v720, %v3961
    %v3963 = vpop.f32.mrb[0].mxu0
    %3964 = vmatprep.mubr.f32.mxu0 0.0
    %3965 = vmatmul.mubr.f32.gmra.mrb[0].mxu0 %v3627
    %v3966 = vpop.f32.mrb[0].mxu0
    %v3967 = vadd.f32 %v720, %v3966
    %v3968 = vpop.f32.mrb[0].mxu0
    %3969 = vmatprep.mubr.f32.mxu0 0.0
    %3970 = vmatmul.mubr.f32.gmra.mrb[0].mxu0 %v3628
    %v3971 = vpop.f32.mrb[0].mxu0
    %v3972 = vadd.f32 %v720, %v3971
    %v3973 = vpop.f32.mrb[0].mxu0
    %3974 = vmatprep.mubr.f32.mxu0 0.0
    %3975 = vmatmul.mubr.f32.gmra.mrb[0].mxu0 %v3629
    %v3976 = vpop.f32.mrb[0].mxu0
    %v3977 = vadd.f32 %v720, %v3976
    %v3978 = vpop.f32.mrb[0].mxu0
    %3979 = vmatprep.mubr.f32.mxu0 0.0
    %3980 = vmatmul.mubr.f32.gmra.mrb[0].mxu0 %v3630
    %v3981 = vpop.f32.mrb[0].mxu0
    %v3982 = vadd.f32 %v720, %v3981
    %v3983 = vpop.f32.mrb[0].mxu0
    %3984 = vmatprep.mubr.f32.mxu0 0.0
    %3985 = vmatmul.mubr.f32.gmra.mrb[0].mxu0 %v3631
    %v3986 = vpop.f32.mrb[0].mxu0
    %v3987 = vadd.f32 %v720, %v3986
    %v3988 = vpop.f32.mrb[0].mxu0
    %3989 = vmatprep.mubr.f32.mxu0 0.0
    %3990 = vmatmul.mubr.f32.gmra.mrb[0].mxu0 %v3632
    %v3991 = vpop.f32.mrb[0].mxu0
    %v3992 = vadd.f32 %v720, %v3991
    %v3993 = vpop.f32.mrb[0].mxu0
    %3994 = vmatprep.mubr.f32.mxu0 0.0
    %3995 = vmatmul.mubr.f32.gmra.mrb[0].mxu0 %v3633
    %v3996 = vpop.f32.mrb[0].mxu0
    %v3997 = vadd.f32 %v720, %v3996
    %v3998 = vpop.f32.mrb[0].mxu0
    %3999 = vmatprep.mubr.f32.mxu0 0.0
    %4000 = vmatmul.mubr.f32.gmra.mrb[0].mxu0 %v3634
    %v4001 = vpop.f32.mrb[0].mxu0
    %v4002 = vadd.f32 %v720, %v4001
    %v4003 = vpop.f32.mrb[0].mxu0
    %4004 = vmatprep.mubr.f32.mxu0 0.0
    %4005 = vmatmul.mubr.f32.gmra.mrb[0].mxu0 %v3635
    %v4006 = vpop.f32.mrb[0].mxu0
    %v4007 = vadd.f32 %v720, %v4006
    %v4008 = vpop.f32.mrb[0].mxu0
    %4009 = vmatprep.mubr.f32.mxu0 0.0
    %4010 = vmatmul.mubr.f32.gmra.mrb[0].mxu0 %v3636
    %v4011 = vpop.f32.mrb[0].mxu0
    %v4012 = vadd.f32 %v720, %v4011
    %v4013 = vpop.f32.mrb[0].mxu0
    %4014 = vmatprep.mubr.f32.mxu0 0.0
    %4015 = vmatmul.mubr.f32.gmra.mrb[0].mxu0 %v3637
    %v4016 = vpop.f32.mrb[0].mxu0
    %v4017 = vadd.f32 %v720, %v4016
    %v4018 = vpop.f32.mrb[0].mxu0
    %4019 = vmatprep.mubr.f32.mxu0 0.0
    %4020 = vmatmul.mubr.f32.gmra.mrb[0].mxu0 %v3638
    %v4021 = vpop.f32.mrb[0].mxu0
    %v4022 = vadd.f32 %v720, %v4021
    %v4023 = vpop.f32.mrb[0].mxu0
    %4024 = vmatprep.mubr.f32.mxu0 0.0
    %4025 = vmatmul.mubr.f32.gmra.mrb[0].mxu0 %v3639
    %v4026 = vpop.f32.mrb[0].mxu0
    %v4027 = vadd.f32 %v720, %v4026
    %v4028 = vpop.f32.mrb[0].mxu0
    %4029 = vmatprep.mubr.f32.mxu0 0.0
    %4030 = vmatmul.mubr.f32.gmra.mrb[0].mxu0 %v3640
    %v4031 = vpop.f32.mrb[0].mxu0
    %v4032 = vadd.f32 %v720, %v4031
    %v4033 = vpop.f32.mrb[0].mxu0
    %4034 = vmatprep.mubr.f32.mxu0 0.0
    %4035 = vmatmul.mubr.f32.gmra.mrb[0].mxu0 %v3641
    %v4036 = vpop.f32.mrb[0].mxu0
    %v4037 = vadd.f32 %v720, %v4036
    %v4038 = vpop.f32.mrb[0].mxu0
    %4039 = vmatprep.mubr.f32.mxu0 0.0
    %4040 = vmatmul.mubr.f32.gmra.mrb[0].mxu0 %v3642
    %v4041 = vpop.f32.mrb[0].mxu0
    %v4042 = vadd.f32 %v720, %v4041
    %v4043 = vpop.f32.mrb[0].mxu0
    %4044 = vmatprep.mubr.f32.mxu0 0.0
    %4045 = vmatmul.mubr.f32.gmra.mrb[0].mxu0 %v3643
    %v4046 = vpop.f32.mrb[0].mxu0
    %v4047 = vadd.f32 %v720, %v4046
    %v4048 = vpop.f32.mrb[0].mxu0
    %4049 = vmatprep.mubr.f32.mxu0 0.0
    %4050 = vmatmul.mubr.f32.gmra.mrb[0].mxu0 %v3644
    %v4051 = vpop.f32.mrb[0].mxu0
    %v4052 = vadd.f32 %v720, %v4051
    %v4053 = vpop.f32.mrb[0].mxu0
    %4054 = vmatprep.mubr.f32.mxu0 0.0
    %4055 = vmatmul.mubr.f32.gmra.mrb[0].mxu0 %v3645
    %v4056 = vpop.f32.mrb[0].mxu0
    %v4057 = vadd.f32 %v720, %v4056
    %v4058 = vpop.f32.mrb[0].mxu0
    %4059 = vmatprep.mubr.f32.mxu0 0.0
    %4060 = vmatmul.mubr.f32.gmra.mrb[0].mxu0 %v3646
    %v4061 = vpop.f32.mrb[0].mxu0
    %v4062 = vadd.f32 %v720, %v4061
    %v4063 = vpop.f32.mrb[0].mxu0
    %4064 = vmatprep.mubr.f32.mxu0 0.0
    %4065 = vmatmul.mubr.f32.gmra.mrb[0].mxu0 %v3647
    %v4066 = vpop.f32.mrb[0].mxu0
    %v4067 = vadd.f32 %v720, %v4066
    %v4068 = vpop.f32.mrb[0].mxu0
    %4069 = vmatprep.mubr.f32.mxu0 0.0
    %4070 = vmatmul.mubr.f32.gmra.mrb[0].mxu0 %v3648
    %v4071 = vpop.f32.mrb[0].mxu0
    %v4072 = vadd.f32 %v720, %v4071
    %v4073 = vpop.f32.mrb[0].mxu0
    %4074 = vmatprep.mubr.f32.mxu0 0.0
    %4075 = vmatmul.mubr.f32.gmra.mrb[0].mxu0 %v3649
    %v4076 = vpop.f32.mrb[0].mxu0
    %v4077 = vadd.f32 %v720, %v4076
    %v4078 = vpop.f32.mrb[0].mxu0
    %4079 = vmatprep.mubr.f32.mxu0 0.0
    %4080 = vmatmul.mubr.f32.gmra.mrb[0].mxu0 %v3650
    %v4081 = vpop.f32.mrb[0].mxu0
    %v4082 = vadd.f32 %v720, %v4081
    %v4083 = vpop.f32.mrb[0].mxu0
    %4084 = vmatprep.mubr.f32.mxu0 0.0
    %4085 = vmatmul.mubr.f32.gmra.mrb[0].mxu0 %v3651
    %v4086 = vpop.f32.mrb[0].mxu0
    %v4087 = vadd.f32 %v720, %v4086
    %v4088 = vpop.f32.mrb[0].mxu0
    %4089 = vmatprep.mubr.f32.mxu0 0.0
    %4090 = vmatmul.mubr.f32.gmra.mrb[0].mxu0 %v3652
    %v4091 = vpop.f32.mrb[0].mxu0
    %v4092 = vadd.f32 %v720, %v4091
    %v4093 = vpop.f32.mrb[0].mxu0
    %4094 = vmatprep.mubr.f32.mxu0 0.0
    %4095 = vmatmul.mubr.f32.gmra.mrb[0].mxu0 %v3653
    %v4096 = vpop.f32.mrb[0].mxu0
    %v4097 = vadd.f32 %v720, %v4096
    %v4098 = vpop.f32.mrb[0].mxu0
    %4099 = vmatprep.mubr.f32.mxu0 0.0
    %4100 = vmatmul.mubr.f32.gmra.mrb[0].mxu0 %v3654
    %v4101 = vpop.f32.mrb[0].mxu0
    %v4102 = vadd.f32 %v720, %v4101
    %v4103 = vpop.f32.mrb[0].mxu0
    %4104 = vdwg.mxu0
    %4105 = vmatprep.subr.mxu0 0.0
    %4106 = vmatpush1.msra.mxu0 %v3722
    %4107 = vmatprep.subr.mxu0 0.0
    %4108 = vmatpush1.msra.mxu0 %v3727
    %4109 = vmatprep.subr.mxu0 0.0
    %4110 = vmatpush1.msra.mxu0 %v3732
    %4111 = vmatprep.subr.mxu0 0.0
    %4112 = vmatpush1.msra.mxu0 %v3737
    %4113 = vmatprep.subr.mxu0 0.0
    %4114 = vmatpush1.msra.mxu0 %v3742
    %4115 = vmatprep.subr.mxu0 0.0
    %4116 = vmatpush1.msra.mxu0 %v3747
    %4117 = vmatprep.subr.mxu0 0.0
    %4118 = vmatpush1.msra.mxu0 %v3752
    %4119 = vmatprep.subr.mxu0 0.0
    %4120 = vmatpush1.msra.mxu0 %v3757
    %4121 = vmatprep.subr.mxu0 0.0
    %4122 = vmatpush1.msra.mxu0 %v3762
    %4123 = vmatprep.subr.mxu0 0.0
    %4124 = vmatpush1.msra.mxu0 %v3767
    %4125 = vmatprep.subr.mxu0 0.0
    %4126 = vmatpush1.msra.mxu0 %v3772
    %4127 = vmatprep.subr.mxu0 0.0
    %4128 = vmatpush1.msra.mxu0 %v3777
    %4129 = vmatprep.subr.mxu0 0.0
    %4130 = vmatpush1.msra.mxu0 %v3782
    %4131 = vmatprep.subr.mxu0 0.0
    %4132 = vmatpush1.msra.mxu0 %v3787
    %4133 = vmatprep.subr.mxu0 0.0
    %4134 = vmatpush1.msra.mxu0 %v3792
    %4135 = vmatprep.subr.mxu0 0.0
    %4136 = vmatpush1.msra.mxu0 %v3797
    %4137 = vmatprep.subr.mxu0 0.0
    %4138 = vmatpush1.msra.mxu0 %v3802
    %4139 = vmatprep.subr.mxu0 0.0
    %4140 = vmatpush1.msra.mxu0 %v3807
    %4141 = vmatprep.subr.mxu0 0.0
    %4142 = vmatpush1.msra.mxu0 %v3812
    %4143 = vmatprep.subr.mxu0 0.0
    %4144 = vmatpush1.msra.mxu0 %v3817
    %4145 = vmatprep.subr.mxu0 0.0
    %4146 = vmatpush1.msra.mxu0 %v3822
    %4147 = vmatprep.subr.mxu0 0.0
    %4148 = vmatpush1.msra.mxu0 %v3827
    %4149 = vmatprep.subr.mxu0 0.0
    %4150 = vmatpush1.msra.mxu0 %v3832
    %4151 = vmatprep.subr.mxu0 0.0
    %4152 = vmatpush1.msra.mxu0 %v3837
    %4153 = vmatprep.subr.mxu0 0.0
    %4154 = vmatpush1.msra.mxu0 %v3842
    %4155 = vmatprep.subr.mxu0 0.0
    %4156 = vmatpush1.msra.mxu0 %v3847
    %4157 = vmatprep.subr.mxu0 0.0
    %4158 = vmatpush1.msra.mxu0 %v3852
    %4159 = vmatprep.subr.mxu0 0.0
    %4160 = vmatpush1.msra.mxu0 %v3857
    %4161 = vmatprep.subr.mxu0 0.0
    %4162 = vmatpush1.msra.mxu0 %v3862
    %4163 = vmatprep.subr.mxu0 0.0
    %4164 = vmatpush1.msra.mxu0 %v3867
    %4165 = vmatprep.subr.mxu0 0.0
    %4166 = vmatpush1.msra.mxu0 %v3872
    %4167 = vmatprep.subr.mxu0 0.0
    %4168 = vmatpush1.msra.mxu0 %v3877
    %4169 = vmatprep.mubr.f32.mxu0 %v144
    %4170 = vmatmul.mubr.f32.gmra.mrb[0].mxu0 %v143
    %v4171 = vpop.f32.mrb[0].mxu0
    %v4172 = vadd.f32 %v951, %v4171
    %v4173 = vpop.f32.mrb[0].mxu0
    %4174 = vmatprep.mubr.f32.mxu0 %v146
    %4175 = vmatmul.mubr.f32.gmra.mrb[0].mxu0 %v145
    %v4176 = vpop.f32.mrb[0].mxu0
    %v4177 = vadd.f32 %v951, %v4176
    %v4178 = vpop.f32.mrb[0].mxu0
    %4179 = vmatprep.mubr.f32.mxu0 %v148
    %4180 = vmatmul.mubr.f32.gmra.mrb[0].mxu0 %v147
    %v4181 = vpop.f32.mrb[0].mxu0
    %v4182 = vadd.f32 %v951, %v4181
    %v4183 = vpop.f32.mrb[0].mxu0
    %4184 = vmatprep.mubr.f32.mxu0 %v150
    %4185 = vmatmul.mubr.f32.gmra.mrb[0].mxu0 %v149
    %v4186 = vpop.f32.mrb[0].mxu0
    %v4187 = vadd.f32 %v951, %v4186
    %v4188 = vpop.f32.mrb[0].mxu0
    %4189 = vmatprep.mubr.f32.mxu0 %v152
    %4190 = vmatmul.mubr.f32.gmra.mrb[0].mxu0 %v151
    %v4191 = vpop.f32.mrb[0].mxu0
    %v4192 = vadd.f32 %v951, %v4191
    %v4193 = vpop.f32.mrb[0].mxu0
    %4194 = vmatprep.mubr.f32.mxu0 %v154
    %4195 = vmatmul.mubr.f32.gmra.mrb[0].mxu0 %v153
    %v4196 = vpop.f32.mrb[0].mxu0
    %v4197 = vadd.f32 %v951, %v4196
    %v4198 = vpop.f32.mrb[0].mxu0
    %4199 = vmatprep.mubr.f32.mxu0 %v156
    %4200 = vmatmul.mubr.f32.gmra.mrb[0].mxu0 %v155
    %v4201 = vpop.f32.mrb[0].mxu0
    %v4202 = vadd.f32 %v951, %v4201
    %v4203 = vpop.f32.mrb[0].mxu0
    %4204 = vmatprep.mubr.f32.mxu0 %v158
    %4205 = vmatmul.mubr.f32.gmra.mrb[0].mxu0 %v157
    %v4206 = vpop.f32.mrb[0].mxu0
    %v4207 = vadd.f32 %v951, %v4206
    %v4208 = vpop.f32.mrb[0].mxu0
    %4209 = vmatprep.mubr.f32.mxu0 %v160
    %4210 = vmatmul.mubr.f32.gmra.mrb[0].mxu0 %v159
    %v4211 = vpop.f32.mrb[0].mxu0
    %v4212 = vadd.f32 %v951, %v4211
    %v4213 = vpop.f32.mrb[0].mxu0
    %4214 = vmatprep.mubr.f32.mxu0 %v162
    %4215 = vmatmul.mubr.f32.gmra.mrb[0].mxu0 %v161
    %v4216 = vpop.f32.mrb[0].mxu0
    %v4217 = vadd.f32 %v951, %v4216
    %v4218 = vpop.f32.mrb[0].mxu0
    %4219 = vmatprep.mubr.f32.mxu0 %v164
    %4220 = vmatmul.mubr.f32.gmra.mrb[0].mxu0 %v163
    %v4221 = vpop.f32.mrb[0].mxu0
    %v4222 = vadd.f32 %v951, %v4221
    %v4223 = vpop.f32.mrb[0].mxu0
    %4224 = vmatprep.mubr.f32.mxu0 %v166
    %4225 = vmatmul.mubr.f32.gmra.mrb[0].mxu0 %v165
    %v4226 = vpop.f32.mrb[0].mxu0
    %v4227 = vadd.f32 %v951, %v4226
    %v4228 = vpop.f32.mrb[0].mxu0
    %4229 = vmatprep.mubr.f32.mxu0 %v168
    %4230 = vmatmul.mubr.f32.gmra.mrb[0].mxu0 %v167
    %v4231 = vpop.f32.mrb[0].mxu0
    %v4232 = vadd.f32 %v951, %v4231
    %v4233 = vpop.f32.mrb[0].mxu0
    %4234 = vmatprep.mubr.f32.mxu0 %v170
    %4235 = vmatmul.mubr.f32.gmra.mrb[0].mxu0 %v169
    %v4236 = vpop.f32.mrb[0].mxu0
    %v4237 = vadd.f32 %v951, %v4236
    %v4238 = vpop.f32.mrb[0].mxu0
    %4239 = vmatprep.mubr.f32.mxu0 %v172
    %4240 = vmatmul.mubr.f32.gmra.mrb[0].mxu0 %v171
    %v4241 = vpop.f32.mrb[0].mxu0
    %v4242 = vadd.f32 %v951, %v4241
    %v4243 = vpop.f32.mrb[0].mxu0
    %4244 = vmatprep.mubr.f32.mxu0 %v174
    %4245 = vmatmul.mubr.f32.gmra.mrb[0].mxu0 %v173
    %v4246 = vpop.f32.mrb[0].mxu0
    %v4247 = vadd.f32 %v951, %v4246
    %v4248 = vpop.f32.mrb[0].mxu0
    %4249 = vmatprep.mubr.f32.mxu0 %v176
    %4250 = vmatmul.mubr.f32.gmra.mrb[0].mxu0 %v175
    %v4251 = vpop.f32.mrb[0].mxu0
    %v4252 = vadd.f32 %v951, %v4251
    %v4253 = vpop.f32.mrb[0].mxu0
    %4254 = vmatprep.mubr.f32.mxu0 %v178
    %4255 = vmatmul.mubr.f32.gmra.mrb[0].mxu0 %v177
    %v4256 = vpop.f32.mrb[0].mxu0
    %v4257 = vadd.f32 %v951, %v4256
    %v4258 = vpop.f32.mrb[0].mxu0
    %4259 = vmatprep.mubr.f32.mxu0 %v180
    %4260 = vmatmul.mubr.f32.gmra.mrb[0].mxu0 %v179
    %v4261 = vpop.f32.mrb[0].mxu0
    %v4262 = vadd.f32 %v951, %v4261
    %v4263 = vpop.f32.mrb[0].mxu0
    %4264 = vmatprep.mubr.f32.mxu0 %v182
    %4265 = vmatmul.mubr.f32.gmra.mrb[0].mxu0 %v181
    %v4266 = vpop.f32.mrb[0].mxu0
    %v4267 = vadd.f32 %v951, %v4266
    %v4268 = vpop.f32.mrb[0].mxu0
    %4269 = vmatprep.mubr.f32.mxu0 %v184
    %4270 = vmatmul.mubr.f32.gmra.mrb[0].mxu0 %v183
    %v4271 = vpop.f32.mrb[0].mxu0
    %v4272 = vadd.f32 %v951, %v4271
    %v4273 = vpop.f32.mrb[0].mxu0
    %4274 = vmatprep.mubr.f32.mxu0 %v186
    %4275 = vmatmul.mubr.f32.gmra.mrb[0].mxu0 %v185
    %v4276 = vpop.f32.mrb[0].mxu0
    %v4277 = vadd.f32 %v951, %v4276
    %v4278 = vpop.f32.mrb[0].mxu0
    %4279 = vmatprep.mubr.f32.mxu0 %v188
    %4280 = vmatmul.mubr.f32.gmra.mrb[0].mxu0 %v187
    %v4281 = vpop.f32.mrb[0].mxu0
    %v4282 = vadd.f32 %v951, %v4281
    %v4283 = vpop.f32.mrb[0].mxu0
    %4284 = vmatprep.mubr.f32.mxu0 %v190
    %4285 = vmatmul.mubr.f32.gmra.mrb[0].mxu0 %v189
    %v4286 = vpop.f32.mrb[0].mxu0
    %v4287 = vadd.f32 %v951, %v4286
    %v4288 = vpop.f32.mrb[0].mxu0
    %4289 = vmatprep.mubr.f32.mxu0 %v192
    %4290 = vmatmul.mubr.f32.gmra.mrb[0].mxu0 %v191
    %v4291 = vpop.f32.mrb[0].mxu0
    %v4292 = vadd.f32 %v951, %v4291
    %v4293 = vpop.f32.mrb[0].mxu0
    %4294 = vmatprep.mubr.f32.mxu0 %v194
    %4295 = vmatmul.mubr.f32.gmra.mrb[0].mxu0 %v193
    %v4296 = vpop.f32.mrb[0].mxu0
    %v4297 = vadd.f32 %v951, %v4296
    %v4298 = vpop.f32.mrb[0].mxu0
    %4299 = vmatprep.mubr.f32.mxu0 %v196
    %4300 = vmatmul.mubr.f32.gmra.mrb[0].mxu0 %v195
    %v4301 = vpop.f32.mrb[0].mxu0
    %v4302 = vadd.f32 %v951, %v4301
    %v4303 = vpop.f32.mrb[0].mxu0
    %4304 = vmatprep.mubr.f32.mxu0 %v198
    %4305 = vmatmul.mubr.f32.gmra.mrb[0].mxu0 %v197
    %v4306 = vpop.f32.mrb[0].mxu0
    %v4307 = vadd.f32 %v951, %v4306
    %v4308 = vpop.f32.mrb[0].mxu0
    %4309 = vmatprep.mubr.f32.mxu0 %v200
    %4310 = vmatmul.mubr.f32.gmra.mrb[0].mxu0 %v199
    %v4311 = vpop.f32.mrb[0].mxu0
    %v4312 = vadd.f32 %v951, %v4311
    %v4313 = vpop.f32.mrb[0].mxu0
    %4314 = vmatprep.mubr.f32.mxu0 %v202
    %4315 = vmatmul.mubr.f32.gmra.mrb[0].mxu0 %v201
    %v4316 = vpop.f32.mrb[0].mxu0
    %v4317 = vadd.f32 %v951, %v4316
    %v4318 = vpop.f32.mrb[0].mxu0
    %4319 = vmatprep.mubr.f32.mxu0 %v204
    %4320 = vmatmul.mubr.f32.gmra.mrb[0].mxu0 %v203
    %v4321 = vpop.f32.mrb[0].mxu0
    %v4322 = vadd.f32 %v951, %v4321
    %v4323 = vpop.f32.mrb[0].mxu0
    %4324 = vmatprep.mubr.f32.mxu0 %v206
    %4325 = vmatmul.mubr.f32.gmra.mrb[0].mxu0 %v205
    %v4326 = vpop.f32.mrb[0].mxu0
    %v4327 = vadd.f32 %v951, %v4326
    %v4328 = vpop.f32.mrb[0].mxu0
    %4329 = vdwg.mxu0
    %4330 = vmatprep.subr.mxu0 0.0
    %4331 = vmatpush1.msra.mxu0 %v3947
    %4332 = vmatprep.subr.mxu0 0.0
    %4333 = vmatpush1.msra.mxu0 %v3952
    %4334 = vmatprep.subr.mxu0 0.0
    %4335 = vmatpush1.msra.mxu0 %v3957
    %4336 = vmatprep.subr.mxu0 0.0
    %4337 = vmatpush1.msra.mxu0 %v3962
    %4338 = vmatprep.subr.mxu0 0.0
    %4339 = vmatpush1.msra.mxu0 %v3967
    %4340 = vmatprep.subr.mxu0 0.0
    %4341 = vmatpush1.msra.mxu0 %v3972
    %4342 = vmatprep.subr.mxu0 0.0
    %4343 = vmatpush1.msra.mxu0 %v3977
    %4344 = vmatprep.subr.mxu0 0.0
    %4345 = vmatpush1.msra.mxu0 %v3982
    %4346 = vmatprep.subr.mxu0 0.0
    %4347 = vmatpush1.msra.mxu0 %v3987
    %4348 = vmatprep.subr.mxu0 0.0
    %4349 = vmatpush1.msra.mxu0 %v3992
    %4350 = vmatprep.subr.mxu0 0.0
    %4351 = vmatpush1.msra.mxu0 %v3997
    %4352 = vmatprep.subr.mxu0 0.0
    %4353 = vmatpush1.msra.mxu0 %v4002
    %4354 = vmatprep.subr.mxu0 0.0
    %4355 = vmatpush1.msra.mxu0 %v4007
    %4356 = vmatprep.subr.mxu0 0.0
    %4357 = vmatpush1.msra.mxu0 %v4012
    %4358 = vmatprep.subr.mxu0 0.0
    %4359 = vmatpush1.msra.mxu0 %v4017
    %4360 = vmatprep.subr.mxu0 0.0
    %4361 = vmatpush1.msra.mxu0 %v4022
    %4362 = vmatprep.subr.mxu0 0.0
    %4363 = vmatpush1.msra.mxu0 %v4027
    %4364 = vmatprep.subr.mxu0 0.0
    %4365 = vmatpush1.msra.mxu0 %v4032
    %4366 = vmatprep.subr.mxu0 0.0
    %4367 = vmatpush1.msra.mxu0 %v4037
    %4368 = vmatprep.subr.mxu0 0.0
    %4369 = vmatpush1.msra.mxu0 %v4042
    %4370 = vmatprep.subr.mxu0 0.0
    %4371 = vmatpush1.msra.mxu0 %v4047
    %4372 = vmatprep.subr.mxu0 0.0
    %4373 = vmatpush1.msra.mxu0 %v4052
    %4374 = vmatprep.subr.mxu0 0.0
    %4375 = vmatpush1.msra.mxu0 %v4057
    %4376 = vmatprep.subr.mxu0 0.0
    %4377 = vmatpush1.msra.mxu0 %v4062
    %4378 = vmatprep.subr.mxu0 0.0
    %4379 = vmatpush1.msra.mxu0 %v4067
    %4380 = vmatprep.subr.mxu0 0.0
    %4381 = vmatpush1.msra.mxu0 %v4072
    %4382 = vmatprep.subr.mxu0 0.0
    %4383 = vmatpush1.msra.mxu0 %v4077
    %4384 = vmatprep.subr.mxu0 0.0
    %4385 = vmatpush1.msra.mxu0 %v4082
    %4386 = vmatprep.subr.mxu0 0.0
    %4387 = vmatpush1.msra.mxu0 %v4087
    %4388 = vmatprep.subr.mxu0 0.0
    %4389 = vmatpush1.msra.mxu0 %v4092
    %4390 = vmatprep.subr.mxu0 0.0
    %4391 = vmatpush1.msra.mxu0 %v4097
    %4392 = vmatprep.subr.mxu0 0.0
    %4393 = vmatpush1.msra.mxu0 %v4102
    %4394 = vmatprep.mubr.f32.mxu0 %v208
    %4395 = vmatmul.mubr.f32.gmra.mrb[0].mxu0 %v207
    %v4396 = vpop.f32.mrb[0].mxu0
    %v4397 = vadd.f32 %v1182, %v4396
    %v4398 = vpop.f32.mrb[0].mxu0
    %4399 = vmatprep.mubr.f32.mxu0 %v210
    %4400 = vmatmul.mubr.f32.gmra.mrb[0].mxu0 %v209
    %v4401 = vpop.f32.mrb[0].mxu0
    %v4402 = vadd.f32 %v1182, %v4401
    %v4403 = vpop.f32.mrb[0].mxu0
    %4404 = vmatprep.mubr.f32.mxu0 %v212
    %4405 = vmatmul.mubr.f32.gmra.mrb[0].mxu0 %v211
    %v4406 = vpop.f32.mrb[0].mxu0
    %v4407 = vadd.f32 %v1182, %v4406
    %v4408 = vpop.f32.mrb[0].mxu0
    %4409 = vmatprep.mubr.f32.mxu0 %v214
    %4410 = vmatmul.mubr.f32.gmra.mrb[0].mxu0 %v213
    %v4411 = vpop.f32.mrb[0].mxu0
    %v4412 = vadd.f32 %v1182, %v4411
    %v4413 = vpop.f32.mrb[0].mxu0
    %4414 = vmatprep.mubr.f32.mxu0 %v216
    %4415 = vmatmul.mubr.f32.gmra.mrb[0].mxu0 %v215
    %v4416 = vpop.f32.mrb[0].mxu0
    %v4417 = vadd.f32 %v1182, %v4416
    %v4418 = vpop.f32.mrb[0].mxu0
    %4419 = vmatprep.mubr.f32.mxu0 %v218
    %4420 = vmatmul.mubr.f32.gmra.mrb[0].mxu0 %v217
    %v4421 = vpop.f32.mrb[0].mxu0
    %v4422 = vadd.f32 %v1182, %v4421
    %v4423 = vpop.f32.mrb[0].mxu0
    %4424 = vmatprep.mubr.f32.mxu0 %v220
    %4425 = vmatmul.mubr.f32.gmra.mrb[0].mxu0 %v219
    %v4426 = vpop.f32.mrb[0].mxu0
    %v4427 = vadd.f32 %v1182, %v4426
    %v4428 = vpop.f32.mrb[0].mxu0
    %4429 = vmatprep.mubr.f32.mxu0 %v222
    %4430 = vmatmul.mubr.f32.gmra.mrb[0].mxu0 %v221
    %v4431 = vpop.f32.mrb[0].mxu0
    %v4432 = vadd.f32 %v1182, %v4431
    %v4433 = vpop.f32.mrb[0].mxu0
    %4434 = vmatprep.mubr.f32.mxu0 %v224
    %4435 = vmatmul.mubr.f32.gmra.mrb[0].mxu0 %v223
    %v4436 = vpop.f32.mrb[0].mxu0
    %v4437 = vadd.f32 %v1182, %v4436
    %v4438 = vpop.f32.mrb[0].mxu0
    %4439 = vmatprep.mubr.f32.mxu0 %v226
    %4440 = vmatmul.mubr.f32.gmra.mrb[0].mxu0 %v225
    %v4441 = vpop.f32.mrb[0].mxu0
    %v4442 = vadd.f32 %v1182, %v4441
    %v4443 = vpop.f32.mrb[0].mxu0
    %4444 = vmatprep.mubr.f32.mxu0 %v228
    %4445 = vmatmul.mubr.f32.gmra.mrb[0].mxu0 %v227
    %v4446 = vpop.f32.mrb[0].mxu0
    %v4447 = vadd.f32 %v1182, %v4446
    %v4448 = vpop.f32.mrb[0].mxu0
    %4449 = vmatprep.mubr.f32.mxu0 %v230
    %4450 = vmatmul.mubr.f32.gmra.mrb[0].mxu0 %v229
    %v4451 = vpop.f32.mrb[0].mxu0
    %v4452 = vadd.f32 %v1182, %v4451
    %v4453 = vpop.f32.mrb[0].mxu0
    %4454 = vmatprep.mubr.f32.mxu0 %v232
    %4455 = vmatmul.mubr.f32.gmra.mrb[0].mxu0 %v231
    %v4456 = vpop.f32.mrb[0].mxu0
    %v4457 = vadd.f32 %v1182, %v4456
    %v4458 = vpop.f32.mrb[0].mxu0
    %4459 = vmatprep.mubr.f32.mxu0 %v234
    %4460 = vmatmul.mubr.f32.gmra.mrb[0].mxu0 %v233
    %v4461 = vpop.f32.mrb[0].mxu0
    %v4462 = vadd.f32 %v1182, %v4461
    %v4463 = vpop.f32.mrb[0].mxu0
    %4464 = vmatprep.mubr.f32.mxu0 %v236
    %4465 = vmatmul.mubr.f32.gmra.mrb[0].mxu0 %v235
    %v4466 = vpop.f32.mrb[0].mxu0
    %v4467 = vadd.f32 %v1182, %v4466
    %v4468 = vpop.f32.mrb[0].mxu0
    %4469 = vmatprep.mubr.f32.mxu0 %v238
    %4470 = vmatmul.mubr.f32.gmra.mrb[0].mxu0 %v237
    %v4471 = vpop.f32.mrb[0].mxu0
    %v4472 = vadd.f32 %v1182, %v4471
    %v4473 = vpop.f32.mrb[0].mxu0
    %4474 = vmatprep.mubr.f32.mxu0 %v240
    %4475 = vmatmul.mubr.f32.gmra.mrb[0].mxu0 %v239
    %v4476 = vpop.f32.mrb[0].mxu0
    %v4477 = vadd.f32 %v1182, %v4476
    %v4478 = vpop.f32.mrb[0].mxu0
    %4479 = vmatprep.mubr.f32.mxu0 %v242
    %4480 = vmatmul.mubr.f32.gmra.mrb[0].mxu0 %v241
    %v4481 = vpop.f32.mrb[0].mxu0
    %v4482 = vadd.f32 %v1182, %v4481
    %v4483 = vpop.f32.mrb[0].mxu0
    %4484 = vmatprep.mubr.f32.mxu0 %v244
    %4485 = vmatmul.mubr.f32.gmra.mrb[0].mxu0 %v243
    %v4486 = vpop.f32.mrb[0].mxu0
    %v4487 = vadd.f32 %v1182, %v4486
    %v4488 = vpop.f32.mrb[0].mxu0
    %4489 = vmatprep.mubr.f32.mxu0 %v246
    %4490 = vmatmul.mubr.f32.gmra.mrb[0].mxu0 %v245
    %v4491 = vpop.f32.mrb[0].mxu0
    %v4492 = vadd.f32 %v1182, %v4491
    %v4493 = vpop.f32.mrb[0].mxu0
    %4494 = vmatprep.mubr.f32.mxu0 %v248
    %4495 = vmatmul.mubr.f32.gmra.mrb[0].mxu0 %v247
    %v4496 = vpop.f32.mrb[0].mxu0
    %v4497 = vadd.f32 %v1182, %v4496
    %v4498 = vpop.f32.mrb[0].mxu0
    %4499 = vmatprep.mubr.f32.mxu0 %v250
    %4500 = vmatmul.mubr.f32.gmra.mrb[0].mxu0 %v249
    %v4501 = vpop.f32.mrb[0].mxu0
    %v4502 = vadd.f32 %v1182, %v4501
    %v4503 = vpop.f32.mrb[0].mxu0
    %4504 = vmatprep.mubr.f32.mxu0 %v252
    %4505 = vmatmul.mubr.f32.gmra.mrb[0].mxu0 %v251
    %v4506 = vpop.f32.mrb[0].mxu0
    %v4507 = vadd.f32 %v1182, %v4506
    %v4508 = vpop.f32.mrb[0].mxu0
    %4509 = vmatprep.mubr.f32.mxu0 %v254
    %4510 = vmatmul.mubr.f32.gmra.mrb[0].mxu0 %v253
    %v4511 = vpop.f32.mrb[0].mxu0
    %v4512 = vadd.f32 %v1182, %v4511
    %v4513 = vpop.f32.mrb[0].mxu0
    %4514 = vmatprep.mubr.f32.mxu0 %v256
    %4515 = vmatmul.mubr.f32.gmra.mrb[0].mxu0 %v255
    %v4516 = vpop.f32.mrb[0].mxu0
    %v4517 = vadd.f32 %v1182, %v4516
    %v4518 = vpop.f32.mrb[0].mxu0
    %4519 = vmatprep.mubr.f32.mxu0 %v258
    %4520 = vmatmul.mubr.f32.gmra.mrb[0].mxu0 %v257
    %v4521 = vpop.f32.mrb[0].mxu0
    %v4522 = vadd.f32 %v1182, %v4521
    %v4523 = vpop.f32.mrb[0].mxu0
    %4524 = vmatprep.mubr.f32.mxu0 %v260
    %4525 = vmatmul.mubr.f32.gmra.mrb[0].mxu0 %v259
    %v4526 = vpop.f32.mrb[0].mxu0
    %v4527 = vadd.f32 %v1182, %v4526
    %v4528 = vpop.f32.mrb[0].mxu0
    %4529 = vmatprep.mubr.f32.mxu0 %v262
    %4530 = vmatmul.mubr.f32.gmra.mrb[0].mxu0 %v261
    %v4531 = vpop.f32.mrb[0].mxu0
    %v4532 = vadd.f32 %v1182, %v4531
    %v4533 = vpop.f32.mrb[0].mxu0
    %4534 = vmatprep.mubr.f32.mxu0 %v264
    %4535 = vmatmul.mubr.f32.gmra.mrb[0].mxu0 %v263
    %v4536 = vpop.f32.mrb[0].mxu0
    %v4537 = vadd.f32 %v1182, %v4536
    %v4538 = vpop.f32.mrb[0].mxu0
    %4539 = vmatprep.mubr.f32.mxu0 %v266
    %4540 = vmatmul.mubr.f32.gmra.mrb[0].mxu0 %v265
    %v4541 = vpop.f32.mrb[0].mxu0
    %v4542 = vadd.f32 %v1182, %v4541
    %v4543 = vpop.f32.mrb[0].mxu0
    %4544 = vmatprep.mubr.f32.mxu0 %v268
    %4545 = vmatmul.mubr.f32.gmra.mrb[0].mxu0 %v267
    %v4546 = vpop.f32.mrb[0].mxu0
    %v4547 = vadd.f32 %v1182, %v4546
    %v4548 = vpop.f32.mrb[0].mxu0
    %4549 = vmatprep.mubr.f32.mxu0 %v270
    %4550 = vmatmul.mubr.f32.gmra.mrb[0].mxu0 %v269
    %v4551 = vpop.f32.mrb[0].mxu0
    %v4552 = vadd.f32 %v1182, %v4551
    %v4553 = vpop.f32.mrb[0].mxu0
    %4554 = vdwg.mxu0
    %4555 = vmatprep.subr.mxu0 %v352
    %4556 = vmatpush1.msra.mxu0 %v351
    %4557 = vmatprep.subr.mxu0 %v355
    %4558 = vmatpush1.msra.mxu0 %v354
    %4559 = vmatprep.subr.mxu0 %v358
    %4560 = vmatpush1.msra.mxu0 %v357
    %4561 = vmatprep.subr.mxu0 %v361
    %4562 = vmatpush1.msra.mxu0 %v360
    %4563 = vmatprep.subr.mxu0 %v364
    %4564 = vmatpush1.msra.mxu0 %v363
    %4565 = vmatprep.subr.mxu0 %v367
    %4566 = vmatpush1.msra.mxu0 %v366
    %4567 = vmatprep.subr.mxu0 %v370
    %4568 = vmatpush1.msra.mxu0 %v369
    %4569 = vmatprep.subr.mxu0 %v373
    %4570 = vmatpush1.msra.mxu0 %v372
    %4571 = vmatprep.subr.mxu0 %v376
    %4572 = vmatpush1.msra.mxu0 %v375
    %4573 = vmatprep.subr.mxu0 %v379
    %4574 = vmatpush1.msra.mxu0 %v378
    %4575 = vmatprep.subr.mxu0 %v382
    %4576 = vmatpush1.msra.mxu0 %v381
    %4577 = vmatprep.subr.mxu0 %v385
    %4578 = vmatpush1.msra.mxu0 %v384
    %4579 = vmatprep.subr.mxu0 %v388
    %4580 = vmatpush1.msra.mxu0 %v387
    %4581 = vmatprep.subr.mxu0 %v391
    %4582 = vmatpush1.msra.mxu0 %v390
    %4583 = vmatprep.subr.mxu0 %v394
    %4584 = vmatpush1.msra.mxu0 %v393
    %4585 = vmatprep.subr.mxu0 %v397
    %4586 = vmatpush1.msra.mxu0 %v396
    %4587 = vmatprep.subr.mxu0 0.0
    %4588 = vmatpush1.msra.mxu0 0.0
    %4589 = vmatprep.subr.mxu0 0.0
    %4590 = vmatpush1.msra.mxu0 0.0
    %4591 = vmatprep.subr.mxu0 0.0
    %4592 = vmatpush1.msra.mxu0 0.0
    %4593 = vmatprep.subr.mxu0 0.0
    %4594 = vmatpush1.msra.mxu0 0.0
    %4595 = vmatprep.subr.mxu0 0.0
    %4596 = vmatpush1.msra.mxu0 0.0
    %4597 = vmatprep.subr.mxu0 0.0
    %4598 = vmatpush1.msra.mxu0 0.0
    %4599 = vmatprep.subr.mxu0 0.0
    %4600 = vmatpush1.msra.mxu0 0.0
    %4601 = vmatprep.subr.mxu0 0.0
    %4602 = vmatpush1.msra.mxu0 0.0
    %4603 = vmatprep.subr.mxu0 0.0
    %4604 = vmatpush1.msra.mxu0 0.0
    %4605 = vmatprep.subr.mxu0 0.0
    %4606 = vmatpush1.msra.mxu0 0.0
    %4607 = vmatprep.subr.mxu0 0.0
    %4608 = vmatpush1.msra.mxu0 0.0
    %4609 = vmatprep.subr.mxu0 0.0
    %4610 = vmatpush1.msra.mxu0 0.0
    %4611 = vmatprep.subr.mxu0 0.0
    %4612 = vmatpush1.msra.mxu0 0.0
    %4613 = vmatprep.subr.mxu0 0.0
    %4614 = vmatpush1.msra.mxu0 0.0
    %4615 = vmatprep.subr.mxu0 0.0
    %4616 = vmatpush1.msra.mxu0 0.0
    %4617 = vmatprep.subr.mxu0 0.0
    %4618 = vmatpush1.msra.mxu0 0.0
    %4619 = vmatprep.mubr.f32.mxu0 0.0
    %4620 = vmatmul.mubr.f32.gmra.mrb[0].mxu0 %v4397
    %v4621 = vpop.f32.mrb[0].mxu0
    %v4622 = vadd.f32 0.0, %v4621
    %v4623 = vpop.f32.mrb[0].mxu0
    %v4624 = vadd.f32 0.0, %v4623
    %4625 = vmatprep.mubr.f32.mxu0 0.0
    %4626 = vmatmul.mubr.f32.gmra.mrb[0].mxu0 %v4402
    %v4627 = vpop.f32.mrb[0].mxu0
    %v4628 = vadd.f32 0.0, %v4627
    %v4629 = vpop.f32.mrb[0].mxu0
    %v4630 = vadd.f32 0.0, %v4629
    %4631 = vmatprep.mubr.f32.mxu0 0.0
    %4632 = vmatmul.mubr.f32.gmra.mrb[0].mxu0 %v4407
    %v4633 = vpop.f32.mrb[0].mxu0
    %v4634 = vadd.f32 0.0, %v4633
    %v4635 = vpop.f32.mrb[0].mxu0
    %v4636 = vadd.f32 0.0, %v4635
    %4637 = vmatprep.mubr.f32.mxu0 0.0
    %4638 = vmatmul.mubr.f32.gmra.mrb[0].mxu0 %v4412
    %v4639 = vpop.f32.mrb[0].mxu0
    %v4640 = vadd.f32 0.0, %v4639
    %v4641 = vpop.f32.mrb[0].mxu0
    %v4642 = vadd.f32 0.0, %v4641
    %4643 = vmatprep.mubr.f32.mxu0 0.0
    %4644 = vmatmul.mubr.f32.gmra.mrb[0].mxu0 %v4417
    %v4645 = vpop.f32.mrb[0].mxu0
    %v4646 = vadd.f32 0.0, %v4645
    %v4647 = vpop.f32.mrb[0].mxu0
    %v4648 = vadd.f32 0.0, %v4647
    %4649 = vmatprep.mubr.f32.mxu0 0.0
    %4650 = vmatmul.mubr.f32.gmra.mrb[0].mxu0 %v4422
    %v4651 = vpop.f32.mrb[0].mxu0
    %v4652 = vadd.f32 0.0, %v4651
    %v4653 = vpop.f32.mrb[0].mxu0
    %v4654 = vadd.f32 0.0, %v4653
    %4655 = vmatprep.mubr.f32.mxu0 0.0
    %4656 = vmatmul.mubr.f32.gmra.mrb[0].mxu0 %v4427
    %v4657 = vpop.f32.mrb[0].mxu0
    %v4658 = vadd.f32 0.0, %v4657
    %v4659 = vpop.f32.mrb[0].mxu0
    %v4660 = vadd.f32 0.0, %v4659
    %4661 = vmatprep.mubr.f32.mxu0 0.0
    %4662 = vmatmul.mubr.f32.gmra.mrb[0].mxu0 %v4432
    %v4663 = vpop.f32.mrb[0].mxu0
    %v4664 = vadd.f32 0.0, %v4663
    %v4665 = vpop.f32.mrb[0].mxu0
    %v4666 = vadd.f32 0.0, %v4665
    %4667 = vmatprep.mubr.f32.mxu0 0.0
    %4668 = vmatmul.mubr.f32.gmra.mrb[0].mxu0 %v4437
    %v4669 = vpop.f32.mrb[0].mxu0
    %v4670 = vadd.f32 0.0, %v4669
    %v4671 = vpop.f32.mrb[0].mxu0
    %v4672 = vadd.f32 0.0, %v4671
    %4673 = vmatprep.mubr.f32.mxu0 0.0
    %4674 = vmatmul.mubr.f32.gmra.mrb[0].mxu0 %v4442
    %v4675 = vpop.f32.mrb[0].mxu0
    %v4676 = vadd.f32 0.0, %v4675
    %v4677 = vpop.f32.mrb[0].mxu0
    %v4678 = vadd.f32 0.0, %v4677
    %4679 = vmatprep.mubr.f32.mxu0 0.0
    %4680 = vmatmul.mubr.f32.gmra.mrb[0].mxu0 %v4447
    %v4681 = vpop.f32.mrb[0].mxu0
    %v4682 = vadd.f32 0.0, %v4681
    %v4683 = vpop.f32.mrb[0].mxu0
    %v4684 = vadd.f32 0.0, %v4683
    %4685 = vmatprep.mubr.f32.mxu0 0.0
    %4686 = vmatmul.mubr.f32.gmra.mrb[0].mxu0 %v4452
    %v4687 = vpop.f32.mrb[0].mxu0
    %v4688 = vadd.f32 0.0, %v4687
    %v4689 = vpop.f32.mrb[0].mxu0
    %v4690 = vadd.f32 0.0, %v4689
    %4691 = vmatprep.mubr.f32.mxu0 0.0
    %4692 = vmatmul.mubr.f32.gmra.mrb[0].mxu0 %v4457
    %v4693 = vpop.f32.mrb[0].mxu0
    %v4694 = vadd.f32 0.0, %v4693
    %v4695 = vpop.f32.mrb[0].mxu0
    %v4696 = vadd.f32 0.0, %v4695
    %4697 = vmatprep.mubr.f32.mxu0 0.0
    %4698 = vmatmul.mubr.f32.gmra.mrb[0].mxu0 %v4462
    %v4699 = vpop.f32.mrb[0].mxu0
    %v4700 = vadd.f32 0.0, %v4699
    %v4701 = vpop.f32.mrb[0].mxu0
    %v4702 = vadd.f32 0.0, %v4701
    %4703 = vmatprep.mubr.f32.mxu0 0.0
    %4704 = vmatmul.mubr.f32.gmra.mrb[0].mxu0 %v4467
    %v4705 = vpop.f32.mrb[0].mxu0
    %v4706 = vadd.f32 0.0, %v4705
    %v4707 = vpop.f32.mrb[0].mxu0
    %v4708 = vadd.f32 0.0, %v4707
    %4709 = vmatprep.mubr.f32.mxu0 0.0
    %4710 = vmatmul.mubr.f32.gmra.mrb[0].mxu0 %v4472
    %v4711 = vpop.f32.mrb[0].mxu0
    %v4712 = vadd.f32 0.0, %v4711
    %v4713 = vpop.f32.mrb[0].mxu0
    %v4714 = vadd.f32 0.0, %v4713
    %4715 = vmatprep.mubr.f32.mxu0 0.0
    %4716 = vmatmul.mubr.f32.gmra.mrb[0].mxu0 %v4477
    %v4717 = vpop.f32.mrb[0].mxu0
    %v4718 = vadd.f32 0.0, %v4717
    %v4719 = vpop.f32.mrb[0].mxu0
    %v4720 = vadd.f32 0.0, %v4719
    %4721 = vmatprep.mubr.f32.mxu0 0.0
    %4722 = vmatmul.mubr.f32.gmra.mrb[0].mxu0 %v4482
    %v4723 = vpop.f32.mrb[0].mxu0
    %v4724 = vadd.f32 0.0, %v4723
    %v4725 = vpop.f32.mrb[0].mxu0
    %v4726 = vadd.f32 0.0, %v4725
    %4727 = vmatprep.mubr.f32.mxu0 0.0
    %4728 = vmatmul.mubr.f32.gmra.mrb[0].mxu0 %v4487
    %v4729 = vpop.f32.mrb[0].mxu0
    %v4730 = vadd.f32 0.0, %v4729
    %v4731 = vpop.f32.mrb[0].mxu0
    %v4732 = vadd.f32 0.0, %v4731
    %4733 = vmatprep.mubr.f32.mxu0 0.0
    %4734 = vmatmul.mubr.f32.gmra.mrb[0].mxu0 %v4492
    %v4735 = vpop.f32.mrb[0].mxu0
    %v4736 = vadd.f32 0.0, %v4735
    %v4737 = vpop.f32.mrb[0].mxu0
    %v4738 = vadd.f32 0.0, %v4737
    %4739 = vmatprep.mubr.f32.mxu0 0.0
    %4740 = vmatmul.mubr.f32.gmra.mrb[0].mxu0 %v4497
    %v4741 = vpop.f32.mrb[0].mxu0
    %v4742 = vadd.f32 0.0, %v4741
    %v4743 = vpop.f32.mrb[0].mxu0
    %v4744 = vadd.f32 0.0, %v4743
    %4745 = vmatprep.mubr.f32.mxu0 0.0
    %4746 = vmatmul.mubr.f32.gmra.mrb[0].mxu0 %v4502
    %v4747 = vpop.f32.mrb[0].mxu0
    %v4748 = vadd.f32 0.0, %v4747
    %v4749 = vpop.f32.mrb[0].mxu0
    %v4750 = vadd.f32 0.0, %v4749
    %4751 = vmatprep.mubr.f32.mxu0 0.0
    %4752 = vmatmul.mubr.f32.gmra.mrb[0].mxu0 %v4507
    %v4753 = vpop.f32.mrb[0].mxu0
    %v4754 = vadd.f32 0.0, %v4753
    %v4755 = vpop.f32.mrb[0].mxu0
    %v4756 = vadd.f32 0.0, %v4755
    %4757 = vmatprep.mubr.f32.mxu0 0.0
    %4758 = vmatmul.mubr.f32.gmra.mrb[0].mxu0 %v4512
    %v4759 = vpop.f32.mrb[0].mxu0
    %v4760 = vadd.f32 0.0, %v4759
    %v4761 = vpop.f32.mrb[0].mxu0
    %v4762 = vadd.f32 0.0, %v4761
    %4763 = vmatprep.mubr.f32.mxu0 0.0
    %4764 = vmatmul.mubr.f32.gmra.mrb[0].mxu0 %v4517
    %v4765 = vpop.f32.mrb[0].mxu0
    %v4766 = vadd.f32 0.0, %v4765
    %v4767 = vpop.f32.mrb[0].mxu0
    %v4768 = vadd.f32 0.0, %v4767
    %4769 = vmatprep.mubr.f32.mxu0 0.0
    %4770 = vmatmul.mubr.f32.gmra.mrb[0].mxu0 %v4522
    %v4771 = vpop.f32.mrb[0].mxu0
    %v4772 = vadd.f32 0.0, %v4771
    %v4773 = vpop.f32.mrb[0].mxu0
    %v4774 = vadd.f32 0.0, %v4773
    %4775 = vmatprep.mubr.f32.mxu0 0.0
    %4776 = vmatmul.mubr.f32.gmra.mrb[0].mxu0 %v4527
    %v4777 = vpop.f32.mrb[0].mxu0
    %v4778 = vadd.f32 0.0, %v4777
    %v4779 = vpop.f32.mrb[0].mxu0
    %v4780 = vadd.f32 0.0, %v4779
    %4781 = vmatprep.mubr.f32.mxu0 0.0
    %4782 = vmatmul.mubr.f32.gmra.mrb[0].mxu0 %v4532
    %v4783 = vpop.f32.mrb[0].mxu0
    %v4784 = vadd.f32 0.0, %v4783
    %v4785 = vpop.f32.mrb[0].mxu0
    %v4786 = vadd.f32 0.0, %v4785
    %4787 = vmatprep.mubr.f32.mxu0 0.0
    %4788 = vmatmul.mubr.f32.gmra.mrb[0].mxu0 %v4537
    %v4789 = vpop.f32.mrb[0].mxu0
    %v4790 = vadd.f32 0.0, %v4789
    %v4791 = vpop.f32.mrb[0].mxu0
    %v4792 = vadd.f32 0.0, %v4791
    %4793 = vmatprep.mubr.f32.mxu0 0.0
    %4794 = vmatmul.mubr.f32.gmra.mrb[0].mxu0 %v4542
    %v4795 = vpop.f32.mrb[0].mxu0
    %v4796 = vadd.f32 0.0, %v4795
    %v4797 = vpop.f32.mrb[0].mxu0
    %v4798 = vadd.f32 0.0, %v4797
    %4799 = vmatprep.mubr.f32.mxu0 0.0
    %4800 = vmatmul.mubr.f32.gmra.mrb[0].mxu0 %v4547
    %v4801 = vpop.f32.mrb[0].mxu0
    %v4802 = vadd.f32 0.0, %v4801
    %v4803 = vpop.f32.mrb[0].mxu0
    %v4804 = vadd.f32 0.0, %v4803
    %4805 = vmatprep.mubr.f32.mxu0 0.0
    %4806 = vmatmul.mubr.f32.gmra.mrb[0].mxu0 %v4552
    %v4807 = vpop.f32.mrb[0].mxu0
    %v4808 = vadd.f32 0.0, %v4807
    %v4809 = vpop.f32.mrb[0].mxu0
    %v4810 = vadd.f32 0.0, %v4809
    %4811 = vdwg.mxu0
    %4812 = vmatprep.subr.mxu0 0.0
    %4813 = vmatpush1.msra.mxu0 %v353
    %4814 = vmatprep.subr.mxu0 0.0
    %4815 = vmatpush1.msra.mxu0 %v356
    %4816 = vmatprep.subr.mxu0 0.0
    %4817 = vmatpush1.msra.mxu0 %v359
    %4818 = vmatprep.subr.mxu0 0.0
    %4819 = vmatpush1.msra.mxu0 %v362
    %4820 = vmatprep.subr.mxu0 0.0
    %4821 = vmatpush1.msra.mxu0 %v365
    %4822 = vmatprep.subr.mxu0 0.0
    %4823 = vmatpush1.msra.mxu0 %v368
    %4824 = vmatprep.subr.mxu0 0.0
    %4825 = vmatpush1.msra.mxu0 %v371
    %4826 = vmatprep.subr.mxu0 0.0
    %4827 = vmatpush1.msra.mxu0 %v374
    %4828 = vmatprep.subr.mxu0 0.0
    %4829 = vmatpush1.msra.mxu0 %v377
    %4830 = vmatprep.subr.mxu0 0.0
    %4831 = vmatpush1.msra.mxu0 %v380
    %4832 = vmatprep.subr.mxu0 0.0
    %4833 = vmatpush1.msra.mxu0 %v383
    %4834 = vmatprep.subr.mxu0 0.0
    %4835 = vmatpush1.msra.mxu0 %v386
    %4836 = vmatprep.subr.mxu0 0.0
    %4837 = vmatpush1.msra.mxu0 %v389
    %4838 = vmatprep.subr.mxu0 0.0
    %4839 = vmatpush1.msra.mxu0 %v392
    %4840 = vmatprep.subr.mxu0 0.0
    %4841 = vmatpush1.msra.mxu0 %v395
    %4842 = vmatprep.subr.mxu0 0.0
    %4843 = vmatpush1.msra.mxu0 %v398
    %4844 = vmatprep.subr.mxu0 0.0
    %4845 = vmatpush1.msra.mxu0 0.0
    %4846 = vmatprep.subr.mxu0 0.0
    %4847 = vmatpush1.msra.mxu0 0.0
    %4848 = vmatprep.subr.mxu0 0.0
    %4849 = vmatpush1.msra.mxu0 0.0
    %4850 = vmatprep.subr.mxu0 0.0
    %4851 = vmatpush1.msra.mxu0 0.0
    %4852 = vmatprep.subr.mxu0 0.0
    %4853 = vmatpush1.msra.mxu0 0.0
    %4854 = vmatprep.subr.mxu0 0.0
    %4855 = vmatpush1.msra.mxu0 0.0
    %4856 = vmatprep.subr.mxu0 0.0
    %4857 = vmatpush1.msra.mxu0 0.0
    %4858 = vmatprep.subr.mxu0 0.0
    %4859 = vmatpush1.msra.mxu0 0.0
    %4860 = vmatprep.subr.mxu0 0.0
    %4861 = vmatpush1.msra.mxu0 0.0
    %4862 = vmatprep.subr.mxu0 0.0
    %4863 = vmatpush1.msra.mxu0 0.0
    %4864 = vmatprep.subr.mxu0 0.0
    %4865 = vmatpush1.msra.mxu0 0.0
    %4866 = vmatprep.subr.mxu0 0.0
    %4867 = vmatpush1.msra.mxu0 0.0
    %4868 = vmatprep.subr.mxu0 0.0
    %4869 = vmatpush1.msra.mxu0 0.0
    %4870 = vmatprep.subr.mxu0 0.0
    %4871 = vmatpush1.msra.mxu0 0.0
    %4872 = vmatprep.subr.mxu0 0.0
    %4873 = vmatpush1.msra.mxu0 0.0
    %4874 = vmatprep.subr.mxu0 0.0
    %4875 = vmatpush1.msra.mxu0 0.0
    %4876 = vmatprep.mubr.f32.mxu0 0.0
    %4877 = vmatmul.mubr.f32.gmra.mrb[0].mxu0 %v4397
    %v4878 = vpop.f32.mrb[0].mxu0
    %v4879 = vadd.f32 0.0, %v4878
    %v4880 = vpop.f32.mrb[0].mxu0
    %4881 = vmatprep.mubr.f32.mxu0 0.0
    %4882 = vmatmul.mubr.f32.gmra.mrb[0].mxu0 %v4402
    %v4883 = vpop.f32.mrb[0].mxu0
    %v4884 = vadd.f32 0.0, %v4883
    %v4885 = vpop.f32.mrb[0].mxu0
    %4886 = vmatprep.mubr.f32.mxu0 0.0
    %4887 = vmatmul.mubr.f32.gmra.mrb[0].mxu0 %v4407
    %v4888 = vpop.f32.mrb[0].mxu0
    %v4889 = vadd.f32 0.0, %v4888
    %v4890 = vpop.f32.mrb[0].mxu0
    %4891 = vmatprep.mubr.f32.mxu0 0.0
    %4892 = vmatmul.mubr.f32.gmra.mrb[0].mxu0 %v4412
    %v4893 = vpop.f32.mrb[0].mxu0
    %v4894 = vadd.f32 0.0, %v4893
    %v4895 = vpop.f32.mrb[0].mxu0
    %4896 = vmatprep.mubr.f32.mxu0 0.0
    %4897 = vmatmul.mubr.f32.gmra.mrb[0].mxu0 %v4417
    %v4898 = vpop.f32.mrb[0].mxu0
    %v4899 = vadd.f32 0.0, %v4898
    %v4900 = vpop.f32.mrb[0].mxu0
    %4901 = vmatprep.mubr.f32.mxu0 0.0
    %4902 = vmatmul.mubr.f32.gmra.mrb[0].mxu0 %v4422
    %v4903 = vpop.f32.mrb[0].mxu0
    %v4904 = vadd.f32 0.0, %v4903
    %v4905 = vpop.f32.mrb[0].mxu0
    %4906 = vmatprep.mubr.f32.mxu0 0.0
    %4907 = vmatmul.mubr.f32.gmra.mrb[0].mxu0 %v4427
    %v4908 = vpop.f32.mrb[0].mxu0
    %v4909 = vadd.f32 0.0, %v4908
    %v4910 = vpop.f32.mrb[0].mxu0
    %4911 = vmatprep.mubr.f32.mxu0 0.0
    %4912 = vmatmul.mubr.f32.gmra.mrb[0].mxu0 %v4432
    %v4913 = vpop.f32.mrb[0].mxu0
    %v4914 = vadd.f32 0.0, %v4913
    %v4915 = vpop.f32.mrb[0].mxu0
    %4916 = vmatprep.mubr.f32.mxu0 0.0
    %4917 = vmatmul.mubr.f32.gmra.mrb[0].mxu0 %v4437
    %v4918 = vpop.f32.mrb[0].mxu0
    %v4919 = vadd.f32 0.0, %v4918
    %v4920 = vpop.f32.mrb[0].mxu0
    %4921 = vmatprep.mubr.f32.mxu0 0.0
    %4922 = vmatmul.mubr.f32.gmra.mrb[0].mxu0 %v4442
    %v4923 = vpop.f32.mrb[0].mxu0
    %v4924 = vadd.f32 0.0, %v4923
    %v4925 = vpop.f32.mrb[0].mxu0
    %4926 = vmatprep.mubr.f32.mxu0 0.0
    %4927 = vmatmul.mubr.f32.gmra.mrb[0].mxu0 %v4447
    %v4928 = vpop.f32.mrb[0].mxu0
    %v4929 = vadd.f32 0.0, %v4928
    %v4930 = vpop.f32.mrb[0].mxu0
    %4931 = vmatprep.mubr.f32.mxu0 0.0
    %4932 = vmatmul.mubr.f32.gmra.mrb[0].mxu0 %v4452
    %v4933 = vpop.f32.mrb[0].mxu0
    %v4934 = vadd.f32 0.0, %v4933
    %v4935 = vpop.f32.mrb[0].mxu0
    %4936 = vmatprep.mubr.f32.mxu0 0.0
    %4937 = vmatmul.mubr.f32.gmra.mrb[0].mxu0 %v4457
    %v4938 = vpop.f32.mrb[0].mxu0
    %v4939 = vadd.f32 0.0, %v4938
    %v4940 = vpop.f32.mrb[0].mxu0
    %4941 = vmatprep.mubr.f32.mxu0 0.0
    %4942 = vmatmul.mubr.f32.gmra.mrb[0].mxu0 %v4462
    %v4943 = vpop.f32.mrb[0].mxu0
    %v4944 = vadd.f32 0.0, %v4943
    %v4945 = vpop.f32.mrb[0].mxu0
    %4946 = vmatprep.mubr.f32.mxu0 0.0
    %4947 = vmatmul.mubr.f32.gmra.mrb[0].mxu0 %v4467
    %v4948 = vpop.f32.mrb[0].mxu0
    %v4949 = vadd.f32 0.0, %v4948
    %v4950 = vpop.f32.mrb[0].mxu0
    %4951 = vmatprep.mubr.f32.mxu0 0.0
    %4952 = vmatmul.mubr.f32.gmra.mrb[0].mxu0 %v4472
    %v4953 = vpop.f32.mrb[0].mxu0
    %v4954 = vadd.f32 0.0, %v4953
    %v4955 = vpop.f32.mrb[0].mxu0
    %4956 = vmatprep.mubr.f32.mxu0 0.0
    %4957 = vmatmul.mubr.f32.gmra.mrb[0].mxu0 %v4477
    %v4958 = vpop.f32.mrb[0].mxu0
    %v4959 = vadd.f32 0.0, %v4958
    %v4960 = vpop.f32.mrb[0].mxu0
    %4961 = vmatprep.mubr.f32.mxu0 0.0
    %4962 = vmatmul.mubr.f32.gmra.mrb[0].mxu0 %v4482
    %v4963 = vpop.f32.mrb[0].mxu0
    %v4964 = vadd.f32 0.0, %v4963
    %v4965 = vpop.f32.mrb[0].mxu0
    %4966 = vmatprep.mubr.f32.mxu0 0.0
    %4967 = vmatmul.mubr.f32.gmra.mrb[0].mxu0 %v4487
    %v4968 = vpop.f32.mrb[0].mxu0
    %v4969 = vadd.f32 0.0, %v4968
    %v4970 = vpop.f32.mrb[0].mxu0
    %4971 = vmatprep.mubr.f32.mxu0 0.0
    %4972 = vmatmul.mubr.f32.gmra.mrb[0].mxu0 %v4492
    %v4973 = vpop.f32.mrb[0].mxu0
    %v4974 = vadd.f32 0.0, %v4973
    %v4975 = vpop.f32.mrb[0].mxu0
    %4976 = vmatprep.mubr.f32.mxu0 0.0
    %4977 = vmatmul.mubr.f32.gmra.mrb[0].mxu0 %v4497
    %v4978 = vpop.f32.mrb[0].mxu0
    %v4979 = vadd.f32 0.0, %v4978
    %v4980 = vpop.f32.mrb[0].mxu0
    %4981 = vmatprep.mubr.f32.mxu0 0.0
    %4982 = vmatmul.mubr.f32.gmra.mrb[0].mxu0 %v4502
    %v4983 = vpop.f32.mrb[0].mxu0
    %v4984 = vadd.f32 0.0, %v4983
    %v4985 = vpop.f32.mrb[0].mxu0
    %4986 = vmatprep.mubr.f32.mxu0 0.0
    %4987 = vmatmul.mubr.f32.gmra.mrb[0].mxu0 %v4507
    %v4988 = vpop.f32.mrb[0].mxu0
    %v4989 = vadd.f32 0.0, %v4988
    %v4990 = vpop.f32.mrb[0].mxu0
    %4991 = vmatprep.mubr.f32.mxu0 0.0
    %4992 = vmatmul.mubr.f32.gmra.mrb[0].mxu0 %v4512
    %v4993 = vpop.f32.mrb[0].mxu0
    %v4994 = vadd.f32 0.0, %v4993
    %v4995 = vpop.f32.mrb[0].mxu0
    %4996 = vmatprep.mubr.f32.mxu0 0.0
    %4997 = vmatmul.mubr.f32.gmra.mrb[0].mxu0 %v4517
    %v4998 = vpop.f32.mrb[0].mxu0
    %v4999 = vadd.f32 0.0, %v4998
    %v5000 = vpop.f32.mrb[0].mxu0
    %5001 = vmatprep.mubr.f32.mxu0 0.0
    %5002 = vmatmul.mubr.f32.gmra.mrb[0].mxu0 %v4522
    %v5003 = vpop.f32.mrb[0].mxu0
    %v5004 = vadd.f32 0.0, %v5003
    %v5005 = vpop.f32.mrb[0].mxu0
    %5006 = vmatprep.mubr.f32.mxu0 0.0
    %5007 = vmatmul.mubr.f32.gmra.mrb[0].mxu0 %v4527
    %v5008 = vpop.f32.mrb[0].mxu0
    %v5009 = vadd.f32 0.0, %v5008
    %v5010 = vpop.f32.mrb[0].mxu0
    %5011 = vmatprep.mubr.f32.mxu0 0.0
    %5012 = vmatmul.mubr.f32.gmra.mrb[0].mxu0 %v4532
    %v5013 = vpop.f32.mrb[0].mxu0
    %v5014 = vadd.f32 0.0, %v5013
    %v5015 = vpop.f32.mrb[0].mxu0
    %5016 = vmatprep.mubr.f32.mxu0 0.0
    %5017 = vmatmul.mubr.f32.gmra.mrb[0].mxu0 %v4537
    %v5018 = vpop.f32.mrb[0].mxu0
    %v5019 = vadd.f32 0.0, %v5018
    %v5020 = vpop.f32.mrb[0].mxu0
    %5021 = vmatprep.mubr.f32.mxu0 0.0
    %5022 = vmatmul.mubr.f32.gmra.mrb[0].mxu0 %v4542
    %v5023 = vpop.f32.mrb[0].mxu0
    %v5024 = vadd.f32 0.0, %v5023
    %v5025 = vpop.f32.mrb[0].mxu0
    %5026 = vmatprep.mubr.f32.mxu0 0.0
    %5027 = vmatmul.mubr.f32.gmra.mrb[0].mxu0 %v4547
    %v5028 = vpop.f32.mrb[0].mxu0
    %v5029 = vadd.f32 0.0, %v5028
    %v5030 = vpop.f32.mrb[0].mxu0
    %5031 = vmatprep.mubr.f32.mxu0 0.0
    %5032 = vmatmul.mubr.f32.gmra.mrb[0].mxu0 %v4552
    %v5033 = vpop.f32.mrb[0].mxu0
    %v5034 = vadd.f32 0.0, %v5033
    %v5035 = vpop.f32.mrb[0].mxu0
    %5036 = vdwg.mxu0
    %5037 = vmatprep.subr.mxu0 %v304
    %5038 = vmatpush1.msra.mxu0 %v303
    %5039 = vmatprep.subr.mxu0 %v307
    %5040 = vmatpush1.msra.mxu0 %v306
    %5041 = vmatprep.subr.mxu0 %v310
    %5042 = vmatpush1.msra.mxu0 %v309
    %5043 = vmatprep.subr.mxu0 %v313
    %5044 = vmatpush1.msra.mxu0 %v312
    %5045 = vmatprep.subr.mxu0 %v316
    %5046 = vmatpush1.msra.mxu0 %v315
    %5047 = vmatprep.subr.mxu0 %v319
    %5048 = vmatpush1.msra.mxu0 %v318
    %5049 = vmatprep.subr.mxu0 %v322
    %5050 = vmatpush1.msra.mxu0 %v321
    %5051 = vmatprep.subr.mxu0 %v325
    %5052 = vmatpush1.msra.mxu0 %v324
    %5053 = vmatprep.subr.mxu0 %v328
    %5054 = vmatpush1.msra.mxu0 %v327
    %5055 = vmatprep.subr.mxu0 %v331
    %5056 = vmatpush1.msra.mxu0 %v330
    %5057 = vmatprep.subr.mxu0 %v334
    %5058 = vmatpush1.msra.mxu0 %v333
    %5059 = vmatprep.subr.mxu0 %v337
    %5060 = vmatpush1.msra.mxu0 %v336
    %5061 = vmatprep.subr.mxu0 %v340
    %5062 = vmatpush1.msra.mxu0 %v339
    %5063 = vmatprep.subr.mxu0 %v343
    %5064 = vmatpush1.msra.mxu0 %v342
    %5065 = vmatprep.subr.mxu0 %v346
    %5066 = vmatpush1.msra.mxu0 %v345
    %5067 = vmatprep.subr.mxu0 %v349
    %5068 = vmatpush1.msra.mxu0 %v348
    %5069 = vmatprep.subr.mxu0 0.0
    %5070 = vmatpush1.msra.mxu0 0.0
    %5071 = vmatprep.subr.mxu0 0.0
    %5072 = vmatpush1.msra.mxu0 0.0
    %5073 = vmatprep.subr.mxu0 0.0
    %5074 = vmatpush1.msra.mxu0 0.0
    %5075 = vmatprep.subr.mxu0 0.0
    %5076 = vmatpush1.msra.mxu0 0.0
    %5077 = vmatprep.subr.mxu0 0.0
    %5078 = vmatpush1.msra.mxu0 0.0
    %5079 = vmatprep.subr.mxu0 0.0
    %5080 = vmatpush1.msra.mxu0 0.0
    %5081 = vmatprep.subr.mxu0 0.0
    %5082 = vmatpush1.msra.mxu0 0.0
    %5083 = vmatprep.subr.mxu0 0.0
    %5084 = vmatpush1.msra.mxu0 0.0
    %5085 = vmatprep.subr.mxu0 0.0
    %5086 = vmatpush1.msra.mxu0 0.0
    %5087 = vmatprep.subr.mxu0 0.0
    %5088 = vmatpush1.msra.mxu0 0.0
    %5089 = vmatprep.subr.mxu0 0.0
    %5090 = vmatpush1.msra.mxu0 0.0
    %5091 = vmatprep.subr.mxu0 0.0
    %5092 = vmatpush1.msra.mxu0 0.0
    %5093 = vmatprep.subr.mxu0 0.0
    %5094 = vmatpush1.msra.mxu0 0.0
    %5095 = vmatprep.subr.mxu0 0.0
    %5096 = vmatpush1.msra.mxu0 0.0
    %5097 = vmatprep.subr.mxu0 0.0
    %5098 = vmatpush1.msra.mxu0 0.0
    %5099 = vmatprep.subr.mxu0 0.0
    %5100 = vmatpush1.msra.mxu0 0.0
    %5101 = vmatprep.mubr.f32.mxu0 0.0
    %5102 = vmatmul.mubr.f32.gmra.mrb[0].mxu0 %v4172
    %v5103 = vpop.f32.mrb[0].mxu0
    %v5104 = vadd.f32 %v4622, %v5103
    %v5105 = vpop.f32.mrb[0].mxu0
    %v5106 = vadd.f32 %v4624, %v5105
    %5107 = vmatprep.mubr.f32.mxu0 0.0
    %5108 = vmatmul.mubr.f32.gmra.mrb[0].mxu0 %v4177
    %v5109 = vpop.f32.mrb[0].mxu0
    %v5110 = vadd.f32 %v4628, %v5109
    %v5111 = vpop.f32.mrb[0].mxu0
    %v5112 = vadd.f32 %v4630, %v5111
    %5113 = vmatprep.mubr.f32.mxu0 0.0
    %5114 = vmatmul.mubr.f32.gmra.mrb[0].mxu0 %v4182
    %v5115 = vpop.f32.mrb[0].mxu0
    %v5116 = vadd.f32 %v4634, %v5115
    %v5117 = vpop.f32.mrb[0].mxu0
    %v5118 = vadd.f32 %v4636, %v5117
    %5119 = vmatprep.mubr.f32.mxu0 0.0
    %5120 = vmatmul.mubr.f32.gmra.mrb[0].mxu0 %v4187
    %v5121 = vpop.f32.mrb[0].mxu0
    %v5122 = vadd.f32 %v4640, %v5121
    %v5123 = vpop.f32.mrb[0].mxu0
    %v5124 = vadd.f32 %v4642, %v5123
    %5125 = vmatprep.mubr.f32.mxu0 0.0
    %5126 = vmatmul.mubr.f32.gmra.mrb[0].mxu0 %v4192
    %v5127 = vpop.f32.mrb[0].mxu0
    %v5128 = vadd.f32 %v4646, %v5127
    %v5129 = vpop.f32.mrb[0].mxu0
    %v5130 = vadd.f32 %v4648, %v5129
    %5131 = vmatprep.mubr.f32.mxu0 0.0
    %5132 = vmatmul.mubr.f32.gmra.mrb[0].mxu0 %v4197
    %v5133 = vpop.f32.mrb[0].mxu0
    %v5134 = vadd.f32 %v4652, %v5133
    %v5135 = vpop.f32.mrb[0].mxu0
    %v5136 = vadd.f32 %v4654, %v5135
    %5137 = vmatprep.mubr.f32.mxu0 0.0
    %5138 = vmatmul.mubr.f32.gmra.mrb[0].mxu0 %v4202
    %v5139 = vpop.f32.mrb[0].mxu0
    %v5140 = vadd.f32 %v4658, %v5139
    %v5141 = vpop.f32.mrb[0].mxu0
    %v5142 = vadd.f32 %v4660, %v5141
    %5143 = vmatprep.mubr.f32.mxu0 0.0
    %5144 = vmatmul.mubr.f32.gmra.mrb[0].mxu0 %v4207
    %v5145 = vpop.f32.mrb[0].mxu0
    %v5146 = vadd.f32 %v4664, %v5145
    %v5147 = vpop.f32.mrb[0].mxu0
    %v5148 = vadd.f32 %v4666, %v5147
    %5149 = vmatprep.mubr.f32.mxu0 0.0
    %5150 = vmatmul.mubr.f32.gmra.mrb[0].mxu0 %v4212
    %v5151 = vpop.f32.mrb[0].mxu0
    %v5152 = vadd.f32 %v4670, %v5151
    %v5153 = vpop.f32.mrb[0].mxu0
    %v5154 = vadd.f32 %v4672, %v5153
    %5155 = vmatprep.mubr.f32.mxu0 0.0
    %5156 = vmatmul.mubr.f32.gmra.mrb[0].mxu0 %v4217
    %v5157 = vpop.f32.mrb[0].mxu0
    %v5158 = vadd.f32 %v4676, %v5157
    %v5159 = vpop.f32.mrb[0].mxu0
    %v5160 = vadd.f32 %v4678, %v5159
    %5161 = vmatprep.mubr.f32.mxu0 0.0
    %5162 = vmatmul.mubr.f32.gmra.mrb[0].mxu0 %v4222
    %v5163 = vpop.f32.mrb[0].mxu0
    %v5164 = vadd.f32 %v4682, %v5163
    %v5165 = vpop.f32.mrb[0].mxu0
    %v5166 = vadd.f32 %v4684, %v5165
    %5167 = vmatprep.mubr.f32.mxu0 0.0
    %5168 = vmatmul.mubr.f32.gmra.mrb[0].mxu0 %v4227
    %v5169 = vpop.f32.mrb[0].mxu0
    %v5170 = vadd.f32 %v4688, %v5169
    %v5171 = vpop.f32.mrb[0].mxu0
    %v5172 = vadd.f32 %v4690, %v5171
    %5173 = vmatprep.mubr.f32.mxu0 0.0
    %5174 = vmatmul.mubr.f32.gmra.mrb[0].mxu0 %v4232
    %v5175 = vpop.f32.mrb[0].mxu0
    %v5176 = vadd.f32 %v4694, %v5175
    %v5177 = vpop.f32.mrb[0].mxu0
    %v5178 = vadd.f32 %v4696, %v5177
    %5179 = vmatprep.mubr.f32.mxu0 0.0
    %5180 = vmatmul.mubr.f32.gmra.mrb[0].mxu0 %v4237
    %v5181 = vpop.f32.mrb[0].mxu0
    %v5182 = vadd.f32 %v4700, %v5181
    %v5183 = vpop.f32.mrb[0].mxu0
    %v5184 = vadd.f32 %v4702, %v5183
    %5185 = vmatprep.mubr.f32.mxu0 0.0
    %5186 = vmatmul.mubr.f32.gmra.mrb[0].mxu0 %v4242
    %v5187 = vpop.f32.mrb[0].mxu0
    %v5188 = vadd.f32 %v4706, %v5187
    %v5189 = vpop.f32.mrb[0].mxu0
    %v5190 = vadd.f32 %v4708, %v5189
    %5191 = vmatprep.mubr.f32.mxu0 0.0
    %5192 = vmatmul.mubr.f32.gmra.mrb[0].mxu0 %v4247
    %v5193 = vpop.f32.mrb[0].mxu0
    %v5194 = vadd.f32 %v4712, %v5193
    %v5195 = vpop.f32.mrb[0].mxu0
    %v5196 = vadd.f32 %v4714, %v5195
    %5197 = vmatprep.mubr.f32.mxu0 0.0
    %5198 = vmatmul.mubr.f32.gmra.mrb[0].mxu0 %v4252
    %v5199 = vpop.f32.mrb[0].mxu0
    %v5200 = vadd.f32 %v4718, %v5199
    %v5201 = vpop.f32.mrb[0].mxu0
    %v5202 = vadd.f32 %v4720, %v5201
    %5203 = vmatprep.mubr.f32.mxu0 0.0
    %5204 = vmatmul.mubr.f32.gmra.mrb[0].mxu0 %v4257
    %v5205 = vpop.f32.mrb[0].mxu0
    %v5206 = vadd.f32 %v4724, %v5205
    %v5207 = vpop.f32.mrb[0].mxu0
    %v5208 = vadd.f32 %v4726, %v5207
    %5209 = vmatprep.mubr.f32.mxu0 0.0
    %5210 = vmatmul.mubr.f32.gmra.mrb[0].mxu0 %v4262
    %v5211 = vpop.f32.mrb[0].mxu0
    %v5212 = vadd.f32 %v4730, %v5211
    %v5213 = vpop.f32.mrb[0].mxu0
    %v5214 = vadd.f32 %v4732, %v5213
    %5215 = vmatprep.mubr.f32.mxu0 0.0
    %5216 = vmatmul.mubr.f32.gmra.mrb[0].mxu0 %v4267
    %v5217 = vpop.f32.mrb[0].mxu0
    %v5218 = vadd.f32 %v4736, %v5217
    %v5219 = vpop.f32.mrb[0].mxu0
    %v5220 = vadd.f32 %v4738, %v5219
    %5221 = vmatprep.mubr.f32.mxu0 0.0
    %5222 = vmatmul.mubr.f32.gmra.mrb[0].mxu0 %v4272
    %v5223 = vpop.f32.mrb[0].mxu0
    %v5224 = vadd.f32 %v4742, %v5223
    %v5225 = vpop.f32.mrb[0].mxu0
    %v5226 = vadd.f32 %v4744, %v5225
    %5227 = vmatprep.mubr.f32.mxu0 0.0
    %5228 = vmatmul.mubr.f32.gmra.mrb[0].mxu0 %v4277
    %v5229 = vpop.f32.mrb[0].mxu0
    %v5230 = vadd.f32 %v4748, %v5229
    %v5231 = vpop.f32.mrb[0].mxu0
    %v5232 = vadd.f32 %v4750, %v5231
    %5233 = vmatprep.mubr.f32.mxu0 0.0
    %5234 = vmatmul.mubr.f32.gmra.mrb[0].mxu0 %v4282
    %v5235 = vpop.f32.mrb[0].mxu0
    %v5236 = vadd.f32 %v4754, %v5235
    %v5237 = vpop.f32.mrb[0].mxu0
    %v5238 = vadd.f32 %v4756, %v5237
    %5239 = vmatprep.mubr.f32.mxu0 0.0
    %5240 = vmatmul.mubr.f32.gmra.mrb[0].mxu0 %v4287
    %v5241 = vpop.f32.mrb[0].mxu0
    %v5242 = vadd.f32 %v4760, %v5241
    %v5243 = vpop.f32.mrb[0].mxu0
    %v5244 = vadd.f32 %v4762, %v5243
    %5245 = vmatprep.mubr.f32.mxu0 0.0
    %5246 = vmatmul.mubr.f32.gmra.mrb[0].mxu0 %v4292
    %v5247 = vpop.f32.mrb[0].mxu0
    %v5248 = vadd.f32 %v4766, %v5247
    %v5249 = vpop.f32.mrb[0].mxu0
    %v5250 = vadd.f32 %v4768, %v5249
    %5251 = vmatprep.mubr.f32.mxu0 0.0
    %5252 = vmatmul.mubr.f32.gmra.mrb[0].mxu0 %v4297
    %v5253 = vpop.f32.mrb[0].mxu0
    %v5254 = vadd.f32 %v4772, %v5253
    %v5255 = vpop.f32.mrb[0].mxu0
    %v5256 = vadd.f32 %v4774, %v5255
    %5257 = vmatprep.mubr.f32.mxu0 0.0
    %5258 = vmatmul.mubr.f32.gmra.mrb[0].mxu0 %v4302
    %v5259 = vpop.f32.mrb[0].mxu0
    %v5260 = vadd.f32 %v4778, %v5259
    %v5261 = vpop.f32.mrb[0].mxu0
    %v5262 = vadd.f32 %v4780, %v5261
    %5263 = vmatprep.mubr.f32.mxu0 0.0
    %5264 = vmatmul.mubr.f32.gmra.mrb[0].mxu0 %v4307
    %v5265 = vpop.f32.mrb[0].mxu0
    %v5266 = vadd.f32 %v4784, %v5265
    %v5267 = vpop.f32.mrb[0].mxu0
    %v5268 = vadd.f32 %v4786, %v5267
    %5269 = vmatprep.mubr.f32.mxu0 0.0
    %5270 = vmatmul.mubr.f32.gmra.mrb[0].mxu0 %v4312
    %v5271 = vpop.f32.mrb[0].mxu0
    %v5272 = vadd.f32 %v4790, %v5271
    %v5273 = vpop.f32.mrb[0].mxu0
    %v5274 = vadd.f32 %v4792, %v5273
    %5275 = vmatprep.mubr.f32.mxu0 0.0
    %5276 = vmatmul.mubr.f32.gmra.mrb[0].mxu0 %v4317
    %v5277 = vpop.f32.mrb[0].mxu0
    %v5278 = vadd.f32 %v4796, %v5277
    %v5279 = vpop.f32.mrb[0].mxu0
    %v5280 = vadd.f32 %v4798, %v5279
    %5281 = vmatprep.mubr.f32.mxu0 0.0
    %5282 = vmatmul.mubr.f32.gmra.mrb[0].mxu0 %v4322
    %v5283 = vpop.f32.mrb[0].mxu0
    %v5284 = vadd.f32 %v4802, %v5283
    %v5285 = vpop.f32.mrb[0].mxu0
    %v5286 = vadd.f32 %v4804, %v5285
    %5287 = vmatprep.mubr.f32.mxu0 0.0
    %5288 = vmatmul.mubr.f32.gmra.mrb[0].mxu0 %v4327
    %v5289 = vpop.f32.mrb[0].mxu0
    %v5290 = vadd.f32 %v4808, %v5289
    %v5291 = vpop.f32.mrb[0].mxu0
    %v5292 = vadd.f32 %v4810, %v5291
    %5293 = vdwg.mxu0
    %5294 = vmatprep.subr.mxu0 0.0
    %5295 = vmatpush1.msra.mxu0 %v305
    %5296 = vmatprep.subr.mxu0 0.0
    %5297 = vmatpush1.msra.mxu0 %v308
    %5298 = vmatprep.subr.mxu0 0.0
    %5299 = vmatpush1.msra.mxu0 %v311
    %5300 = vmatprep.subr.mxu0 0.0
    %5301 = vmatpush1.msra.mxu0 %v314
    %5302 = vmatprep.subr.mxu0 0.0
    %5303 = vmatpush1.msra.mxu0 %v317
    %5304 = vmatprep.subr.mxu0 0.0
    %5305 = vmatpush1.msra.mxu0 %v320
    %5306 = vmatprep.subr.mxu0 0.0
    %5307 = vmatpush1.msra.mxu0 %v323
    %5308 = vmatprep.subr.mxu0 0.0
    %5309 = vmatpush1.msra.mxu0 %v326
    %5310 = vmatprep.subr.mxu0 0.0
    %5311 = vmatpush1.msra.mxu0 %v329
    %5312 = vmatprep.subr.mxu0 0.0
    %5313 = vmatpush1.msra.mxu0 %v332
    %5314 = vmatprep.subr.mxu0 0.0
    %5315 = vmatpush1.msra.mxu0 %v335
    %5316 = vmatprep.subr.mxu0 0.0
    %5317 = vmatpush1.msra.mxu0 %v338
    %5318 = vmatprep.subr.mxu0 0.0
    %5319 = vmatpush1.msra.mxu0 %v341
    %5320 = vmatprep.subr.mxu0 0.0
    %5321 = vmatpush1.msra.mxu0 %v344
    %5322 = vmatprep.subr.mxu0 0.0
    %5323 = vmatpush1.msra.mxu0 %v347
    %5324 = vmatprep.subr.mxu0 0.0
    %5325 = vmatpush1.msra.mxu0 %v350
    %5326 = vmatprep.subr.mxu0 0.0
    %5327 = vmatpush1.msra.mxu0 0.0
    %5328 = vmatprep.subr.mxu0 0.0
    %5329 = vmatpush1.msra.mxu0 0.0
    %5330 = vmatprep.subr.mxu0 0.0
    %5331 = vmatpush1.msra.mxu0 0.0
    %5332 = vmatprep.subr.mxu0 0.0
    %5333 = vmatpush1.msra.mxu0 0.0
    %5334 = vmatprep.subr.mxu0 0.0
    %5335 = vmatpush1.msra.mxu0 0.0
    %5336 = vmatprep.subr.mxu0 0.0
    %5337 = vmatpush1.msra.mxu0 0.0
    %5338 = vmatprep.subr.mxu0 0.0
    %5339 = vmatpush1.msra.mxu0 0.0
    %5340 = vmatprep.subr.mxu0 0.0
    %5341 = vmatpush1.msra.mxu0 0.0
    %5342 = vmatprep.subr.mxu0 0.0
    %5343 = vmatpush1.msra.mxu0 0.0
    %5344 = vmatprep.subr.mxu0 0.0
    %5345 = vmatpush1.msra.mxu0 0.0
    %5346 = vmatprep.subr.mxu0 0.0
    %5347 = vmatpush1.msra.mxu0 0.0
    %5348 = vmatprep.subr.mxu0 0.0
    %5349 = vmatpush1.msra.mxu0 0.0
    %5350 = vmatprep.subr.mxu0 0.0
    %5351 = vmatpush1.msra.mxu0 0.0
    %5352 = vmatprep.subr.mxu0 0.0
    %5353 = vmatpush1.msra.mxu0 0.0
    %5354 = vmatprep.subr.mxu0 0.0
    %5355 = vmatpush1.msra.mxu0 0.0
    %5356 = vmatprep.subr.mxu0 0.0
    %5357 = vmatpush1.msra.mxu0 0.0
    %5358 = vmatprep.mubr.f32.mxu0 0.0
    %5359 = vmatmul.mubr.f32.gmra.mrb[0].mxu0 %v4172
    %v5360 = vpop.f32.mrb[0].mxu0
    %v5361 = vadd.f32 %v4879, %v5360
    %v5362 = vpop.f32.mrb[0].mxu0
    %5363 = vmatprep.mubr.f32.mxu0 0.0
    %5364 = vmatmul.mubr.f32.gmra.mrb[0].mxu0 %v4177
    %v5365 = vpop.f32.mrb[0].mxu0
    %v5366 = vadd.f32 %v4884, %v5365
    %v5367 = vpop.f32.mrb[0].mxu0
    %5368 = vmatprep.mubr.f32.mxu0 0.0
    %5369 = vmatmul.mubr.f32.gmra.mrb[0].mxu0 %v4182
    %v5370 = vpop.f32.mrb[0].mxu0
    %v5371 = vadd.f32 %v4889, %v5370
    %v5372 = vpop.f32.mrb[0].mxu0
    %5373 = vmatprep.mubr.f32.mxu0 0.0
    %5374 = vmatmul.mubr.f32.gmra.mrb[0].mxu0 %v4187
    %v5375 = vpop.f32.mrb[0].mxu0
    %v5376 = vadd.f32 %v4894, %v5375
    %v5377 = vpop.f32.mrb[0].mxu0
    %5378 = vmatprep.mubr.f32.mxu0 0.0
    %5379 = vmatmul.mubr.f32.gmra.mrb[0].mxu0 %v4192
    %v5380 = vpop.f32.mrb[0].mxu0
    %v5381 = vadd.f32 %v4899, %v5380
    %v5382 = vpop.f32.mrb[0].mxu0
    %5383 = vmatprep.mubr.f32.mxu0 0.0
    %5384 = vmatmul.mubr.f32.gmra.mrb[0].mxu0 %v4197
    %v5385 = vpop.f32.mrb[0].mxu0
    %v5386 = vadd.f32 %v4904, %v5385
    %v5387 = vpop.f32.mrb[0].mxu0
    %5388 = vmatprep.mubr.f32.mxu0 0.0
    %5389 = vmatmul.mubr.f32.gmra.mrb[0].mxu0 %v4202
    %v5390 = vpop.f32.mrb[0].mxu0
    %v5391 = vadd.f32 %v4909, %v5390
    %v5392 = vpop.f32.mrb[0].mxu0
    %5393 = vmatprep.mubr.f32.mxu0 0.0
    %5394 = vmatmul.mubr.f32.gmra.mrb[0].mxu0 %v4207
    %v5395 = vpop.f32.mrb[0].mxu0
    %v5396 = vadd.f32 %v4914, %v5395
    %v5397 = vpop.f32.mrb[0].mxu0
    %5398 = vmatprep.mubr.f32.mxu0 0.0
    %5399 = vmatmul.mubr.f32.gmra.mrb[0].mxu0 %v4212
    %v5400 = vpop.f32.mrb[0].mxu0
    %v5401 = vadd.f32 %v4919, %v5400
    %v5402 = vpop.f32.mrb[0].mxu0
    %5403 = vmatprep.mubr.f32.mxu0 0.0
    %5404 = vmatmul.mubr.f32.gmra.mrb[0].mxu0 %v4217
    %v5405 = vpop.f32.mrb[0].mxu0
    %v5406 = vadd.f32 %v4924, %v5405
    %v5407 = vpop.f32.mrb[0].mxu0
    %5408 = vmatprep.mubr.f32.mxu0 0.0
    %5409 = vmatmul.mubr.f32.gmra.mrb[0].mxu0 %v4222
    %v5410 = vpop.f32.mrb[0].mxu0
    %v5411 = vadd.f32 %v4929, %v5410
    %v5412 = vpop.f32.mrb[0].mxu0
    %5413 = vmatprep.mubr.f32.mxu0 0.0
    %5414 = vmatmul.mubr.f32.gmra.mrb[0].mxu0 %v4227
    %v5415 = vpop.f32.mrb[0].mxu0
    %v5416 = vadd.f32 %v4934, %v5415
    %v5417 = vpop.f32.mrb[0].mxu0
    %5418 = vmatprep.mubr.f32.mxu0 0.0
    %5419 = vmatmul.mubr.f32.gmra.mrb[0].mxu0 %v4232
    %v5420 = vpop.f32.mrb[0].mxu0
    %v5421 = vadd.f32 %v4939, %v5420
    %v5422 = vpop.f32.mrb[0].mxu0
    %5423 = vmatprep.mubr.f32.mxu0 0.0
    %5424 = vmatmul.mubr.f32.gmra.mrb[0].mxu0 %v4237
    %v5425 = vpop.f32.mrb[0].mxu0
    %v5426 = vadd.f32 %v4944, %v5425
    %v5427 = vpop.f32.mrb[0].mxu0
    %5428 = vmatprep.mubr.f32.mxu0 0.0
    %5429 = vmatmul.mubr.f32.gmra.mrb[0].mxu0 %v4242
    %v5430 = vpop.f32.mrb[0].mxu0
    %v5431 = vadd.f32 %v4949, %v5430
    %v5432 = vpop.f32.mrb[0].mxu0
    %5433 = vmatprep.mubr.f32.mxu0 0.0
    %5434 = vmatmul.mubr.f32.gmra.mrb[0].mxu0 %v4247
    %v5435 = vpop.f32.mrb[0].mxu0
    %v5436 = vadd.f32 %v4954, %v5435
    %v5437 = vpop.f32.mrb[0].mxu0
    %5438 = vmatprep.mubr.f32.mxu0 0.0
    %5439 = vmatmul.mubr.f32.gmra.mrb[0].mxu0 %v4252
    %v5440 = vpop.f32.mrb[0].mxu0
    %v5441 = vadd.f32 %v4959, %v5440
    %v5442 = vpop.f32.mrb[0].mxu0
    %5443 = vmatprep.mubr.f32.mxu0 0.0
    %5444 = vmatmul.mubr.f32.gmra.mrb[0].mxu0 %v4257
    %v5445 = vpop.f32.mrb[0].mxu0
    %v5446 = vadd.f32 %v4964, %v5445
    %v5447 = vpop.f32.mrb[0].mxu0
    %5448 = vmatprep.mubr.f32.mxu0 0.0
    %5449 = vmatmul.mubr.f32.gmra.mrb[0].mxu0 %v4262
    %v5450 = vpop.f32.mrb[0].mxu0
    %v5451 = vadd.f32 %v4969, %v5450
    %v5452 = vpop.f32.mrb[0].mxu0
    %5453 = vmatprep.mubr.f32.mxu0 0.0
    %5454 = vmatmul.mubr.f32.gmra.mrb[0].mxu0 %v4267
    %v5455 = vpop.f32.mrb[0].mxu0
    %v5456 = vadd.f32 %v4974, %v5455
    %v5457 = vpop.f32.mrb[0].mxu0
    %5458 = vmatprep.mubr.f32.mxu0 0.0
    %5459 = vmatmul.mubr.f32.gmra.mrb[0].mxu0 %v4272
    %v5460 = vpop.f32.mrb[0].mxu0
    %v5461 = vadd.f32 %v4979, %v5460
    %v5462 = vpop.f32.mrb[0].mxu0
    %5463 = vmatprep.mubr.f32.mxu0 0.0
    %5464 = vmatmul.mubr.f32.gmra.mrb[0].mxu0 %v4277
    %v5465 = vpop.f32.mrb[0].mxu0
    %v5466 = vadd.f32 %v4984, %v5465
    %v5467 = vpop.f32.mrb[0].mxu0
    %5468 = vmatprep.mubr.f32.mxu0 0.0
    %5469 = vmatmul.mubr.f32.gmra.mrb[0].mxu0 %v4282
    %v5470 = vpop.f32.mrb[0].mxu0
    %v5471 = vadd.f32 %v4989, %v5470
    %v5472 = vpop.f32.mrb[0].mxu0
    %5473 = vmatprep.mubr.f32.mxu0 0.0
    %5474 = vmatmul.mubr.f32.gmra.mrb[0].mxu0 %v4287
    %v5475 = vpop.f32.mrb[0].mxu0
    %v5476 = vadd.f32 %v4994, %v5475
    %v5477 = vpop.f32.mrb[0].mxu0
    %5478 = vmatprep.mubr.f32.mxu0 0.0
    %5479 = vmatmul.mubr.f32.gmra.mrb[0].mxu0 %v4292
    %v5480 = vpop.f32.mrb[0].mxu0
    %v5481 = vadd.f32 %v4999, %v5480
    %v5482 = vpop.f32.mrb[0].mxu0
    %5483 = vmatprep.mubr.f32.mxu0 0.0
    %5484 = vmatmul.mubr.f32.gmra.mrb[0].mxu0 %v4297
    %v5485 = vpop.f32.mrb[0].mxu0
    %v5486 = vadd.f32 %v5004, %v5485
    %v5487 = vpop.f32.mrb[0].mxu0
    %5488 = vmatprep.mubr.f32.mxu0 0.0
    %5489 = vmatmul.mubr.f32.gmra.mrb[0].mxu0 %v4302
    %v5490 = vpop.f32.mrb[0].mxu0
    %v5491 = vadd.f32 %v5009, %v5490
    %v5492 = vpop.f32.mrb[0].mxu0
    %5493 = vmatprep.mubr.f32.mxu0 0.0
    %5494 = vmatmul.mubr.f32.gmra.mrb[0].mxu0 %v4307
    %v5495 = vpop.f32.mrb[0].mxu0
    %v5496 = vadd.f32 %v5014, %v5495
    %v5497 = vpop.f32.mrb[0].mxu0
    %5498 = vmatprep.mubr.f32.mxu0 0.0
    %5499 = vmatmul.mubr.f32.gmra.mrb[0].mxu0 %v4312
    %v5500 = vpop.f32.mrb[0].mxu0
    %v5501 = vadd.f32 %v5019, %v5500
    %v5502 = vpop.f32.mrb[0].mxu0
    %5503 = vmatprep.mubr.f32.mxu0 0.0
    %5504 = vmatmul.mubr.f32.gmra.mrb[0].mxu0 %v4317
    %v5505 = vpop.f32.mrb[0].mxu0
    %v5506 = vadd.f32 %v5024, %v5505
    %v5507 = vpop.f32.mrb[0].mxu0
    %5508 = vmatprep.mubr.f32.mxu0 0.0
    %5509 = vmatmul.mubr.f32.gmra.mrb[0].mxu0 %v4322
    %v5510 = vpop.f32.mrb[0].mxu0
    %v5511 = vadd.f32 %v5029, %v5510
    %v5512 = vpop.f32.mrb[0].mxu0
    %5513 = vmatprep.mubr.f32.mxu0 0.0
    %5514 = vmatmul.mubr.f32.gmra.mrb[0].mxu0 %v4327
    %v5515 = vpop.f32.mrb[0].mxu0
    %v5516 = vadd.f32 %v5034, %v5515
    %v5517 = vpop.f32.mrb[0].mxu0
    %5518 = vdwg.mxu0
    %v5519 = vadd.f32 %v5104, %v2377
    %v5520 = vadd.f32 %v5106, %v2381
    %v5521 = vadd.f32 %v5361, %v2385
    %v5522 = vadd.f32 %v5110, %v2377
    %v5523 = vadd.f32 %v5112, %v2381
    %v5524 = vadd.f32 %v5366, %v2385
    %v5525 = vadd.f32 %v5116, %v2377
    %v5526 = vadd.f32 %v5118, %v2381
    %v5527 = vadd.f32 %v5371, %v2385
    %v5528 = vadd.f32 %v5122, %v2377
    %v5529 = vadd.f32 %v5124, %v2381
    %v5530 = vadd.f32 %v5376, %v2385
    %v5531 = vadd.f32 %v5128, %v2377
    %v5532 = vadd.f32 %v5130, %v2381
    %v5533 = vadd.f32 %v5381, %v2385
    %v5534 = vadd.f32 %v5134, %v2377
    %v5535 = vadd.f32 %v5136, %v2381
    %v5536 = vadd.f32 %v5386, %v2385
    %v5537 = vadd.f32 %v5140, %v2377
    %v5538 = vadd.f32 %v5142, %v2381
    %v5539 = vadd.f32 %v5391, %v2385
    %v5540 = vadd.f32 %v5146, %v2377
    %v5541 = vadd.f32 %v5148, %v2381
    %v5542 = vadd.f32 %v5396, %v2385
    %v5543 = vadd.f32 %v5152, %v2377
    %v5544 = vadd.f32 %v5154, %v2381
    %v5545 = vadd.f32 %v5401, %v2385
    %v5546 = vadd.f32 %v5158, %v2377
    %v5547 = vadd.f32 %v5160, %v2381
    %v5548 = vadd.f32 %v5406, %v2385
    %v5549 = vadd.f32 %v5164, %v2377
    %v5550 = vadd.f32 %v5166, %v2381
    %v5551 = vadd.f32 %v5411, %v2385
    %v5552 = vadd.f32 %v5170, %v2377
    %v5553 = vadd.f32 %v5172, %v2381
    %v5554 = vadd.f32 %v5416, %v2385
    %v5555 = vadd.f32 %v5176, %v2377
    %v5556 = vadd.f32 %v5178, %v2381
    %v5557 = vadd.f32 %v5421, %v2385
    %v5558 = vadd.f32 %v5182, %v2377
    %v5559 = vadd.f32 %v5184, %v2381
    %v5560 = vadd.f32 %v5426, %v2385
    %v5561 = vadd.f32 %v5188, %v2377
    %v5562 = vadd.f32 %v5190, %v2381
    %v5563 = vadd.f32 %v5431, %v2385
    %v5564 = vadd.f32 %v5194, %v2377
    %v5565 = vadd.f32 %v5196, %v2381
    %v5566 = vadd.f32 %v5436, %v2385
    %v5567 = vadd.f32 %v5200, %v2377
    %v5568 = vadd.f32 %v5202, %v2381
    %v5569 = vadd.f32 %v5441, %v2385
    %v5570 = vadd.f32 %v5206, %v2377
    %v5571 = vadd.f32 %v5208, %v2381
    %v5572 = vadd.f32 %v5446, %v2385
    %v5573 = vadd.f32 %v5212, %v2377
    %v5574 = vadd.f32 %v5214, %v2381
    %v5575 = vadd.f32 %v5451, %v2385
    %v5576 = vadd.f32 %v5218, %v2377
    %v5577 = vadd.f32 %v5220, %v2381
    %v5578 = vadd.f32 %v5456, %v2385
    %v5579 = vadd.f32 %v5224, %v2377
    %v5580 = vadd.f32 %v5226, %v2381
    %v5581 = vadd.f32 %v5461, %v2385
    %v5582 = vadd.f32 %v5230, %v2377
    %v5583 = vadd.f32 %v5232, %v2381
    %v5584 = vadd.f32 %v5466, %v2385
    %v5585 = vadd.f32 %v5236, %v2377
    %v5586 = vadd.f32 %v5238, %v2381
    %v5587 = vadd.f32 %v5471, %v2385
    %v5588 = vadd.f32 %v5242, %v2377
    %v5589 = vadd.f32 %v5244, %v2381
    %v5590 = vadd.f32 %v5476, %v2385
    %v5591 = vadd.f32 %v5248, %v2377
    %v5592 = vadd.f32 %v5250, %v2381
    %v5593 = vadd.f32 %v5481, %v2385
    %v5594 = vadd.f32 %v5254, %v2377
    %v5595 = vadd.f32 %v5256, %v2381
    %v5596 = vadd.f32 %v5486, %v2385
    %v5597 = vadd.f32 %v5260, %v2377
    %v5598 = vadd.f32 %v5262, %v2381
    %v5599 = vadd.f32 %v5491, %v2385
    %v5600 = vadd.f32 %v5266, %v2377
    %v5601 = vadd.f32 %v5268, %v2381
    %v5602 = vadd.f32 %v5496, %v2385
    %v5603 = vadd.f32 %v5272, %v2377
    %v5604 = vadd.f32 %v5274, %v2381
    %v5605 = vadd.f32 %v5501, %v2385
    %v5606 = vadd.f32 %v5278, %v2377
    %v5607 = vadd.f32 %v5280, %v2381
    %v5608 = vadd.f32 %v5506, %v2385
    %v5609 = vadd.f32 %v5284, %v2377
    %v5610 = vadd.f32 %v5286, %v2381
    %v5611 = vadd.f32 %v5511, %v2385
    %v5612 = vadd.f32 %v5290, %v2377
    %v5613 = vadd.f32 %v5292, %v2381
    %v5614 = vadd.f32 %v5516, %v2385
    %5615 = vmatprep.subr.mxu0 %v400
    %5616 = vmatpush1.msra.mxu0 %v399
    %5617 = vmatprep.subr.mxu0 %v403
    %5618 = vmatpush1.msra.mxu0 %v402
    %5619 = vmatprep.subr.mxu0 %v406
    %5620 = vmatpush1.msra.mxu0 %v405
    %5621 = vmatprep.subr.mxu0 %v409
    %5622 = vmatpush1.msra.mxu0 %v408
    %5623 = vmatprep.subr.mxu0 %v412
    %5624 = vmatpush1.msra.mxu0 %v411
    %5625 = vmatprep.subr.mxu0 %v415
    %5626 = vmatpush1.msra.mxu0 %v414
    %5627 = vmatprep.subr.mxu0 %v418
    %5628 = vmatpush1.msra.mxu0 %v417
    %5629 = vmatprep.subr.mxu0 %v421
    %5630 = vmatpush1.msra.mxu0 %v420
    %5631 = vmatprep.subr.mxu0 %v424
    %5632 = vmatpush1.msra.mxu0 %v423
    %5633 = vmatprep.subr.mxu0 %v427
    %5634 = vmatpush1.msra.mxu0 %v426
    %5635 = vmatprep.subr.mxu0 %v430
    %5636 = vmatpush1.msra.mxu0 %v429
    %5637 = vmatprep.subr.mxu0 %v433
    %5638 = vmatpush1.msra.mxu0 %v432
    %5639 = vmatprep.subr.mxu0 %v436
    %5640 = vmatpush1.msra.mxu0 %v435
    %5641 = vmatprep.subr.mxu0 %v439
    %5642 = vmatpush1.msra.mxu0 %v438
    %5643 = vmatprep.subr.mxu0 %v442
    %5644 = vmatpush1.msra.mxu0 %v441
    %5645 = vmatprep.subr.mxu0 %v445
    %5646 = vmatpush1.msra.mxu0 %v444
    %5647 = vmatprep.subr.mxu0 0.0
    %5648 = vmatpush1.msra.mxu0 0.0
    %5649 = vmatprep.subr.mxu0 0.0
    %5650 = vmatpush1.msra.mxu0 0.0
    %5651 = vmatprep.subr.mxu0 0.0
    %5652 = vmatpush1.msra.mxu0 0.0
    %5653 = vmatprep.subr.mxu0 0.0
    %5654 = vmatpush1.msra.mxu0 0.0
    %5655 = vmatprep.subr.mxu0 0.0
    %5656 = vmatpush1.msra.mxu0 0.0
    %5657 = vmatprep.subr.mxu0 0.0
    %5658 = vmatpush1.msra.mxu0 0.0
    %5659 = vmatprep.subr.mxu0 0.0
    %5660 = vmatpush1.msra.mxu0 0.0
    %5661 = vmatprep.subr.mxu0 0.0
    %5662 = vmatpush1.msra.mxu0 0.0
    %5663 = vmatprep.subr.mxu0 0.0
    %5664 = vmatpush1.msra.mxu0 0.0
    %5665 = vmatprep.subr.mxu0 0.0
    %5666 = vmatpush1.msra.mxu0 0.0
    %5667 = vmatprep.subr.mxu0 0.0
    %5668 = vmatpush1.msra.mxu0 0.0
    %5669 = vmatprep.subr.mxu0 0.0
    %5670 = vmatpush1.msra.mxu0 0.0
    %5671 = vmatprep.subr.mxu0 0.0
    %5672 = vmatpush1.msra.mxu0 0.0
    %5673 = vmatprep.subr.mxu0 0.0
    %5674 = vmatpush1.msra.mxu0 0.0
    %5675 = vmatprep.subr.mxu0 0.0
    %5676 = vmatpush1.msra.mxu0 0.0
    %5677 = vmatprep.subr.mxu0 0.0
    %5678 = vmatpush1.msra.mxu0 0.0
    %5679 = vmatprep.mubr.f32.mxu0 0.0
    %5680 = vmatmul.mubr.f32.gmra.mrb[0].mxu0 %v3623
    %v5681 = vpop.f32.mrb[0].mxu0
    %v5682 = vadd.f32 %v2489, %v5681
    %v5683 = vpop.f32.mrb[0].mxu0
    %v5684 = vadd.f32 %v2493, %v5683
    %5685 = vmatprep.mubr.f32.mxu0 0.0
    %5686 = vmatmul.mubr.f32.gmra.mrb[0].mxu0 %v3624
    %v5687 = vpop.f32.mrb[0].mxu0
    %v5688 = vadd.f32 %v2489, %v5687
    %v5689 = vpop.f32.mrb[0].mxu0
    %v5690 = vadd.f32 %v2493, %v5689
    %5691 = vmatprep.mubr.f32.mxu0 0.0
    %5692 = vmatmul.mubr.f32.gmra.mrb[0].mxu0 %v3625
    %v5693 = vpop.f32.mrb[0].mxu0
    %v5694 = vadd.f32 %v2489, %v5693
    %v5695 = vpop.f32.mrb[0].mxu0
    %v5696 = vadd.f32 %v2493, %v5695
    %5697 = vmatprep.mubr.f32.mxu0 0.0
    %5698 = vmatmul.mubr.f32.gmra.mrb[0].mxu0 %v3626
    %v5699 = vpop.f32.mrb[0].mxu0
    %v5700 = vadd.f32 %v2489, %v5699
    %v5701 = vpop.f32.mrb[0].mxu0
    %v5702 = vadd.f32 %v2493, %v5701
    %5703 = vmatprep.mubr.f32.mxu0 0.0
    %5704 = vmatmul.mubr.f32.gmra.mrb[0].mxu0 %v3627
    %v5705 = vpop.f32.mrb[0].mxu0
    %v5706 = vadd.f32 %v2489, %v5705
    %v5707 = vpop.f32.mrb[0].mxu0
    %v5708 = vadd.f32 %v2493, %v5707
    %5709 = vmatprep.mubr.f32.mxu0 0.0
    %5710 = vmatmul.mubr.f32.gmra.mrb[0].mxu0 %v3628
    %v5711 = vpop.f32.mrb[0].mxu0
    %v5712 = vadd.f32 %v2489, %v5711
    %v5713 = vpop.f32.mrb[0].mxu0
    %v5714 = vadd.f32 %v2493, %v5713
    %5715 = vmatprep.mubr.f32.mxu0 0.0
    %5716 = vmatmul.mubr.f32.gmra.mrb[0].mxu0 %v3629
    %v5717 = vpop.f32.mrb[0].mxu0
    %v5718 = vadd.f32 %v2489, %v5717
    %v5719 = vpop.f32.mrb[0].mxu0
    %v5720 = vadd.f32 %v2493, %v5719
    %5721 = vmatprep.mubr.f32.mxu0 0.0
    %5722 = vmatmul.mubr.f32.gmra.mrb[0].mxu0 %v3630
    %v5723 = vpop.f32.mrb[0].mxu0
    %v5724 = vadd.f32 %v2489, %v5723
    %v5725 = vpop.f32.mrb[0].mxu0
    %v5726 = vadd.f32 %v2493, %v5725
    %5727 = vmatprep.mubr.f32.mxu0 0.0
    %5728 = vmatmul.mubr.f32.gmra.mrb[0].mxu0 %v3631
    %v5729 = vpop.f32.mrb[0].mxu0
    %v5730 = vadd.f32 %v2489, %v5729
    %v5731 = vpop.f32.mrb[0].mxu0
    %v5732 = vadd.f32 %v2493, %v5731
    %5733 = vmatprep.mubr.f32.mxu0 0.0
    %5734 = vmatmul.mubr.f32.gmra.mrb[0].mxu0 %v3632
    %v5735 = vpop.f32.mrb[0].mxu0
    %v5736 = vadd.f32 %v2489, %v5735
    %v5737 = vpop.f32.mrb[0].mxu0
    %v5738 = vadd.f32 %v2493, %v5737
    %5739 = vmatprep.mubr.f32.mxu0 0.0
    %5740 = vmatmul.mubr.f32.gmra.mrb[0].mxu0 %v3633
    %v5741 = vpop.f32.mrb[0].mxu0
    %v5742 = vadd.f32 %v2489, %v5741
    %v5743 = vpop.f32.mrb[0].mxu0
    %v5744 = vadd.f32 %v2493, %v5743
    %5745 = vmatprep.mubr.f32.mxu0 0.0
    %5746 = vmatmul.mubr.f32.gmra.mrb[0].mxu0 %v3634
    %v5747 = vpop.f32.mrb[0].mxu0
    %v5748 = vadd.f32 %v2489, %v5747
    %v5749 = vpop.f32.mrb[0].mxu0
    %v5750 = vadd.f32 %v2493, %v5749
    %5751 = vmatprep.mubr.f32.mxu0 0.0
    %5752 = vmatmul.mubr.f32.gmra.mrb[0].mxu0 %v3635
    %v5753 = vpop.f32.mrb[0].mxu0
    %v5754 = vadd.f32 %v2489, %v5753
    %v5755 = vpop.f32.mrb[0].mxu0
    %v5756 = vadd.f32 %v2493, %v5755
    %5757 = vmatprep.mubr.f32.mxu0 0.0
    %5758 = vmatmul.mubr.f32.gmra.mrb[0].mxu0 %v3636
    %v5759 = vpop.f32.mrb[0].mxu0
    %v5760 = vadd.f32 %v2489, %v5759
    %v5761 = vpop.f32.mrb[0].mxu0
    %v5762 = vadd.f32 %v2493, %v5761
    %5763 = vmatprep.mubr.f32.mxu0 0.0
    %5764 = vmatmul.mubr.f32.gmra.mrb[0].mxu0 %v3637
    %v5765 = vpop.f32.mrb[0].mxu0
    %v5766 = vadd.f32 %v2489, %v5765
    %v5767 = vpop.f32.mrb[0].mxu0
    %v5768 = vadd.f32 %v2493, %v5767
    %5769 = vmatprep.mubr.f32.mxu0 0.0
    %5770 = vmatmul.mubr.f32.gmra.mrb[0].mxu0 %v3638
    %v5771 = vpop.f32.mrb[0].mxu0
    %v5772 = vadd.f32 %v2489, %v5771
    %v5773 = vpop.f32.mrb[0].mxu0
    %v5774 = vadd.f32 %v2493, %v5773
    %5775 = vmatprep.mubr.f32.mxu0 0.0
    %5776 = vmatmul.mubr.f32.gmra.mrb[0].mxu0 %v3639
    %v5777 = vpop.f32.mrb[0].mxu0
    %v5778 = vadd.f32 %v2489, %v5777
    %v5779 = vpop.f32.mrb[0].mxu0
    %v5780 = vadd.f32 %v2493, %v5779
    %5781 = vmatprep.mubr.f32.mxu0 0.0
    %5782 = vmatmul.mubr.f32.gmra.mrb[0].mxu0 %v3640
    %v5783 = vpop.f32.mrb[0].mxu0
    %v5784 = vadd.f32 %v2489, %v5783
    %v5785 = vpop.f32.mrb[0].mxu0
    %v5786 = vadd.f32 %v2493, %v5785
    %5787 = vmatprep.mubr.f32.mxu0 0.0
    %5788 = vmatmul.mubr.f32.gmra.mrb[0].mxu0 %v3641
    %v5789 = vpop.f32.mrb[0].mxu0
    %v5790 = vadd.f32 %v2489, %v5789
    %v5791 = vpop.f32.mrb[0].mxu0
    %v5792 = vadd.f32 %v2493, %v5791
    %5793 = vmatprep.mubr.f32.mxu0 0.0
    %5794 = vmatmul.mubr.f32.gmra.mrb[0].mxu0 %v3642
    %v5795 = vpop.f32.mrb[0].mxu0
    %v5796 = vadd.f32 %v2489, %v5795
    %v5797 = vpop.f32.mrb[0].mxu0
    %v5798 = vadd.f32 %v2493, %v5797
    %5799 = vmatprep.mubr.f32.mxu0 0.0
    %5800 = vmatmul.mubr.f32.gmra.mrb[0].mxu0 %v3643
    %v5801 = vpop.f32.mrb[0].mxu0
    %v5802 = vadd.f32 %v2489, %v5801
    %v5803 = vpop.f32.mrb[0].mxu0
    %v5804 = vadd.f32 %v2493, %v5803
    %5805 = vmatprep.mubr.f32.mxu0 0.0
    %5806 = vmatmul.mubr.f32.gmra.mrb[0].mxu0 %v3644
    %v5807 = vpop.f32.mrb[0].mxu0
    %v5808 = vadd.f32 %v2489, %v5807
    %v5809 = vpop.f32.mrb[0].mxu0
    %v5810 = vadd.f32 %v2493, %v5809
    %5811 = vmatprep.mubr.f32.mxu0 0.0
    %5812 = vmatmul.mubr.f32.gmra.mrb[0].mxu0 %v3645
    %v5813 = vpop.f32.mrb[0].mxu0
    %v5814 = vadd.f32 %v2489, %v5813
    %v5815 = vpop.f32.mrb[0].mxu0
    %v5816 = vadd.f32 %v2493, %v5815
    %5817 = vmatprep.mubr.f32.mxu0 0.0
    %5818 = vmatmul.mubr.f32.gmra.mrb[0].mxu0 %v3646
    %v5819 = vpop.f32.mrb[0].mxu0
    %v5820 = vadd.f32 %v2489, %v5819
    %v5821 = vpop.f32.mrb[0].mxu0
    %v5822 = vadd.f32 %v2493, %v5821
    %5823 = vmatprep.mubr.f32.mxu0 0.0
    %5824 = vmatmul.mubr.f32.gmra.mrb[0].mxu0 %v3647
    %v5825 = vpop.f32.mrb[0].mxu0
    %v5826 = vadd.f32 %v2489, %v5825
    %v5827 = vpop.f32.mrb[0].mxu0
    %v5828 = vadd.f32 %v2493, %v5827
    %5829 = vmatprep.mubr.f32.mxu0 0.0
    %5830 = vmatmul.mubr.f32.gmra.mrb[0].mxu0 %v3648
    %v5831 = vpop.f32.mrb[0].mxu0
    %v5832 = vadd.f32 %v2489, %v5831
    %v5833 = vpop.f32.mrb[0].mxu0
    %v5834 = vadd.f32 %v2493, %v5833
    %5835 = vmatprep.mubr.f32.mxu0 0.0
    %5836 = vmatmul.mubr.f32.gmra.mrb[0].mxu0 %v3649
    %v5837 = vpop.f32.mrb[0].mxu0
    %v5838 = vadd.f32 %v2489, %v5837
    %v5839 = vpop.f32.mrb[0].mxu0
    %v5840 = vadd.f32 %v2493, %v5839
    %5841 = vmatprep.mubr.f32.mxu0 0.0
    %5842 = vmatmul.mubr.f32.gmra.mrb[0].mxu0 %v3650
    %v5843 = vpop.f32.mrb[0].mxu0
    %v5844 = vadd.f32 %v2489, %v5843
    %v5845 = vpop.f32.mrb[0].mxu0
    %v5846 = vadd.f32 %v2493, %v5845
    %5847 = vmatprep.mubr.f32.mxu0 0.0
    %5848 = vmatmul.mubr.f32.gmra.mrb[0].mxu0 %v3651
    %v5849 = vpop.f32.mrb[0].mxu0
    %v5850 = vadd.f32 %v2489, %v5849
    %v5851 = vpop.f32.mrb[0].mxu0
    %v5852 = vadd.f32 %v2493, %v5851
    %5853 = vmatprep.mubr.f32.mxu0 0.0
    %5854 = vmatmul.mubr.f32.gmra.mrb[0].mxu0 %v3652
    %v5855 = vpop.f32.mrb[0].mxu0
    %v5856 = vadd.f32 %v2489, %v5855
    %v5857 = vpop.f32.mrb[0].mxu0
    %v5858 = vadd.f32 %v2493, %v5857
    %5859 = vmatprep.mubr.f32.mxu0 0.0
    %5860 = vmatmul.mubr.f32.gmra.mrb[0].mxu0 %v3653
    %v5861 = vpop.f32.mrb[0].mxu0
    %v5862 = vadd.f32 %v2489, %v5861
    %v5863 = vpop.f32.mrb[0].mxu0
    %v5864 = vadd.f32 %v2493, %v5863
    %5865 = vmatprep.mubr.f32.mxu0 0.0
    %5866 = vmatmul.mubr.f32.gmra.mrb[0].mxu0 %v3654
    %v5867 = vpop.f32.mrb[0].mxu0
    %v5868 = vadd.f32 %v2489, %v5867
    %v5869 = vpop.f32.mrb[0].mxu0
    %v5870 = vadd.f32 %v2493, %v5869
    %5871 = vdwg.mxu0
    %5872 = vmatprep.subr.mxu0 0.0
    %5873 = vmatpush1.msra.mxu0 %v401
    %5874 = vmatprep.subr.mxu0 0.0
    %5875 = vmatpush1.msra.mxu0 %v404
    %5876 = vmatprep.subr.mxu0 0.0
    %5877 = vmatpush1.msra.mxu0 %v407
    %5878 = vmatprep.subr.mxu0 0.0
    %5879 = vmatpush1.msra.mxu0 %v410
    %5880 = vmatprep.subr.mxu0 0.0
    %5881 = vmatpush1.msra.mxu0 %v413
    %5882 = vmatprep.subr.mxu0 0.0
    %5883 = vmatpush1.msra.mxu0 %v416
    %5884 = vmatprep.subr.mxu0 0.0
    %5885 = vmatpush1.msra.mxu0 %v419
    %5886 = vmatprep.subr.mxu0 0.0
    %5887 = vmatpush1.msra.mxu0 %v422
    %5888 = vmatprep.subr.mxu0 0.0
    %5889 = vmatpush1.msra.mxu0 %v425
    %5890 = vmatprep.subr.mxu0 0.0
    %5891 = vmatpush1.msra.mxu0 %v428
    %5892 = vmatprep.subr.mxu0 0.0
    %5893 = vmatpush1.msra.mxu0 %v431
    %5894 = vmatprep.subr.mxu0 0.0
    %5895 = vmatpush1.msra.mxu0 %v434
    %5896 = vmatprep.subr.mxu0 0.0
    %5897 = vmatpush1.msra.mxu0 %v437
    %5898 = vmatprep.subr.mxu0 0.0
    %5899 = vmatpush1.msra.mxu0 %v440
    %5900 = vmatprep.subr.mxu0 0.0
    %5901 = vmatpush1.msra.mxu0 %v443
    %5902 = vmatprep.subr.mxu0 0.0
    %5903 = vmatpush1.msra.mxu0 %v446
    %5904 = vmatprep.subr.mxu0 0.0
    %5905 = vmatpush1.msra.mxu0 0.0
    %5906 = vmatprep.subr.mxu0 0.0
    %5907 = vmatpush1.msra.mxu0 0.0
    %5908 = vmatprep.subr.mxu0 0.0
    %5909 = vmatpush1.msra.mxu0 0.0
    %5910 = vmatprep.subr.mxu0 0.0
    %5911 = vmatpush1.msra.mxu0 0.0
    %5912 = vmatprep.subr.mxu0 0.0
    %5913 = vmatpush1.msra.mxu0 0.0
    %5914 = vmatprep.subr.mxu0 0.0
    %5915 = vmatpush1.msra.mxu0 0.0
    %5916 = vmatprep.subr.mxu0 0.0
    %5917 = vmatpush1.msra.mxu0 0.0
    %5918 = vmatprep.subr.mxu0 0.0
    %5919 = vmatpush1.msra.mxu0 0.0
    %5920 = vmatprep.subr.mxu0 0.0
    %5921 = vmatpush1.msra.mxu0 0.0
    %5922 = vmatprep.subr.mxu0 0.0
    %5923 = vmatpush1.msra.mxu0 0.0
    %5924 = vmatprep.subr.mxu0 0.0
    %5925 = vmatpush1.msra.mxu0 0.0
    %5926 = vmatprep.subr.mxu0 0.0
    %5927 = vmatpush1.msra.mxu0 0.0
    %5928 = vmatprep.subr.mxu0 0.0
    %5929 = vmatpush1.msra.mxu0 0.0
    %5930 = vmatprep.subr.mxu0 0.0
    %5931 = vmatpush1.msra.mxu0 0.0
    %5932 = vmatprep.subr.mxu0 0.0
    %5933 = vmatpush1.msra.mxu0 0.0
    %5934 = vmatprep.subr.mxu0 0.0
    %5935 = vmatpush1.msra.mxu0 0.0
    %5936 = vmatprep.mubr.f32.mxu0 0.0
    %5937 = vmatmul.mubr.f32.gmra.mrb[0].mxu0 %v3623
    %v5938 = vpop.f32.mrb[0].mxu0
    %v5939 = vadd.f32 %v2497, %v5938
    %v5940 = vpop.f32.mrb[0].mxu0
    %5941 = vmatprep.mubr.f32.mxu0 0.0
    %5942 = vmatmul.mubr.f32.gmra.mrb[0].mxu0 %v3624
    %v5943 = vpop.f32.mrb[0].mxu0
    %v5944 = vadd.f32 %v2497, %v5943
    %v5945 = vpop.f32.mrb[0].mxu0
    %5946 = vmatprep.mubr.f32.mxu0 0.0
    %5947 = vmatmul.mubr.f32.gmra.mrb[0].mxu0 %v3625
    %v5948 = vpop.f32.mrb[0].mxu0
    %v5949 = vadd.f32 %v2497, %v5948
    %v5950 = vpop.f32.mrb[0].mxu0
    %5951 = vmatprep.mubr.f32.mxu0 0.0
    %5952 = vmatmul.mubr.f32.gmra.mrb[0].mxu0 %v3626
    %v5953 = vpop.f32.mrb[0].mxu0
    %v5954 = vadd.f32 %v2497, %v5953
    %v5955 = vpop.f32.mrb[0].mxu0
    %5956 = vmatprep.mubr.f32.mxu0 0.0
    %5957 = vmatmul.mubr.f32.gmra.mrb[0].mxu0 %v3627
    %v5958 = vpop.f32.mrb[0].mxu0
    %v5959 = vadd.f32 %v2497, %v5958
    %v5960 = vpop.f32.mrb[0].mxu0
    %5961 = vmatprep.mubr.f32.mxu0 0.0
    %5962 = vmatmul.mubr.f32.gmra.mrb[0].mxu0 %v3628
    %v5963 = vpop.f32.mrb[0].mxu0
    %v5964 = vadd.f32 %v2497, %v5963
    %v5965 = vpop.f32.mrb[0].mxu0
    %5966 = vmatprep.mubr.f32.mxu0 0.0
    %5967 = vmatmul.mubr.f32.gmra.mrb[0].mxu0 %v3629
    %v5968 = vpop.f32.mrb[0].mxu0
    %v5969 = vadd.f32 %v2497, %v5968
    %v5970 = vpop.f32.mrb[0].mxu0
    %5971 = vmatprep.mubr.f32.mxu0 0.0
    %5972 = vmatmul.mubr.f32.gmra.mrb[0].mxu0 %v3630
    %v5973 = vpop.f32.mrb[0].mxu0
    %v5974 = vadd.f32 %v2497, %v5973
    %v5975 = vpop.f32.mrb[0].mxu0
    %5976 = vmatprep.mubr.f32.mxu0 0.0
    %5977 = vmatmul.mubr.f32.gmra.mrb[0].mxu0 %v3631
    %v5978 = vpop.f32.mrb[0].mxu0
    %v5979 = vadd.f32 %v2497, %v5978
    %v5980 = vpop.f32.mrb[0].mxu0
    %5981 = vmatprep.mubr.f32.mxu0 0.0
    %5982 = vmatmul.mubr.f32.gmra.mrb[0].mxu0 %v3632
    %v5983 = vpop.f32.mrb[0].mxu0
    %v5984 = vadd.f32 %v2497, %v5983
    %v5985 = vpop.f32.mrb[0].mxu0
    %5986 = vmatprep.mubr.f32.mxu0 0.0
    %5987 = vmatmul.mubr.f32.gmra.mrb[0].mxu0 %v3633
    %v5988 = vpop.f32.mrb[0].mxu0
    %v5989 = vadd.f32 %v2497, %v5988
    %v5990 = vpop.f32.mrb[0].mxu0
    %5991 = vmatprep.mubr.f32.mxu0 0.0
    %5992 = vmatmul.mubr.f32.gmra.mrb[0].mxu0 %v3634
    %v5993 = vpop.f32.mrb[0].mxu0
    %v5994 = vadd.f32 %v2497, %v5993
    %v5995 = vpop.f32.mrb[0].mxu0
    %5996 = vmatprep.mubr.f32.mxu0 0.0
    %5997 = vmatmul.mubr.f32.gmra.mrb[0].mxu0 %v3635
    %v5998 = vpop.f32.mrb[0].mxu0
    %v5999 = vadd.f32 %v2497, %v5998
    %v6000 = vpop.f32.mrb[0].mxu0
    %6001 = vmatprep.mubr.f32.mxu0 0.0
    %6002 = vmatmul.mubr.f32.gmra.mrb[0].mxu0 %v3636
    %v6003 = vpop.f32.mrb[0].mxu0
    %v6004 = vadd.f32 %v2497, %v6003
    %v6005 = vpop.f32.mrb[0].mxu0
    %6006 = vmatprep.mubr.f32.mxu0 0.0
    %6007 = vmatmul.mubr.f32.gmra.mrb[0].mxu0 %v3637
    %v6008 = vpop.f32.mrb[0].mxu0
    %v6009 = vadd.f32 %v2497, %v6008
    %v6010 = vpop.f32.mrb[0].mxu0
    %6011 = vmatprep.mubr.f32.mxu0 0.0
    %6012 = vmatmul.mubr.f32.gmra.mrb[0].mxu0 %v3638
    %v6013 = vpop.f32.mrb[0].mxu0
    %v6014 = vadd.f32 %v2497, %v6013
    %v6015 = vpop.f32.mrb[0].mxu0
    %6016 = vmatprep.mubr.f32.mxu0 0.0
    %6017 = vmatmul.mubr.f32.gmra.mrb[0].mxu0 %v3639
    %v6018 = vpop.f32.mrb[0].mxu0
    %v6019 = vadd.f32 %v2497, %v6018
    %v6020 = vpop.f32.mrb[0].mxu0
    %6021 = vmatprep.mubr.f32.mxu0 0.0
    %6022 = vmatmul.mubr.f32.gmra.mrb[0].mxu0 %v3640
    %v6023 = vpop.f32.mrb[0].mxu0
    %v6024 = vadd.f32 %v2497, %v6023
    %v6025 = vpop.f32.mrb[0].mxu0
    %6026 = vmatprep.mubr.f32.mxu0 0.0
    %6027 = vmatmul.mubr.f32.gmra.mrb[0].mxu0 %v3641
    %v6028 = vpop.f32.mrb[0].mxu0
    %v6029 = vadd.f32 %v2497, %v6028
    %v6030 = vpop.f32.mrb[0].mxu0
    %6031 = vmatprep.mubr.f32.mxu0 0.0
    %6032 = vmatmul.mubr.f32.gmra.mrb[0].mxu0 %v3642
    %v6033 = vpop.f32.mrb[0].mxu0
    %v6034 = vadd.f32 %v2497, %v6033
    %v6035 = vpop.f32.mrb[0].mxu0
    %6036 = vmatprep.mubr.f32.mxu0 0.0
    %6037 = vmatmul.mubr.f32.gmra.mrb[0].mxu0 %v3643
    %v6038 = vpop.f32.mrb[0].mxu0
    %v6039 = vadd.f32 %v2497, %v6038
    %v6040 = vpop.f32.mrb[0].mxu0
    %6041 = vmatprep.mubr.f32.mxu0 0.0
    %6042 = vmatmul.mubr.f32.gmra.mrb[0].mxu0 %v3644
    %v6043 = vpop.f32.mrb[0].mxu0
    %v6044 = vadd.f32 %v2497, %v6043
    %v6045 = vpop.f32.mrb[0].mxu0
    %6046 = vmatprep.mubr.f32.mxu0 0.0
    %6047 = vmatmul.mubr.f32.gmra.mrb[0].mxu0 %v3645
    %v6048 = vpop.f32.mrb[0].mxu0
    %v6049 = vadd.f32 %v2497, %v6048
    %v6050 = vpop.f32.mrb[0].mxu0
    %6051 = vmatprep.mubr.f32.mxu0 0.0
    %6052 = vmatmul.mubr.f32.gmra.mrb[0].mxu0 %v3646
    %v6053 = vpop.f32.mrb[0].mxu0
    %v6054 = vadd.f32 %v2497, %v6053
    %v6055 = vpop.f32.mrb[0].mxu0
    %6056 = vmatprep.mubr.f32.mxu0 0.0
    %6057 = vmatmul.mubr.f32.gmra.mrb[0].mxu0 %v3647
    %v6058 = vpop.f32.mrb[0].mxu0
    %v6059 = vadd.f32 %v2497, %v6058
    %v6060 = vpop.f32.mrb[0].mxu0
    %6061 = vmatprep.mubr.f32.mxu0 0.0
    %6062 = vmatmul.mubr.f32.gmra.mrb[0].mxu0 %v3648
    %v6063 = vpop.f32.mrb[0].mxu0
    %v6064 = vadd.f32 %v2497, %v6063
    %v6065 = vpop.f32.mrb[0].mxu0
    %6066 = vmatprep.mubr.f32.mxu0 0.0
    %6067 = vmatmul.mubr.f32.gmra.mrb[0].mxu0 %v3649
    %v6068 = vpop.f32.mrb[0].mxu0
    %v6069 = vadd.f32 %v2497, %v6068
    %v6070 = vpop.f32.mrb[0].mxu0
    %6071 = vmatprep.mubr.f32.mxu0 0.0
    %6072 = vmatmul.mubr.f32.gmra.mrb[0].mxu0 %v3650
    %v6073 = vpop.f32.mrb[0].mxu0
    %v6074 = vadd.f32 %v2497, %v6073
    %v6075 = vpop.f32.mrb[0].mxu0
    %6076 = vmatprep.mubr.f32.mxu0 0.0
    %6077 = vmatmul.mubr.f32.gmra.mrb[0].mxu0 %v3651
    %v6078 = vpop.f32.mrb[0].mxu0
    %v6079 = vadd.f32 %v2497, %v6078
    %v6080 = vpop.f32.mrb[0].mxu0
    %6081 = vmatprep.mubr.f32.mxu0 0.0
    %6082 = vmatmul.mubr.f32.gmra.mrb[0].mxu0 %v3652
    %v6083 = vpop.f32.mrb[0].mxu0
    %v6084 = vadd.f32 %v2497, %v6083
    %v6085 = vpop.f32.mrb[0].mxu0
    %6086 = vmatprep.mubr.f32.mxu0 0.0
    %6087 = vmatmul.mubr.f32.gmra.mrb[0].mxu0 %v3653
    %v6088 = vpop.f32.mrb[0].mxu0
    %v6089 = vadd.f32 %v2497, %v6088
    %v6090 = vpop.f32.mrb[0].mxu0
    %6091 = vmatprep.mubr.f32.mxu0 0.0
    %6092 = vmatmul.mubr.f32.gmra.mrb[0].mxu0 %v3654
    %v6093 = vpop.f32.mrb[0].mxu0
    %v6094 = vadd.f32 %v2497, %v6093
    %v6095 = vpop.f32.mrb[0].mxu0
    %6096 = vdwg.mxu0
    %v6097 = vadd.f32 %v5519, %v5682
    %v6098 = vadd.f32 %v5522, %v5688
    %v6099 = vadd.f32 %v5525, %v5694
    %v6100 = vadd.f32 %v5528, %v5700
    %v6101 = vadd.f32 %v5531, %v5706
    %v6102 = vadd.f32 %v5534, %v5712
    %v6103 = vadd.f32 %v5537, %v5718
    %v6104 = vadd.f32 %v5540, %v5724
    %v6105 = vadd.f32 %v5543, %v5730
    %v6106 = vadd.f32 %v5546, %v5736
    %v6107 = vadd.f32 %v5549, %v5742
    %v6108 = vadd.f32 %v5552, %v5748
    %v6109 = vadd.f32 %v5555, %v5754
    %v6110 = vadd.f32 %v5558, %v5760
    %v6111 = vadd.f32 %v5561, %v5766
    %v6112 = vadd.f32 %v5564, %v5772
    %v6113 = vadd.f32 %v5567, %v5778
    %v6114 = vadd.f32 %v5570, %v5784
    %v6115 = vadd.f32 %v5573, %v5790
    %v6116 = vadd.f32 %v5576, %v5796
    %v6117 = vadd.f32 %v5579, %v5802
    %v6118 = vadd.f32 %v5582, %v5808
    %v6119 = vadd.f32 %v5585, %v5814
    %v6120 = vadd.f32 %v5588, %v5820
    %v6121 = vadd.f32 %v5591, %v5826
    %v6122 = vadd.f32 %v5594, %v5832
    %v6123 = vadd.f32 %v5597, %v5838
    %v6124 = vadd.f32 %v5600, %v5844
    %v6125 = vadd.f32 %v5603, %v5850
    %v6126 = vadd.f32 %v5606, %v5856
    %v6127 = vadd.f32 %v5609, %v5862
    %v6128 = vadd.f32 %v5612, %v5868
    %v6129 = vxor.u32 %v6097, 2147483648
    %v6130 = vxor.u32 %v6098, 2147483648
    %v6131 = vxor.u32 %v6099, 2147483648
    %v6132 = vxor.u32 %v6100, 2147483648
    %v6133 = vxor.u32 %v6101, 2147483648
    %v6134 = vxor.u32 %v6102, 2147483648
    %v6135 = vxor.u32 %v6103, 2147483648
    %v6136 = vxor.u32 %v6104, 2147483648
    %v6137 = vxor.u32 %v6105, 2147483648
    %v6138 = vxor.u32 %v6106, 2147483648
    %v6139 = vxor.u32 %v6107, 2147483648
    %v6140 = vxor.u32 %v6108, 2147483648
    %v6141 = vxor.u32 %v6109, 2147483648
    %v6142 = vxor.u32 %v6110, 2147483648
    %v6143 = vxor.u32 %v6111, 2147483648
    %v6144 = vxor.u32 %v6112, 2147483648
    %v6145 = vxor.u32 %v6113, 2147483648
    %v6146 = vxor.u32 %v6114, 2147483648
    %v6147 = vxor.u32 %v6115, 2147483648
    %v6148 = vxor.u32 %v6116, 2147483648
    %v6149 = vxor.u32 %v6117, 2147483648
    %v6150 = vxor.u32 %v6118, 2147483648
    %v6151 = vxor.u32 %v6119, 2147483648
    %v6152 = vxor.u32 %v6120, 2147483648
    %v6153 = vxor.u32 %v6121, 2147483648
    %v6154 = vxor.u32 %v6122, 2147483648
    %v6155 = vxor.u32 %v6123, 2147483648
    %v6156 = vxor.u32 %v6124, 2147483648
    %v6157 = vxor.u32 %v6125, 2147483648
    %v6158 = vxor.u32 %v6126, 2147483648
    %v6159 = vxor.u32 %v6127, 2147483648
    %v6160 = vxor.u32 %v6128, 2147483648
    %v6161 = vmul.f32 %v6129, 1.442695
    %v6162 = vpow.pop %v6161
    %v6163 = vmul.f32 %v6130, 1.442695
    %v6164 = vpow.pop %v6163
    %v6165 = vmul.f32 %v6131, 1.442695
    %v6166 = vpow.pop %v6165
    %v6167 = vmul.f32 %v6132, 1.442695
    %v6168 = vpow.pop %v6167
    %v6169 = vmul.f32 %v6133, 1.442695
    %v6170 = vpow.pop %v6169
    %v6171 = vmul.f32 %v6134, 1.442695
    %v6172 = vpow.pop %v6171
    %v6173 = vmul.f32 %v6135, 1.442695
    %v6174 = vpow.pop %v6173
    %v6175 = vmul.f32 %v6136, 1.442695
    %v6176 = vpow.pop %v6175
    %v6177 = vmul.f32 %v6137, 1.442695
    %v6178 = vpow.pop %v6177
    %v6179 = vmul.f32 %v6138, 1.442695
    %v6180 = vpow.pop %v6179
    %v6181 = vmul.f32 %v6139, 1.442695
    %v6182 = vpow.pop %v6181
    %v6183 = vmul.f32 %v6140, 1.442695
    %v6184 = vpow.pop %v6183
    %v6185 = vmul.f32 %v6141, 1.442695
    %v6186 = vpow.pop %v6185
    %v6187 = vmul.f32 %v6142, 1.442695
    %v6188 = vpow.pop %v6187
    %v6189 = vmul.f32 %v6143, 1.442695
    %v6190 = vpow.pop %v6189
    %v6191 = vmul.f32 %v6144, 1.442695
    %v6192 = vpow.pop %v6191
    %v6193 = vmul.f32 %v6145, 1.442695
    %v6194 = vpow.pop %v6193
    %v6195 = vmul.f32 %v6146, 1.442695
    %v6196 = vpow.pop %v6195
    %v6197 = vmul.f32 %v6147, 1.442695
    %v6198 = vpow.pop %v6197
    %v6199 = vmul.f32 %v6148, 1.442695
    %v6200 = vpow.pop %v6199
    %v6201 = vmul.f32 %v6149, 1.442695
    %v6202 = vpow.pop %v6201
    %v6203 = vmul.f32 %v6150, 1.442695
    %v6204 = vpow.pop %v6203
    %v6205 = vmul.f32 %v6151, 1.442695
    %v6206 = vpow.pop %v6205
    %v6207 = vmul.f32 %v6152, 1.442695
    %v6208 = vpow.pop %v6207
    %v6209 = vmul.f32 %v6153, 1.442695
    %v6210 = vpow.pop %v6209
    %v6211 = vmul.f32 %v6154, 1.442695
    %v6212 = vpow.pop %v6211
    %v6213 = vmul.f32 %v6155, 1.442695
    %v6214 = vpow.pop %v6213
    %v6215 = vmul.f32 %v6156, 1.442695
    %v6216 = vpow.pop %v6215
    %v6217 = vmul.f32 %v6157, 1.442695
    %v6218 = vpow.pop %v6217
    %v6219 = vmul.f32 %v6158, 1.442695
    %v6220 = vpow.pop %v6219
    %v6221 = vmul.f32 %v6159, 1.442695
    %v6222 = vpow.pop %v6221
    %v6223 = vmul.f32 %v6160, 1.442695
    %v6224 = vpow.pop %v6223
    %v6225 = vadd.f32 %v6162, 1.0
    %v6226 = vadd.f32 %v6164, 1.0
    %v6227 = vadd.f32 %v6166, 1.0
    %v6228 = vadd.f32 %v6168, 1.0
    %v6229 = vadd.f32 %v6170, 1.0
    %v6230 = vadd.f32 %v6172, 1.0
    %v6231 = vadd.f32 %v6174, 1.0
    %v6232 = vadd.f32 %v6176, 1.0
    %v6233 = vadd.f32 %v6178, 1.0
    %v6234 = vadd.f32 %v6180, 1.0
    %v6235 = vadd.f32 %v6182, 1.0
    %v6236 = vadd.f32 %v6184, 1.0
    %v6237 = vadd.f32 %v6186, 1.0
    %v6238 = vadd.f32 %v6188, 1.0
    %v6239 = vadd.f32 %v6190, 1.0
    %v6240 = vadd.f32 %v6192, 1.0
    %v6241 = vadd.f32 %v6194, 1.0
    %v6242 = vadd.f32 %v6196, 1.0
    %v6243 = vadd.f32 %v6198, 1.0
    %v6244 = vadd.f32 %v6200, 1.0
    %v6245 = vadd.f32 %v6202, 1.0
    %v6246 = vadd.f32 %v6204, 1.0
    %v6247 = vadd.f32 %v6206, 1.0
    %v6248 = vadd.f32 %v6208, 1.0
    %v6249 = vadd.f32 %v6210, 1.0
    %v6250 = vadd.f32 %v6212, 1.0
    %v6251 = vadd.f32 %v6214, 1.0
    %v6252 = vadd.f32 %v6216, 1.0
    %v6253 = vadd.f32 %v6218, 1.0
    %v6254 = vadd.f32 %v6220, 1.0
    %v6255 = vadd.f32 %v6222, 1.0
    %v6256 = vadd.f32 %v6224, 1.0
    %v6257 = vrcp.pop %v6225
    %v6258 = vmul.f32 1.0, %v6257
    %v6259 = vrcp.pop %v6226
    %v6260 = vmul.f32 1.0, %v6259
    %v6261 = vrcp.pop %v6227
    %v6262 = vmul.f32 1.0, %v6261
    %v6263 = vrcp.pop %v6228
    %v6264 = vmul.f32 1.0, %v6263
    %v6265 = vrcp.pop %v6229
    %v6266 = vmul.f32 1.0, %v6265
    %v6267 = vrcp.pop %v6230
    %v6268 = vmul.f32 1.0, %v6267
    %v6269 = vrcp.pop %v6231
    %v6270 = vmul.f32 1.0, %v6269
    %v6271 = vrcp.pop %v6232
    %v6272 = vmul.f32 1.0, %v6271
    %v6273 = vrcp.pop %v6233
    %v6274 = vmul.f32 1.0, %v6273
    %v6275 = vrcp.pop %v6234
    %v6276 = vmul.f32 1.0, %v6275
    %v6277 = vrcp.pop %v6235
    %v6278 = vmul.f32 1.0, %v6277
    %v6279 = vrcp.pop %v6236
    %v6280 = vmul.f32 1.0, %v6279
    %v6281 = vrcp.pop %v6237
    %v6282 = vmul.f32 1.0, %v6281
    %v6283 = vrcp.pop %v6238
    %v6284 = vmul.f32 1.0, %v6283
    %v6285 = vrcp.pop %v6239
    %v6286 = vmul.f32 1.0, %v6285
    %v6287 = vrcp.pop %v6240
    %v6288 = vmul.f32 1.0, %v6287
    %v6289 = vrcp.pop %v6241
    %v6290 = vmul.f32 1.0, %v6289
    %v6291 = vrcp.pop %v6242
    %v6292 = vmul.f32 1.0, %v6291
    %v6293 = vrcp.pop %v6243
    %v6294 = vmul.f32 1.0, %v6293
    %v6295 = vrcp.pop %v6244
    %v6296 = vmul.f32 1.0, %v6295
    %v6297 = vrcp.pop %v6245
    %v6298 = vmul.f32 1.0, %v6297
    %v6299 = vrcp.pop %v6246
    %v6300 = vmul.f32 1.0, %v6299
    %v6301 = vrcp.pop %v6247
    %v6302 = vmul.f32 1.0, %v6301
    %v6303 = vrcp.pop %v6248
    %v6304 = vmul.f32 1.0, %v6303
    %v6305 = vrcp.pop %v6249
    %v6306 = vmul.f32 1.0, %v6305
    %v6307 = vrcp.pop %v6250
    %v6308 = vmul.f32 1.0, %v6307
    %v6309 = vrcp.pop %v6251
    %v6310 = vmul.f32 1.0, %v6309
    %v6311 = vrcp.pop %v6252
    %v6312 = vmul.f32 1.0, %v6311
    %v6313 = vrcp.pop %v6253
    %v6314 = vmul.f32 1.0, %v6313
    %v6315 = vrcp.pop %v6254
    %v6316 = vmul.f32 1.0, %v6315
    %v6317 = vrcp.pop %v6255
    %v6318 = vmul.f32 1.0, %v6317
    %v6319 = vrcp.pop %v6256
    %v6320 = vmul.f32 1.0, %v6319
    %v6321 = vadd.f32 %v5520, %v5684
    %v6322 = vadd.f32 %v5523, %v5690
    %v6323 = vadd.f32 %v5526, %v5696
    %v6324 = vadd.f32 %v5529, %v5702
    %v6325 = vadd.f32 %v5532, %v5708
    %v6326 = vadd.f32 %v5535, %v5714
    %v6327 = vadd.f32 %v5538, %v5720
    %v6328 = vadd.f32 %v5541, %v5726
    %v6329 = vadd.f32 %v5544, %v5732
    %v6330 = vadd.f32 %v5547, %v5738
    %v6331 = vadd.f32 %v5550, %v5744
    %v6332 = vadd.f32 %v5553, %v5750
    %v6333 = vadd.f32 %v5556, %v5756
    %v6334 = vadd.f32 %v5559, %v5762
    %v6335 = vadd.f32 %v5562, %v5768
    %v6336 = vadd.f32 %v5565, %v5774
    %v6337 = vadd.f32 %v5568, %v5780
    %v6338 = vadd.f32 %v5571, %v5786
    %v6339 = vadd.f32 %v5574, %v5792
    %v6340 = vadd.f32 %v5577, %v5798
    %v6341 = vadd.f32 %v5580, %v5804
    %v6342 = vadd.f32 %v5583, %v5810
    %v6343 = vadd.f32 %v5586, %v5816
    %v6344 = vadd.f32 %v5589, %v5822
    %v6345 = vadd.f32 %v5592, %v5828
    %v6346 = vadd.f32 %v5595, %v5834
    %v6347 = vadd.f32 %v5598, %v5840
    %v6348 = vadd.f32 %v5601, %v5846
    %v6349 = vadd.f32 %v5604, %v5852
    %v6350 = vadd.f32 %v5607, %v5858
    %v6351 = vadd.f32 %v5610, %v5864
    %v6352 = vadd.f32 %v5613, %v5870
    %v6353 = vxor.u32 %v6321, 2147483648
    %v6354 = vxor.u32 %v6322, 2147483648
    %v6355 = vxor.u32 %v6323, 2147483648
    %v6356 = vxor.u32 %v6324, 2147483648
    %v6357 = vxor.u32 %v6325, 2147483648
    %v6358 = vxor.u32 %v6326, 2147483648
    %v6359 = vxor.u32 %v6327, 2147483648
    %v6360 = vxor.u32 %v6328, 2147483648
    %v6361 = vxor.u32 %v6329, 2147483648
    %v6362 = vxor.u32 %v6330, 2147483648
    %v6363 = vxor.u32 %v6331, 2147483648
    %v6364 = vxor.u32 %v6332, 2147483648
    %v6365 = vxor.u32 %v6333, 2147483648
    %v6366 = vxor.u32 %v6334, 2147483648
    %v6367 = vxor.u32 %v6335, 2147483648
    %v6368 = vxor.u32 %v6336, 2147483648
    %v6369 = vxor.u32 %v6337, 2147483648
    %v6370 = vxor.u32 %v6338, 2147483648
    %v6371 = vxor.u32 %v6339, 2147483648
    %v6372 = vxor.u32 %v6340, 2147483648
    %v6373 = vxor.u32 %v6341, 2147483648
    %v6374 = vxor.u32 %v6342, 2147483648
    %v6375 = vxor.u32 %v6343, 2147483648
    %v6376 = vxor.u32 %v6344, 2147483648
    %v6377 = vxor.u32 %v6345, 2147483648
    %v6378 = vxor.u32 %v6346, 2147483648
    %v6379 = vxor.u32 %v6347, 2147483648
    %v6380 = vxor.u32 %v6348, 2147483648
    %v6381 = vxor.u32 %v6349, 2147483648
    %v6382 = vxor.u32 %v6350, 2147483648
    %v6383 = vxor.u32 %v6351, 2147483648
    %v6384 = vxor.u32 %v6352, 2147483648
    %v6385 = vmul.f32 %v6353, 1.442695
    %v6386 = vpow.pop %v6385
    %v6387 = vmul.f32 %v6354, 1.442695
    %v6388 = vpow.pop %v6387
    %v6389 = vmul.f32 %v6355, 1.442695
    %v6390 = vpow.pop %v6389
    %v6391 = vmul.f32 %v6356, 1.442695
    %v6392 = vpow.pop %v6391
    %v6393 = vmul.f32 %v6357, 1.442695
    %v6394 = vpow.pop %v6393
    %v6395 = vmul.f32 %v6358, 1.442695
    %v6396 = vpow.pop %v6395
    %v6397 = vmul.f32 %v6359, 1.442695
    %v6398 = vpow.pop %v6397
    %v6399 = vmul.f32 %v6360, 1.442695
    %v6400 = vpow.pop %v6399
    %v6401 = vmul.f32 %v6361, 1.442695
    %v6402 = vpow.pop %v6401
    %v6403 = vmul.f32 %v6362, 1.442695
    %v6404 = vpow.pop %v6403
    %v6405 = vmul.f32 %v6363, 1.442695
    %v6406 = vpow.pop %v6405
    %v6407 = vmul.f32 %v6364, 1.442695
    %v6408 = vpow.pop %v6407
    %v6409 = vmul.f32 %v6365, 1.442695
    %v6410 = vpow.pop %v6409
    %v6411 = vmul.f32 %v6366, 1.442695
    %v6412 = vpow.pop %v6411
    %v6413 = vmul.f32 %v6367, 1.442695
    %v6414 = vpow.pop %v6413
    %v6415 = vmul.f32 %v6368, 1.442695
    %v6416 = vpow.pop %v6415
    %v6417 = vmul.f32 %v6369, 1.442695
    %v6418 = vpow.pop %v6417
    %v6419 = vmul.f32 %v6370, 1.442695
    %v6420 = vpow.pop %v6419
    %v6421 = vmul.f32 %v6371, 1.442695
    %v6422 = vpow.pop %v6421
    %v6423 = vmul.f32 %v6372, 1.442695
    %v6424 = vpow.pop %v6423
    %v6425 = vmul.f32 %v6373, 1.442695
    %v6426 = vpow.pop %v6425
    %v6427 = vmul.f32 %v6374, 1.442695
    %v6428 = vpow.pop %v6427
    %v6429 = vmul.f32 %v6375, 1.442695
    %v6430 = vpow.pop %v6429
    %v6431 = vmul.f32 %v6376, 1.442695
    %v6432 = vpow.pop %v6431
    %v6433 = vmul.f32 %v6377, 1.442695
    %v6434 = vpow.pop %v6433
    %v6435 = vmul.f32 %v6378, 1.442695
    %v6436 = vpow.pop %v6435
    %v6437 = vmul.f32 %v6379, 1.442695
    %v6438 = vpow.pop %v6437
    %v6439 = vmul.f32 %v6380, 1.442695
    %v6440 = vpow.pop %v6439
    %v6441 = vmul.f32 %v6381, 1.442695
    %v6442 = vpow.pop %v6441
    %v6443 = vmul.f32 %v6382, 1.442695
    %v6444 = vpow.pop %v6443
    %v6445 = vmul.f32 %v6383, 1.442695
    %v6446 = vpow.pop %v6445
    %v6447 = vmul.f32 %v6384, 1.442695
    %v6448 = vpow.pop %v6447
    %v6449 = vadd.f32 %v6386, 1.0
    %v6450 = vadd.f32 %v6388, 1.0
    %v6451 = vadd.f32 %v6390, 1.0
    %v6452 = vadd.f32 %v6392, 1.0
    %v6453 = vadd.f32 %v6394, 1.0
    %v6454 = vadd.f32 %v6396, 1.0
    %v6455 = vadd.f32 %v6398, 1.0
    %v6456 = vadd.f32 %v6400, 1.0
    %v6457 = vadd.f32 %v6402, 1.0
    %v6458 = vadd.f32 %v6404, 1.0
    %v6459 = vadd.f32 %v6406, 1.0
    %v6460 = vadd.f32 %v6408, 1.0
    %v6461 = vadd.f32 %v6410, 1.0
    %v6462 = vadd.f32 %v6412, 1.0
    %v6463 = vadd.f32 %v6414, 1.0
    %v6464 = vadd.f32 %v6416, 1.0
    %v6465 = vadd.f32 %v6418, 1.0
    %v6466 = vadd.f32 %v6420, 1.0
    %v6467 = vadd.f32 %v6422, 1.0
    %v6468 = vadd.f32 %v6424, 1.0
    %v6469 = vadd.f32 %v6426, 1.0
    %v6470 = vadd.f32 %v6428, 1.0
    %v6471 = vadd.f32 %v6430, 1.0
    %v6472 = vadd.f32 %v6432, 1.0
    %v6473 = vadd.f32 %v6434, 1.0
    %v6474 = vadd.f32 %v6436, 1.0
    %v6475 = vadd.f32 %v6438, 1.0
    %v6476 = vadd.f32 %v6440, 1.0
    %v6477 = vadd.f32 %v6442, 1.0
    %v6478 = vadd.f32 %v6444, 1.0
    %v6479 = vadd.f32 %v6446, 1.0
    %v6480 = vadd.f32 %v6448, 1.0
    %v6481 = vrcp.pop %v6449
    %v6482 = vmul.f32 1.0, %v6481
    %v6483 = vrcp.pop %v6450
    %v6484 = vmul.f32 1.0, %v6483
    %v6485 = vrcp.pop %v6451
    %v6486 = vmul.f32 1.0, %v6485
    %v6487 = vrcp.pop %v6452
    %v6488 = vmul.f32 1.0, %v6487
    %v6489 = vrcp.pop %v6453
    %v6490 = vmul.f32 1.0, %v6489
    %v6491 = vrcp.pop %v6454
    %v6492 = vmul.f32 1.0, %v6491
    %v6493 = vrcp.pop %v6455
    %v6494 = vmul.f32 1.0, %v6493
    %v6495 = vrcp.pop %v6456
    %v6496 = vmul.f32 1.0, %v6495
    %v6497 = vrcp.pop %v6457
    %v6498 = vmul.f32 1.0, %v6497
    %v6499 = vrcp.pop %v6458
    %v6500 = vmul.f32 1.0, %v6499
    %v6501 = vrcp.pop %v6459
    %v6502 = vmul.f32 1.0, %v6501
    %v6503 = vrcp.pop %v6460
    %v6504 = vmul.f32 1.0, %v6503
    %v6505 = vrcp.pop %v6461
    %v6506 = vmul.f32 1.0, %v6505
    %v6507 = vrcp.pop %v6462
    %v6508 = vmul.f32 1.0, %v6507
    %v6509 = vrcp.pop %v6463
    %v6510 = vmul.f32 1.0, %v6509
    %v6511 = vrcp.pop %v6464
    %v6512 = vmul.f32 1.0, %v6511
    %v6513 = vrcp.pop %v6465
    %v6514 = vmul.f32 1.0, %v6513
    %v6515 = vrcp.pop %v6466
    %v6516 = vmul.f32 1.0, %v6515
    %v6517 = vrcp.pop %v6467
    %v6518 = vmul.f32 1.0, %v6517
    %v6519 = vrcp.pop %v6468
    %v6520 = vmul.f32 1.0, %v6519
    %v6521 = vrcp.pop %v6469
    %v6522 = vmul.f32 1.0, %v6521
    %v6523 = vrcp.pop %v6470
    %v6524 = vmul.f32 1.0, %v6523
    %v6525 = vrcp.pop %v6471
    %v6526 = vmul.f32 1.0, %v6525
    %v6527 = vrcp.pop %v6472
    %v6528 = vmul.f32 1.0, %v6527
    %v6529 = vrcp.pop %v6473
    %v6530 = vmul.f32 1.0, %v6529
    %v6531 = vrcp.pop %v6474
    %v6532 = vmul.f32 1.0, %v6531
    %v6533 = vrcp.pop %v6475
    %v6534 = vmul.f32 1.0, %v6533
    %v6535 = vrcp.pop %v6476
    %v6536 = vmul.f32 1.0, %v6535
    %v6537 = vrcp.pop %v6477
    %v6538 = vmul.f32 1.0, %v6537
    %v6539 = vrcp.pop %v6478
    %v6540 = vmul.f32 1.0, %v6539
    %v6541 = vrcp.pop %v6479
    %v6542 = vmul.f32 1.0, %v6541
    %v6543 = vrcp.pop %v6480
    %v6544 = vmul.f32 1.0, %v6543
    %v6545 = vmul.f32 %v6258, %v5939
    %v6546 = vmul.f32 %v6260, %v5944
    %v6547 = vmul.f32 %v6262, %v5949
    %v6548 = vmul.f32 %v6264, %v5954
    %v6549 = vmul.f32 %v6266, %v5959
    %v6550 = vmul.f32 %v6268, %v5964
    %v6551 = vmul.f32 %v6270, %v5969
    %v6552 = vmul.f32 %v6272, %v5974
    %v6553 = vmul.f32 %v6274, %v5979
    %v6554 = vmul.f32 %v6276, %v5984
    %v6555 = vmul.f32 %v6278, %v5989
    %v6556 = vmul.f32 %v6280, %v5994
    %v6557 = vmul.f32 %v6282, %v5999
    %v6558 = vmul.f32 %v6284, %v6004
    %v6559 = vmul.f32 %v6286, %v6009
    %v6560 = vmul.f32 %v6288, %v6014
    %v6561 = vmul.f32 %v6290, %v6019
    %v6562 = vmul.f32 %v6292, %v6024
    %v6563 = vmul.f32 %v6294, %v6029
    %v6564 = vmul.f32 %v6296, %v6034
    %v6565 = vmul.f32 %v6298, %v6039
    %v6566 = vmul.f32 %v6300, %v6044
    %v6567 = vmul.f32 %v6302, %v6049
    %v6568 = vmul.f32 %v6304, %v6054
    %v6569 = vmul.f32 %v6306, %v6059
    %v6570 = vmul.f32 %v6308, %v6064
    %v6571 = vmul.f32 %v6310, %v6069
    %v6572 = vmul.f32 %v6312, %v6074
    %v6573 = vmul.f32 %v6314, %v6079
    %v6574 = vmul.f32 %v6316, %v6084
    %v6575 = vmul.f32 %v6318, %v6089
    %v6576 = vmul.f32 %v6320, %v6094
    %v6577 = vadd.f32 %v5521, %v6545
    %v6578 = vadd.f32 %v5524, %v6546
    %v6579 = vadd.f32 %v5527, %v6547
    %v6580 = vadd.f32 %v5530, %v6548
    %v6581 = vadd.f32 %v5533, %v6549
    %v6582 = vadd.f32 %v5536, %v6550
    %v6583 = vadd.f32 %v5539, %v6551
    %v6584 = vadd.f32 %v5542, %v6552
    %v6585 = vadd.f32 %v5545, %v6553
    %v6586 = vadd.f32 %v5548, %v6554
    %v6587 = vadd.f32 %v5551, %v6555
    %v6588 = vadd.f32 %v5554, %v6556
    %v6589 = vadd.f32 %v5557, %v6557
    %v6590 = vadd.f32 %v5560, %v6558
    %v6591 = vadd.f32 %v5563, %v6559
    %v6592 = vadd.f32 %v5566, %v6560
    %v6593 = vadd.f32 %v5569, %v6561
    %v6594 = vadd.f32 %v5572, %v6562
    %v6595 = vadd.f32 %v5575, %v6563
    %v6596 = vadd.f32 %v5578, %v6564
    %v6597 = vadd.f32 %v5581, %v6565
    %v6598 = vadd.f32 %v5584, %v6566
    %v6599 = vadd.f32 %v5587, %v6567
    %v6600 = vadd.f32 %v5590, %v6568
    %v6601 = vadd.f32 %v5593, %v6569
    %v6602 = vadd.f32 %v5596, %v6570
    %v6603 = vadd.f32 %v5599, %v6571
    %v6604 = vadd.f32 %v5602, %v6572
    %v6605 = vadd.f32 %v5605, %v6573
    %v6606 = vadd.f32 %v5608, %v6574
    %v6607 = vadd.f32 %v5611, %v6575
    %v6608 = vadd.f32 %v5614, %v6576
    %v6609 = vtanh.pop %v6577
    %v6610 = vtanh.pop %v6578
    %v6611 = vtanh.pop %v6579
    %v6612 = vtanh.pop %v6580
    %v6613 = vtanh.pop %v6581
    %v6614 = vtanh.pop %v6582
    %v6615 = vtanh.pop %v6583
    %v6616 = vtanh.pop %v6584
    %v6617 = vtanh.pop %v6585
    %v6618 = vtanh.pop %v6586
    %v6619 = vtanh.pop %v6587
    %v6620 = vtanh.pop %v6588
    %v6621 = vtanh.pop %v6589
    %v6622 = vtanh.pop %v6590
    %v6623 = vtanh.pop %v6591
    %v6624 = vtanh.pop %v6592
    %v6625 = vtanh.pop %v6593
    %v6626 = vtanh.pop %v6594
    %v6627 = vtanh.pop %v6595
    %v6628 = vtanh.pop %v6596
    %v6629 = vtanh.pop %v6597
    %v6630 = vtanh.pop %v6598
    %v6631 = vtanh.pop %v6599
    %v6632 = vtanh.pop %v6600
    %v6633 = vtanh.pop %v6601
    %v6634 = vtanh.pop %v6602
    %v6635 = vtanh.pop %v6603
    %v6636 = vtanh.pop %v6604
    %v6637 = vtanh.pop %v6605
    %v6638 = vtanh.pop %v6606
    %v6639 = vtanh.pop %v6607
    %v6640 = vtanh.pop %v6608
    %v6641 = vsub.f32 1.0, %v6482
    %v6642 = vsub.f32 1.0, %v6484
    %v6643 = vsub.f32 1.0, %v6486
    %v6644 = vsub.f32 1.0, %v6488
    %v6645 = vsub.f32 1.0, %v6490
    %v6646 = vsub.f32 1.0, %v6492
    %v6647 = vsub.f32 1.0, %v6494
    %v6648 = vsub.f32 1.0, %v6496
    %v6649 = vsub.f32 1.0, %v6498
    %v6650 = vsub.f32 1.0, %v6500
    %v6651 = vsub.f32 1.0, %v6502
    %v6652 = vsub.f32 1.0, %v6504
    %v6653 = vsub.f32 1.0, %v6506
    %v6654 = vsub.f32 1.0, %v6508
    %v6655 = vsub.f32 1.0, %v6510
    %v6656 = vsub.f32 1.0, %v6512
    %v6657 = vsub.f32 1.0, %v6514
    %v6658 = vsub.f32 1.0, %v6516
    %v6659 = vsub.f32 1.0, %v6518
    %v6660 = vsub.f32 1.0, %v6520
    %v6661 = vsub.f32 1.0, %v6522
    %v6662 = vsub.f32 1.0, %v6524
    %v6663 = vsub.f32 1.0, %v6526
    %v6664 = vsub.f32 1.0, %v6528
    %v6665 = vsub.f32 1.0, %v6530
    %v6666 = vsub.f32 1.0, %v6532
    %v6667 = vsub.f32 1.0, %v6534
    %v6668 = vsub.f32 1.0, %v6536
    %v6669 = vsub.f32 1.0, %v6538
    %v6670 = vsub.f32 1.0, %v6540
    %v6671 = vsub.f32 1.0, %v6542
    %v6672 = vsub.f32 1.0, %v6544
    %v6673 = vmul.f32 %v6641, %v3623
    %v6674 = vmul.f32 %v6642, %v3624
    %v6675 = vmul.f32 %v6643, %v3625
    %v6676 = vmul.f32 %v6644, %v3626
    %v6677 = vmul.f32 %v6645, %v3627
    %v6678 = vmul.f32 %v6646, %v3628
    %v6679 = vmul.f32 %v6647, %v3629
    %v6680 = vmul.f32 %v6648, %v3630
    %v6681 = vmul.f32 %v6649, %v3631
    %v6682 = vmul.f32 %v6650, %v3632
    %v6683 = vmul.f32 %v6651, %v3633
    %v6684 = vmul.f32 %v6652, %v3634
    %v6685 = vmul.f32 %v6653, %v3635
    %v6686 = vmul.f32 %v6654, %v3636
    %v6687 = vmul.f32 %v6655, %v3637
    %v6688 = vmul.f32 %v6656, %v3638
    %v6689 = vmul.f32 %v6657, %v3639
    %v6690 = vmul.f32 %v6658, %v3640
    %v6691 = vmul.f32 %v6659, %v3641
    %v6692 = vmul.f32 %v6660, %v3642
    %v6693 = vmul.f32 %v6661, %v3643
    %v6694 = vmul.f32 %v6662, %v3644
    %v6695 = vmul.f32 %v6663, %v3645
    %v6696 = vmul.f32 %v6664, %v3646
    %v6697 = vmul.f32 %v6665, %v3647
    %v6698 = vmul.f32 %v6666, %v3648
    %v6699 = vmul.f32 %v6667, %v3649
    %v6700 = vmul.f32 %v6668, %v3650
    %v6701 = vmul.f32 %v6669, %v3651
    %v6702 = vmul.f32 %v6670, %v3652
    %v6703 = vmul.f32 %v6671, %v3653
    %v6704 = vmul.f32 %v6672, %v3654
    %v6705 = vmul.f32 %v6482, %v6609
    %v6706 = vmul.f32 %v6484, %v6610
    %v6707 = vmul.f32 %v6486, %v6611
    %v6708 = vmul.f32 %v6488, %v6612
    %v6709 = vmul.f32 %v6490, %v6613
    %v6710 = vmul.f32 %v6492, %v6614
    %v6711 = vmul.f32 %v6494, %v6615
    %v6712 = vmul.f32 %v6496, %v6616
    %v6713 = vmul.f32 %v6498, %v6617
    %v6714 = vmul.f32 %v6500, %v6618
    %v6715 = vmul.f32 %v6502, %v6619
    %v6716 = vmul.f32 %v6504, %v6620
    %v6717 = vmul.f32 %v6506, %v6621
    %v6718 = vmul.f32 %v6508, %v6622
    %v6719 = vmul.f32 %v6510, %v6623
    %v6720 = vmul.f32 %v6512, %v6624
    %v6721 = vmul.f32 %v6514, %v6625
    %v6722 = vmul.f32 %v6516, %v6626
    %v6723 = vmul.f32 %v6518, %v6627
    %v6724 = vmul.f32 %v6520, %v6628
    %v6725 = vmul.f32 %v6522, %v6629
    %v6726 = vmul.f32 %v6524, %v6630
    %v6727 = vmul.f32 %v6526, %v6631
    %v6728 = vmul.f32 %v6528, %v6632
    %v6729 = vmul.f32 %v6530, %v6633
    %v6730 = vmul.f32 %v6532, %v6634
    %v6731 = vmul.f32 %v6534, %v6635
    %v6732 = vmul.f32 %v6536, %v6636
    %v6733 = vmul.f32 %v6538, %v6637
    %v6734 = vmul.f32 %v6540, %v6638
    %v6735 = vmul.f32 %v6542, %v6639
    %v6736 = vmul.f32 %v6544, %v6640
    %v6737 = vadd.f32 %v6673, %v6705
    %v6738 = vadd.f32 %v6674, %v6706
    %v6739 = vadd.f32 %v6675, %v6707
    %v6740 = vadd.f32 %v6676, %v6708
    %v6741 = vadd.f32 %v6677, %v6709
    %v6742 = vadd.f32 %v6678, %v6710
    %v6743 = vadd.f32 %v6679, %v6711
    %v6744 = vadd.f32 %v6680, %v6712
    %v6745 = vadd.f32 %v6681, %v6713
    %v6746 = vadd.f32 %v6682, %v6714
    %v6747 = vadd.f32 %v6683, %v6715
    %v6748 = vadd.f32 %v6684, %v6716
    %v6749 = vadd.f32 %v6685, %v6717
    %v6750 = vadd.f32 %v6686, %v6718
    %v6751 = vadd.f32 %v6687, %v6719
    %v6752 = vadd.f32 %v6688, %v6720
    %v6753 = vadd.f32 %v6689, %v6721
    %v6754 = vadd.f32 %v6690, %v6722
    %v6755 = vadd.f32 %v6691, %v6723
    %v6756 = vadd.f32 %v6692, %v6724
    %v6757 = vadd.f32 %v6693, %v6725
    %v6758 = vadd.f32 %v6694, %v6726
    %v6759 = vadd.f32 %v6695, %v6727
    %v6760 = vadd.f32 %v6696, %v6728
    %v6761 = vadd.f32 %v6697, %v6729
    %v6762 = vadd.f32 %v6698, %v6730
    %v6763 = vadd.f32 %v6699, %v6731
    %v6764 = vadd.f32 %v6700, %v6732
    %v6765 = vadd.f32 %v6701, %v6733
    %v6766 = vadd.f32 %v6702, %v6734
    %v6767 = vadd.f32 %v6703, %v6735
    %v6768 = vadd.f32 %v6704, %v6736
    %6769 = vst [vmem:[#allocation14] sm:$0xff] %v6737
    %6770 = vst [vmem:[#allocation14 + $0x8] sm:$0xff] %v6738
    %6771 = vst [vmem:[#allocation14 + $0x10] sm:$0xff] %v6739
    %6772 = vst [vmem:[#allocation14 + $0x18] sm:$0xff] %v6740
    %6773 = vst [vmem:[#allocation14 + $0x20] sm:$0xff] %v6741
    %6774 = vst [vmem:[#allocation14 + $0x28] sm:$0xff] %v6742
    %6775 = vst [vmem:[#allocation14 + $0x30] sm:$0xff] %v6743
    %6776 = vst [vmem:[#allocation14 + $0x38] sm:$0xff] %v6744
    %6777 = vst [vmem:[#allocation14 + $0x40] sm:$0xff] %v6745
    %6778 = vst [vmem:[#allocation14 + $0x48] sm:$0xff] %v6746
    %6779 = vst [vmem:[#allocation14 + $0x50] sm:$0xff] %v6747
    %6780 = vst [vmem:[#allocation14 + $0x58] sm:$0xff] %v6748
    %6781 = vst [vmem:[#allocation14 + $0x60] sm:$0xff] %v6749
    %6782 = vst [vmem:[#allocation14 + $0x68] sm:$0xff] %v6750
    %6783 = vst [vmem:[#allocation14 + $0x70] sm:$0xff] %v6751
    %6784 = vst [vmem:[#allocation14 + $0x78] sm:$0xff] %v6752
    %6785 = vst [vmem:[#allocation14 + $0x80] sm:$0xff] %v6753
    %6786 = vst [vmem:[#allocation14 + $0x88] sm:$0xff] %v6754
    %6787 = vst [vmem:[#allocation14 + $0x90] sm:$0xff] %v6755
    %6788 = vst [vmem:[#allocation14 + $0x98] sm:$0xff] %v6756
    %6789 = vst [vmem:[#allocation14 + $0xa0] sm:$0xff] %v6757
    %6790 = vst [vmem:[#allocation14 + $0xa8] sm:$0xff] %v6758
    %6791 = vst [vmem:[#allocation14 + $0xb0] sm:$0xff] %v6759
    %6792 = vst [vmem:[#allocation14 + $0xb8] sm:$0xff] %v6760
    %6793 = vst [vmem:[#allocation14 + $0xc0] sm:$0xff] %v6761
    %6794 = vst [vmem:[#allocation14 + $0xc8] sm:$0xff] %v6762
    %6795 = vst [vmem:[#allocation14 + $0xd0] sm:$0xff] %v6763
    %6796 = vst [vmem:[#allocation14 + $0xd8] sm:$0xff] %v6764
    %6797 = vst [vmem:[#allocation14 + $0xe0] sm:$0xff] %v6765
    %6798 = vst [vmem:[#allocation14 + $0xe8] sm:$0xff] %v6766
    %6799 = vst [vmem:[#allocation14 + $0xf0] sm:$0xff] %v6767
    %6800 = vst [vmem:[#allocation14 + $0xf8] sm:$0xff] %v6768
    // Predicated region
    $region86: #{tpu_custom_call.1} parent=1 // pred_check
      _
    $region87: #{tpu_custom_call.1} parent=1 // pred_check_branch
      %6802 = sbr.rel (0) target = $region89
    $region88: #{tpu_custom_call.1} parent=1 // pred_region
      %s6804 = ssub.s32 4096, 4096
      %6805 = vsyncadd [#allocation4], %s6804
      %s6806 = sshll.u32 [#allocation14], 4
      %s6807 = int_to_ptr.vmem [resolvable:$true] %s6806
      %6812 = dma.vmem_to_hbm [thread:$0]  %s6807, 4096, %s14, [#allocation4], 128, 128, 8
    $region89: #{tpu_custom_call.1} parent=1 // pred_fallthru
      _
    // Predicated region
    $region90: #{tpu_custom_call.1} parent=1 // pred_check
      _
    $region91: #{tpu_custom_call.1} parent=1 // pred_check_branch
      %6814 = sbr.rel (0) target = $region93
    $region92: #{tpu_custom_call.1} parent=1 // pred_region
      %6815 = dma.done [#allocation4], 4096
    $region93: #{tpu_custom_call.1} parent=1 // pred_fallthru
      _
    %6816 = vsyncpa [#allocation3], 1
    %6817 = vsyncpa [#allocation6], 1
    %6818 = vsyncpa [#allocation9], 1
    %6819 = vsyncpa [#allocation12], 1
    %6820 = vsyncpa [#allocation4], 1

</llo_original>
